<compile_context>
chip_gen: v6e
topology: v6e:2x2x1
jax: 0.10.0
libtpu: 0.0.40
codegen_flags: <defaults>
</compile_context>

<pallas_src>
import math
import functools

import jax
import jax.numpy as jnp
from jax.experimental import pallas as pl
from jax.experimental.pallas import tpu as pltpu

# ---------------- config consistent with the ViT forward ----------------
IMAGE_SIZE = 16        # config.image_size
PATCH = 4              # config.patch_size
CHANNELS = 3           # RGB input
NUM_CLASSES = 8        # config.num_classes
DIM = 32               # config.hidden_size
DEPTH = 2              # config.num_hidden_layers
HEADS = 4              # config.num_attention_heads
MLP_DIM = 64           # config.intermediate_size
HEAD_DIM = DIM // HEADS
LN_EPS = 1e-5          # torch.nn.LayerNorm default

N_PATCHES = (IMAGE_SIZE // PATCH) ** 2
SEQ = N_PATCHES + 1
PATCH_DIM = CHANNELS * PATCH * PATCH


# ---------------- in-kernel math helpers ----------------
def _erf(x):
    # Abramowitz & Stegun 7.1.26 rational approximation.  The divide is routed
    # to the EUP via approx reciprocal (inference-grade: ~1e-4 GELU error).
    a1, a2, a3, a4, a5 = 0.254829592, -0.284496736, 1.421413741, -1.453152027, 1.061405429
    p = 0.3275911
    ax = jnp.abs(x)
    t = pl.reciprocal(1.0 + p * ax, approx=True)
    poly = ((((a5 * t + a4) * t + a3) * t + a2) * t + a1) * t
    y = 1.0 - poly * jnp.exp(-ax * ax)
    return jnp.where(x >= 0.0, y, -y)


def _gelu(x):
    return 0.5 * x * (1.0 + _erf(x * (1.0 / math.sqrt(2.0))))


def _layernorm(x, g, b):
    mu = jnp.mean(x, axis=-1, keepdims=True)
    var = jnp.mean(jnp.square(x - mu), axis=-1, keepdims=True)
    return (x - mu) * jax.lax.rsqrt(var + LN_EPS) * g + b


# ---------------- fused forward kernel (no grid, single invocation) ----------------
def _vit_fused_kernel(
        # resident inputs
        patches_ref, addend_ref, patch_w_ref,
        # stacked (DEPTH, ...) per-layer weights, indexed with a static layer id
        ln1_g_ref, ln1_b_ref, qkv_w_ref, qkv_b_ref, proj_w_ref, proj_b_ref,
        ln2_g_ref, ln2_b_ref, fc1_w_ref, fc1_b_ref, fc2_w_ref, fc2_b_ref,
        # epilogue params
        lnf_g_ref, lnf_b_ref, fc_w_ref, fc_b_ref,
        # output + scratch
        out_ref, attn_ref,
        *, batch):
    scale = 1.0 / math.sqrt(HEAD_DIM)

    # ---- patch embedding + CLS + positional embedding: one (B*S, PD)@(PD, D) ----
    # CLS-slot rows of `patches` are zero, so the matmul contributes 0 there; the
    # addend supplies cls_token+pos[0] (row 0 of each image) and patch_bias+pos[i].
    x = jnp.dot(patches_ref[...], patch_w_ref[...],
                preferred_element_type=jnp.float32) + addend_ref[...]      # (B*S, D)

    # ---- encoder: DEPTH pre-LN blocks, fully unrolled (weights all resident) ----
    for l in range(DEPTH):
        # --- multi-head self-attention ---
        h = _layernorm(x, ln1_g_ref[l], ln1_b_ref[l])
        qkv = jnp.dot(h, qkv_w_ref[l],
                      preferred_element_type=jnp.float32) + qkv_b_ref[l]   # (B*S, 3D)

        # gather per-(image, head) Q/K/V into (B*H, S, head_dim) batches
        qs, ks, vs = [], [], []
        for b in range(batch):
            r0 = b * SEQ
            for hh in range(HEADS):
                lo = hh * HEAD_DIM
                qs.append(qkv[r0:r0 + SEQ, lo:lo + HEAD_DIM])
                ks.append(qkv[r0:r0 + SEQ, DIM + lo:DIM + lo + HEAD_DIM])
                vs.append(qkv[r0:r0 + SEQ, 2 * DIM + lo:2 * DIM + lo + HEAD_DIM])
        q3 = jnp.stack(qs, axis=0)                                          # (B*H, S, hd)
        k3 = jnp.stack(ks, axis=0)
        v3 = jnp.stack(vs, axis=0)

        # batched scores / softmax / PV (one einsum each, one softmax total)
        s = jnp.einsum('bqd,bkd->bqk', q3, k3,
                       preferred_element_type=jnp.float32) * scale          # (B*H, S, S)
        s = s - jnp.max(s, axis=-1, keepdims=True)
        p = jnp.exp(s)
        p = p * pl.reciprocal(jnp.sum(p, axis=-1, keepdims=True), approx=True)
        o3 = jnp.einsum('bqk,bkd->bqd', p, v3,
                        preferred_element_type=jnp.float32)                 # (B*H, S, hd)

        # head-concat via static lane-slice stores into the (B*S, D) slab,
        # then ONE K=DIM projection matmul (instead of B*H K=8 matmuls).
        for b in range(batch):
            r0 = b * SEQ
            for hh in range(HEADS):
                lo = hh * HEAD_DIM
                attn_ref[r0:r0 + SEQ, lo:lo + HEAD_DIM] = o3[b * HEADS + hh]

        x = x + jnp.dot(attn_ref[...], proj_w_ref[l],
                        preferred_element_type=jnp.float32) + proj_b_ref[l]

        # --- MLP: Linear -> GELU -> Linear (dropout == identity) ---
        h = _layernorm(x, ln2_g_ref[l], ln2_b_ref[l])
        h = _gelu(jnp.dot(h, fc1_w_ref[l],
                          preferred_element_type=jnp.float32) + fc1_b_ref[l])
        x = x + jnp.dot(h, fc2_w_ref[l],
                        preferred_element_type=jnp.float32) + fc2_b_ref[l]

    # ---- epilogue: final LN on CLS rows + fc head, one matmul + one store ----
    cls = jnp.concatenate([x[b * SEQ:b * SEQ + 1, :] for b in range(batch)], axis=0)  # (B, D)
    cls = _layernorm(cls, lnf_g_ref[...], lnf_b_ref[...])
    out_ref[...] = jnp.dot(cls, fc_w_ref[...],
                           preferred_element_type=jnp.float32) + fc_b_ref[...]


# ---------------- model ----------------
def init_params(key):
    ks = iter(jax.random.split(key, 6 + 8 * DEPTH))

    def xavier(k, fin, fout):
        lim = math.sqrt(6.0 / (fin + fout))
        return jax.random.uniform(k, (fin, fout), jnp.float32, -lim, lim)

    def bias(k, n):
        return jax.random.normal(k, (1, n), jnp.float32) * 1e-6

    params = {
        "patch_w": xavier(next(ks), PATCH_DIM, DIM),   # flattened Conv2d weight (c,ph,pw)
        "patch_b": bias(next(ks), DIM).reshape(DIM),
        "cls_token": jax.random.normal(next(ks), (1, 1, DIM), jnp.float32),
        "pos_emb": jax.random.normal(next(ks), (1, SEQ, DIM), jnp.float32),
        "lnf_g": jnp.ones((DIM,), jnp.float32),
        "lnf_b": jnp.zeros((DIM,), jnp.float32),
        "fc_w": xavier(next(ks), DIM, NUM_CLASSES),
        "fc_b": bias(next(ks), NUM_CLASSES).reshape(NUM_CLASSES),
    }

    per_layer = []
    for _ in range(DEPTH):
        per_layer.append({
            "ln1_g": jnp.ones((1, DIM), jnp.float32),
            "ln1_b": jnp.zeros((1, DIM), jnp.float32),
            "qkv_w": xavier(next(ks), DIM, 3 * DIM),
            "qkv_b": bias(next(ks), 3 * DIM),
            "proj_w": xavier(next(ks), DIM, DIM),
            "proj_b": bias(next(ks), DIM),
            "ln2_g": jnp.ones((1, DIM), jnp.float32),
            "ln2_b": jnp.zeros((1, DIM), jnp.float32),
            "fc1_w": xavier(next(ks), DIM, MLP_DIM),
            "fc1_b": bias(next(ks), MLP_DIM),
            "fc2_w": xavier(next(ks), MLP_DIM, DIM),
            "fc2_b": bias(next(ks), DIM),
        })
    # Stack per-layer tensors into (DEPTH, ...) arrays; the kernel indexes them
    # with a static layer id (all layers are VMEM-resident, no per-layer DMA).
    params["layers"] = {name: jnp.stack([lyr[name] for lyr in per_layer], axis=0)
                        for name in per_layer[0]}
    return params


def backbone_forward(x, params):
    """Backbone('vit', config)(x): x is NCHW f32, returns (B, NUM_CLASSES) logits."""
    B, C, H, W = x.shape
    P, D = PATCH, DIM
    nH, nW = H // P, W // P
    N = nH * nW
    S = N + 1
    PD = C * P * P

    # --- patchify (feature order (c, ph, pw), matching a flattened Conv2d weight) ---
    patches = x.reshape(B, C, nH, P, nW, P).transpose(0, 2, 4, 1, 3, 5)
    patches = patches.reshape(B, N, PD)
    # zero row per image in the CLS slot, then flatten to a single (B*S, PD) slab
    patches = jnp.pad(patches, ((0, 0), (1, 0), (0, 0))).reshape(B * S, PD)

    # parameter-only additive slab:
    #   row 0 of each image = cls_token + pos[0]; rows 1.. = patch_bias + pos[1..]
    pos = params["pos_emb"][0]                                        # (S, D)
    addend = jnp.concatenate(
        [params["cls_token"].reshape(1, D) + pos[0:1],
         params["patch_b"].reshape(1, D) + pos[1:S]], axis=0)         # (S, D)
    addend = jnp.tile(addend, (B, 1))                                 # (B*S, D)

    L = params["layers"]
    kern = functools.partial(_vit_fused_kernel, batch=B)

    # No grid: everything (weights + activations, < 1 MiB) is resident in VMEM;
    # the only HBM writeback is the (B, NUM_CLASSES) logits.
    # TODO(synk): for large batch on v7x, add a leading "parallel" batch grid axis
    # so the two TensorCores each take a batch shard.
    return pl.pallas_call(
        kern,
        out_shape=jax.ShapeDtypeStruct((B, NUM_CLASSES), jnp.float32),
        scratch_shapes=[pltpu.VMEM((B * S, D), jnp.float32)],          # attention slab
    )(
        patches, addend, params["patch_w"],
        L["ln1_g"], L["ln1_b"], L["qkv_w"], L["qkv_b"],
        L["proj_w"], L["proj_b"], L["ln2_g"], L["ln2_b"],
        L["fc1_w"], L["fc1_b"], L["fc2_w"], L["fc2_b"],
        params["lnf_g"].reshape(1, D), params["lnf_b"].reshape(1, D),
        params["fc_w"], params["fc_b"].reshape(1, NUM_CLASSES),
    )


if __name__ == "__main__":
    key = jax.random.PRNGKey(0)
    pkey, xkey = jax.random.split(key)
    params = init_params(pkey)
    x = jax.random.normal(xkey, (2, CHANNELS, IMAGE_SIZE, IMAGE_SIZE), jnp.float32)

    logits = jax.jit(backbone_forward)(x, params)
    logits = jax.block_until_ready(logits)

    assert logits.shape == (2, NUM_CLASSES), logits.shape
    assert bool(jnp.all(jnp.isfinite(logits)))
    print("KERNEL_OK")
</pallas_src>

<mosaic_0001>
module attributes {stable_mosaic.version = 11 : i64} {
  func.func @_vit_fused_kernel(%arg0: memref<34x48xf32, #tpu.memory_space<vmem>>, %arg1: memref<34x32xf32, #tpu.memory_space<vmem>>, %arg2: memref<48x32xf32, #tpu.memory_space<vmem>>, %arg3: memref<2x1x32xf32, #tpu.memory_space<vmem>>, %arg4: memref<2x1x32xf32, #tpu.memory_space<vmem>>, %arg5: memref<2x32x96xf32, #tpu.memory_space<vmem>>, %arg6: memref<2x1x96xf32, #tpu.memory_space<vmem>>, %arg7: memref<2x32x32xf32, #tpu.memory_space<vmem>>, %arg8: memref<2x1x32xf32, #tpu.memory_space<vmem>>, %arg9: memref<2x1x32xf32, #tpu.memory_space<vmem>>, %arg10: memref<2x1x32xf32, #tpu.memory_space<vmem>>, %arg11: memref<2x32x64xf32, #tpu.memory_space<vmem>>, %arg12: memref<2x1x64xf32, #tpu.memory_space<vmem>>, %arg13: memref<2x64x32xf32, #tpu.memory_space<vmem>>, %arg14: memref<2x1x32xf32, #tpu.memory_space<vmem>>, %arg15: memref<1x32xf32, #tpu.memory_space<vmem>>, %arg16: memref<1x32xf32, #tpu.memory_space<vmem>>, %arg17: memref<32x8xf32, #tpu.memory_space<vmem>>, %arg18: memref<1x8xf32, #tpu.memory_space<vmem>>, %arg19: memref<2x8xf32, #tpu.memory_space<vmem>>, %arg20: memref<34x32xf32, #tpu.memory_space<vmem>>) attributes {dimension_semantics = [], scalar_prefetch = 0 : i64, scratch_operands = 1 : i64, tpu.core_type = #tpu.core_type<tc>} {
    %c0 = arith.constant 0 : index
    %c0_0 = arith.constant 0 : index
    %0 = vector.load %arg0[%c0, %c0_0] : memref<34x48xf32, #tpu.memory_space<vmem>>, vector<34x48xf32>
    %c0_1 = arith.constant 0 : index
    %c0_2 = arith.constant 0 : index
    %1 = vector.load %arg2[%c0_1, %c0_2] : memref<48x32xf32, #tpu.memory_space<vmem>>, vector<48x32xf32>
    %cst = arith.constant dense<0.000000e+00> : vector<34x32xf32>
    %2 = tpu.matmul %0, %1, %cst {dimension_numbers = #tpu.dot_dimension_numbers<[1], [0], [0], [1], [0, 0, 1, 1], [], []>} : vector<34x48xf32>, vector<48x32xf32>, vector<34x32xf32> -> vector<34x32xf32>
    %c0_3 = arith.constant 0 : index
    %c0_4 = arith.constant 0 : index
    %3 = vector.load %arg1[%c0_3, %c0_4] : memref<34x32xf32, #tpu.memory_space<vmem>>, vector<34x32xf32>
    %4 = arith.addf %2, %3 : vector<34x32xf32>
    %c0_5 = arith.constant 0 : index
    %c0_6 = arith.constant 0 : index
    %c0_7 = arith.constant 0 : index
    %5 = vector.load %arg3[%c0_5, %c0_6, %c0_7] : memref<2x1x32xf32, #tpu.memory_space<vmem>>, vector<1x1x32xf32>
    %6 = vector.shape_cast %5 : vector<1x1x32xf32> to vector<1x32xf32>
    %c0_8 = arith.constant 0 : index
    %c0_9 = arith.constant 0 : index
    %c0_10 = arith.constant 0 : index
    %7 = vector.load %arg4[%c0_8, %c0_9, %c0_10] : memref<2x1x32xf32, #tpu.memory_space<vmem>>, vector<1x1x32xf32>
    %8 = vector.shape_cast %7 : vector<1x1x32xf32> to vector<1x32xf32>
    %cst_11 = arith.constant dense<0.000000e+00> : vector<34xf32>
    %9 = vector.multi_reduction <add>, %4, %cst_11 [1] : vector<34x32xf32> to vector<34xf32>
    %10 = vector.shape_cast %9 : vector<34xf32> to vector<34x1xf32>
    %cst_12 = arith.constant 3.200000e+01 : f32
    %11 = vector.broadcast %cst_12 : f32 to vector<34x1xf32>
    %12 = arith.divf %10, %11 : vector<34x1xf32>
    %13 = vector.broadcast %12 : vector<34x1xf32> to vector<34x32xf32>
    %14 = arith.subf %4, %13 : vector<34x32xf32>
    %15 = arith.mulf %14, %14 : vector<34x32xf32>
    %cst_13 = arith.constant dense<0.000000e+00> : vector<34xf32>
    %16 = vector.multi_reduction <add>, %15, %cst_13 [1] : vector<34x32xf32> to vector<34xf32>
    %17 = vector.shape_cast %16 : vector<34xf32> to vector<34x1xf32>
    %cst_14 = arith.constant 3.200000e+01 : f32
    %18 = vector.broadcast %cst_14 : f32 to vector<34x1xf32>
    %19 = arith.divf %17, %18 : vector<34x1xf32>
    %20 = vector.broadcast %12 : vector<34x1xf32> to vector<34x32xf32>
    %21 = arith.subf %4, %20 : vector<34x32xf32>
    %cst_15 = arith.constant 9.99999974E-6 : f32
    %22 = vector.broadcast %cst_15 : f32 to vector<34x1xf32>
    %23 = arith.addf %19, %22 : vector<34x1xf32>
    %24 = math.rsqrt %23 : vector<34x1xf32>
    %25 = vector.broadcast %24 : vector<34x1xf32> to vector<34x32xf32>
    %26 = arith.mulf %21, %25 : vector<34x32xf32>
    %27 = vector.broadcast %6 : vector<1x32xf32> to vector<34x32xf32>
    %28 = arith.mulf %26, %27 : vector<34x32xf32>
    %29 = vector.broadcast %8 : vector<1x32xf32> to vector<34x32xf32>
    %30 = arith.addf %28, %29 : vector<34x32xf32>
    %c0_16 = arith.constant 0 : index
    %c0_17 = arith.constant 0 : index
    %c0_18 = arith.constant 0 : index
    %31 = vector.load %arg5[%c0_16, %c0_17, %c0_18] : memref<2x32x96xf32, #tpu.memory_space<vmem>>, vector<1x32x96xf32>
    %32 = vector.shape_cast %31 : vector<1x32x96xf32> to vector<32x96xf32>
    %cst_19 = arith.constant dense<0.000000e+00> : vector<34x96xf32>
    %33 = tpu.matmul %30, %32, %cst_19 {dimension_numbers = #tpu.dot_dimension_numbers<[1], [0], [0], [1], [0, 0, 1, 1], [], []>} : vector<34x32xf32>, vector<32x96xf32>, vector<34x96xf32> -> vector<34x96xf32>
    %c0_20 = arith.constant 0 : index
    %c0_21 = arith.constant 0 : index
    %c0_22 = arith.constant 0 : index
    %34 = vector.load %arg6[%c0_20, %c0_21, %c0_22] : memref<2x1x96xf32, #tpu.memory_space<vmem>>, vector<1x1x96xf32>
    %35 = vector.shape_cast %34 : vector<1x1x96xf32> to vector<1x96xf32>
    %36 = vector.broadcast %35 : vector<1x96xf32> to vector<34x96xf32>
    %37 = arith.addf %33, %36 : vector<34x96xf32>
    %38 = vector.extract_strided_slice %37 {offsets = [0, 0], sizes = [17, 8], strides = [1, 1]} : vector<34x96xf32> to vector<17x8xf32>
    %39 = vector.extract_strided_slice %37 {offsets = [0, 32], sizes = [17, 8], strides = [1, 1]} : vector<34x96xf32> to vector<17x8xf32>
    %40 = vector.extract_strided_slice %37 {offsets = [0, 64], sizes = [17, 8], strides = [1, 1]} : vector<34x96xf32> to vector<17x8xf32>
    %41 = vector.extract_strided_slice %37 {offsets = [0, 8], sizes = [17, 8], strides = [1, 1]} : vector<34x96xf32> to vector<17x8xf32>
    %42 = vector.extract_strided_slice %37 {offsets = [0, 40], sizes = [17, 8], strides = [1, 1]} : vector<34x96xf32> to vector<17x8xf32>
    %43 = vector.extract_strided_slice %37 {offsets = [0, 72], sizes = [17, 8], strides = [1, 1]} : vector<34x96xf32> to vector<17x8xf32>
    %44 = vector.extract_strided_slice %37 {offsets = [0, 16], sizes = [17, 8], strides = [1, 1]} : vector<34x96xf32> to vector<17x8xf32>
    %45 = vector.extract_strided_slice %37 {offsets = [0, 48], sizes = [17, 8], strides = [1, 1]} : vector<34x96xf32> to vector<17x8xf32>
    %46 = vector.extract_strided_slice %37 {offsets = [0, 80], sizes = [17, 8], strides = [1, 1]} : vector<34x96xf32> to vector<17x8xf32>
    %47 = vector.extract_strided_slice %37 {offsets = [0, 24], sizes = [17, 8], strides = [1, 1]} : vector<34x96xf32> to vector<17x8xf32>
    %48 = vector.extract_strided_slice %37 {offsets = [0, 56], sizes = [17, 8], strides = [1, 1]} : vector<34x96xf32> to vector<17x8xf32>
    %49 = vector.extract_strided_slice %37 {offsets = [0, 88], sizes = [17, 8], strides = [1, 1]} : vector<34x96xf32> to vector<17x8xf32>
    %50 = vector.extract_strided_slice %37 {offsets = [17, 0], sizes = [17, 8], strides = [1, 1]} : vector<34x96xf32> to vector<17x8xf32>
    %51 = vector.extract_strided_slice %37 {offsets = [17, 32], sizes = [17, 8], strides = [1, 1]} : vector<34x96xf32> to vector<17x8xf32>
    %52 = vector.extract_strided_slice %37 {offsets = [17, 64], sizes = [17, 8], strides = [1, 1]} : vector<34x96xf32> to vector<17x8xf32>
    %53 = vector.extract_strided_slice %37 {offsets = [17, 8], sizes = [17, 8], strides = [1, 1]} : vector<34x96xf32> to vector<17x8xf32>
    %54 = vector.extract_strided_slice %37 {offsets = [17, 40], sizes = [17, 8], strides = [1, 1]} : vector<34x96xf32> to vector<17x8xf32>
    %55 = vector.extract_strided_slice %37 {offsets = [17, 72], sizes = [17, 8], strides = [1, 1]} : vector<34x96xf32> to vector<17x8xf32>
    %56 = vector.extract_strided_slice %37 {offsets = [17, 16], sizes = [17, 8], strides = [1, 1]} : vector<34x96xf32> to vector<17x8xf32>
    %57 = vector.extract_strided_slice %37 {offsets = [17, 48], sizes = [17, 8], strides = [1, 1]} : vector<34x96xf32> to vector<17x8xf32>
    %58 = vector.extract_strided_slice %37 {offsets = [17, 80], sizes = [17, 8], strides = [1, 1]} : vector<34x96xf32> to vector<17x8xf32>
    %59 = vector.extract_strided_slice %37 {offsets = [17, 24], sizes = [17, 8], strides = [1, 1]} : vector<34x96xf32> to vector<17x8xf32>
    %60 = vector.extract_strided_slice %37 {offsets = [17, 56], sizes = [17, 8], strides = [1, 1]} : vector<34x96xf32> to vector<17x8xf32>
    %61 = vector.extract_strided_slice %37 {offsets = [17, 88], sizes = [17, 8], strides = [1, 1]} : vector<34x96xf32> to vector<17x8xf32>
    %62 = vector.shape_cast %38 : vector<17x8xf32> to vector<1x17x8xf32>
    %63 = vector.shape_cast %41 : vector<17x8xf32> to vector<1x17x8xf32>
    %64 = vector.shape_cast %44 : vector<17x8xf32> to vector<1x17x8xf32>
    %65 = vector.shape_cast %47 : vector<17x8xf32> to vector<1x17x8xf32>
    %66 = vector.shape_cast %50 : vector<17x8xf32> to vector<1x17x8xf32>
    %67 = vector.shape_cast %53 : vector<17x8xf32> to vector<1x17x8xf32>
    %68 = vector.shape_cast %56 : vector<17x8xf32> to vector<1x17x8xf32>
    %69 = vector.shape_cast %59 : vector<17x8xf32> to vector<1x17x8xf32>
    %70 = tpu.concatenate %62, %63, %64, %65, %66, %67, %68, %69 in 0 : vector<1x17x8xf32>, vector<1x17x8xf32>, vector<1x17x8xf32>, vector<1x17x8xf32>, vector<1x17x8xf32>, vector<1x17x8xf32>, vector<1x17x8xf32>, vector<1x17x8xf32> -> vector<8x17x8xf32>
    %71 = vector.shape_cast %39 : vector<17x8xf32> to vector<1x17x8xf32>
    %72 = vector.shape_cast %42 : vector<17x8xf32> to vector<1x17x8xf32>
    %73 = vector.shape_cast %45 : vector<17x8xf32> to vector<1x17x8xf32>
    %74 = vector.shape_cast %48 : vector<17x8xf32> to vector<1x17x8xf32>
    %75 = vector.shape_cast %51 : vector<17x8xf32> to vector<1x17x8xf32>
    %76 = vector.shape_cast %54 : vector<17x8xf32> to vector<1x17x8xf32>
    %77 = vector.shape_cast %57 : vector<17x8xf32> to vector<1x17x8xf32>
    %78 = vector.shape_cast %60 : vector<17x8xf32> to vector<1x17x8xf32>
    %79 = tpu.concatenate %71, %72, %73, %74, %75, %76, %77, %78 in 0 : vector<1x17x8xf32>, vector<1x17x8xf32>, vector<1x17x8xf32>, vector<1x17x8xf32>, vector<1x17x8xf32>, vector<1x17x8xf32>, vector<1x17x8xf32>, vector<1x17x8xf32> -> vector<8x17x8xf32>
    %80 = vector.shape_cast %40 : vector<17x8xf32> to vector<1x17x8xf32>
    %81 = vector.shape_cast %43 : vector<17x8xf32> to vector<1x17x8xf32>
    %82 = vector.shape_cast %46 : vector<17x8xf32> to vector<1x17x8xf32>
    %83 = vector.shape_cast %49 : vector<17x8xf32> to vector<1x17x8xf32>
    %84 = vector.shape_cast %52 : vector<17x8xf32> to vector<1x17x8xf32>
    %85 = vector.shape_cast %55 : vector<17x8xf32> to vector<1x17x8xf32>
    %86 = vector.shape_cast %58 : vector<17x8xf32> to vector<1x17x8xf32>
    %87 = vector.shape_cast %61 : vector<17x8xf32> to vector<1x17x8xf32>
    %88 = tpu.concatenate %80, %81, %82, %83, %84, %85, %86, %87 in 0 : vector<1x17x8xf32>, vector<1x17x8xf32>, vector<1x17x8xf32>, vector<1x17x8xf32>, vector<1x17x8xf32>, vector<1x17x8xf32>, vector<1x17x8xf32>, vector<1x17x8xf32> -> vector<8x17x8xf32>
    "tpu.trace_start"() <{level = 10 : i32, message = "bqd,bkd->bqk"}> : () -> ()
    %cst_23 = arith.constant dense<0.000000e+00> : vector<8x17x17xf32>
    %89 = tpu.matmul %70, %79, %cst_23 {dimension_numbers = #tpu.dot_dimension_numbers<[2], [2], [1], [1], [0, 0, 0, 1, 1, 1], [0], [0]>} : vector<8x17x8xf32>, vector<8x17x8xf32>, vector<8x17x17xf32> -> vector<8x17x17xf32>
    "tpu.trace_stop"() : () -> ()
    %cst_24 = arith.constant 0.353553385 : f32
    %90 = vector.broadcast %cst_24 : f32 to vector<8x17x17xf32>
    %91 = arith.mulf %89, %90 : vector<8x17x17xf32>
    %cst_25 = arith.constant dense<0xFF800000> : vector<8x17xf32>
    %92 = vector.multi_reduction <maximumf>, %91, %cst_25 [2] : vector<8x17x17xf32> to vector<8x17xf32>
    %93 = vector.shape_cast %92 : vector<8x17xf32> to vector<8x17x1xf32>
    %94 = vector.broadcast %93 : vector<8x17x1xf32> to vector<8x17x17xf32>
    %95 = arith.subf %91, %94 : vector<8x17x17xf32>
    %96 = math.exp %95 : vector<8x17x17xf32>
    %cst_26 = arith.constant dense<0.000000e+00> : vector<8x17xf32>
    %97 = vector.multi_reduction <add>, %96, %cst_26 [2] : vector<8x17x17xf32> to vector<8x17xf32>
    %98 = vector.shape_cast %97 : vector<8x17xf32> to vector<8x17x1xf32>
    %99 = tpu.reciprocal %98 {approx = true} : vector<8x17x1xf32> -> vector<8x17x1xf32>
    %100 = vector.broadcast %99 : vector<8x17x1xf32> to vector<8x17x17xf32>
    %101 = arith.mulf %96, %100 : vector<8x17x17xf32>
    "tpu.trace_start"() <{level = 10 : i32, message = "bqk,bkd->bqd"}> : () -> ()
    %cst_27 = arith.constant dense<0.000000e+00> : vector<8x17x8xf32>
    %102 = tpu.matmul %101, %88, %cst_27 {dimension_numbers = #tpu.dot_dimension_numbers<[2], [1], [1], [2], [0, 0, 0, 1, 1, 2], [0], [0]>} : vector<8x17x17xf32>, vector<8x17x8xf32>, vector<8x17x8xf32> -> vector<8x17x8xf32>
    "tpu.trace_stop"() : () -> ()
    %103 = vector.extract_strided_slice %102 {offsets = [0, 0, 0], sizes = [1, 17, 8], strides = [1, 1, 1]} : vector<8x17x8xf32> to vector<1x17x8xf32>
    %104 = vector.shape_cast %103 : vector<1x17x8xf32> to vector<17x8xf32>
    %c0_28 = arith.constant 0 : index
    %c0_29 = arith.constant 0 : index
    %105 = vector.load %arg20[%c0_28, %c0_29] : memref<34x32xf32, #tpu.memory_space<vmem>>, vector<17x8xf32>
    tpu.vector_store %arg20[%c0_28, %c0_29], %104 {strides = array<i32>} : memref<34x32xf32, #tpu.memory_space<vmem>>, vector<17x8xf32>,
    %106 = vector.extract_strided_slice %102 {offsets = [1, 0, 0], sizes = [1, 17, 8], strides = [1, 1, 1]} : vector<8x17x8xf32> to vector<1x17x8xf32>
    %107 = vector.shape_cast %106 : vector<1x17x8xf32> to vector<17x8xf32>
    %c0_30 = arith.constant 0 : index
    %c8 = arith.constant 8 : index
    %108 = vector.load %arg20[%c0_30, %c8] : memref<34x32xf32, #tpu.memory_space<vmem>>, vector<17x8xf32>
    tpu.vector_store %arg20[%c0_30, %c8], %107 {strides = array<i32>} : memref<34x32xf32, #tpu.memory_space<vmem>>, vector<17x8xf32>,
    %109 = vector.extract_strided_slice %102 {offsets = [2, 0, 0], sizes = [1, 17, 8], strides = [1, 1, 1]} : vector<8x17x8xf32> to vector<1x17x8xf32>
    %110 = vector.shape_cast %109 : vector<1x17x8xf32> to vector<17x8xf32>
    %c0_31 = arith.constant 0 : index
    %c16 = arith.constant 16 : index
    %111 = vector.load %arg20[%c0_31, %c16] : memref<34x32xf32, #tpu.memory_space<vmem>>, vector<17x8xf32>
    tpu.vector_store %arg20[%c0_31, %c16], %110 {strides = array<i32>} : memref<34x32xf32, #tpu.memory_space<vmem>>, vector<17x8xf32>,
    %112 = vector.extract_strided_slice %102 {offsets = [3, 0, 0], sizes = [1, 17, 8], strides = [1, 1, 1]} : vector<8x17x8xf32> to vector<1x17x8xf32>
    %113 = vector.shape_cast %112 : vector<1x17x8xf32> to vector<17x8xf32>
    %c0_32 = arith.constant 0 : index
    %c24 = arith.constant 24 : index
    %114 = vector.load %arg20[%c0_32, %c24] : memref<34x32xf32, #tpu.memory_space<vmem>>, vector<17x8xf32>
    tpu.vector_store %arg20[%c0_32, %c24], %113 {strides = array<i32>} : memref<34x32xf32, #tpu.memory_space<vmem>>, vector<17x8xf32>,
    %115 = vector.extract_strided_slice %102 {offsets = [4, 0, 0], sizes = [1, 17, 8], strides = [1, 1, 1]} : vector<8x17x8xf32> to vector<1x17x8xf32>
    %116 = vector.shape_cast %115 : vector<1x17x8xf32> to vector<17x8xf32>
    %c17 = arith.constant 17 : index
    %c0_33 = arith.constant 0 : index
    %117 = vector.load %arg20[%c17, %c0_33] : memref<34x32xf32, #tpu.memory_space<vmem>>, vector<17x8xf32>
    tpu.vector_store %arg20[%c17, %c0_33], %116 {strides = array<i32>} : memref<34x32xf32, #tpu.memory_space<vmem>>, vector<17x8xf32>,
    %118 = vector.extract_strided_slice %102 {offsets = [5, 0, 0], sizes = [1, 17, 8], strides = [1, 1, 1]} : vector<8x17x8xf32> to vector<1x17x8xf32>
    %119 = vector.shape_cast %118 : vector<1x17x8xf32> to vector<17x8xf32>
    %c17_34 = arith.constant 17 : index
    %c8_35 = arith.constant 8 : index
    %120 = vector.load %arg20[%c17_34, %c8_35] : memref<34x32xf32, #tpu.memory_space<vmem>>, vector<17x8xf32>
    tpu.vector_store %arg20[%c17_34, %c8_35], %119 {strides = array<i32>} : memref<34x32xf32, #tpu.memory_space<vmem>>, vector<17x8xf32>,
    %121 = vector.extract_strided_slice %102 {offsets = [6, 0, 0], sizes = [1, 17, 8], strides = [1, 1, 1]} : vector<8x17x8xf32> to vector<1x17x8xf32>
    %122 = vector.shape_cast %121 : vector<1x17x8xf32> to vector<17x8xf32>
    %c17_36 = arith.constant 17 : index
    %c16_37 = arith.constant 16 : index
    %123 = vector.load %arg20[%c17_36, %c16_37] : memref<34x32xf32, #tpu.memory_space<vmem>>, vector<17x8xf32>
    tpu.vector_store %arg20[%c17_36, %c16_37], %122 {strides = array<i32>} : memref<34x32xf32, #tpu.memory_space<vmem>>, vector<17x8xf32>,
    %124 = vector.extract_strided_slice %102 {offsets = [7, 0, 0], sizes = [1, 17, 8], strides = [1, 1, 1]} : vector<8x17x8xf32> to vector<1x17x8xf32>
    %125 = vector.shape_cast %124 : vector<1x17x8xf32> to vector<17x8xf32>
    %c17_38 = arith.constant 17 : index
    %c24_39 = arith.constant 24 : index
    %126 = vector.load %arg20[%c17_38, %c24_39] : memref<34x32xf32, #tpu.memory_space<vmem>>, vector<17x8xf32>
    tpu.vector_store %arg20[%c17_38, %c24_39], %125 {strides = array<i32>} : memref<34x32xf32, #tpu.memory_space<vmem>>, vector<17x8xf32>,
    %c0_40 = arith.constant 0 : index
    %c0_41 = arith.constant 0 : index
    %127 = vector.load %arg20[%c0_40, %c0_41] : memref<34x32xf32, #tpu.memory_space<vmem>>, vector<34x32xf32>
    %c0_42 = arith.constant 0 : index
    %c0_43 = arith.constant 0 : index
    %c0_44 = arith.constant 0 : index
    %128 = vector.load %arg7[%c0_42, %c0_43, %c0_44] : memref<2x32x32xf32, #tpu.memory_space<vmem>>, vector<1x32x32xf32>
    %129 = vector.shape_cast %128 : vector<1x32x32xf32> to vector<32x32xf32>
    %cst_45 = arith.constant dense<0.000000e+00> : vector<34x32xf32>
    %130 = tpu.matmul %127, %129, %cst_45 {dimension_numbers = #tpu.dot_dimension_numbers<[1], [0], [0], [1], [0, 0, 1, 1], [], []>} : vector<34x32xf32>, vector<32x32xf32>, vector<34x32xf32> -> vector<34x32xf32>
    %131 = arith.addf %4, %130 : vector<34x32xf32>
    %c0_46 = arith.constant 0 : index
    %c0_47 = arith.constant 0 : index
    %c0_48 = arith.constant 0 : index
    %132 = vector.load %arg8[%c0_46, %c0_47, %c0_48] : memref<2x1x32xf32, #tpu.memory_space<vmem>>, vector<1x1x32xf32>
    %133 = vector.shape_cast %132 : vector<1x1x32xf32> to vector<1x32xf32>
    %134 = vector.broadcast %133 : vector<1x32xf32> to vector<34x32xf32>
    %135 = arith.addf %131, %134 : vector<34x32xf32>
    %c0_49 = arith.constant 0 : index
    %c0_50 = arith.constant 0 : index
    %c0_51 = arith.constant 0 : index
    %136 = vector.load %arg9[%c0_49, %c0_50, %c0_51] : memref<2x1x32xf32, #tpu.memory_space<vmem>>, vector<1x1x32xf32>
    %137 = vector.shape_cast %136 : vector<1x1x32xf32> to vector<1x32xf32>
    %c0_52 = arith.constant 0 : index
    %c0_53 = arith.constant 0 : index
    %c0_54 = arith.constant 0 : index
    %138 = vector.load %arg10[%c0_52, %c0_53, %c0_54] : memref<2x1x32xf32, #tpu.memory_space<vmem>>, vector<1x1x32xf32>
    %139 = vector.shape_cast %138 : vector<1x1x32xf32> to vector<1x32xf32>
    %cst_55 = arith.constant dense<0.000000e+00> : vector<34xf32>
    %140 = vector.multi_reduction <add>, %135, %cst_55 [1] : vector<34x32xf32> to vector<34xf32>
    %141 = vector.shape_cast %140 : vector<34xf32> to vector<34x1xf32>
    %cst_56 = arith.constant 3.200000e+01 : f32
    %142 = vector.broadcast %cst_56 : f32 to vector<34x1xf32>
    %143 = arith.divf %141, %142 : vector<34x1xf32>
    %144 = vector.broadcast %143 : vector<34x1xf32> to vector<34x32xf32>
    %145 = arith.subf %135, %144 : vector<34x32xf32>
    %146 = arith.mulf %145, %145 : vector<34x32xf32>
    %cst_57 = arith.constant dense<0.000000e+00> : vector<34xf32>
    %147 = vector.multi_reduction <add>, %146, %cst_57 [1] : vector<34x32xf32> to vector<34xf32>
    %148 = vector.shape_cast %147 : vector<34xf32> to vector<34x1xf32>
    %cst_58 = arith.constant 3.200000e+01 : f32
    %149 = vector.broadcast %cst_58 : f32 to vector<34x1xf32>
    %150 = arith.divf %148, %149 : vector<34x1xf32>
    %151 = vector.broadcast %143 : vector<34x1xf32> to vector<34x32xf32>
    %152 = arith.subf %135, %151 : vector<34x32xf32>
    %cst_59 = arith.constant 9.99999974E-6 : f32
    %153 = vector.broadcast %cst_59 : f32 to vector<34x1xf32>
    %154 = arith.addf %150, %153 : vector<34x1xf32>
    %155 = math.rsqrt %154 : vector<34x1xf32>
    %156 = vector.broadcast %155 : vector<34x1xf32> to vector<34x32xf32>
    %157 = arith.mulf %152, %156 : vector<34x32xf32>
    %158 = vector.broadcast %137 : vector<1x32xf32> to vector<34x32xf32>
    %159 = arith.mulf %157, %158 : vector<34x32xf32>
    %160 = vector.broadcast %139 : vector<1x32xf32> to vector<34x32xf32>
    %161 = arith.addf %159, %160 : vector<34x32xf32>
    %c0_60 = arith.constant 0 : index
    %c0_61 = arith.constant 0 : index
    %c0_62 = arith.constant 0 : index
    %162 = vector.load %arg11[%c0_60, %c0_61, %c0_62] : memref<2x32x64xf32, #tpu.memory_space<vmem>>, vector<1x32x64xf32>
    %163 = vector.shape_cast %162 : vector<1x32x64xf32> to vector<32x64xf32>
    %cst_63 = arith.constant dense<0.000000e+00> : vector<34x64xf32>
    %164 = tpu.matmul %161, %163, %cst_63 {dimension_numbers = #tpu.dot_dimension_numbers<[1], [0], [0], [1], [0, 0, 1, 1], [], []>} : vector<34x32xf32>, vector<32x64xf32>, vector<34x64xf32> -> vector<34x64xf32>
    %c0_64 = arith.constant 0 : index
    %c0_65 = arith.constant 0 : index
    %c0_66 = arith.constant 0 : index
    %165 = vector.load %arg12[%c0_64, %c0_65, %c0_66] : memref<2x1x64xf32, #tpu.memory_space<vmem>>, vector<1x1x64xf32>
    %166 = vector.shape_cast %165 : vector<1x1x64xf32> to vector<1x64xf32>
    %167 = vector.broadcast %166 : vector<1x64xf32> to vector<34x64xf32>
    %168 = arith.addf %164, %167 : vector<34x64xf32>
    %cst_67 = arith.constant 5.000000e-01 : f32
    %169 = vector.broadcast %cst_67 : f32 to vector<34x64xf32>
    %170 = arith.mulf %169, %168 : vector<34x64xf32>
    %cst_68 = arith.constant 0.707106769 : f32
    %171 = vector.broadcast %cst_68 : f32 to vector<34x64xf32>
    %172 = arith.mulf %168, %171 : vector<34x64xf32>
    %173 = math.absf %172 : vector<34x64xf32>
    %cst_69 = arith.constant 0.327591091 : f32
    %174 = vector.broadcast %cst_69 : f32 to vector<34x64xf32>
    %175 = arith.mulf %174, %173 : vector<34x64xf32>
    %cst_70 = arith.constant 1.000000e+00 : f32
    %176 = vector.broadcast %cst_70 : f32 to vector<34x64xf32>
    %177 = arith.addf %176, %175 : vector<34x64xf32>
    %178 = tpu.reciprocal %177 {approx = true} : vector<34x64xf32> -> vector<34x64xf32>
    %cst_71 = arith.constant 1.06140542 : f32
    %179 = vector.broadcast %cst_71 : f32 to vector<34x64xf32>
    %180 = arith.mulf %179, %178 : vector<34x64xf32>
    %cst_72 = arith.constant -1.45315206 : f32
    %181 = vector.broadcast %cst_72 : f32 to vector<34x64xf32>
    %182 = arith.addf %180, %181 : vector<34x64xf32>
    %183 = arith.mulf %182, %178 : vector<34x64xf32>
    %cst_73 = arith.constant 1.42141378 : f32
    %184 = vector.broadcast %cst_73 : f32 to vector<34x64xf32>
    %185 = arith.addf %183, %184 : vector<34x64xf32>
    %186 = arith.mulf %185, %178 : vector<34x64xf32>
    %cst_74 = arith.constant -0.284496725 : f32
    %187 = vector.broadcast %cst_74 : f32 to vector<34x64xf32>
    %188 = arith.addf %186, %187 : vector<34x64xf32>
    %189 = arith.mulf %188, %178 : vector<34x64xf32>
    %cst_75 = arith.constant 0.254829586 : f32
    %190 = vector.broadcast %cst_75 : f32 to vector<34x64xf32>
    %191 = arith.addf %189, %190 : vector<34x64xf32>
    %192 = arith.mulf %191, %178 : vector<34x64xf32>
    %cst_76 = arith.constant 0.000000e+00 : f32
    %193 = vector.broadcast %cst_76 : f32 to vector<34x64xf32>
    %194 = arith.subf %193, %173 : vector<34x64xf32>
    %195 = arith.mulf %194, %173 : vector<34x64xf32>
    %196 = math.exp %195 : vector<34x64xf32>
    %197 = arith.mulf %192, %196 : vector<34x64xf32>
    %cst_77 = arith.constant 1.000000e+00 : f32
    %198 = vector.broadcast %cst_77 : f32 to vector<34x64xf32>
    %199 = arith.subf %198, %197 : vector<34x64xf32>
    %cst_78 = arith.constant 0.000000e+00 : f32
    %200 = vector.broadcast %cst_78 : f32 to vector<34x64xf32>
    %201 = arith.cmpf oge, %172, %200 : vector<34x64xf32>
    %cst_79 = arith.constant 0.000000e+00 : f32
    %202 = vector.broadcast %cst_79 : f32 to vector<34x64xf32>
    %203 = arith.subf %202, %199 : vector<34x64xf32>
    %204 = arith.select %201, %199, %203 : vector<34x64xi1>, vector<34x64xf32>
    %cst_80 = arith.constant 1.000000e+00 : f32
    %205 = vector.broadcast %cst_80 : f32 to vector<34x64xf32>
    %206 = arith.addf %205, %204 : vector<34x64xf32>
    %207 = arith.mulf %170, %206 : vector<34x64xf32>
    %c0_81 = arith.constant 0 : index
    %c0_82 = arith.constant 0 : index
    %c0_83 = arith.constant 0 : index
    %208 = vector.load %arg13[%c0_81, %c0_82, %c0_83] : memref<2x64x32xf32, #tpu.memory_space<vmem>>, vector<1x64x32xf32>
    %209 = vector.shape_cast %208 : vector<1x64x32xf32> to vector<64x32xf32>
    %cst_84 = arith.constant dense<0.000000e+00> : vector<34x32xf32>
    %210 = tpu.matmul %207, %209, %cst_84 {dimension_numbers = #tpu.dot_dimension_numbers<[1], [0], [0], [1], [0, 0, 1, 1], [], []>} : vector<34x64xf32>, vector<64x32xf32>, vector<34x32xf32> -> vector<34x32xf32>
    %211 = arith.addf %135, %210 : vector<34x32xf32>
    %c0_85 = arith.constant 0 : index
    %c0_86 = arith.constant 0 : index
    %c0_87 = arith.constant 0 : index
    %212 = vector.load %arg14[%c0_85, %c0_86, %c0_87] : memref<2x1x32xf32, #tpu.memory_space<vmem>>, vector<1x1x32xf32>
    %213 = vector.shape_cast %212 : vector<1x1x32xf32> to vector<1x32xf32>
    %214 = vector.broadcast %213 : vector<1x32xf32> to vector<34x32xf32>
    %215 = arith.addf %211, %214 : vector<34x32xf32>
    %c1 = arith.constant 1 : index
    %c0_88 = arith.constant 0 : index
    %c0_89 = arith.constant 0 : index
    %216 = vector.load %arg3[%c1, %c0_88, %c0_89] : memref<2x1x32xf32, #tpu.memory_space<vmem>>, vector<1x1x32xf32>
    %217 = vector.shape_cast %216 : vector<1x1x32xf32> to vector<1x32xf32>
    %c1_90 = arith.constant 1 : index
    %c0_91 = arith.constant 0 : index
    %c0_92 = arith.constant 0 : index
    %218 = vector.load %arg4[%c1_90, %c0_91, %c0_92] : memref<2x1x32xf32, #tpu.memory_space<vmem>>, vector<1x1x32xf32>
    %219 = vector.shape_cast %218 : vector<1x1x32xf32> to vector<1x32xf32>
    %cst_93 = arith.constant dense<0.000000e+00> : vector<34xf32>
    %220 = vector.multi_reduction <add>, %215, %cst_93 [1] : vector<34x32xf32> to vector<34xf32>
    %221 = vector.shape_cast %220 : vector<34xf32> to vector<34x1xf32>
    %cst_94 = arith.constant 3.200000e+01 : f32
    %222 = vector.broadcast %cst_94 : f32 to vector<34x1xf32>
    %223 = arith.divf %221, %222 : vector<34x1xf32>
    %224 = vector.broadcast %223 : vector<34x1xf32> to vector<34x32xf32>
    %225 = arith.subf %215, %224 : vector<34x32xf32>
    %226 = arith.mulf %225, %225 : vector<34x32xf32>
    %cst_95 = arith.constant dense<0.000000e+00> : vector<34xf32>
    %227 = vector.multi_reduction <add>, %226, %cst_95 [1] : vector<34x32xf32> to vector<34xf32>
    %228 = vector.shape_cast %227 : vector<34xf32> to vector<34x1xf32>
    %cst_96 = arith.constant 3.200000e+01 : f32
    %229 = vector.broadcast %cst_96 : f32 to vector<34x1xf32>
    %230 = arith.divf %228, %229 : vector<34x1xf32>
    %231 = vector.broadcast %223 : vector<34x1xf32> to vector<34x32xf32>
    %232 = arith.subf %215, %231 : vector<34x32xf32>
    %cst_97 = arith.constant 9.99999974E-6 : f32
    %233 = vector.broadcast %cst_97 : f32 to vector<34x1xf32>
    %234 = arith.addf %230, %233 : vector<34x1xf32>
    %235 = math.rsqrt %234 : vector<34x1xf32>
    %236 = vector.broadcast %235 : vector<34x1xf32> to vector<34x32xf32>
    %237 = arith.mulf %232, %236 : vector<34x32xf32>
    %238 = vector.broadcast %217 : vector<1x32xf32> to vector<34x32xf32>
    %239 = arith.mulf %237, %238 : vector<34x32xf32>
    %240 = vector.broadcast %219 : vector<1x32xf32> to vector<34x32xf32>
    %241 = arith.addf %239, %240 : vector<34x32xf32>
    %c1_98 = arith.constant 1 : index
    %c0_99 = arith.constant 0 : index
    %c0_100 = arith.constant 0 : index
    %242 = vector.load %arg5[%c1_98, %c0_99, %c0_100] : memref<2x32x96xf32, #tpu.memory_space<vmem>>, vector<1x32x96xf32>
    %243 = vector.shape_cast %242 : vector<1x32x96xf32> to vector<32x96xf32>
    %cst_101 = arith.constant dense<0.000000e+00> : vector<34x96xf32>
    %244 = tpu.matmul %241, %243, %cst_101 {dimension_numbers = #tpu.dot_dimension_numbers<[1], [0], [0], [1], [0, 0, 1, 1], [], []>} : vector<34x32xf32>, vector<32x96xf32>, vector<34x96xf32> -> vector<34x96xf32>
    %c1_102 = arith.constant 1 : index
    %c0_103 = arith.constant 0 : index
    %c0_104 = arith.constant 0 : index
    %245 = vector.load %arg6[%c1_102, %c0_103, %c0_104] : memref<2x1x96xf32, #tpu.memory_space<vmem>>, vector<1x1x96xf32>
    %246 = vector.shape_cast %245 : vector<1x1x96xf32> to vector<1x96xf32>
    %247 = vector.broadcast %246 : vector<1x96xf32> to vector<34x96xf32>
    %248 = arith.addf %244, %247 : vector<34x96xf32>
    %249 = vector.extract_strided_slice %248 {offsets = [0, 0], sizes = [17, 8], strides = [1, 1]} : vector<34x96xf32> to vector<17x8xf32>
    %250 = vector.extract_strided_slice %248 {offsets = [0, 32], sizes = [17, 8], strides = [1, 1]} : vector<34x96xf32> to vector<17x8xf32>
    %251 = vector.extract_strided_slice %248 {offsets = [0, 64], sizes = [17, 8], strides = [1, 1]} : vector<34x96xf32> to vector<17x8xf32>
    %252 = vector.extract_strided_slice %248 {offsets = [0, 8], sizes = [17, 8], strides = [1, 1]} : vector<34x96xf32> to vector<17x8xf32>
    %253 = vector.extract_strided_slice %248 {offsets = [0, 40], sizes = [17, 8], strides = [1, 1]} : vector<34x96xf32> to vector<17x8xf32>
    %254 = vector.extract_strided_slice %248 {offsets = [0, 72], sizes = [17, 8], strides = [1, 1]} : vector<34x96xf32> to vector<17x8xf32>
    %255 = vector.extract_strided_slice %248 {offsets = [0, 16], sizes = [17, 8], strides = [1, 1]} : vector<34x96xf32> to vector<17x8xf32>
    %256 = vector.extract_strided_slice %248 {offsets = [0, 48], sizes = [17, 8], strides = [1, 1]} : vector<34x96xf32> to vector<17x8xf32>
    %257 = vector.extract_strided_slice %248 {offsets = [0, 80], sizes = [17, 8], strides = [1, 1]} : vector<34x96xf32> to vector<17x8xf32>
    %258 = vector.extract_strided_slice %248 {offsets = [0, 24], sizes = [17, 8], strides = [1, 1]} : vector<34x96xf32> to vector<17x8xf32>
    %259 = vector.extract_strided_slice %248 {offsets = [0, 56], sizes = [17, 8], strides = [1, 1]} : vector<34x96xf32> to vector<17x8xf32>
    %260 = vector.extract_strided_slice %248 {offsets = [0, 88], sizes = [17, 8], strides = [1, 1]} : vector<34x96xf32> to vector<17x8xf32>
    %261 = vector.extract_strided_slice %248 {offsets = [17, 0], sizes = [17, 8], strides = [1, 1]} : vector<34x96xf32> to vector<17x8xf32>
    %262 = vector.extract_strided_slice %248 {offsets = [17, 32], sizes = [17, 8], strides = [1, 1]} : vector<34x96xf32> to vector<17x8xf32>
    %263 = vector.extract_strided_slice %248 {offsets = [17, 64], sizes = [17, 8], strides = [1, 1]} : vector<34x96xf32> to vector<17x8xf32>
    %264 = vector.extract_strided_slice %248 {offsets = [17, 8], sizes = [17, 8], strides = [1, 1]} : vector<34x96xf32> to vector<17x8xf32>
    %265 = vector.extract_strided_slice %248 {offsets = [17, 40], sizes = [17, 8], strides = [1, 1]} : vector<34x96xf32> to vector<17x8xf32>
    %266 = vector.extract_strided_slice %248 {offsets = [17, 72], sizes = [17, 8], strides = [1, 1]} : vector<34x96xf32> to vector<17x8xf32>
    %267 = vector.extract_strided_slice %248 {offsets = [17, 16], sizes = [17, 8], strides = [1, 1]} : vector<34x96xf32> to vector<17x8xf32>
    %268 = vector.extract_strided_slice %248 {offsets = [17, 48], sizes = [17, 8], strides = [1, 1]} : vector<34x96xf32> to vector<17x8xf32>
    %269 = vector.extract_strided_slice %248 {offsets = [17, 80], sizes = [17, 8], strides = [1, 1]} : vector<34x96xf32> to vector<17x8xf32>
    %270 = vector.extract_strided_slice %248 {offsets = [17, 24], sizes = [17, 8], strides = [1, 1]} : vector<34x96xf32> to vector<17x8xf32>
    %271 = vector.extract_strided_slice %248 {offsets = [17, 56], sizes = [17, 8], strides = [1, 1]} : vector<34x96xf32> to vector<17x8xf32>
    %272 = vector.extract_strided_slice %248 {offsets = [17, 88], sizes = [17, 8], strides = [1, 1]} : vector<34x96xf32> to vector<17x8xf32>
    %273 = vector.shape_cast %249 : vector<17x8xf32> to vector<1x17x8xf32>
    %274 = vector.shape_cast %252 : vector<17x8xf32> to vector<1x17x8xf32>
    %275 = vector.shape_cast %255 : vector<17x8xf32> to vector<1x17x8xf32>
    %276 = vector.shape_cast %258 : vector<17x8xf32> to vector<1x17x8xf32>
    %277 = vector.shape_cast %261 : vector<17x8xf32> to vector<1x17x8xf32>
    %278 = vector.shape_cast %264 : vector<17x8xf32> to vector<1x17x8xf32>
    %279 = vector.shape_cast %267 : vector<17x8xf32> to vector<1x17x8xf32>
    %280 = vector.shape_cast %270 : vector<17x8xf32> to vector<1x17x8xf32>
    %281 = tpu.concatenate %273, %274, %275, %276, %277, %278, %279, %280 in 0 : vector<1x17x8xf32>, vector<1x17x8xf32>, vector<1x17x8xf32>, vector<1x17x8xf32>, vector<1x17x8xf32>, vector<1x17x8xf32>, vector<1x17x8xf32>, vector<1x17x8xf32> -> vector<8x17x8xf32>
    %282 = vector.shape_cast %250 : vector<17x8xf32> to vector<1x17x8xf32>
    %283 = vector.shape_cast %253 : vector<17x8xf32> to vector<1x17x8xf32>
    %284 = vector.shape_cast %256 : vector<17x8xf32> to vector<1x17x8xf32>
    %285 = vector.shape_cast %259 : vector<17x8xf32> to vector<1x17x8xf32>
    %286 = vector.shape_cast %262 : vector<17x8xf32> to vector<1x17x8xf32>
    %287 = vector.shape_cast %265 : vector<17x8xf32> to vector<1x17x8xf32>
    %288 = vector.shape_cast %268 : vector<17x8xf32> to vector<1x17x8xf32>
    %289 = vector.shape_cast %271 : vector<17x8xf32> to vector<1x17x8xf32>
    %290 = tpu.concatenate %282, %283, %284, %285, %286, %287, %288, %289 in 0 : vector<1x17x8xf32>, vector<1x17x8xf32>, vector<1x17x8xf32>, vector<1x17x8xf32>, vector<1x17x8xf32>, vector<1x17x8xf32>, vector<1x17x8xf32>, vector<1x17x8xf32> -> vector<8x17x8xf32>
    %291 = vector.shape_cast %251 : vector<17x8xf32> to vector<1x17x8xf32>
    %292 = vector.shape_cast %254 : vector<17x8xf32> to vector<1x17x8xf32>
    %293 = vector.shape_cast %257 : vector<17x8xf32> to vector<1x17x8xf32>
    %294 = vector.shape_cast %260 : vector<17x8xf32> to vector<1x17x8xf32>
    %295 = vector.shape_cast %263 : vector<17x8xf32> to vector<1x17x8xf32>
    %296 = vector.shape_cast %266 : vector<17x8xf32> to vector<1x17x8xf32>
    %297 = vector.shape_cast %269 : vector<17x8xf32> to vector<1x17x8xf32>
    %298 = vector.shape_cast %272 : vector<17x8xf32> to vector<1x17x8xf32>
    %299 = tpu.concatenate %291, %292, %293, %294, %295, %296, %297, %298 in 0 : vector<1x17x8xf32>, vector<1x17x8xf32>, vector<1x17x8xf32>, vector<1x17x8xf32>, vector<1x17x8xf32>, vector<1x17x8xf32>, vector<1x17x8xf32>, vector<1x17x8xf32> -> vector<8x17x8xf32>
    "tpu.trace_start"() <{level = 10 : i32, message = "bqd,bkd->bqk"}> : () -> ()
    %cst_105 = arith.constant dense<0.000000e+00> : vector<8x17x17xf32>
    %300 = tpu.matmul %281, %290, %cst_105 {dimension_numbers = #tpu.dot_dimension_numbers<[2], [2], [1], [1], [0, 0, 0, 1, 1, 1], [0], [0]>} : vector<8x17x8xf32>, vector<8x17x8xf32>, vector<8x17x17xf32> -> vector<8x17x17xf32>
    "tpu.trace_stop"() : () -> ()
    %cst_106 = arith.constant 0.353553385 : f32
    %301 = vector.broadcast %cst_106 : f32 to vector<8x17x17xf32>
    %302 = arith.mulf %300, %301 : vector<8x17x17xf32>
    %cst_107 = arith.constant dense<0xFF800000> : vector<8x17xf32>
    %303 = vector.multi_reduction <maximumf>, %302, %cst_107 [2] : vector<8x17x17xf32> to vector<8x17xf32>
    %304 = vector.shape_cast %303 : vector<8x17xf32> to vector<8x17x1xf32>
    %305 = vector.broadcast %304 : vector<8x17x1xf32> to vector<8x17x17xf32>
    %306 = arith.subf %302, %305 : vector<8x17x17xf32>
    %307 = math.exp %306 : vector<8x17x17xf32>
    %cst_108 = arith.constant dense<0.000000e+00> : vector<8x17xf32>
    %308 = vector.multi_reduction <add>, %307, %cst_108 [2] : vector<8x17x17xf32> to vector<8x17xf32>
    %309 = vector.shape_cast %308 : vector<8x17xf32> to vector<8x17x1xf32>
    %310 = tpu.reciprocal %309 {approx = true} : vector<8x17x1xf32> -> vector<8x17x1xf32>
    %311 = vector.broadcast %310 : vector<8x17x1xf32> to vector<8x17x17xf32>
    %312 = arith.mulf %307, %311 : vector<8x17x17xf32>
    "tpu.trace_start"() <{level = 10 : i32, message = "bqk,bkd->bqd"}> : () -> ()
    %cst_109 = arith.constant dense<0.000000e+00> : vector<8x17x8xf32>
    %313 = tpu.matmul %312, %299, %cst_109 {dimension_numbers = #tpu.dot_dimension_numbers<[2], [1], [1], [2], [0, 0, 0, 1, 1, 2], [0], [0]>} : vector<8x17x17xf32>, vector<8x17x8xf32>, vector<8x17x8xf32> -> vector<8x17x8xf32>
    "tpu.trace_stop"() : () -> ()
    %314 = vector.extract_strided_slice %313 {offsets = [0, 0, 0], sizes = [1, 17, 8], strides = [1, 1, 1]} : vector<8x17x8xf32> to vector<1x17x8xf32>
    %315 = vector.shape_cast %314 : vector<1x17x8xf32> to vector<17x8xf32>
    %c0_110 = arith.constant 0 : index
    %c0_111 = arith.constant 0 : index
    %316 = vector.load %arg20[%c0_110, %c0_111] : memref<34x32xf32, #tpu.memory_space<vmem>>, vector<17x8xf32>
    tpu.vector_store %arg20[%c0_110, %c0_111], %315 {strides = array<i32>} : memref<34x32xf32, #tpu.memory_space<vmem>>, vector<17x8xf32>,
    %317 = vector.extract_strided_slice %313 {offsets = [1, 0, 0], sizes = [1, 17, 8], strides = [1, 1, 1]} : vector<8x17x8xf32> to vector<1x17x8xf32>
    %318 = vector.shape_cast %317 : vector<1x17x8xf32> to vector<17x8xf32>
    %c0_112 = arith.constant 0 : index
    %c8_113 = arith.constant 8 : index
    %319 = vector.load %arg20[%c0_112, %c8_113] : memref<34x32xf32, #tpu.memory_space<vmem>>, vector<17x8xf32>
    tpu.vector_store %arg20[%c0_112, %c8_113], %318 {strides = array<i32>} : memref<34x32xf32, #tpu.memory_space<vmem>>, vector<17x8xf32>,
    %320 = vector.extract_strided_slice %313 {offsets = [2, 0, 0], sizes = [1, 17, 8], strides = [1, 1, 1]} : vector<8x17x8xf32> to vector<1x17x8xf32>
    %321 = vector.shape_cast %320 : vector<1x17x8xf32> to vector<17x8xf32>
    %c0_114 = arith.constant 0 : index
    %c16_115 = arith.constant 16 : index
    %322 = vector.load %arg20[%c0_114, %c16_115] : memref<34x32xf32, #tpu.memory_space<vmem>>, vector<17x8xf32>
    tpu.vector_store %arg20[%c0_114, %c16_115], %321 {strides = array<i32>} : memref<34x32xf32, #tpu.memory_space<vmem>>, vector<17x8xf32>,
    %323 = vector.extract_strided_slice %313 {offsets = [3, 0, 0], sizes = [1, 17, 8], strides = [1, 1, 1]} : vector<8x17x8xf32> to vector<1x17x8xf32>
    %324 = vector.shape_cast %323 : vector<1x17x8xf32> to vector<17x8xf32>
    %c0_116 = arith.constant 0 : index
    %c24_117 = arith.constant 24 : index
    %325 = vector.load %arg20[%c0_116, %c24_117] : memref<34x32xf32, #tpu.memory_space<vmem>>, vector<17x8xf32>
    tpu.vector_store %arg20[%c0_116, %c24_117], %324 {strides = array<i32>} : memref<34x32xf32, #tpu.memory_space<vmem>>, vector<17x8xf32>,
    %326 = vector.extract_strided_slice %313 {offsets = [4, 0, 0], sizes = [1, 17, 8], strides = [1, 1, 1]} : vector<8x17x8xf32> to vector<1x17x8xf32>
    %327 = vector.shape_cast %326 : vector<1x17x8xf32> to vector<17x8xf32>
    %c17_118 = arith.constant 17 : index
    %c0_119 = arith.constant 0 : index
    %328 = vector.load %arg20[%c17_118, %c0_119] : memref<34x32xf32, #tpu.memory_space<vmem>>, vector<17x8xf32>
    tpu.vector_store %arg20[%c17_118, %c0_119], %327 {strides = array<i32>} : memref<34x32xf32, #tpu.memory_space<vmem>>, vector<17x8xf32>,
    %329 = vector.extract_strided_slice %313 {offsets = [5, 0, 0], sizes = [1, 17, 8], strides = [1, 1, 1]} : vector<8x17x8xf32> to vector<1x17x8xf32>
    %330 = vector.shape_cast %329 : vector<1x17x8xf32> to vector<17x8xf32>
    %c17_120 = arith.constant 17 : index
    %c8_121 = arith.constant 8 : index
    %331 = vector.load %arg20[%c17_120, %c8_121] : memref<34x32xf32, #tpu.memory_space<vmem>>, vector<17x8xf32>
    tpu.vector_store %arg20[%c17_120, %c8_121], %330 {strides = array<i32>} : memref<34x32xf32, #tpu.memory_space<vmem>>, vector<17x8xf32>,
    %332 = vector.extract_strided_slice %313 {offsets = [6, 0, 0], sizes = [1, 17, 8], strides = [1, 1, 1]} : vector<8x17x8xf32> to vector<1x17x8xf32>
    %333 = vector.shape_cast %332 : vector<1x17x8xf32> to vector<17x8xf32>
    %c17_122 = arith.constant 17 : index
    %c16_123 = arith.constant 16 : index
    %334 = vector.load %arg20[%c17_122, %c16_123] : memref<34x32xf32, #tpu.memory_space<vmem>>, vector<17x8xf32>
    tpu.vector_store %arg20[%c17_122, %c16_123], %333 {strides = array<i32>} : memref<34x32xf32, #tpu.memory_space<vmem>>, vector<17x8xf32>,
    %335 = vector.extract_strided_slice %313 {offsets = [7, 0, 0], sizes = [1, 17, 8], strides = [1, 1, 1]} : vector<8x17x8xf32> to vector<1x17x8xf32>
    %336 = vector.shape_cast %335 : vector<1x17x8xf32> to vector<17x8xf32>
    %c17_124 = arith.constant 17 : index
    %c24_125 = arith.constant 24 : index
    %337 = vector.load %arg20[%c17_124, %c24_125] : memref<34x32xf32, #tpu.memory_space<vmem>>, vector<17x8xf32>
    tpu.vector_store %arg20[%c17_124, %c24_125], %336 {strides = array<i32>} : memref<34x32xf32, #tpu.memory_space<vmem>>, vector<17x8xf32>,
    %c0_126 = arith.constant 0 : index
    %c0_127 = arith.constant 0 : index
    %338 = vector.load %arg20[%c0_126, %c0_127] : memref<34x32xf32, #tpu.memory_space<vmem>>, vector<34x32xf32>
    %c1_128 = arith.constant 1 : index
    %c0_129 = arith.constant 0 : index
    %c0_130 = arith.constant 0 : index
    %339 = vector.load %arg7[%c1_128, %c0_129, %c0_130] : memref<2x32x32xf32, #tpu.memory_space<vmem>>, vector<1x32x32xf32>
    %340 = vector.shape_cast %339 : vector<1x32x32xf32> to vector<32x32xf32>
    %cst_131 = arith.constant dense<0.000000e+00> : vector<34x32xf32>
    %341 = tpu.matmul %338, %340, %cst_131 {dimension_numbers = #tpu.dot_dimension_numbers<[1], [0], [0], [1], [0, 0, 1, 1], [], []>} : vector<34x32xf32>, vector<32x32xf32>, vector<34x32xf32> -> vector<34x32xf32>
    %342 = arith.addf %215, %341 : vector<34x32xf32>
    %c1_132 = arith.constant 1 : index
    %c0_133 = arith.constant 0 : index
    %c0_134 = arith.constant 0 : index
    %343 = vector.load %arg8[%c1_132, %c0_133, %c0_134] : memref<2x1x32xf32, #tpu.memory_space<vmem>>, vector<1x1x32xf32>
    %344 = vector.shape_cast %343 : vector<1x1x32xf32> to vector<1x32xf32>
    %345 = vector.broadcast %344 : vector<1x32xf32> to vector<34x32xf32>
    %346 = arith.addf %342, %345 : vector<34x32xf32>
    %c1_135 = arith.constant 1 : index
    %c0_136 = arith.constant 0 : index
    %c0_137 = arith.constant 0 : index
    %347 = vector.load %arg9[%c1_135, %c0_136, %c0_137] : memref<2x1x32xf32, #tpu.memory_space<vmem>>, vector<1x1x32xf32>
    %348 = vector.shape_cast %347 : vector<1x1x32xf32> to vector<1x32xf32>
    %c1_138 = arith.constant 1 : index
    %c0_139 = arith.constant 0 : index
    %c0_140 = arith.constant 0 : index
    %349 = vector.load %arg10[%c1_138, %c0_139, %c0_140] : memref<2x1x32xf32, #tpu.memory_space<vmem>>, vector<1x1x32xf32>
    %350 = vector.shape_cast %349 : vector<1x1x32xf32> to vector<1x32xf32>
    %cst_141 = arith.constant dense<0.000000e+00> : vector<34xf32>
    %351 = vector.multi_reduction <add>, %346, %cst_141 [1] : vector<34x32xf32> to vector<34xf32>
    %352 = vector.shape_cast %351 : vector<34xf32> to vector<34x1xf32>
    %cst_142 = arith.constant 3.200000e+01 : f32
    %353 = vector.broadcast %cst_142 : f32 to vector<34x1xf32>
    %354 = arith.divf %352, %353 : vector<34x1xf32>
    %355 = vector.broadcast %354 : vector<34x1xf32> to vector<34x32xf32>
    %356 = arith.subf %346, %355 : vector<34x32xf32>
    %357 = arith.mulf %356, %356 : vector<34x32xf32>
    %cst_143 = arith.constant dense<0.000000e+00> : vector<34xf32>
    %358 = vector.multi_reduction <add>, %357, %cst_143 [1] : vector<34x32xf32> to vector<34xf32>
    %359 = vector.shape_cast %358 : vector<34xf32> to vector<34x1xf32>
    %cst_144 = arith.constant 3.200000e+01 : f32
    %360 = vector.broadcast %cst_144 : f32 to vector<34x1xf32>
    %361 = arith.divf %359, %360 : vector<34x1xf32>
    %362 = vector.broadcast %354 : vector<34x1xf32> to vector<34x32xf32>
    %363 = arith.subf %346, %362 : vector<34x32xf32>
    %cst_145 = arith.constant 9.99999974E-6 : f32
    %364 = vector.broadcast %cst_145 : f32 to vector<34x1xf32>
    %365 = arith.addf %361, %364 : vector<34x1xf32>
    %366 = math.rsqrt %365 : vector<34x1xf32>
    %367 = vector.broadcast %366 : vector<34x1xf32> to vector<34x32xf32>
    %368 = arith.mulf %363, %367 : vector<34x32xf32>
    %369 = vector.broadcast %348 : vector<1x32xf32> to vector<34x32xf32>
    %370 = arith.mulf %368, %369 : vector<34x32xf32>
    %371 = vector.broadcast %350 : vector<1x32xf32> to vector<34x32xf32>
    %372 = arith.addf %370, %371 : vector<34x32xf32>
    %c1_146 = arith.constant 1 : index
    %c0_147 = arith.constant 0 : index
    %c0_148 = arith.constant 0 : index
    %373 = vector.load %arg11[%c1_146, %c0_147, %c0_148] : memref<2x32x64xf32, #tpu.memory_space<vmem>>, vector<1x32x64xf32>
    %374 = vector.shape_cast %373 : vector<1x32x64xf32> to vector<32x64xf32>
    %cst_149 = arith.constant dense<0.000000e+00> : vector<34x64xf32>
    %375 = tpu.matmul %372, %374, %cst_149 {dimension_numbers = #tpu.dot_dimension_numbers<[1], [0], [0], [1], [0, 0, 1, 1], [], []>} : vector<34x32xf32>, vector<32x64xf32>, vector<34x64xf32> -> vector<34x64xf32>
    %c1_150 = arith.constant 1 : index
    %c0_151 = arith.constant 0 : index
    %c0_152 = arith.constant 0 : index
    %376 = vector.load %arg12[%c1_150, %c0_151, %c0_152] : memref<2x1x64xf32, #tpu.memory_space<vmem>>, vector<1x1x64xf32>
    %377 = vector.shape_cast %376 : vector<1x1x64xf32> to vector<1x64xf32>
    %378 = vector.broadcast %377 : vector<1x64xf32> to vector<34x64xf32>
    %379 = arith.addf %375, %378 : vector<34x64xf32>
    %cst_153 = arith.constant 5.000000e-01 : f32
    %380 = vector.broadcast %cst_153 : f32 to vector<34x64xf32>
    %381 = arith.mulf %380, %379 : vector<34x64xf32>
    %cst_154 = arith.constant 0.707106769 : f32
    %382 = vector.broadcast %cst_154 : f32 to vector<34x64xf32>
    %383 = arith.mulf %379, %382 : vector<34x64xf32>
    %384 = math.absf %383 : vector<34x64xf32>
    %cst_155 = arith.constant 0.327591091 : f32
    %385 = vector.broadcast %cst_155 : f32 to vector<34x64xf32>
    %386 = arith.mulf %385, %384 : vector<34x64xf32>
    %cst_156 = arith.constant 1.000000e+00 : f32
    %387 = vector.broadcast %cst_156 : f32 to vector<34x64xf32>
    %388 = arith.addf %387, %386 : vector<34x64xf32>
    %389 = tpu.reciprocal %388 {approx = true} : vector<34x64xf32> -> vector<34x64xf32>
    %cst_157 = arith.constant 1.06140542 : f32
    %390 = vector.broadcast %cst_157 : f32 to vector<34x64xf32>
    %391 = arith.mulf %390, %389 : vector<34x64xf32>
    %cst_158 = arith.constant -1.45315206 : f32
    %392 = vector.broadcast %cst_158 : f32 to vector<34x64xf32>
    %393 = arith.addf %391, %392 : vector<34x64xf32>
    %394 = arith.mulf %393, %389 : vector<34x64xf32>
    %cst_159 = arith.constant 1.42141378 : f32
    %395 = vector.broadcast %cst_159 : f32 to vector<34x64xf32>
    %396 = arith.addf %394, %395 : vector<34x64xf32>
    %397 = arith.mulf %396, %389 : vector<34x64xf32>
    %cst_160 = arith.constant -0.284496725 : f32
    %398 = vector.broadcast %cst_160 : f32 to vector<34x64xf32>
    %399 = arith.addf %397, %398 : vector<34x64xf32>
    %400 = arith.mulf %399, %389 : vector<34x64xf32>
    %cst_161 = arith.constant 0.254829586 : f32
    %401 = vector.broadcast %cst_161 : f32 to vector<34x64xf32>
    %402 = arith.addf %400, %401 : vector<34x64xf32>
    %403 = arith.mulf %402, %389 : vector<34x64xf32>
    %cst_162 = arith.constant 0.000000e+00 : f32
    %404 = vector.broadcast %cst_162 : f32 to vector<34x64xf32>
    %405 = arith.subf %404, %384 : vector<34x64xf32>
    %406 = arith.mulf %405, %384 : vector<34x64xf32>
    %407 = math.exp %406 : vector<34x64xf32>
    %408 = arith.mulf %403, %407 : vector<34x64xf32>
    %cst_163 = arith.constant 1.000000e+00 : f32
    %409 = vector.broadcast %cst_163 : f32 to vector<34x64xf32>
    %410 = arith.subf %409, %408 : vector<34x64xf32>
    %cst_164 = arith.constant 0.000000e+00 : f32
    %411 = vector.broadcast %cst_164 : f32 to vector<34x64xf32>
    %412 = arith.cmpf oge, %383, %411 : vector<34x64xf32>
    %cst_165 = arith.constant 0.000000e+00 : f32
    %413 = vector.broadcast %cst_165 : f32 to vector<34x64xf32>
    %414 = arith.subf %413, %410 : vector<34x64xf32>
    %415 = arith.select %412, %410, %414 : vector<34x64xi1>, vector<34x64xf32>
    %cst_166 = arith.constant 1.000000e+00 : f32
    %416 = vector.broadcast %cst_166 : f32 to vector<34x64xf32>
    %417 = arith.addf %416, %415 : vector<34x64xf32>
    %418 = arith.mulf %381, %417 : vector<34x64xf32>
    %c1_167 = arith.constant 1 : index
    %c0_168 = arith.constant 0 : index
    %c0_169 = arith.constant 0 : index
    %419 = vector.load %arg13[%c1_167, %c0_168, %c0_169] : memref<2x64x32xf32, #tpu.memory_space<vmem>>, vector<1x64x32xf32>
    %420 = vector.shape_cast %419 : vector<1x64x32xf32> to vector<64x32xf32>
    %cst_170 = arith.constant dense<0.000000e+00> : vector<34x32xf32>
    %421 = tpu.matmul %418, %420, %cst_170 {dimension_numbers = #tpu.dot_dimension_numbers<[1], [0], [0], [1], [0, 0, 1, 1], [], []>} : vector<34x64xf32>, vector<64x32xf32>, vector<34x32xf32> -> vector<34x32xf32>
    %422 = arith.addf %346, %421 : vector<34x32xf32>
    %c1_171 = arith.constant 1 : index
    %c0_172 = arith.constant 0 : index
    %c0_173 = arith.constant 0 : index
    %423 = vector.load %arg14[%c1_171, %c0_172, %c0_173] : memref<2x1x32xf32, #tpu.memory_space<vmem>>, vector<1x1x32xf32>
    %424 = vector.shape_cast %423 : vector<1x1x32xf32> to vector<1x32xf32>
    %425 = vector.broadcast %424 : vector<1x32xf32> to vector<34x32xf32>
    %426 = arith.addf %422, %425 : vector<34x32xf32>
    %427 = vector.extract_strided_slice %426 {offsets = [0, 0], sizes = [1, 32], strides = [1, 1]} : vector<34x32xf32> to vector<1x32xf32>
    %428 = vector.extract_strided_slice %426 {offsets = [17, 0], sizes = [1, 32], strides = [1, 1]} : vector<34x32xf32> to vector<1x32xf32>
    %429 = tpu.concatenate %427, %428 in 0 : vector<1x32xf32>, vector<1x32xf32> -> vector<2x32xf32>
    %c0_174 = arith.constant 0 : index
    %c0_175 = arith.constant 0 : index
    %430 = vector.load %arg15[%c0_174, %c0_175] : memref<1x32xf32, #tpu.memory_space<vmem>>, vector<1x32xf32>
    %c0_176 = arith.constant 0 : index
    %c0_177 = arith.constant 0 : index
    %431 = vector.load %arg16[%c0_176, %c0_177] : memref<1x32xf32, #tpu.memory_space<vmem>>, vector<1x32xf32>
    %cst_178 = arith.constant dense<0.000000e+00> : vector<2xf32>
    %432 = vector.multi_reduction <add>, %429, %cst_178 [1] : vector<2x32xf32> to vector<2xf32>
    %433 = vector.shape_cast %432 : vector<2xf32> to vector<2x1xf32>
    %cst_179 = arith.constant 3.200000e+01 : f32
    %434 = vector.broadcast %cst_179 : f32 to vector<2x1xf32>
    %435 = arith.divf %433, %434 : vector<2x1xf32>
    %436 = vector.broadcast %435 : vector<2x1xf32> to vector<2x32xf32>
    %437 = arith.subf %429, %436 : vector<2x32xf32>
    %438 = arith.mulf %437, %437 : vector<2x32xf32>
    %cst_180 = arith.constant dense<0.000000e+00> : vector<2xf32>
    %439 = vector.multi_reduction <add>, %438, %cst_180 [1] : vector<2x32xf32> to vector<2xf32>
    %440 = vector.shape_cast %439 : vector<2xf32> to vector<2x1xf32>
    %cst_181 = arith.constant 3.200000e+01 : f32
    %441 = vector.broadcast %cst_181 : f32 to vector<2x1xf32>
    %442 = arith.divf %440, %441 : vector<2x1xf32>
    %443 = vector.broadcast %435 : vector<2x1xf32> to vector<2x32xf32>
    %444 = arith.subf %429, %443 : vector<2x32xf32>
    %cst_182 = arith.constant 9.99999974E-6 : f32
    %445 = vector.broadcast %cst_182 : f32 to vector<2x1xf32>
    %446 = arith.addf %442, %445 : vector<2x1xf32>
    %447 = math.rsqrt %446 : vector<2x1xf32>
    %448 = vector.broadcast %447 : vector<2x1xf32> to vector<2x32xf32>
    %449 = arith.mulf %444, %448 : vector<2x32xf32>
    %450 = vector.broadcast %430 : vector<1x32xf32> to vector<2x32xf32>
    %451 = arith.mulf %449, %450 : vector<2x32xf32>
    %452 = vector.broadcast %431 : vector<1x32xf32> to vector<2x32xf32>
    %453 = arith.addf %451, %452 : vector<2x32xf32>
    %c0_183 = arith.constant 0 : index
    %c0_184 = arith.constant 0 : index
    %454 = vector.load %arg17[%c0_183, %c0_184] : memref<32x8xf32, #tpu.memory_space<vmem>>, vector<32x8xf32>
    %cst_185 = arith.constant dense<0.000000e+00> : vector<2x8xf32>
    %455 = tpu.matmul %453, %454, %cst_185 {dimension_numbers = #tpu.dot_dimension_numbers<[1], [0], [0], [1], [0, 0, 1, 1], [], []>} : vector<2x32xf32>, vector<32x8xf32>, vector<2x8xf32> -> vector<2x8xf32>
    %c0_186 = arith.constant 0 : index
    %c0_187 = arith.constant 0 : index
    %456 = vector.load %arg18[%c0_186, %c0_187] : memref<1x8xf32, #tpu.memory_space<vmem>>, vector<1x8xf32>
    %457 = vector.broadcast %456 : vector<1x8xf32> to vector<2x8xf32>
    %458 = arith.addf %455, %457 : vector<2x8xf32>
    %c0_188 = arith.constant 0 : index
    %c0_189 = arith.constant 0 : index
    %459 = vector.load %arg19[%c0_188, %c0_189] : memref<2x8xf32, #tpu.memory_space<vmem>>, vector<2x8xf32>
    tpu.vector_store %arg19[%c0_188, %c0_189], %458 {strides = array<i32>} : memref<2x8xf32, #tpu.memory_space<vmem>>, vector<2x8xf32>,
    return
  }
}

</mosaic_0001>

<llo_original>
// kernel: tile.9
$region0: #{tile.9}
  %s0 = inlined_call_operand.vmem [shape: f32[2,17,32], index: 0, kind: input, shape index: {}]
  %s1 = inlined_call_operand.vmem [shape: f32[34,32], index: 1, kind: output, shape index: {}]
  %v2 = vld [vmem:[%s0] sm:$0xff]
  %vm3 = vcmask 261120
  %4 = vst.msk [vmem:[%s1] sm:$0xff] %vm3, %v2
  %s5 = scalar_lea.vmem %s0, 8
  %v6 = vld [vmem:[%s5] sm:$0xff]
  %vm7 = vcmask 261120
  %s8 = scalar_lea.vmem %s1, 8
  %9 = vst.msk [vmem:[%s8] sm:$0xff] %vm7, %v6
  %s10 = scalar_lea.vmem %s0, 16
  %s11 = smov 3
  %v12 = vld [vmem:[%s10] ss:$8 sm:%s11]
  %vm13 = vcmask 261120
  %s14 = scalar_lea.vmem %s1, 16
  %15 = vst.msk [vmem:[%s14] sm:$0x3] %vm13, %v12
  %s16 = scalar_lea.vmem %s0, 25
  %v17 = vld [vmem:[%s16] sm:$0xff]
  %vm18 = vcmask 261120
  %s19 = scalar_lea.vmem %s1, 18
  %20 = vst.msk [vmem:[%s19] sm:$0xff] %vm18, %v17
  %s21 = scalar_lea.vmem %s0, 33
  %v22 = vld [vmem:[%s21] sm:$0xff]
  %vm23 = vcmask 261120
  %s24 = scalar_lea.vmem %s1, 26
  %25 = vst.msk [vmem:[%s24] sm:$0xff] %vm23, %v22

// kernel: backbone_forward.1
$region0: #{backbone_forward.1}
  #allocation0 [shape = 'u32[]', space=smem, size = 0x4, offset = 0x4, fixed_abs, tag = 'smem constant byte address 0x4 - core index']
  #allocation1 [shape = 'u32[144,128]{1,0:T(1,128)}', space=vmem, size = 0x12000, scoped, tag = 'internal scratch']
  #allocation2 [shape = 'f32[34,32]{1,0:T(8,128)}', space=vmem, size = 0x5000, scoped, tag = 'scratch operand']
  %s0 = inlined_call_operand.vmem [shape: f32[34,48], index: 0, kind: input, shape index: {}]
  %s1 = inlined_call_operand.vmem [shape: f32[34,32], index: 1, kind: input, shape index: {}]
  %s2 = inlined_call_operand.vmem [shape: f32[48,32], index: 2, kind: input, shape index: {}]
  %s3 = inlined_call_operand.vmem [shape: f32[2,1,32], index: 3, kind: input, shape index: {}]
  %s4 = inlined_call_operand.vmem [shape: f32[2,1,32], index: 4, kind: input, shape index: {}]
  %s5 = inlined_call_operand.vmem [shape: f32[2,32,96], index: 5, kind: input, shape index: {}]
  %s6 = inlined_call_operand.vmem [shape: f32[2,1,96], index: 6, kind: input, shape index: {}]
  %s7 = inlined_call_operand.vmem [shape: f32[2,32,32], index: 7, kind: input, shape index: {}]
  %s8 = inlined_call_operand.vmem [shape: f32[2,1,32], index: 8, kind: input, shape index: {}]
  %s9 = inlined_call_operand.vmem [shape: f32[2,1,32], index: 9, kind: input, shape index: {}]
  %s10 = inlined_call_operand.vmem [shape: f32[2,1,32], index: 10, kind: input, shape index: {}]
  %s11 = inlined_call_operand.vmem [shape: f32[2,32,64], index: 11, kind: input, shape index: {}]
  %s12 = inlined_call_operand.vmem [shape: f32[2,1,64], index: 12, kind: input, shape index: {}]
  %s13 = inlined_call_operand.vmem [shape: f32[2,64,32], index: 13, kind: input, shape index: {}]
  %s14 = inlined_call_operand.vmem [shape: f32[2,1,32], index: 14, kind: input, shape index: {}]
  %s15 = inlined_call_operand.vmem [shape: f32[1,32], index: 15, kind: input, shape index: {}]
  %s16 = inlined_call_operand.vmem [shape: f32[1,32], index: 16, kind: input, shape index: {}]
  %s17 = inlined_call_operand.vmem [shape: f32[32,8], index: 17, kind: input, shape index: {}]
  %s18 = inlined_call_operand.vmem [shape: f32[1,8], index: 18, kind: input, shape index: {}]
  %s19 = inlined_call_operand.hbm [shape: f32[2,8], index: 19, kind: output, shape index: {}]
  %s20 = sld [smem:[#allocation0]]
  $region86: #{backbone_forward.1} parent=0
    _
  %s22 = ssub.s32 1, %s20
  %s23 = scalar_select 0, %s22, %s20
  $region1: #{backbone_forward.1} parent=0
    #allocation3 [shape = 'u8[1024]{0}', space=vmem, size = 0x400, scoped, tag = 'output window, operand 0, single buffered']
    #allocation4 [shape = 's32[1]{0}', space=sflag, size = 0x4, scoped, tag = 'scoped memory for backbone_forward.1']
    %24 = vsyncpa [#allocation4], 0
    // Predicated region
    $region2: #{backbone_forward.1} parent=1 // pred_check
      _
    $region3: #{backbone_forward.1} parent=1 // pred_check_branch
      %26 = sbr.rel (0) target = $region5
    $region4: #{backbone_forward.1} parent=1 // pred_region
      _
    $region5: #{backbone_forward.1} parent=1 // pred_fallthru
      _
    // Predicated region
    $region6: #{backbone_forward.1} parent=1 // pred_check
      _
    $region7: #{backbone_forward.1} parent=1 // pred_check_branch
      %28 = sbr.rel (0) target = $region9
    $region8: #{backbone_forward.1} parent=1 // pred_region
      _
    $region9: #{backbone_forward.1} parent=1 // pred_fallthru
      _
    // Predicated region
    $region10: #{backbone_forward.1} parent=1 // pred_check
      _
    $region11: #{backbone_forward.1} parent=1 // pred_check_branch
      %30 = sbr.rel (0) target = $region13
    $region12: #{backbone_forward.1} parent=1 // pred_region
      _
    $region13: #{backbone_forward.1} parent=1 // pred_fallthru
      _
    // Predicated region
    $region14: #{backbone_forward.1} parent=1 // pred_check
      _
    $region15: #{backbone_forward.1} parent=1 // pred_check_branch
      %32 = sbr.rel (0) target = $region17
    $region16: #{backbone_forward.1} parent=1 // pred_region
      _
    $region17: #{backbone_forward.1} parent=1 // pred_fallthru
      _
    // Predicated region
    $region18: #{backbone_forward.1} parent=1 // pred_check
      _
    $region19: #{backbone_forward.1} parent=1 // pred_check_branch
      %34 = sbr.rel (0) target = $region21
    $region20: #{backbone_forward.1} parent=1 // pred_region
      _
    $region21: #{backbone_forward.1} parent=1 // pred_fallthru
      _
    // Predicated region
    $region22: #{backbone_forward.1} parent=1 // pred_check
      _
    $region23: #{backbone_forward.1} parent=1 // pred_check_branch
      %36 = sbr.rel (0) target = $region25
    $region24: #{backbone_forward.1} parent=1 // pred_region
      _
    $region25: #{backbone_forward.1} parent=1 // pred_fallthru
      _
    // Predicated region
    $region26: #{backbone_forward.1} parent=1 // pred_check
      _
    $region27: #{backbone_forward.1} parent=1 // pred_check_branch
      %38 = sbr.rel (0) target = $region29
    $region28: #{backbone_forward.1} parent=1 // pred_region
      _
    $region29: #{backbone_forward.1} parent=1 // pred_fallthru
      _
    // Predicated region
    $region30: #{backbone_forward.1} parent=1 // pred_check
      _
    $region31: #{backbone_forward.1} parent=1 // pred_check_branch
      %40 = sbr.rel (0) target = $region33
    $region32: #{backbone_forward.1} parent=1 // pred_region
      _
    $region33: #{backbone_forward.1} parent=1 // pred_fallthru
      _
    // Predicated region
    $region34: #{backbone_forward.1} parent=1 // pred_check
      _
    $region35: #{backbone_forward.1} parent=1 // pred_check_branch
      %42 = sbr.rel (0) target = $region37
    $region36: #{backbone_forward.1} parent=1 // pred_region
      _
    $region37: #{backbone_forward.1} parent=1 // pred_fallthru
      _
    // Predicated region
    $region38: #{backbone_forward.1} parent=1 // pred_check
      _
    $region39: #{backbone_forward.1} parent=1 // pred_check_branch
      %44 = sbr.rel (0) target = $region41
    $region40: #{backbone_forward.1} parent=1 // pred_region
      _
    $region41: #{backbone_forward.1} parent=1 // pred_fallthru
      _
    // Predicated region
    $region42: #{backbone_forward.1} parent=1 // pred_check
      _
    $region43: #{backbone_forward.1} parent=1 // pred_check_branch
      %46 = sbr.rel (0) target = $region45
    $region44: #{backbone_forward.1} parent=1 // pred_region
      _
    $region45: #{backbone_forward.1} parent=1 // pred_fallthru
      _
    // Predicated region
    $region46: #{backbone_forward.1} parent=1 // pred_check
      _
    $region47: #{backbone_forward.1} parent=1 // pred_check_branch
      %48 = sbr.rel (0) target = $region49
    $region48: #{backbone_forward.1} parent=1 // pred_region
      _
    $region49: #{backbone_forward.1} parent=1 // pred_fallthru
      _
    // Predicated region
    $region50: #{backbone_forward.1} parent=1 // pred_check
      _
    $region51: #{backbone_forward.1} parent=1 // pred_check_branch
      %50 = sbr.rel (0) target = $region53
    $region52: #{backbone_forward.1} parent=1 // pred_region
      _
    $region53: #{backbone_forward.1} parent=1 // pred_fallthru
      _
    // Predicated region
    $region54: #{backbone_forward.1} parent=1 // pred_check
      _
    $region55: #{backbone_forward.1} parent=1 // pred_check_branch
      %52 = sbr.rel (0) target = $region57
    $region56: #{backbone_forward.1} parent=1 // pred_region
      _
    $region57: #{backbone_forward.1} parent=1 // pred_fallthru
      _
    // Predicated region
    $region58: #{backbone_forward.1} parent=1 // pred_check
      _
    $region59: #{backbone_forward.1} parent=1 // pred_check_branch
      %54 = sbr.rel (0) target = $region61
    $region60: #{backbone_forward.1} parent=1 // pred_region
      _
    $region61: #{backbone_forward.1} parent=1 // pred_fallthru
      _
    // Predicated region
    $region62: #{backbone_forward.1} parent=1 // pred_check
      _
    $region63: #{backbone_forward.1} parent=1 // pred_check_branch
      %56 = sbr.rel (0) target = $region65
    $region64: #{backbone_forward.1} parent=1 // pred_region
      _
    $region65: #{backbone_forward.1} parent=1 // pred_fallthru
      _
    // Predicated region
    $region66: #{backbone_forward.1} parent=1 // pred_check
      _
    $region67: #{backbone_forward.1} parent=1 // pred_check_branch
      %58 = sbr.rel (0) target = $region69
    $region68: #{backbone_forward.1} parent=1 // pred_region
      _
    $region69: #{backbone_forward.1} parent=1 // pred_fallthru
      _
    // Predicated region
    $region70: #{backbone_forward.1} parent=1 // pred_check
      _
    $region71: #{backbone_forward.1} parent=1 // pred_check_branch
      %60 = sbr.rel (0) target = $region73
    $region72: #{backbone_forward.1} parent=1 // pred_region
      _
    $region73: #{backbone_forward.1} parent=1 // pred_fallthru
      _
    // Predicated region
    $region74: #{backbone_forward.1} parent=1 // pred_check
      _
    $region75: #{backbone_forward.1} parent=1 // pred_check_branch
      %62 = sbr.rel (0) target = $region77
    $region76: #{backbone_forward.1} parent=1 // pred_region
      _
    $region77: #{backbone_forward.1} parent=1 // pred_fallthru
      _
    %v63 = vld [vmem:[%s0] sm:$0xff]
    %v64 = vld [vmem:[%s0 + $0x8] sm:$0xff]
    %v65 = vld [vmem:[%s0 + $0x10] sm:$0xff]
    %v66 = vld [vmem:[%s0 + $0x18] sm:$0xff]
    %v67 = vld [vmem:[%s0 + $0x20] sm:$0x3]
    %v68 = vld [vmem:[%s2] sm:$0xff]
    %v69 = vld [vmem:[%s2 + $0x8] sm:$0xff]
    %v70 = vld [vmem:[%s2 + $0x10] sm:$0xff]
    %v71 = vld [vmem:[%s2 + $0x18] sm:$0xff]
    %v72 = vld [vmem:[%s2 + $0x20] sm:$0xff]
    %v73 = vld [vmem:[%s2 + $0x28] sm:$0xff]
    %v74 = vld [vmem:[%s1] sm:$0xff]
    %v75 = vld [vmem:[%s1 + $0x8] sm:$0xff]
    %v76 = vld [vmem:[%s1 + $0x10] sm:$0xff]
    %v77 = vld [vmem:[%s1 + $0x18] sm:$0xff]
    %v78 = vld [vmem:[%s1 + $0x20] sm:$0x3]
    %vm79 = vcmask 392192
    %v81 = vsel %vm79, %v63, 0
    %v84 = vsel %vm79, %v64, 0
    %v87 = vsel %vm79, %v65, 0
    %v90 = vsel %vm79, %v66, 0
    %v93 = vsel %vm79, %v67, 0
    %95 = vmatprep.subr.mxu0 0.0
    %96 = vmatpush1.msra.mxu0 0.0
    %97 = vmatprep.subr.mxu0 0.0
    %98 = vmatpush1.msra.mxu0 0.0
    %99 = vmatprep.subr.mxu0 0.0
    %100 = vmatpush1.msra.mxu0 0.0
    %101 = vmatprep.subr.mxu0 0.0
    %102 = vmatpush1.msra.mxu0 0.0
    %103 = vmatprep.subr.mxu0 0.0
    %104 = vmatpush1.msra.mxu0 0.0
    %105 = vmatprep.subr.mxu0 0.0
    %106 = vmatpush1.msra.mxu0 0.0
    %107 = vmatprep.subr.mxu0 0.0
    %108 = vmatpush1.msra.mxu0 0.0
    %109 = vmatprep.subr.mxu0 0.0
    %110 = vmatpush1.msra.mxu0 0.0
    %111 = vmatprep.subr.mxu0 0.0
    %112 = vmatpush1.msra.mxu0 0.0
    %113 = vmatprep.subr.mxu0 0.0
    %114 = vmatpush1.msra.mxu0 0.0
    %115 = vmatprep.subr.mxu0 0.0
    %116 = vmatpush1.msra.mxu0 %v73
    %117 = vmatprep.subr.mxu0 0.0
    %118 = vmatpush1.msra.mxu0 %v72
    %119 = vmatprep.subr.mxu0 0.0
    %120 = vmatpush1.msra.mxu0 %v71
    %121 = vmatprep.subr.mxu0 0.0
    %122 = vmatpush1.msra.mxu0 %v70
    %123 = vmatprep.subr.mxu0 0.0
    %124 = vmatpush1.msra.mxu0 %v69
    %125 = vmatprep.subr.mxu0 0.0
    %126 = vmatpush1.msra.mxu0 %v68
    %127 = vmatprep.subr.mxu0 0.0
    %128 = vmatpush2.msra.mxu0 0.0
    %129 = vmatprep.subr.mxu0 0.0
    %130 = vmatpush2.msra.mxu0 0.0
    %131 = vmatprep.subr.mxu0 0.0
    %132 = vmatpush2.msra.mxu0 0.0
    %133 = vmatprep.subr.mxu0 0.0
    %134 = vmatpush2.msra.mxu0 0.0
    %135 = vmatprep.subr.mxu0 0.0
    %136 = vmatpush2.msra.mxu0 0.0
    %137 = vmatprep.subr.mxu0 0.0
    %138 = vmatpush2.msra.mxu0 0.0
    %139 = vmatprep.subr.mxu0 0.0
    %140 = vmatpush2.msra.mxu0 0.0
    %141 = vmatprep.subr.mxu0 0.0
    %142 = vmatpush2.msra.mxu0 0.0
    %143 = vmatprep.subr.mxu0 0.0
    %144 = vmatpush2.msra.mxu0 0.0
    %145 = vmatprep.subr.mxu0 0.0
    %146 = vmatpush2.msra.mxu0 0.0
    %147 = vmatprep.subr.mxu0 0.0
    %148 = vmatpush2.msra.mxu0 0.0
    %149 = vmatprep.subr.mxu0 0.0
    %150 = vmatpush2.msra.mxu0 0.0
    %151 = vmatprep.subr.mxu0 0.0
    %152 = vmatpush2.msra.mxu0 0.0
    %153 = vmatprep.subr.mxu0 0.0
    %154 = vmatpush2.msra.mxu0 0.0
    %155 = vmatprep.subr.mxu0 0.0
    %156 = vmatpush2.msra.mxu0 0.0
    %157 = vmatprep.subr.mxu0 0.0
    %158 = vmatpush2.msra.mxu0 0.0
    %159 = vmatprep.mubr.f32.mxu0 0.0
    %160 = vmatmul.mubr.f32.gmra.mxu0 %v81
    %v161 = vpop.f32.mrf.mxu0
    %v162 = vadd.f32 %v74, %v161
    %v163 = vpop.f32.mrf.mxu0
    %164 = vmatprep.mubr.f32.mxu0 0.0
    %165 = vmatmul.mubr.f32.gmra.mxu0 %v84
    %v166 = vpop.f32.mrf.mxu0
    %v167 = vadd.f32 %v75, %v166
    %v168 = vpop.f32.mrf.mxu0
    %169 = vmatprep.mubr.f32.mxu0 0.0
    %170 = vmatmul.mubr.f32.gmra.mxu0 %v87
    %v171 = vpop.f32.mrf.mxu0
    %v172 = vadd.f32 %v76, %v171
    %v173 = vpop.f32.mrf.mxu0
    %174 = vmatprep.mubr.f32.mxu0 0.0
    %175 = vmatmul.mubr.f32.gmra.mxu0 %v90
    %v176 = vpop.f32.mrf.mxu0
    %v177 = vadd.f32 %v77, %v176
    %v178 = vpop.f32.mrf.mxu0
    %179 = vmatprep.mubr.f32.mxu0 0.0
    %180 = vmatmul.mubr.f32.gmra.mxu0 %v93
    %v181 = vpop.f32.mrf.mxu0
    %v182 = vadd.f32 %v78, %v181
    %v183 = vpop.f32.mrf.mxu0
    %184 = vdwg.mxu0
    %v185 = vld [vmem:[%s3] sm:$0x1]
    %v186 = vld [vmem:[%s4] sm:$0x1]
    %vm187 = vcmask 261120
    %v188 = vsel %vm187, %v162, 0.0
    %189 = vadd.xlane.f32.xlu0 %v188
    %v190 = vpop.xlane.xlu0 %189
    %v191 = vsel %vm187, %v167, 0.0
    %192 = vadd.xlane.f32.xlu0 %v191
    %v193 = vpop.xlane.xlu0 %192
    %v194 = vsel %vm187, %v172, 0.0
    %195 = vadd.xlane.f32.xlu0 %v194
    %v196 = vpop.xlane.xlu0 %195
    %v197 = vsel %vm187, %v177, 0.0
    %198 = vadd.xlane.f32.xlu0 %v197
    %v199 = vpop.xlane.xlu0 %198
    %vm200 = vcmask 254976
    %v201 = vsel %vm200, %v182, 0.0
    %202 = vadd.xlane.f32.xlu0 %v201
    %v203 = vpop.xlane.xlu0 %202
    %v204 = vrcp.pop 32.0
    %v205 = vmul.f32 %v190, %v204
    %v206 = vmul.f32 %v193, %v204
    %v207 = vmul.f32 %v196, %v204
    %v208 = vmul.f32 %v199, %v204
    %v209 = vmul.f32 %v203, %v204
    %v210 = vsub.f32 %v162, %v205
    %v211 = vsub.f32 %v167, %v206
    %v212 = vsub.f32 %v172, %v207
    %v213 = vsub.f32 %v177, %v208
    %v214 = vsub.f32 %v182, %v209
    %v215 = vmul.f32 %v210, %v210
    %v216 = vmul.f32 %v211, %v211
    %v217 = vmul.f32 %v212, %v212
    %v218 = vmul.f32 %v213, %v213
    %v219 = vmul.f32 %v214, %v214
    %v220 = vsel %vm187, %v215, 0.0
    %221 = vadd.xlane.f32.xlu0 %v220
    %v222 = vpop.xlane.xlu0 %221
    %v223 = vsel %vm187, %v216, 0.0
    %224 = vadd.xlane.f32.xlu0 %v223
    %v225 = vpop.xlane.xlu0 %224
    %v226 = vsel %vm187, %v217, 0.0
    %227 = vadd.xlane.f32.xlu0 %v226
    %v228 = vpop.xlane.xlu0 %227
    %v229 = vsel %vm187, %v218, 0.0
    %230 = vadd.xlane.f32.xlu0 %v229
    %v231 = vpop.xlane.xlu0 %230
    %v232 = vsel %vm200, %v219, 0.0
    %233 = vadd.xlane.f32.xlu0 %v232
    %v234 = vpop.xlane.xlu0 %233
    %v235 = vmul.f32 %v222, %v204
    %v236 = vmul.f32 %v225, %v204
    %v237 = vmul.f32 %v228, %v204
    %v238 = vmul.f32 %v231, %v204
    %v239 = vmul.f32 %v234, %v204
    %v240 = vadd.f32 %v235, 1e-05
    %v241 = vadd.f32 %v236, 1e-05
    %v242 = vadd.f32 %v237, 1e-05
    %v243 = vadd.f32 %v238, 1e-05
    %v244 = vadd.f32 %v239, 1e-05
    %v245 = vrsqrt.pop %v240
    %v246 = vrsqrt.pop %v241
    %v247 = vrsqrt.pop %v242
    %v248 = vrsqrt.pop %v243
    %v249 = vrsqrt.pop %v244
    %v250 = vmul.f32 %v210, %v245
    %v251 = vmul.f32 %v211, %v246
    %v252 = vmul.f32 %v212, %v247
    %v253 = vmul.f32 %v213, %v248
    %v254 = vmul.f32 %v214, %v249
    %v256 = vlaneseq
    %v257 = vshrl.u32 %v256, 7
    %v258 = vsub.s32 0, %v257
    %v259 = vrot.slane %v185, %v258
    %v261 = vmul.f32 %v250, %v259
    %v262 = vmul.f32 %v251, %v259
    %v263 = vmul.f32 %v252, %v259
    %v264 = vmul.f32 %v253, %v259
    %v265 = vmul.f32 %v254, %v259
    %v267 = vlaneseq
    %v268 = vshrl.u32 %v267, 7
    %v269 = vsub.s32 0, %v268
    %v270 = vrot.slane %v186, %v269
    %v272 = vadd.f32 %v261, %v270
    %v273 = vadd.f32 %v262, %v270
    %v274 = vadd.f32 %v263, %v270
    %v275 = vadd.f32 %v264, %v270
    %v276 = vadd.f32 %v265, %v270
    %v277 = vld [vmem:[%s5] sm:$0xff]
    %v278 = vld [vmem:[%s5 + $0x8] sm:$0xff]
    %v279 = vld [vmem:[%s5 + $0x10] sm:$0xff]
    %v280 = vld [vmem:[%s5 + $0x18] sm:$0xff]
    %v281 = vld [vmem:[%s6] sm:$0x1]
    %v283 = vlaneseq
    %v284 = vshrl.u32 %v283, 7
    %v285 = vsub.s32 0, %v284
    %v286 = vrot.slane %v281, %v285
    %v289 = vsel %vm187, %v272, 0
    %v292 = vsel %vm187, %v273, 0
    %v295 = vsel %vm187, %v274, 0
    %v298 = vsel %vm187, %v275, 0
    %v301 = vsel %vm187, %v276, 0
    %303 = vmatprep.subr.mxu0 0.0
    %304 = vmatpush1.msra.mxu0 0.0
    %305 = vmatprep.subr.mxu0 0.0
    %306 = vmatpush1.msra.mxu0 0.0
    %307 = vmatprep.subr.mxu0 0.0
    %308 = vmatpush1.msra.mxu0 0.0
    %309 = vmatprep.subr.mxu0 0.0
    %310 = vmatpush1.msra.mxu0 0.0
    %311 = vmatprep.subr.mxu0 0.0
    %312 = vmatpush1.msra.mxu0 0.0
    %313 = vmatprep.subr.mxu0 0.0
    %314 = vmatpush1.msra.mxu0 0.0
    %315 = vmatprep.subr.mxu0 0.0
    %316 = vmatpush1.msra.mxu0 0.0
    %317 = vmatprep.subr.mxu0 0.0
    %318 = vmatpush1.msra.mxu0 0.0
    %319 = vmatprep.subr.mxu0 0.0
    %320 = vmatpush1.msra.mxu0 0.0
    %321 = vmatprep.subr.mxu0 0.0
    %322 = vmatpush1.msra.mxu0 0.0
    %323 = vmatprep.subr.mxu0 0.0
    %324 = vmatpush1.msra.mxu0 0.0
    %325 = vmatprep.subr.mxu0 0.0
    %326 = vmatpush1.msra.mxu0 0.0
    %327 = vmatprep.subr.mxu0 0.0
    %328 = vmatpush1.msra.mxu0 %v280
    %329 = vmatprep.subr.mxu0 0.0
    %330 = vmatpush1.msra.mxu0 %v279
    %331 = vmatprep.subr.mxu0 0.0
    %332 = vmatpush1.msra.mxu0 %v278
    %333 = vmatprep.subr.mxu0 0.0
    %334 = vmatpush1.msra.mxu0 %v277
    %335 = vmatprep.subr.mxu0 0.0
    %336 = vmatpush2.msra.mxu0 0.0
    %337 = vmatprep.subr.mxu0 0.0
    %338 = vmatpush2.msra.mxu0 0.0
    %339 = vmatprep.subr.mxu0 0.0
    %340 = vmatpush2.msra.mxu0 0.0
    %341 = vmatprep.subr.mxu0 0.0
    %342 = vmatpush2.msra.mxu0 0.0
    %343 = vmatprep.subr.mxu0 0.0
    %344 = vmatpush2.msra.mxu0 0.0
    %345 = vmatprep.subr.mxu0 0.0
    %346 = vmatpush2.msra.mxu0 0.0
    %347 = vmatprep.subr.mxu0 0.0
    %348 = vmatpush2.msra.mxu0 0.0
    %349 = vmatprep.subr.mxu0 0.0
    %350 = vmatpush2.msra.mxu0 0.0
    %351 = vmatprep.subr.mxu0 0.0
    %352 = vmatpush2.msra.mxu0 0.0
    %353 = vmatprep.subr.mxu0 0.0
    %354 = vmatpush2.msra.mxu0 0.0
    %355 = vmatprep.subr.mxu0 0.0
    %356 = vmatpush2.msra.mxu0 0.0
    %357 = vmatprep.subr.mxu0 0.0
    %358 = vmatpush2.msra.mxu0 0.0
    %359 = vmatprep.subr.mxu0 0.0
    %360 = vmatpush2.msra.mxu0 0.0
    %361 = vmatprep.subr.mxu0 0.0
    %362 = vmatpush2.msra.mxu0 0.0
    %363 = vmatprep.subr.mxu0 0.0
    %364 = vmatpush2.msra.mxu0 0.0
    %365 = vmatprep.subr.mxu0 0.0
    %366 = vmatpush2.msra.mxu0 0.0
    %367 = vmatprep.mubr.f32.mxu0 0.0
    %368 = vmatmul.mubr.f32.gmra.mxu0 %v289
    %v369 = vpop.f32.mrf.mxu0
    %v370 = vadd.f32 %v286, %v369
    %v371 = vpop.f32.mrf.mxu0
    %372 = vmatprep.mubr.f32.mxu0 0.0
    %373 = vmatmul.mubr.f32.gmra.mxu0 %v292
    %v374 = vpop.f32.mrf.mxu0
    %v375 = vadd.f32 %v286, %v374
    %v376 = vpop.f32.mrf.mxu0
    %377 = vmatprep.mubr.f32.mxu0 0.0
    %378 = vmatmul.mubr.f32.gmra.mxu0 %v295
    %v379 = vpop.f32.mrf.mxu0
    %v380 = vadd.f32 %v286, %v379
    %v381 = vpop.f32.mrf.mxu0
    %382 = vmatprep.mubr.f32.mxu0 0.0
    %383 = vmatmul.mubr.f32.gmra.mxu0 %v298
    %v384 = vpop.f32.mrf.mxu0
    %v385 = vadd.f32 %v286, %v384
    %v386 = vpop.f32.mrf.mxu0
    %387 = vmatprep.mubr.f32.mxu0 0.0
    %388 = vmatmul.mubr.f32.gmra.mxu0 %v301
    %v389 = vpop.f32.mrf.mxu0
    %v390 = vadd.f32 %v286, %v389
    %v391 = vpop.f32.mrf.mxu0
    %392 = vdwg.mxu0
    %396 = vrot.lane.b32.xlu0 %v370, 120
    %v397 = vpop.permute.xlu0 %396
    %398 = vrot.lane.b32.xlu0 %v375, 120
    %v399 = vpop.permute.xlu0 %398
    %400 = vrot.lane.b32.xlu0 %v380, 120
    %v401 = vpop.permute.xlu0 %400
    %402 = vrot.lane.b32.xlu0 %v370, 112
    %v403 = vpop.permute.xlu0 %402
    %404 = vrot.lane.b32.xlu0 %v375, 112
    %v405 = vpop.permute.xlu0 %404
    %406 = vrot.lane.b32.xlu0 %v380, 112
    %v407 = vpop.permute.xlu0 %406
    %408 = vrot.lane.b32.xlu0 %v370, 104
    %v409 = vpop.permute.xlu0 %408
    %410 = vrot.lane.b32.xlu0 %v375, 104
    %v411 = vpop.permute.xlu0 %410
    %412 = vrot.lane.b32.xlu0 %v380, 104
    %v413 = vpop.permute.xlu0 %412
    %vm416 = vcmask 1046528
    %v417 = vrot.slane %v380, 1
    %v418 = vrot.slane %v385, 1
    %v419 = vsel %vm416, %v417, %v418
    %v420 = vrot.slane %v390, 1
    %v421 = vsel %vm416, %v418, %v420
    %422 = vrot.lane.b32.xlu0 %v419, 120
    %v423 = vpop.permute.xlu0 %422
    %424 = vrot.lane.b32.xlu0 %v421, 120
    %v425 = vpop.permute.xlu0 %424
    %426 = vrot.lane.b32.xlu0 %v420, 120
    %v427 = vpop.permute.xlu0 %426
    %428 = vrot.lane.b32.xlu0 %v419, 112
    %v429 = vpop.permute.xlu0 %428
    %430 = vrot.lane.b32.xlu0 %v421, 112
    %v431 = vpop.permute.xlu0 %430
    %432 = vrot.lane.b32.xlu0 %v420, 112
    %v433 = vpop.permute.xlu0 %432
    %434 = vrot.lane.b32.xlu0 %v419, 104
    %v435 = vpop.permute.xlu0 %434
    %436 = vrot.lane.b32.xlu0 %v421, 104
    %v437 = vpop.permute.xlu0 %436
    %438 = vrot.lane.b32.xlu0 %v420, 104
    %v439 = vpop.permute.xlu0 %438
    %440 = vrot.lane.b32.xlu0 %v370, 96
    %v441 = vpop.permute.xlu0 %440
    %442 = vrot.lane.b32.xlu0 %v375, 96
    %v443 = vpop.permute.xlu0 %442
    %444 = vrot.lane.b32.xlu0 %v380, 96
    %v445 = vpop.permute.xlu0 %444
    %vm446 = vcmask 64512
    %v447 = vsel %vm446, %v370, 0
    %v449 = vsel %vm446, %v375, 0
    %v451 = vsel %vm446, %v380, 0
    %v453 = vsel %vm446, %v441, 0
    %v455 = vsel %vm446, %v443, 0
    %v457 = vsel %vm446, %v445, 0
    %459 = vmatprep.subr.mxu0 0.0
    %460 = vmatpush1.xpose.msra.mxu0 0.0
    %461 = vmatprep.subr.mxu0 0.0
    %462 = vmatpush1.xpose.msra.mxu0 0.0
    %463 = vmatprep.subr.mxu0 0.0
    %464 = vmatpush1.xpose.msra.mxu0 0.0
    %465 = vmatprep.subr.mxu0 0.0
    %466 = vmatpush1.xpose.msra.mxu0 0.0
    %467 = vmatprep.subr.mxu0 0.0
    %468 = vmatpush1.xpose.msra.mxu0 0.0
    %469 = vmatprep.subr.mxu0 0.0
    %470 = vmatpush1.xpose.msra.mxu0 0.0
    %471 = vmatprep.subr.mxu0 0.0
    %472 = vmatpush1.xpose.msra.mxu0 0.0
    %473 = vmatprep.subr.mxu0 0.0
    %474 = vmatpush1.xpose.msra.mxu0 0.0
    %475 = vmatprep.subr.mxu0 0.0
    %476 = vmatpush1.xpose.msra.mxu0 0.0
    %477 = vmatprep.subr.mxu0 0.0
    %478 = vmatpush1.xpose.msra.mxu0 0.0
    %479 = vmatprep.subr.mxu0 0.0
    %480 = vmatpush1.xpose.msra.mxu0 0.0
    %481 = vmatprep.subr.mxu0 0.0
    %482 = vmatpush1.xpose.msra.mxu0 0.0
    %483 = vmatprep.subr.mxu0 0.0
    %484 = vmatpush1.xpose.msra.mxu0 0.0
    %485 = vmatprep.subr.mxu0 0.0
    %486 = vmatpush1.xpose.msra.mxu0 %v457
    %487 = vmatprep.subr.mxu0 0.0
    %488 = vmatpush1.xpose.msra.mxu0 %v455
    %489 = vmatprep.subr.mxu0 0.0
    %490 = vmatpush1.xpose.msra.mxu0 %v453
    %491 = vmatprep.subr.mxu0 0.0
    %492 = vmatpush2.xpose.msra.mxu0 0.0
    %493 = vmatprep.subr.mxu0 0.0
    %494 = vmatpush2.xpose.msra.mxu0 0.0
    %495 = vmatprep.subr.mxu0 0.0
    %496 = vmatpush2.xpose.msra.mxu0 0.0
    %497 = vmatprep.subr.mxu0 0.0
    %498 = vmatpush2.xpose.msra.mxu0 0.0
    %499 = vmatprep.subr.mxu0 0.0
    %500 = vmatpush2.xpose.msra.mxu0 0.0
    %501 = vmatprep.subr.mxu0 0.0
    %502 = vmatpush2.xpose.msra.mxu0 0.0
    %503 = vmatprep.subr.mxu0 0.0
    %504 = vmatpush2.xpose.msra.mxu0 0.0
    %505 = vmatprep.subr.mxu0 0.0
    %506 = vmatpush2.xpose.msra.mxu0 0.0
    %507 = vmatprep.subr.mxu0 0.0
    %508 = vmatpush2.xpose.msra.mxu0 0.0
    %509 = vmatprep.subr.mxu0 0.0
    %510 = vmatpush2.xpose.msra.mxu0 0.0
    %511 = vmatprep.subr.mxu0 0.0
    %512 = vmatpush2.xpose.msra.mxu0 0.0
    %513 = vmatprep.subr.mxu0 0.0
    %514 = vmatpush2.xpose.msra.mxu0 0.0
    %515 = vmatprep.subr.mxu0 0.0
    %516 = vmatpush2.xpose.msra.mxu0 0.0
    %517 = vmatprep.subr.mxu0 0.0
    %518 = vmatpush2.xpose.msra.mxu0 0.0
    %519 = vmatprep.subr.mxu0 0.0
    %520 = vmatpush2.xpose.msra.mxu0 0.0
    %521 = vmatprep.subr.mxu0 0.0
    %522 = vmatpush2.xpose.msra.mxu0 0.0
    %523 = vmatprep.mubr.f32.mxu0 0.0
    %524 = vmatmul.mubr.f32.gmra.mxu0 %v447
    %v525 = vpop.f32.mrf.mxu0
    %v526 = vadd.f32 0.0, %v525
    %v527 = vpop.f32.mrf.mxu0
    %528 = vmatprep.mubr.f32.mxu0 0.0
    %529 = vmatmul.mubr.f32.gmra.mxu0 %v449
    %v530 = vpop.f32.mrf.mxu0
    %v531 = vadd.f32 0.0, %v530
    %v532 = vpop.f32.mrf.mxu0
    %533 = vmatprep.mubr.f32.mxu0 0.0
    %534 = vmatmul.mubr.f32.gmra.mxu0 %v451
    %v535 = vpop.f32.mrf.mxu0
    %v536 = vadd.f32 0.0, %v535
    %v537 = vpop.f32.mrf.mxu0
    %538 = vdwg.mxu0
    %539 = vrot.lane.b32.xlu0 %v397, 96
    %v540 = vpop.permute.xlu0 %539
    %541 = vrot.lane.b32.xlu0 %v399, 96
    %v542 = vpop.permute.xlu0 %541
    %543 = vrot.lane.b32.xlu0 %v401, 96
    %v544 = vpop.permute.xlu0 %543
    %v545 = vsel %vm446, %v397, 0
    %v547 = vsel %vm446, %v399, 0
    %v549 = vsel %vm446, %v401, 0
    %v551 = vsel %vm446, %v540, 0
    %v553 = vsel %vm446, %v542, 0
    %v555 = vsel %vm446, %v544, 0
    %557 = vmatprep.subr.mxu0 0.0
    %558 = vmatpush1.xpose.msra.mxu0 0.0
    %559 = vmatprep.subr.mxu0 0.0
    %560 = vmatpush1.xpose.msra.mxu0 0.0
    %561 = vmatprep.subr.mxu0 0.0
    %562 = vmatpush1.xpose.msra.mxu0 0.0
    %563 = vmatprep.subr.mxu0 0.0
    %564 = vmatpush1.xpose.msra.mxu0 0.0
    %565 = vmatprep.subr.mxu0 0.0
    %566 = vmatpush1.xpose.msra.mxu0 0.0
    %567 = vmatprep.subr.mxu0 0.0
    %568 = vmatpush1.xpose.msra.mxu0 0.0
    %569 = vmatprep.subr.mxu0 0.0
    %570 = vmatpush1.xpose.msra.mxu0 0.0
    %571 = vmatprep.subr.mxu0 0.0
    %572 = vmatpush1.xpose.msra.mxu0 0.0
    %573 = vmatprep.subr.mxu0 0.0
    %574 = vmatpush1.xpose.msra.mxu0 0.0
    %575 = vmatprep.subr.mxu0 0.0
    %576 = vmatpush1.xpose.msra.mxu0 0.0
    %577 = vmatprep.subr.mxu0 0.0
    %578 = vmatpush1.xpose.msra.mxu0 0.0
    %579 = vmatprep.subr.mxu0 0.0
    %580 = vmatpush1.xpose.msra.mxu0 0.0
    %581 = vmatprep.subr.mxu0 0.0
    %582 = vmatpush1.xpose.msra.mxu0 0.0
    %583 = vmatprep.subr.mxu0 0.0
    %584 = vmatpush1.xpose.msra.mxu0 %v555
    %585 = vmatprep.subr.mxu0 0.0
    %586 = vmatpush1.xpose.msra.mxu0 %v553
    %587 = vmatprep.subr.mxu0 0.0
    %588 = vmatpush1.xpose.msra.mxu0 %v551
    %589 = vmatprep.subr.mxu0 0.0
    %590 = vmatpush2.xpose.msra.mxu0 0.0
    %591 = vmatprep.subr.mxu0 0.0
    %592 = vmatpush2.xpose.msra.mxu0 0.0
    %593 = vmatprep.subr.mxu0 0.0
    %594 = vmatpush2.xpose.msra.mxu0 0.0
    %595 = vmatprep.subr.mxu0 0.0
    %596 = vmatpush2.xpose.msra.mxu0 0.0
    %597 = vmatprep.subr.mxu0 0.0
    %598 = vmatpush2.xpose.msra.mxu0 0.0
    %599 = vmatprep.subr.mxu0 0.0
    %600 = vmatpush2.xpose.msra.mxu0 0.0
    %601 = vmatprep.subr.mxu0 0.0
    %602 = vmatpush2.xpose.msra.mxu0 0.0
    %603 = vmatprep.subr.mxu0 0.0
    %604 = vmatpush2.xpose.msra.mxu0 0.0
    %605 = vmatprep.subr.mxu0 0.0
    %606 = vmatpush2.xpose.msra.mxu0 0.0
    %607 = vmatprep.subr.mxu0 0.0
    %608 = vmatpush2.xpose.msra.mxu0 0.0
    %609 = vmatprep.subr.mxu0 0.0
    %610 = vmatpush2.xpose.msra.mxu0 0.0
    %611 = vmatprep.subr.mxu0 0.0
    %612 = vmatpush2.xpose.msra.mxu0 0.0
    %613 = vmatprep.subr.mxu0 0.0
    %614 = vmatpush2.xpose.msra.mxu0 0.0
    %615 = vmatprep.subr.mxu0 0.0
    %616 = vmatpush2.xpose.msra.mxu0 0.0
    %617 = vmatprep.subr.mxu0 0.0
    %618 = vmatpush2.xpose.msra.mxu0 0.0
    %619 = vmatprep.subr.mxu0 0.0
    %620 = vmatpush2.xpose.msra.mxu0 0.0
    %621 = vmatprep.mubr.f32.mxu0 0.0
    %622 = vmatmul.mubr.f32.gmra.mxu0 %v545
    %v623 = vpop.f32.mrf.mxu0
    %v624 = vadd.f32 0.0, %v623
    %v625 = vpop.f32.mrf.mxu0
    %626 = vmatprep.mubr.f32.mxu0 0.0
    %627 = vmatmul.mubr.f32.gmra.mxu0 %v547
    %v628 = vpop.f32.mrf.mxu0
    %v629 = vadd.f32 0.0, %v628
    %v630 = vpop.f32.mrf.mxu0
    %631 = vmatprep.mubr.f32.mxu0 0.0
    %632 = vmatmul.mubr.f32.gmra.mxu0 %v549
    %v633 = vpop.f32.mrf.mxu0
    %v634 = vadd.f32 0.0, %v633
    %v635 = vpop.f32.mrf.mxu0
    %636 = vdwg.mxu0
    %637 = vrot.lane.b32.xlu0 %v403, 96
    %v638 = vpop.permute.xlu0 %637
    %639 = vrot.lane.b32.xlu0 %v405, 96
    %v640 = vpop.permute.xlu0 %639
    %641 = vrot.lane.b32.xlu0 %v407, 96
    %v642 = vpop.permute.xlu0 %641
    %v643 = vsel %vm446, %v403, 0
    %v645 = vsel %vm446, %v405, 0
    %v647 = vsel %vm446, %v407, 0
    %v649 = vsel %vm446, %v638, 0
    %v651 = vsel %vm446, %v640, 0
    %v653 = vsel %vm446, %v642, 0
    %655 = vmatprep.subr.mxu0 0.0
    %656 = vmatpush1.xpose.msra.mxu0 0.0
    %657 = vmatprep.subr.mxu0 0.0
    %658 = vmatpush1.xpose.msra.mxu0 0.0
    %659 = vmatprep.subr.mxu0 0.0
    %660 = vmatpush1.xpose.msra.mxu0 0.0
    %661 = vmatprep.subr.mxu0 0.0
    %662 = vmatpush1.xpose.msra.mxu0 0.0
    %663 = vmatprep.subr.mxu0 0.0
    %664 = vmatpush1.xpose.msra.mxu0 0.0
    %665 = vmatprep.subr.mxu0 0.0
    %666 = vmatpush1.xpose.msra.mxu0 0.0
    %667 = vmatprep.subr.mxu0 0.0
    %668 = vmatpush1.xpose.msra.mxu0 0.0
    %669 = vmatprep.subr.mxu0 0.0
    %670 = vmatpush1.xpose.msra.mxu0 0.0
    %671 = vmatprep.subr.mxu0 0.0
    %672 = vmatpush1.xpose.msra.mxu0 0.0
    %673 = vmatprep.subr.mxu0 0.0
    %674 = vmatpush1.xpose.msra.mxu0 0.0
    %675 = vmatprep.subr.mxu0 0.0
    %676 = vmatpush1.xpose.msra.mxu0 0.0
    %677 = vmatprep.subr.mxu0 0.0
    %678 = vmatpush1.xpose.msra.mxu0 0.0
    %679 = vmatprep.subr.mxu0 0.0
    %680 = vmatpush1.xpose.msra.mxu0 0.0
    %681 = vmatprep.subr.mxu0 0.0
    %682 = vmatpush1.xpose.msra.mxu0 %v653
    %683 = vmatprep.subr.mxu0 0.0
    %684 = vmatpush1.xpose.msra.mxu0 %v651
    %685 = vmatprep.subr.mxu0 0.0
    %686 = vmatpush1.xpose.msra.mxu0 %v649
    %687 = vmatprep.subr.mxu0 0.0
    %688 = vmatpush2.xpose.msra.mxu0 0.0
    %689 = vmatprep.subr.mxu0 0.0
    %690 = vmatpush2.xpose.msra.mxu0 0.0
    %691 = vmatprep.subr.mxu0 0.0
    %692 = vmatpush2.xpose.msra.mxu0 0.0
    %693 = vmatprep.subr.mxu0 0.0
    %694 = vmatpush2.xpose.msra.mxu0 0.0
    %695 = vmatprep.subr.mxu0 0.0
    %696 = vmatpush2.xpose.msra.mxu0 0.0
    %697 = vmatprep.subr.mxu0 0.0
    %698 = vmatpush2.xpose.msra.mxu0 0.0
    %699 = vmatprep.subr.mxu0 0.0
    %700 = vmatpush2.xpose.msra.mxu0 0.0
    %701 = vmatprep.subr.mxu0 0.0
    %702 = vmatpush2.xpose.msra.mxu0 0.0
    %703 = vmatprep.subr.mxu0 0.0
    %704 = vmatpush2.xpose.msra.mxu0 0.0
    %705 = vmatprep.subr.mxu0 0.0
    %706 = vmatpush2.xpose.msra.mxu0 0.0
    %707 = vmatprep.subr.mxu0 0.0
    %708 = vmatpush2.xpose.msra.mxu0 0.0
    %709 = vmatprep.subr.mxu0 0.0
    %710 = vmatpush2.xpose.msra.mxu0 0.0
    %711 = vmatprep.subr.mxu0 0.0
    %712 = vmatpush2.xpose.msra.mxu0 0.0
    %713 = vmatprep.subr.mxu0 0.0
    %714 = vmatpush2.xpose.msra.mxu0 0.0
    %715 = vmatprep.subr.mxu0 0.0
    %716 = vmatpush2.xpose.msra.mxu0 0.0
    %717 = vmatprep.subr.mxu0 0.0
    %718 = vmatpush2.xpose.msra.mxu0 0.0
    %719 = vmatprep.mubr.f32.mxu0 0.0
    %720 = vmatmul.mubr.f32.gmra.mxu0 %v643
    %v721 = vpop.f32.mrf.mxu0
    %v722 = vadd.f32 0.0, %v721
    %v723 = vpop.f32.mrf.mxu0
    %724 = vmatprep.mubr.f32.mxu0 0.0
    %725 = vmatmul.mubr.f32.gmra.mxu0 %v645
    %v726 = vpop.f32.mrf.mxu0
    %v727 = vadd.f32 0.0, %v726
    %v728 = vpop.f32.mrf.mxu0
    %729 = vmatprep.mubr.f32.mxu0 0.0
    %730 = vmatmul.mubr.f32.gmra.mxu0 %v647
    %v731 = vpop.f32.mrf.mxu0
    %v732 = vadd.f32 0.0, %v731
    %v733 = vpop.f32.mrf.mxu0
    %734 = vdwg.mxu0
    %735 = vrot.lane.b32.xlu0 %v409, 96
    %v736 = vpop.permute.xlu0 %735
    %737 = vrot.lane.b32.xlu0 %v411, 96
    %v738 = vpop.permute.xlu0 %737
    %739 = vrot.lane.b32.xlu0 %v413, 96
    %v740 = vpop.permute.xlu0 %739
    %v741 = vsel %vm446, %v409, 0
    %v743 = vsel %vm446, %v411, 0
    %v745 = vsel %vm446, %v413, 0
    %v747 = vsel %vm446, %v736, 0
    %v749 = vsel %vm446, %v738, 0
    %v751 = vsel %vm446, %v740, 0
    %753 = vmatprep.subr.mxu0 0.0
    %754 = vmatpush1.xpose.msra.mxu0 0.0
    %755 = vmatprep.subr.mxu0 0.0
    %756 = vmatpush1.xpose.msra.mxu0 0.0
    %757 = vmatprep.subr.mxu0 0.0
    %758 = vmatpush1.xpose.msra.mxu0 0.0
    %759 = vmatprep.subr.mxu0 0.0
    %760 = vmatpush1.xpose.msra.mxu0 0.0
    %761 = vmatprep.subr.mxu0 0.0
    %762 = vmatpush1.xpose.msra.mxu0 0.0
    %763 = vmatprep.subr.mxu0 0.0
    %764 = vmatpush1.xpose.msra.mxu0 0.0
    %765 = vmatprep.subr.mxu0 0.0
    %766 = vmatpush1.xpose.msra.mxu0 0.0
    %767 = vmatprep.subr.mxu0 0.0
    %768 = vmatpush1.xpose.msra.mxu0 0.0
    %769 = vmatprep.subr.mxu0 0.0
    %770 = vmatpush1.xpose.msra.mxu0 0.0
    %771 = vmatprep.subr.mxu0 0.0
    %772 = vmatpush1.xpose.msra.mxu0 0.0
    %773 = vmatprep.subr.mxu0 0.0
    %774 = vmatpush1.xpose.msra.mxu0 0.0
    %775 = vmatprep.subr.mxu0 0.0
    %776 = vmatpush1.xpose.msra.mxu0 0.0
    %777 = vmatprep.subr.mxu0 0.0
    %778 = vmatpush1.xpose.msra.mxu0 0.0
    %779 = vmatprep.subr.mxu0 0.0
    %780 = vmatpush1.xpose.msra.mxu0 %v751
    %781 = vmatprep.subr.mxu0 0.0
    %782 = vmatpush1.xpose.msra.mxu0 %v749
    %783 = vmatprep.subr.mxu0 0.0
    %784 = vmatpush1.xpose.msra.mxu0 %v747
    %785 = vmatprep.subr.mxu0 0.0
    %786 = vmatpush2.xpose.msra.mxu0 0.0
    %787 = vmatprep.subr.mxu0 0.0
    %788 = vmatpush2.xpose.msra.mxu0 0.0
    %789 = vmatprep.subr.mxu0 0.0
    %790 = vmatpush2.xpose.msra.mxu0 0.0
    %791 = vmatprep.subr.mxu0 0.0
    %792 = vmatpush2.xpose.msra.mxu0 0.0
    %793 = vmatprep.subr.mxu0 0.0
    %794 = vmatpush2.xpose.msra.mxu0 0.0
    %795 = vmatprep.subr.mxu0 0.0
    %796 = vmatpush2.xpose.msra.mxu0 0.0
    %797 = vmatprep.subr.mxu0 0.0
    %798 = vmatpush2.xpose.msra.mxu0 0.0
    %799 = vmatprep.subr.mxu0 0.0
    %800 = vmatpush2.xpose.msra.mxu0 0.0
    %801 = vmatprep.subr.mxu0 0.0
    %802 = vmatpush2.xpose.msra.mxu0 0.0
    %803 = vmatprep.subr.mxu0 0.0
    %804 = vmatpush2.xpose.msra.mxu0 0.0
    %805 = vmatprep.subr.mxu0 0.0
    %806 = vmatpush2.xpose.msra.mxu0 0.0
    %807 = vmatprep.subr.mxu0 0.0
    %808 = vmatpush2.xpose.msra.mxu0 0.0
    %809 = vmatprep.subr.mxu0 0.0
    %810 = vmatpush2.xpose.msra.mxu0 0.0
    %811 = vmatprep.subr.mxu0 0.0
    %812 = vmatpush2.xpose.msra.mxu0 0.0
    %813 = vmatprep.subr.mxu0 0.0
    %814 = vmatpush2.xpose.msra.mxu0 0.0
    %815 = vmatprep.subr.mxu0 0.0
    %816 = vmatpush2.xpose.msra.mxu0 0.0
    %817 = vmatprep.mubr.f32.mxu0 0.0
    %818 = vmatmul.mubr.f32.gmra.mxu0 %v741
    %v819 = vpop.f32.mrf.mxu0
    %v820 = vadd.f32 0.0, %v819
    %v821 = vpop.f32.mrf.mxu0
    %822 = vmatprep.mubr.f32.mxu0 0.0
    %823 = vmatmul.mubr.f32.gmra.mxu0 %v743
    %v824 = vpop.f32.mrf.mxu0
    %v825 = vadd.f32 0.0, %v824
    %v826 = vpop.f32.mrf.mxu0
    %827 = vmatprep.mubr.f32.mxu0 0.0
    %828 = vmatmul.mubr.f32.gmra.mxu0 %v745
    %v829 = vpop.f32.mrf.mxu0
    %v830 = vadd.f32 0.0, %v829
    %v831 = vpop.f32.mrf.mxu0
    %832 = vdwg.mxu0
    %833 = vrot.lane.b32.xlu0 %v419, 96
    %v834 = vpop.permute.xlu0 %833
    %835 = vrot.lane.b32.xlu0 %v421, 96
    %v836 = vpop.permute.xlu0 %835
    %837 = vrot.lane.b32.xlu0 %v420, 96
    %v838 = vpop.permute.xlu0 %837
    %v839 = vsel %vm446, %v419, 0
    %v841 = vsel %vm446, %v421, 0
    %v843 = vsel %vm446, %v420, 0
    %v845 = vsel %vm446, %v834, 0
    %v847 = vsel %vm446, %v836, 0
    %v849 = vsel %vm446, %v838, 0
    %851 = vmatprep.subr.mxu0 0.0
    %852 = vmatpush1.xpose.msra.mxu0 0.0
    %853 = vmatprep.subr.mxu0 0.0
    %854 = vmatpush1.xpose.msra.mxu0 0.0
    %855 = vmatprep.subr.mxu0 0.0
    %856 = vmatpush1.xpose.msra.mxu0 0.0
    %857 = vmatprep.subr.mxu0 0.0
    %858 = vmatpush1.xpose.msra.mxu0 0.0
    %859 = vmatprep.subr.mxu0 0.0
    %860 = vmatpush1.xpose.msra.mxu0 0.0
    %861 = vmatprep.subr.mxu0 0.0
    %862 = vmatpush1.xpose.msra.mxu0 0.0
    %863 = vmatprep.subr.mxu0 0.0
    %864 = vmatpush1.xpose.msra.mxu0 0.0
    %865 = vmatprep.subr.mxu0 0.0
    %866 = vmatpush1.xpose.msra.mxu0 0.0
    %867 = vmatprep.subr.mxu0 0.0
    %868 = vmatpush1.xpose.msra.mxu0 0.0
    %869 = vmatprep.subr.mxu0 0.0
    %870 = vmatpush1.xpose.msra.mxu0 0.0
    %871 = vmatprep.subr.mxu0 0.0
    %872 = vmatpush1.xpose.msra.mxu0 0.0
    %873 = vmatprep.subr.mxu0 0.0
    %874 = vmatpush1.xpose.msra.mxu0 0.0
    %875 = vmatprep.subr.mxu0 0.0
    %876 = vmatpush1.xpose.msra.mxu0 0.0
    %877 = vmatprep.subr.mxu0 0.0
    %878 = vmatpush1.xpose.msra.mxu0 %v849
    %879 = vmatprep.subr.mxu0 0.0
    %880 = vmatpush1.xpose.msra.mxu0 %v847
    %881 = vmatprep.subr.mxu0 0.0
    %882 = vmatpush1.xpose.msra.mxu0 %v845
    %883 = vmatprep.subr.mxu0 0.0
    %884 = vmatpush2.xpose.msra.mxu0 0.0
    %885 = vmatprep.subr.mxu0 0.0
    %886 = vmatpush2.xpose.msra.mxu0 0.0
    %887 = vmatprep.subr.mxu0 0.0
    %888 = vmatpush2.xpose.msra.mxu0 0.0
    %889 = vmatprep.subr.mxu0 0.0
    %890 = vmatpush2.xpose.msra.mxu0 0.0
    %891 = vmatprep.subr.mxu0 0.0
    %892 = vmatpush2.xpose.msra.mxu0 0.0
    %893 = vmatprep.subr.mxu0 0.0
    %894 = vmatpush2.xpose.msra.mxu0 0.0
    %895 = vmatprep.subr.mxu0 0.0
    %896 = vmatpush2.xpose.msra.mxu0 0.0
    %897 = vmatprep.subr.mxu0 0.0
    %898 = vmatpush2.xpose.msra.mxu0 0.0
    %899 = vmatprep.subr.mxu0 0.0
    %900 = vmatpush2.xpose.msra.mxu0 0.0
    %901 = vmatprep.subr.mxu0 0.0
    %902 = vmatpush2.xpose.msra.mxu0 0.0
    %903 = vmatprep.subr.mxu0 0.0
    %904 = vmatpush2.xpose.msra.mxu0 0.0
    %905 = vmatprep.subr.mxu0 0.0
    %906 = vmatpush2.xpose.msra.mxu0 0.0
    %907 = vmatprep.subr.mxu0 0.0
    %908 = vmatpush2.xpose.msra.mxu0 0.0
    %909 = vmatprep.subr.mxu0 0.0
    %910 = vmatpush2.xpose.msra.mxu0 0.0
    %911 = vmatprep.subr.mxu0 0.0
    %912 = vmatpush2.xpose.msra.mxu0 0.0
    %913 = vmatprep.subr.mxu0 0.0
    %914 = vmatpush2.xpose.msra.mxu0 0.0
    %915 = vmatprep.mubr.f32.mxu0 0.0
    %916 = vmatmul.mubr.f32.gmra.mxu0 %v839
    %v917 = vpop.f32.mrf.mxu0
    %v918 = vadd.f32 0.0, %v917
    %v919 = vpop.f32.mrf.mxu0
    %920 = vmatprep.mubr.f32.mxu0 0.0
    %921 = vmatmul.mubr.f32.gmra.mxu0 %v841
    %v922 = vpop.f32.mrf.mxu0
    %v923 = vadd.f32 0.0, %v922
    %v924 = vpop.f32.mrf.mxu0
    %925 = vmatprep.mubr.f32.mxu0 0.0
    %926 = vmatmul.mubr.f32.gmra.mxu0 %v843
    %v927 = vpop.f32.mrf.mxu0
    %v928 = vadd.f32 0.0, %v927
    %v929 = vpop.f32.mrf.mxu0
    %930 = vdwg.mxu0
    %931 = vrot.lane.b32.xlu0 %v423, 96
    %v932 = vpop.permute.xlu0 %931
    %933 = vrot.lane.b32.xlu0 %v425, 96
    %v934 = vpop.permute.xlu0 %933
    %935 = vrot.lane.b32.xlu0 %v427, 96
    %v936 = vpop.permute.xlu0 %935
    %v937 = vsel %vm446, %v423, 0
    %v939 = vsel %vm446, %v425, 0
    %v941 = vsel %vm446, %v427, 0
    %v943 = vsel %vm446, %v932, 0
    %v945 = vsel %vm446, %v934, 0
    %v947 = vsel %vm446, %v936, 0
    %949 = vmatprep.subr.mxu0 0.0
    %950 = vmatpush1.xpose.msra.mxu0 0.0
    %951 = vmatprep.subr.mxu0 0.0
    %952 = vmatpush1.xpose.msra.mxu0 0.0
    %953 = vmatprep.subr.mxu0 0.0
    %954 = vmatpush1.xpose.msra.mxu0 0.0
    %955 = vmatprep.subr.mxu0 0.0
    %956 = vmatpush1.xpose.msra.mxu0 0.0
    %957 = vmatprep.subr.mxu0 0.0
    %958 = vmatpush1.xpose.msra.mxu0 0.0
    %959 = vmatprep.subr.mxu0 0.0
    %960 = vmatpush1.xpose.msra.mxu0 0.0
    %961 = vmatprep.subr.mxu0 0.0
    %962 = vmatpush1.xpose.msra.mxu0 0.0
    %963 = vmatprep.subr.mxu0 0.0
    %964 = vmatpush1.xpose.msra.mxu0 0.0
    %965 = vmatprep.subr.mxu0 0.0
    %966 = vmatpush1.xpose.msra.mxu0 0.0
    %967 = vmatprep.subr.mxu0 0.0
    %968 = vmatpush1.xpose.msra.mxu0 0.0
    %969 = vmatprep.subr.mxu0 0.0
    %970 = vmatpush1.xpose.msra.mxu0 0.0
    %971 = vmatprep.subr.mxu0 0.0
    %972 = vmatpush1.xpose.msra.mxu0 0.0
    %973 = vmatprep.subr.mxu0 0.0
    %974 = vmatpush1.xpose.msra.mxu0 0.0
    %975 = vmatprep.subr.mxu0 0.0
    %976 = vmatpush1.xpose.msra.mxu0 %v947
    %977 = vmatprep.subr.mxu0 0.0
    %978 = vmatpush1.xpose.msra.mxu0 %v945
    %979 = vmatprep.subr.mxu0 0.0
    %980 = vmatpush1.xpose.msra.mxu0 %v943
    %981 = vmatprep.subr.mxu0 0.0
    %982 = vmatpush2.xpose.msra.mxu0 0.0
    %983 = vmatprep.subr.mxu0 0.0
    %984 = vmatpush2.xpose.msra.mxu0 0.0
    %985 = vmatprep.subr.mxu0 0.0
    %986 = vmatpush2.xpose.msra.mxu0 0.0
    %987 = vmatprep.subr.mxu0 0.0
    %988 = vmatpush2.xpose.msra.mxu0 0.0
    %989 = vmatprep.subr.mxu0 0.0
    %990 = vmatpush2.xpose.msra.mxu0 0.0
    %991 = vmatprep.subr.mxu0 0.0
    %992 = vmatpush2.xpose.msra.mxu0 0.0
    %993 = vmatprep.subr.mxu0 0.0
    %994 = vmatpush2.xpose.msra.mxu0 0.0
    %995 = vmatprep.subr.mxu0 0.0
    %996 = vmatpush2.xpose.msra.mxu0 0.0
    %997 = vmatprep.subr.mxu0 0.0
    %998 = vmatpush2.xpose.msra.mxu0 0.0
    %999 = vmatprep.subr.mxu0 0.0
    %1000 = vmatpush2.xpose.msra.mxu0 0.0
    %1001 = vmatprep.subr.mxu0 0.0
    %1002 = vmatpush2.xpose.msra.mxu0 0.0
    %1003 = vmatprep.subr.mxu0 0.0
    %1004 = vmatpush2.xpose.msra.mxu0 0.0
    %1005 = vmatprep.subr.mxu0 0.0
    %1006 = vmatpush2.xpose.msra.mxu0 0.0
    %1007 = vmatprep.subr.mxu0 0.0
    %1008 = vmatpush2.xpose.msra.mxu0 0.0
    %1009 = vmatprep.subr.mxu0 0.0
    %1010 = vmatpush2.xpose.msra.mxu0 0.0
    %1011 = vmatprep.subr.mxu0 0.0
    %1012 = vmatpush2.xpose.msra.mxu0 0.0
    %1013 = vmatprep.mubr.f32.mxu0 0.0
    %1014 = vmatmul.mubr.f32.gmra.mxu0 %v937
    %v1015 = vpop.f32.mrf.mxu0
    %v1016 = vadd.f32 0.0, %v1015
    %v1017 = vpop.f32.mrf.mxu0
    %1018 = vmatprep.mubr.f32.mxu0 0.0
    %1019 = vmatmul.mubr.f32.gmra.mxu0 %v939
    %v1020 = vpop.f32.mrf.mxu0
    %v1021 = vadd.f32 0.0, %v1020
    %v1022 = vpop.f32.mrf.mxu0
    %1023 = vmatprep.mubr.f32.mxu0 0.0
    %1024 = vmatmul.mubr.f32.gmra.mxu0 %v941
    %v1025 = vpop.f32.mrf.mxu0
    %v1026 = vadd.f32 0.0, %v1025
    %v1027 = vpop.f32.mrf.mxu0
    %1028 = vdwg.mxu0
    %1029 = vrot.lane.b32.xlu0 %v429, 96
    %v1030 = vpop.permute.xlu0 %1029
    %1031 = vrot.lane.b32.xlu0 %v431, 96
    %v1032 = vpop.permute.xlu0 %1031
    %1033 = vrot.lane.b32.xlu0 %v433, 96
    %v1034 = vpop.permute.xlu0 %1033
    %v1035 = vsel %vm446, %v429, 0
    %v1037 = vsel %vm446, %v431, 0
    %v1039 = vsel %vm446, %v433, 0
    %v1041 = vsel %vm446, %v1030, 0
    %v1043 = vsel %vm446, %v1032, 0
    %v1045 = vsel %vm446, %v1034, 0
    %1047 = vmatprep.subr.mxu0 0.0
    %1048 = vmatpush1.xpose.msra.mxu0 0.0
    %1049 = vmatprep.subr.mxu0 0.0
    %1050 = vmatpush1.xpose.msra.mxu0 0.0
    %1051 = vmatprep.subr.mxu0 0.0
    %1052 = vmatpush1.xpose.msra.mxu0 0.0
    %1053 = vmatprep.subr.mxu0 0.0
    %1054 = vmatpush1.xpose.msra.mxu0 0.0
    %1055 = vmatprep.subr.mxu0 0.0
    %1056 = vmatpush1.xpose.msra.mxu0 0.0
    %1057 = vmatprep.subr.mxu0 0.0
    %1058 = vmatpush1.xpose.msra.mxu0 0.0
    %1059 = vmatprep.subr.mxu0 0.0
    %1060 = vmatpush1.xpose.msra.mxu0 0.0
    %1061 = vmatprep.subr.mxu0 0.0
    %1062 = vmatpush1.xpose.msra.mxu0 0.0
    %1063 = vmatprep.subr.mxu0 0.0
    %1064 = vmatpush1.xpose.msra.mxu0 0.0
    %1065 = vmatprep.subr.mxu0 0.0
    %1066 = vmatpush1.xpose.msra.mxu0 0.0
    %1067 = vmatprep.subr.mxu0 0.0
    %1068 = vmatpush1.xpose.msra.mxu0 0.0
    %1069 = vmatprep.subr.mxu0 0.0
    %1070 = vmatpush1.xpose.msra.mxu0 0.0
    %1071 = vmatprep.subr.mxu0 0.0
    %1072 = vmatpush1.xpose.msra.mxu0 0.0
    %1073 = vmatprep.subr.mxu0 0.0
    %1074 = vmatpush1.xpose.msra.mxu0 %v1045
    %1075 = vmatprep.subr.mxu0 0.0
    %1076 = vmatpush1.xpose.msra.mxu0 %v1043
    %1077 = vmatprep.subr.mxu0 0.0
    %1078 = vmatpush1.xpose.msra.mxu0 %v1041
    %1079 = vmatprep.subr.mxu0 0.0
    %1080 = vmatpush2.xpose.msra.mxu0 0.0
    %1081 = vmatprep.subr.mxu0 0.0
    %1082 = vmatpush2.xpose.msra.mxu0 0.0
    %1083 = vmatprep.subr.mxu0 0.0
    %1084 = vmatpush2.xpose.msra.mxu0 0.0
    %1085 = vmatprep.subr.mxu0 0.0
    %1086 = vmatpush2.xpose.msra.mxu0 0.0
    %1087 = vmatprep.subr.mxu0 0.0
    %1088 = vmatpush2.xpose.msra.mxu0 0.0
    %1089 = vmatprep.subr.mxu0 0.0
    %1090 = vmatpush2.xpose.msra.mxu0 0.0
    %1091 = vmatprep.subr.mxu0 0.0
    %1092 = vmatpush2.xpose.msra.mxu0 0.0
    %1093 = vmatprep.subr.mxu0 0.0
    %1094 = vmatpush2.xpose.msra.mxu0 0.0
    %1095 = vmatprep.subr.mxu0 0.0
    %1096 = vmatpush2.xpose.msra.mxu0 0.0
    %1097 = vmatprep.subr.mxu0 0.0
    %1098 = vmatpush2.xpose.msra.mxu0 0.0
    %1099 = vmatprep.subr.mxu0 0.0
    %1100 = vmatpush2.xpose.msra.mxu0 0.0
    %1101 = vmatprep.subr.mxu0 0.0
    %1102 = vmatpush2.xpose.msra.mxu0 0.0
    %1103 = vmatprep.subr.mxu0 0.0
    %1104 = vmatpush2.xpose.msra.mxu0 0.0
    %1105 = vmatprep.subr.mxu0 0.0
    %1106 = vmatpush2.xpose.msra.mxu0 0.0
    %1107 = vmatprep.subr.mxu0 0.0
    %1108 = vmatpush2.xpose.msra.mxu0 0.0
    %1109 = vmatprep.subr.mxu0 0.0
    %1110 = vmatpush2.xpose.msra.mxu0 0.0
    %1111 = vmatprep.mubr.f32.mxu0 0.0
    %1112 = vmatmul.mubr.f32.gmra.mxu0 %v1035
    %v1113 = vpop.f32.mrf.mxu0
    %v1114 = vadd.f32 0.0, %v1113
    %v1115 = vpop.f32.mrf.mxu0
    %1116 = vmatprep.mubr.f32.mxu0 0.0
    %1117 = vmatmul.mubr.f32.gmra.mxu0 %v1037
    %v1118 = vpop.f32.mrf.mxu0
    %v1119 = vadd.f32 0.0, %v1118
    %v1120 = vpop.f32.mrf.mxu0
    %1121 = vmatprep.mubr.f32.mxu0 0.0
    %1122 = vmatmul.mubr.f32.gmra.mxu0 %v1039
    %v1123 = vpop.f32.mrf.mxu0
    %v1124 = vadd.f32 0.0, %v1123
    %v1125 = vpop.f32.mrf.mxu0
    %1126 = vdwg.mxu0
    %1127 = vrot.lane.b32.xlu0 %v435, 96
    %v1128 = vpop.permute.xlu0 %1127
    %1129 = vrot.lane.b32.xlu0 %v437, 96
    %v1130 = vpop.permute.xlu0 %1129
    %1131 = vrot.lane.b32.xlu0 %v439, 96
    %v1132 = vpop.permute.xlu0 %1131
    %v1133 = vsel %vm446, %v435, 0
    %v1135 = vsel %vm446, %v437, 0
    %v1137 = vsel %vm446, %v439, 0
    %v1139 = vsel %vm446, %v1128, 0
    %v1141 = vsel %vm446, %v1130, 0
    %v1143 = vsel %vm446, %v1132, 0
    %1145 = vmatprep.subr.mxu0 0.0
    %1146 = vmatpush1.xpose.msra.mxu0 0.0
    %1147 = vmatprep.subr.mxu0 0.0
    %1148 = vmatpush1.xpose.msra.mxu0 0.0
    %1149 = vmatprep.subr.mxu0 0.0
    %1150 = vmatpush1.xpose.msra.mxu0 0.0
    %1151 = vmatprep.subr.mxu0 0.0
    %1152 = vmatpush1.xpose.msra.mxu0 0.0
    %1153 = vmatprep.subr.mxu0 0.0
    %1154 = vmatpush1.xpose.msra.mxu0 0.0
    %1155 = vmatprep.subr.mxu0 0.0
    %1156 = vmatpush1.xpose.msra.mxu0 0.0
    %1157 = vmatprep.subr.mxu0 0.0
    %1158 = vmatpush1.xpose.msra.mxu0 0.0
    %1159 = vmatprep.subr.mxu0 0.0
    %1160 = vmatpush1.xpose.msra.mxu0 0.0
    %1161 = vmatprep.subr.mxu0 0.0
    %1162 = vmatpush1.xpose.msra.mxu0 0.0
    %1163 = vmatprep.subr.mxu0 0.0
    %1164 = vmatpush1.xpose.msra.mxu0 0.0
    %1165 = vmatprep.subr.mxu0 0.0
    %1166 = vmatpush1.xpose.msra.mxu0 0.0
    %1167 = vmatprep.subr.mxu0 0.0
    %1168 = vmatpush1.xpose.msra.mxu0 0.0
    %1169 = vmatprep.subr.mxu0 0.0
    %1170 = vmatpush1.xpose.msra.mxu0 0.0
    %1171 = vmatprep.subr.mxu0 0.0
    %1172 = vmatpush1.xpose.msra.mxu0 %v1143
    %1173 = vmatprep.subr.mxu0 0.0
    %1174 = vmatpush1.xpose.msra.mxu0 %v1141
    %1175 = vmatprep.subr.mxu0 0.0
    %1176 = vmatpush1.xpose.msra.mxu0 %v1139
    %1177 = vmatprep.subr.mxu0 0.0
    %1178 = vmatpush2.xpose.msra.mxu0 0.0
    %1179 = vmatprep.subr.mxu0 0.0
    %1180 = vmatpush2.xpose.msra.mxu0 0.0
    %1181 = vmatprep.subr.mxu0 0.0
    %1182 = vmatpush2.xpose.msra.mxu0 0.0
    %1183 = vmatprep.subr.mxu0 0.0
    %1184 = vmatpush2.xpose.msra.mxu0 0.0
    %1185 = vmatprep.subr.mxu0 0.0
    %1186 = vmatpush2.xpose.msra.mxu0 0.0
    %1187 = vmatprep.subr.mxu0 0.0
    %1188 = vmatpush2.xpose.msra.mxu0 0.0
    %1189 = vmatprep.subr.mxu0 0.0
    %1190 = vmatpush2.xpose.msra.mxu0 0.0
    %1191 = vmatprep.subr.mxu0 0.0
    %1192 = vmatpush2.xpose.msra.mxu0 0.0
    %1193 = vmatprep.subr.mxu0 0.0
    %1194 = vmatpush2.xpose.msra.mxu0 0.0
    %1195 = vmatprep.subr.mxu0 0.0
    %1196 = vmatpush2.xpose.msra.mxu0 0.0
    %1197 = vmatprep.subr.mxu0 0.0
    %1198 = vmatpush2.xpose.msra.mxu0 0.0
    %1199 = vmatprep.subr.mxu0 0.0
    %1200 = vmatpush2.xpose.msra.mxu0 0.0
    %1201 = vmatprep.subr.mxu0 0.0
    %1202 = vmatpush2.xpose.msra.mxu0 0.0
    %1203 = vmatprep.subr.mxu0 0.0
    %1204 = vmatpush2.xpose.msra.mxu0 0.0
    %1205 = vmatprep.subr.mxu0 0.0
    %1206 = vmatpush2.xpose.msra.mxu0 0.0
    %1207 = vmatprep.subr.mxu0 0.0
    %1208 = vmatpush2.xpose.msra.mxu0 0.0
    %1209 = vmatprep.mubr.f32.mxu0 0.0
    %1210 = vmatmul.mubr.f32.gmra.mxu0 %v1133
    %v1211 = vpop.f32.mrf.mxu0
    %v1212 = vadd.f32 0.0, %v1211
    %v1213 = vpop.f32.mrf.mxu0
    %1214 = vmatprep.mubr.f32.mxu0 0.0
    %1215 = vmatmul.mubr.f32.gmra.mxu0 %v1135
    %v1216 = vpop.f32.mrf.mxu0
    %v1217 = vadd.f32 0.0, %v1216
    %v1218 = vpop.f32.mrf.mxu0
    %1219 = vmatprep.mubr.f32.mxu0 0.0
    %1220 = vmatmul.mubr.f32.gmra.mxu0 %v1137
    %v1221 = vpop.f32.mrf.mxu0
    %v1222 = vadd.f32 0.0, %v1221
    %v1223 = vpop.f32.mrf.mxu0
    %1224 = vdwg.mxu0
    %v1225 = vmul.f32 %v526, 0.35355338
    %v1226 = vmul.f32 %v531, 0.35355338
    %v1227 = vmul.f32 %v536, 0.35355338
    %v1228 = vmul.f32 %v624, 0.35355338
    %v1229 = vmul.f32 %v629, 0.35355338
    %v1230 = vmul.f32 %v634, 0.35355338
    %v1231 = vmul.f32 %v722, 0.35355338
    %v1232 = vmul.f32 %v727, 0.35355338
    %v1233 = vmul.f32 %v732, 0.35355338
    %v1234 = vmul.f32 %v820, 0.35355338
    %v1235 = vmul.f32 %v825, 0.35355338
    %v1236 = vmul.f32 %v830, 0.35355338
    %v1237 = vmul.f32 %v918, 0.35355338
    %v1238 = vmul.f32 %v923, 0.35355338
    %v1239 = vmul.f32 %v928, 0.35355338
    %v1240 = vmul.f32 %v1016, 0.35355338
    %v1241 = vmul.f32 %v1021, 0.35355338
    %v1242 = vmul.f32 %v1026, 0.35355338
    %v1243 = vmul.f32 %v1114, 0.35355338
    %v1244 = vmul.f32 %v1119, 0.35355338
    %v1245 = vmul.f32 %v1124, 0.35355338
    %v1246 = vmul.f32 %v1212, 0.35355338
    %v1247 = vmul.f32 %v1217, 0.35355338
    %v1248 = vmul.f32 %v1222, 0.35355338
    %vm1249 = vcmask 138240
    %v1250 = vsel %vm1249, %v1225, -inf
    %1251 = vmax.xlane.f32.xlu0 %v1250
    %v1252 = vpop.xlane.xlu0 %1251
    %v1253 = vsel %vm1249, %v1226, -inf
    %1254 = vmax.xlane.f32.xlu0 %v1253
    %v1255 = vpop.xlane.xlu0 %1254
    %vm1256 = vcmask 131072
    %v1257 = vsel %vm1256, %v1227, -inf
    %1258 = vmax.xlane.f32.xlu0 %v1257
    %v1259 = vpop.xlane.xlu0 %1258
    %v1260 = vsel %vm1249, %v1228, -inf
    %1261 = vmax.xlane.f32.xlu0 %v1260
    %v1262 = vpop.xlane.xlu0 %1261
    %v1263 = vsel %vm1249, %v1229, -inf
    %1264 = vmax.xlane.f32.xlu0 %v1263
    %v1265 = vpop.xlane.xlu0 %1264
    %v1266 = vsel %vm1256, %v1230, -inf
    %1267 = vmax.xlane.f32.xlu0 %v1266
    %v1268 = vpop.xlane.xlu0 %1267
    %v1269 = vsel %vm1249, %v1231, -inf
    %1270 = vmax.xlane.f32.xlu0 %v1269
    %v1271 = vpop.xlane.xlu0 %1270
    %v1272 = vsel %vm1249, %v1232, -inf
    %1273 = vmax.xlane.f32.xlu0 %v1272
    %v1274 = vpop.xlane.xlu0 %1273
    %v1275 = vsel %vm1256, %v1233, -inf
    %1276 = vmax.xlane.f32.xlu0 %v1275
    %v1277 = vpop.xlane.xlu0 %1276
    %v1278 = vsel %vm1249, %v1234, -inf
    %1279 = vmax.xlane.f32.xlu0 %v1278
    %v1280 = vpop.xlane.xlu0 %1279
    %v1281 = vsel %vm1249, %v1235, -inf
    %1282 = vmax.xlane.f32.xlu0 %v1281
    %v1283 = vpop.xlane.xlu0 %1282
    %v1284 = vsel %vm1256, %v1236, -inf
    %1285 = vmax.xlane.f32.xlu0 %v1284
    %v1286 = vpop.xlane.xlu0 %1285
    %v1287 = vsel %vm1249, %v1237, -inf
    %1288 = vmax.xlane.f32.xlu0 %v1287
    %v1289 = vpop.xlane.xlu0 %1288
    %v1290 = vsel %vm1249, %v1238, -inf
    %1291 = vmax.xlane.f32.xlu0 %v1290
    %v1292 = vpop.xlane.xlu0 %1291
    %v1293 = vsel %vm1256, %v1239, -inf
    %1294 = vmax.xlane.f32.xlu0 %v1293
    %v1295 = vpop.xlane.xlu0 %1294
    %v1296 = vsel %vm1249, %v1240, -inf
    %1297 = vmax.xlane.f32.xlu0 %v1296
    %v1298 = vpop.xlane.xlu0 %1297
    %v1299 = vsel %vm1249, %v1241, -inf
    %1300 = vmax.xlane.f32.xlu0 %v1299
    %v1301 = vpop.xlane.xlu0 %1300
    %v1302 = vsel %vm1256, %v1242, -inf
    %1303 = vmax.xlane.f32.xlu0 %v1302
    %v1304 = vpop.xlane.xlu0 %1303
    %v1305 = vsel %vm1249, %v1243, -inf
    %1306 = vmax.xlane.f32.xlu0 %v1305
    %v1307 = vpop.xlane.xlu0 %1306
    %v1308 = vsel %vm1249, %v1244, -inf
    %1309 = vmax.xlane.f32.xlu0 %v1308
    %v1310 = vpop.xlane.xlu0 %1309
    %v1311 = vsel %vm1256, %v1245, -inf
    %1312 = vmax.xlane.f32.xlu0 %v1311
    %v1313 = vpop.xlane.xlu0 %1312
    %v1314 = vsel %vm1249, %v1246, -inf
    %1315 = vmax.xlane.f32.xlu0 %v1314
    %v1316 = vpop.xlane.xlu0 %1315
    %v1317 = vsel %vm1249, %v1247, -inf
    %1318 = vmax.xlane.f32.xlu0 %v1317
    %v1319 = vpop.xlane.xlu0 %1318
    %v1320 = vsel %vm1256, %v1248, -inf
    %1321 = vmax.xlane.f32.xlu0 %v1320
    %v1322 = vpop.xlane.xlu0 %1321
    %v1323 = vsub.f32 %v1225, %v1252
    %v1324 = vsub.f32 %v1226, %v1255
    %v1325 = vsub.f32 %v1227, %v1259
    %v1326 = vsub.f32 %v1228, %v1262
    %v1327 = vsub.f32 %v1229, %v1265
    %v1328 = vsub.f32 %v1230, %v1268
    %v1329 = vsub.f32 %v1231, %v1271
    %v1330 = vsub.f32 %v1232, %v1274
    %v1331 = vsub.f32 %v1233, %v1277
    %v1332 = vsub.f32 %v1234, %v1280
    %v1333 = vsub.f32 %v1235, %v1283
    %v1334 = vsub.f32 %v1236, %v1286
    %v1335 = vsub.f32 %v1237, %v1289
    %v1336 = vsub.f32 %v1238, %v1292
    %v1337 = vsub.f32 %v1239, %v1295
    %v1338 = vsub.f32 %v1240, %v1298
    %v1339 = vsub.f32 %v1241, %v1301
    %v1340 = vsub.f32 %v1242, %v1304
    %v1341 = vsub.f32 %v1243, %v1307
    %v1342 = vsub.f32 %v1244, %v1310
    %v1343 = vsub.f32 %v1245, %v1313
    %v1344 = vsub.f32 %v1246, %v1316
    %v1345 = vsub.f32 %v1247, %v1319
    %v1346 = vsub.f32 %v1248, %v1322
    %v1347 = vmul.f32 %v1323, 1.442695
    %v1348 = vpow.pop %v1347
    %v1349 = vmul.f32 %v1324, 1.442695
    %v1350 = vpow.pop %v1349
    %v1351 = vmul.f32 %v1325, 1.442695
    %v1352 = vpow.pop %v1351
    %v1353 = vmul.f32 %v1326, 1.442695
    %v1354 = vpow.pop %v1353
    %v1355 = vmul.f32 %v1327, 1.442695
    %v1356 = vpow.pop %v1355
    %v1357 = vmul.f32 %v1328, 1.442695
    %v1358 = vpow.pop %v1357
    %v1359 = vmul.f32 %v1329, 1.442695
    %v1360 = vpow.pop %v1359
    %v1361 = vmul.f32 %v1330, 1.442695
    %v1362 = vpow.pop %v1361
    %v1363 = vmul.f32 %v1331, 1.442695
    %v1364 = vpow.pop %v1363
    %v1365 = vmul.f32 %v1332, 1.442695
    %v1366 = vpow.pop %v1365
    %v1367 = vmul.f32 %v1333, 1.442695
    %v1368 = vpow.pop %v1367
    %v1369 = vmul.f32 %v1334, 1.442695
    %v1370 = vpow.pop %v1369
    %v1371 = vmul.f32 %v1335, 1.442695
    %v1372 = vpow.pop %v1371
    %v1373 = vmul.f32 %v1336, 1.442695
    %v1374 = vpow.pop %v1373
    %v1375 = vmul.f32 %v1337, 1.442695
    %v1376 = vpow.pop %v1375
    %v1377 = vmul.f32 %v1338, 1.442695
    %v1378 = vpow.pop %v1377
    %v1379 = vmul.f32 %v1339, 1.442695
    %v1380 = vpow.pop %v1379
    %v1381 = vmul.f32 %v1340, 1.442695
    %v1382 = vpow.pop %v1381
    %v1383 = vmul.f32 %v1341, 1.442695
    %v1384 = vpow.pop %v1383
    %v1385 = vmul.f32 %v1342, 1.442695
    %v1386 = vpow.pop %v1385
    %v1387 = vmul.f32 %v1343, 1.442695
    %v1388 = vpow.pop %v1387
    %v1389 = vmul.f32 %v1344, 1.442695
    %v1390 = vpow.pop %v1389
    %v1391 = vmul.f32 %v1345, 1.442695
    %v1392 = vpow.pop %v1391
    %v1393 = vmul.f32 %v1346, 1.442695
    %v1394 = vpow.pop %v1393
    %v1395 = vsel %vm1249, %v1348, 0.0
    %1396 = vadd.xlane.f32.xlu0 %v1395
    %v1397 = vpop.xlane.xlu0 %1396
    %v1398 = vsel %vm1249, %v1350, 0.0
    %1399 = vadd.xlane.f32.xlu0 %v1398
    %v1400 = vpop.xlane.xlu0 %1399
    %v1401 = vsel %vm1256, %v1352, 0.0
    %1402 = vadd.xlane.f32.xlu0 %v1401
    %v1403 = vpop.xlane.xlu0 %1402
    %v1404 = vsel %vm1249, %v1354, 0.0
    %1405 = vadd.xlane.f32.xlu0 %v1404
    %v1406 = vpop.xlane.xlu0 %1405
    %v1407 = vsel %vm1249, %v1356, 0.0
    %1408 = vadd.xlane.f32.xlu0 %v1407
    %v1409 = vpop.xlane.xlu0 %1408
    %v1410 = vsel %vm1256, %v1358, 0.0
    %1411 = vadd.xlane.f32.xlu0 %v1410
    %v1412 = vpop.xlane.xlu0 %1411
    %v1413 = vsel %vm1249, %v1360, 0.0
    %1414 = vadd.xlane.f32.xlu0 %v1413
    %v1415 = vpop.xlane.xlu0 %1414
    %v1416 = vsel %vm1249, %v1362, 0.0
    %1417 = vadd.xlane.f32.xlu0 %v1416
    %v1418 = vpop.xlane.xlu0 %1417
    %v1419 = vsel %vm1256, %v1364, 0.0
    %1420 = vadd.xlane.f32.xlu0 %v1419
    %v1421 = vpop.xlane.xlu0 %1420
    %v1422 = vsel %vm1249, %v1366, 0.0
    %1423 = vadd.xlane.f32.xlu0 %v1422
    %v1424 = vpop.xlane.xlu0 %1423
    %v1425 = vsel %vm1249, %v1368, 0.0
    %1426 = vadd.xlane.f32.xlu0 %v1425
    %v1427 = vpop.xlane.xlu0 %1426
    %v1428 = vsel %vm1256, %v1370, 0.0
    %1429 = vadd.xlane.f32.xlu0 %v1428
    %v1430 = vpop.xlane.xlu0 %1429
    %v1431 = vsel %vm1249, %v1372, 0.0
    %1432 = vadd.xlane.f32.xlu0 %v1431
    %v1433 = vpop.xlane.xlu0 %1432
    %v1434 = vsel %vm1249, %v1374, 0.0
    %1435 = vadd.xlane.f32.xlu0 %v1434
    %v1436 = vpop.xlane.xlu0 %1435
    %v1437 = vsel %vm1256, %v1376, 0.0
    %1438 = vadd.xlane.f32.xlu0 %v1437
    %v1439 = vpop.xlane.xlu0 %1438
    %v1440 = vsel %vm1249, %v1378, 0.0
    %1441 = vadd.xlane.f32.xlu0 %v1440
    %v1442 = vpop.xlane.xlu0 %1441
    %v1443 = vsel %vm1249, %v1380, 0.0
    %1444 = vadd.xlane.f32.xlu0 %v1443
    %v1445 = vpop.xlane.xlu0 %1444
    %v1446 = vsel %vm1256, %v1382, 0.0
    %1447 = vadd.xlane.f32.xlu0 %v1446
    %v1448 = vpop.xlane.xlu0 %1447
    %v1449 = vsel %vm1249, %v1384, 0.0
    %1450 = vadd.xlane.f32.xlu0 %v1449
    %v1451 = vpop.xlane.xlu0 %1450
    %v1452 = vsel %vm1249, %v1386, 0.0
    %1453 = vadd.xlane.f32.xlu0 %v1452
    %v1454 = vpop.xlane.xlu0 %1453
    %v1455 = vsel %vm1256, %v1388, 0.0
    %1456 = vadd.xlane.f32.xlu0 %v1455
    %v1457 = vpop.xlane.xlu0 %1456
    %v1458 = vsel %vm1249, %v1390, 0.0
    %1459 = vadd.xlane.f32.xlu0 %v1458
    %v1460 = vpop.xlane.xlu0 %1459
    %v1461 = vsel %vm1249, %v1392, 0.0
    %1462 = vadd.xlane.f32.xlu0 %v1461
    %v1463 = vpop.xlane.xlu0 %1462
    %v1464 = vsel %vm1256, %v1394, 0.0
    %1465 = vadd.xlane.f32.xlu0 %v1464
    %v1466 = vpop.xlane.xlu0 %1465
    %v1467 = vrcp.pop %v1397
    %v1468 = vrcp.pop %v1400
    %v1469 = vrcp.pop %v1403
    %v1470 = vrcp.pop %v1406
    %v1471 = vrcp.pop %v1409
    %v1472 = vrcp.pop %v1412
    %v1473 = vrcp.pop %v1415
    %v1474 = vrcp.pop %v1418
    %v1475 = vrcp.pop %v1421
    %v1476 = vrcp.pop %v1424
    %v1477 = vrcp.pop %v1427
    %v1478 = vrcp.pop %v1430
    %v1479 = vrcp.pop %v1433
    %v1480 = vrcp.pop %v1436
    %v1481 = vrcp.pop %v1439
    %v1482 = vrcp.pop %v1442
    %v1483 = vrcp.pop %v1445
    %v1484 = vrcp.pop %v1448
    %v1485 = vrcp.pop %v1451
    %v1486 = vrcp.pop %v1454
    %v1487 = vrcp.pop %v1457
    %v1488 = vrcp.pop %v1460
    %v1489 = vrcp.pop %v1463
    %v1490 = vrcp.pop %v1466
    %v1491 = vmul.f32 %v1348, %v1467
    %v1492 = vmul.f32 %v1350, %v1468
    %v1493 = vmul.f32 %v1352, %v1469
    %v1494 = vmul.f32 %v1354, %v1470
    %v1495 = vmul.f32 %v1356, %v1471
    %v1496 = vmul.f32 %v1358, %v1472
    %v1497 = vmul.f32 %v1360, %v1473
    %v1498 = vmul.f32 %v1362, %v1474
    %v1499 = vmul.f32 %v1364, %v1475
    %v1500 = vmul.f32 %v1366, %v1476
    %v1501 = vmul.f32 %v1368, %v1477
    %v1502 = vmul.f32 %v1370, %v1478
    %v1503 = vmul.f32 %v1372, %v1479
    %v1504 = vmul.f32 %v1374, %v1480
    %v1505 = vmul.f32 %v1376, %v1481
    %v1506 = vmul.f32 %v1378, %v1482
    %v1507 = vmul.f32 %v1380, %v1483
    %v1508 = vmul.f32 %v1382, %v1484
    %v1509 = vmul.f32 %v1384, %v1485
    %v1510 = vmul.f32 %v1386, %v1486
    %v1511 = vmul.f32 %v1388, %v1487
    %v1512 = vmul.f32 %v1390, %v1488
    %v1513 = vmul.f32 %v1392, %v1489
    %v1514 = vmul.f32 %v1394, %v1490
    %1515 = vrot.lane.b32.xlu0 %v370, 64
    %v1516 = vpop.permute.xlu0 %1515
    %1517 = vrot.lane.b32.xlu0 %v375, 64
    %v1518 = vpop.permute.xlu0 %1517
    %1519 = vrot.lane.b32.xlu0 %v380, 64
    %v1520 = vpop.permute.xlu0 %1519
    %v1524 = vsel %vm1249, %v1491, 0
    %v1527 = vsel %vm1249, %v1492, 0
    %v1530 = vsel %vm1249, %v1493, 0
    %vm1532 = vcmask 1040384
    %v1533 = vsel %vm1532, %v1520, 0
    %1535 = vmatprep.subr.mxu0 0.0
    %1536 = vmatpush1.msra.mxu0 0.0
    %1537 = vmatprep.subr.mxu0 0.0
    %1538 = vmatpush1.msra.mxu0 0.0
    %1539 = vmatprep.subr.mxu0 0.0
    %1540 = vmatpush1.msra.mxu0 0.0
    %1541 = vmatprep.subr.mxu0 0.0
    %1542 = vmatpush1.msra.mxu0 0.0
    %1543 = vmatprep.subr.mxu0 0.0
    %1544 = vmatpush1.msra.mxu0 0.0
    %1545 = vmatprep.subr.mxu0 0.0
    %1546 = vmatpush1.msra.mxu0 0.0
    %1547 = vmatprep.subr.mxu0 0.0
    %1548 = vmatpush1.msra.mxu0 0.0
    %1549 = vmatprep.subr.mxu0 0.0
    %1550 = vmatpush1.msra.mxu0 0.0
    %1551 = vmatprep.subr.mxu0 0.0
    %1552 = vmatpush1.msra.mxu0 0.0
    %1553 = vmatprep.subr.mxu0 0.0
    %1554 = vmatpush1.msra.mxu0 0.0
    %1555 = vmatprep.subr.mxu0 0.0
    %1556 = vmatpush1.msra.mxu0 0.0
    %1557 = vmatprep.subr.mxu0 0.0
    %1558 = vmatpush1.msra.mxu0 0.0
    %1559 = vmatprep.subr.mxu0 0.0
    %1560 = vmatpush1.msra.mxu0 0.0
    %1561 = vmatprep.subr.mxu0 0.0
    %1562 = vmatpush1.msra.mxu0 %v1533
    %1563 = vmatprep.subr.mxu0 0.0
    %1564 = vmatpush1.msra.mxu0 %v1518
    %1565 = vmatprep.subr.mxu0 0.0
    %1566 = vmatpush1.msra.mxu0 %v1516
    %1567 = vmatprep.subr.mxu0 0.0
    %1568 = vmatpush2.msra.mxu0 0.0
    %1569 = vmatprep.subr.mxu0 0.0
    %1570 = vmatpush2.msra.mxu0 0.0
    %1571 = vmatprep.subr.mxu0 0.0
    %1572 = vmatpush2.msra.mxu0 0.0
    %1573 = vmatprep.subr.mxu0 0.0
    %1574 = vmatpush2.msra.mxu0 0.0
    %1575 = vmatprep.subr.mxu0 0.0
    %1576 = vmatpush2.msra.mxu0 0.0
    %1577 = vmatprep.subr.mxu0 0.0
    %1578 = vmatpush2.msra.mxu0 0.0
    %1579 = vmatprep.subr.mxu0 0.0
    %1580 = vmatpush2.msra.mxu0 0.0
    %1581 = vmatprep.subr.mxu0 0.0
    %1582 = vmatpush2.msra.mxu0 0.0
    %1583 = vmatprep.subr.mxu0 0.0
    %1584 = vmatpush2.msra.mxu0 0.0
    %1585 = vmatprep.subr.mxu0 0.0
    %1586 = vmatpush2.msra.mxu0 0.0
    %1587 = vmatprep.subr.mxu0 0.0
    %1588 = vmatpush2.msra.mxu0 0.0
    %1589 = vmatprep.subr.mxu0 0.0
    %1590 = vmatpush2.msra.mxu0 0.0
    %1591 = vmatprep.subr.mxu0 0.0
    %1592 = vmatpush2.msra.mxu0 0.0
    %1593 = vmatprep.subr.mxu0 0.0
    %1594 = vmatpush2.msra.mxu0 0.0
    %1595 = vmatprep.subr.mxu0 0.0
    %1596 = vmatpush2.msra.mxu0 0.0
    %1597 = vmatprep.subr.mxu0 0.0
    %1598 = vmatpush2.msra.mxu0 0.0
    %1599 = vmatprep.mubr.f32.mxu0 0.0
    %1600 = vmatmul.mubr.f32.gmra.mxu0 %v1524
    %v1601 = vpop.f32.mrf.mxu0
    %v1602 = vadd.f32 0.0, %v1601
    %v1603 = vpop.f32.mrf.mxu0
    %1604 = vmatprep.mubr.f32.mxu0 0.0
    %1605 = vmatmul.mubr.f32.gmra.mxu0 %v1527
    %v1606 = vpop.f32.mrf.mxu0
    %v1607 = vadd.f32 0.0, %v1606
    %v1608 = vpop.f32.mrf.mxu0
    %1609 = vmatprep.mubr.f32.mxu0 0.0
    %1610 = vmatmul.mubr.f32.gmra.mxu0 %v1530
    %v1611 = vpop.f32.mrf.mxu0
    %v1612 = vadd.f32 0.0, %v1611
    %v1613 = vpop.f32.mrf.mxu0
    %1614 = vdwg.mxu0
    %1615 = vrot.lane.b32.xlu0 %v397, 64
    %v1616 = vpop.permute.xlu0 %1615
    %1617 = vrot.lane.b32.xlu0 %v399, 64
    %v1618 = vpop.permute.xlu0 %1617
    %1619 = vrot.lane.b32.xlu0 %v401, 64
    %v1620 = vpop.permute.xlu0 %1619
    %v1624 = vsel %vm1249, %v1494, 0
    %v1627 = vsel %vm1249, %v1495, 0
    %v1630 = vsel %vm1249, %v1496, 0
    %v1632 = vsel %vm1532, %v1620, 0
    %1634 = vmatprep.subr.mxu0 0.0
    %1635 = vmatpush1.msra.mxu0 0.0
    %1636 = vmatprep.subr.mxu0 0.0
    %1637 = vmatpush1.msra.mxu0 0.0
    %1638 = vmatprep.subr.mxu0 0.0
    %1639 = vmatpush1.msra.mxu0 0.0
    %1640 = vmatprep.subr.mxu0 0.0
    %1641 = vmatpush1.msra.mxu0 0.0
    %1642 = vmatprep.subr.mxu0 0.0
    %1643 = vmatpush1.msra.mxu0 0.0
    %1644 = vmatprep.subr.mxu0 0.0
    %1645 = vmatpush1.msra.mxu0 0.0
    %1646 = vmatprep.subr.mxu0 0.0
    %1647 = vmatpush1.msra.mxu0 0.0
    %1648 = vmatprep.subr.mxu0 0.0
    %1649 = vmatpush1.msra.mxu0 0.0
    %1650 = vmatprep.subr.mxu0 0.0
    %1651 = vmatpush1.msra.mxu0 0.0
    %1652 = vmatprep.subr.mxu0 0.0
    %1653 = vmatpush1.msra.mxu0 0.0
    %1654 = vmatprep.subr.mxu0 0.0
    %1655 = vmatpush1.msra.mxu0 0.0
    %1656 = vmatprep.subr.mxu0 0.0
    %1657 = vmatpush1.msra.mxu0 0.0
    %1658 = vmatprep.subr.mxu0 0.0
    %1659 = vmatpush1.msra.mxu0 0.0
    %1660 = vmatprep.subr.mxu0 0.0
    %1661 = vmatpush1.msra.mxu0 %v1632
    %1662 = vmatprep.subr.mxu0 0.0
    %1663 = vmatpush1.msra.mxu0 %v1618
    %1664 = vmatprep.subr.mxu0 0.0
    %1665 = vmatpush1.msra.mxu0 %v1616
    %1666 = vmatprep.subr.mxu0 0.0
    %1667 = vmatpush2.msra.mxu0 0.0
    %1668 = vmatprep.subr.mxu0 0.0
    %1669 = vmatpush2.msra.mxu0 0.0
    %1670 = vmatprep.subr.mxu0 0.0
    %1671 = vmatpush2.msra.mxu0 0.0
    %1672 = vmatprep.subr.mxu0 0.0
    %1673 = vmatpush2.msra.mxu0 0.0
    %1674 = vmatprep.subr.mxu0 0.0
    %1675 = vmatpush2.msra.mxu0 0.0
    %1676 = vmatprep.subr.mxu0 0.0
    %1677 = vmatpush2.msra.mxu0 0.0
    %1678 = vmatprep.subr.mxu0 0.0
    %1679 = vmatpush2.msra.mxu0 0.0
    %1680 = vmatprep.subr.mxu0 0.0
    %1681 = vmatpush2.msra.mxu0 0.0
    %1682 = vmatprep.subr.mxu0 0.0
    %1683 = vmatpush2.msra.mxu0 0.0
    %1684 = vmatprep.subr.mxu0 0.0
    %1685 = vmatpush2.msra.mxu0 0.0
    %1686 = vmatprep.subr.mxu0 0.0
    %1687 = vmatpush2.msra.mxu0 0.0
    %1688 = vmatprep.subr.mxu0 0.0
    %1689 = vmatpush2.msra.mxu0 0.0
    %1690 = vmatprep.subr.mxu0 0.0
    %1691 = vmatpush2.msra.mxu0 0.0
    %1692 = vmatprep.subr.mxu0 0.0
    %1693 = vmatpush2.msra.mxu0 0.0
    %1694 = vmatprep.subr.mxu0 0.0
    %1695 = vmatpush2.msra.mxu0 0.0
    %1696 = vmatprep.subr.mxu0 0.0
    %1697 = vmatpush2.msra.mxu0 0.0
    %1698 = vmatprep.mubr.f32.mxu0 0.0
    %1699 = vmatmul.mubr.f32.gmra.mxu0 %v1624
    %v1700 = vpop.f32.mrf.mxu0
    %v1701 = vadd.f32 0.0, %v1700
    %v1702 = vpop.f32.mrf.mxu0
    %1703 = vmatprep.mubr.f32.mxu0 0.0
    %1704 = vmatmul.mubr.f32.gmra.mxu0 %v1627
    %v1705 = vpop.f32.mrf.mxu0
    %v1706 = vadd.f32 0.0, %v1705
    %v1707 = vpop.f32.mrf.mxu0
    %1708 = vmatprep.mubr.f32.mxu0 0.0
    %1709 = vmatmul.mubr.f32.gmra.mxu0 %v1630
    %v1710 = vpop.f32.mrf.mxu0
    %v1711 = vadd.f32 0.0, %v1710
    %v1712 = vpop.f32.mrf.mxu0
    %1713 = vdwg.mxu0
    %1714 = vrot.lane.b32.xlu0 %v403, 64
    %v1715 = vpop.permute.xlu0 %1714
    %1716 = vrot.lane.b32.xlu0 %v405, 64
    %v1717 = vpop.permute.xlu0 %1716
    %1718 = vrot.lane.b32.xlu0 %v407, 64
    %v1719 = vpop.permute.xlu0 %1718
    %v1723 = vsel %vm1249, %v1497, 0
    %v1726 = vsel %vm1249, %v1498, 0
    %v1729 = vsel %vm1249, %v1499, 0
    %v1731 = vsel %vm1532, %v1719, 0
    %1733 = vmatprep.subr.mxu0 0.0
    %1734 = vmatpush1.msra.mxu0 0.0
    %1735 = vmatprep.subr.mxu0 0.0
    %1736 = vmatpush1.msra.mxu0 0.0
    %1737 = vmatprep.subr.mxu0 0.0
    %1738 = vmatpush1.msra.mxu0 0.0
    %1739 = vmatprep.subr.mxu0 0.0
    %1740 = vmatpush1.msra.mxu0 0.0
    %1741 = vmatprep.subr.mxu0 0.0
    %1742 = vmatpush1.msra.mxu0 0.0
    %1743 = vmatprep.subr.mxu0 0.0
    %1744 = vmatpush1.msra.mxu0 0.0
    %1745 = vmatprep.subr.mxu0 0.0
    %1746 = vmatpush1.msra.mxu0 0.0
    %1747 = vmatprep.subr.mxu0 0.0
    %1748 = vmatpush1.msra.mxu0 0.0
    %1749 = vmatprep.subr.mxu0 0.0
    %1750 = vmatpush1.msra.mxu0 0.0
    %1751 = vmatprep.subr.mxu0 0.0
    %1752 = vmatpush1.msra.mxu0 0.0
    %1753 = vmatprep.subr.mxu0 0.0
    %1754 = vmatpush1.msra.mxu0 0.0
    %1755 = vmatprep.subr.mxu0 0.0
    %1756 = vmatpush1.msra.mxu0 0.0
    %1757 = vmatprep.subr.mxu0 0.0
    %1758 = vmatpush1.msra.mxu0 0.0
    %1759 = vmatprep.subr.mxu0 0.0
    %1760 = vmatpush1.msra.mxu0 %v1731
    %1761 = vmatprep.subr.mxu0 0.0
    %1762 = vmatpush1.msra.mxu0 %v1717
    %1763 = vmatprep.subr.mxu0 0.0
    %1764 = vmatpush1.msra.mxu0 %v1715
    %1765 = vmatprep.subr.mxu0 0.0
    %1766 = vmatpush2.msra.mxu0 0.0
    %1767 = vmatprep.subr.mxu0 0.0
    %1768 = vmatpush2.msra.mxu0 0.0
    %1769 = vmatprep.subr.mxu0 0.0
    %1770 = vmatpush2.msra.mxu0 0.0
    %1771 = vmatprep.subr.mxu0 0.0
    %1772 = vmatpush2.msra.mxu0 0.0
    %1773 = vmatprep.subr.mxu0 0.0
    %1774 = vmatpush2.msra.mxu0 0.0
    %1775 = vmatprep.subr.mxu0 0.0
    %1776 = vmatpush2.msra.mxu0 0.0
    %1777 = vmatprep.subr.mxu0 0.0
    %1778 = vmatpush2.msra.mxu0 0.0
    %1779 = vmatprep.subr.mxu0 0.0
    %1780 = vmatpush2.msra.mxu0 0.0
    %1781 = vmatprep.subr.mxu0 0.0
    %1782 = vmatpush2.msra.mxu0 0.0
    %1783 = vmatprep.subr.mxu0 0.0
    %1784 = vmatpush2.msra.mxu0 0.0
    %1785 = vmatprep.subr.mxu0 0.0
    %1786 = vmatpush2.msra.mxu0 0.0
    %1787 = vmatprep.subr.mxu0 0.0
    %1788 = vmatpush2.msra.mxu0 0.0
    %1789 = vmatprep.subr.mxu0 0.0
    %1790 = vmatpush2.msra.mxu0 0.0
    %1791 = vmatprep.subr.mxu0 0.0
    %1792 = vmatpush2.msra.mxu0 0.0
    %1793 = vmatprep.subr.mxu0 0.0
    %1794 = vmatpush2.msra.mxu0 0.0
    %1795 = vmatprep.subr.mxu0 0.0
    %1796 = vmatpush2.msra.mxu0 0.0
    %1797 = vmatprep.mubr.f32.mxu0 0.0
    %1798 = vmatmul.mubr.f32.gmra.mxu0 %v1723
    %v1799 = vpop.f32.mrf.mxu0
    %v1800 = vadd.f32 0.0, %v1799
    %v1801 = vpop.f32.mrf.mxu0
    %1802 = vmatprep.mubr.f32.mxu0 0.0
    %1803 = vmatmul.mubr.f32.gmra.mxu0 %v1726
    %v1804 = vpop.f32.mrf.mxu0
    %v1805 = vadd.f32 0.0, %v1804
    %v1806 = vpop.f32.mrf.mxu0
    %1807 = vmatprep.mubr.f32.mxu0 0.0
    %1808 = vmatmul.mubr.f32.gmra.mxu0 %v1729
    %v1809 = vpop.f32.mrf.mxu0
    %v1810 = vadd.f32 0.0, %v1809
    %v1811 = vpop.f32.mrf.mxu0
    %1812 = vdwg.mxu0
    %1813 = vrot.lane.b32.xlu0 %v409, 64
    %v1814 = vpop.permute.xlu0 %1813
    %1815 = vrot.lane.b32.xlu0 %v411, 64
    %v1816 = vpop.permute.xlu0 %1815
    %1817 = vrot.lane.b32.xlu0 %v413, 64
    %v1818 = vpop.permute.xlu0 %1817
    %v1822 = vsel %vm1249, %v1500, 0
    %v1825 = vsel %vm1249, %v1501, 0
    %v1828 = vsel %vm1249, %v1502, 0
    %v1830 = vsel %vm1532, %v1818, 0
    %1832 = vmatprep.subr.mxu0 0.0
    %1833 = vmatpush1.msra.mxu0 0.0
    %1834 = vmatprep.subr.mxu0 0.0
    %1835 = vmatpush1.msra.mxu0 0.0
    %1836 = vmatprep.subr.mxu0 0.0
    %1837 = vmatpush1.msra.mxu0 0.0
    %1838 = vmatprep.subr.mxu0 0.0
    %1839 = vmatpush1.msra.mxu0 0.0
    %1840 = vmatprep.subr.mxu0 0.0
    %1841 = vmatpush1.msra.mxu0 0.0
    %1842 = vmatprep.subr.mxu0 0.0
    %1843 = vmatpush1.msra.mxu0 0.0
    %1844 = vmatprep.subr.mxu0 0.0
    %1845 = vmatpush1.msra.mxu0 0.0
    %1846 = vmatprep.subr.mxu0 0.0
    %1847 = vmatpush1.msra.mxu0 0.0
    %1848 = vmatprep.subr.mxu0 0.0
    %1849 = vmatpush1.msra.mxu0 0.0
    %1850 = vmatprep.subr.mxu0 0.0
    %1851 = vmatpush1.msra.mxu0 0.0
    %1852 = vmatprep.subr.mxu0 0.0
    %1853 = vmatpush1.msra.mxu0 0.0
    %1854 = vmatprep.subr.mxu0 0.0
    %1855 = vmatpush1.msra.mxu0 0.0
    %1856 = vmatprep.subr.mxu0 0.0
    %1857 = vmatpush1.msra.mxu0 0.0
    %1858 = vmatprep.subr.mxu0 0.0
    %1859 = vmatpush1.msra.mxu0 %v1830
    %1860 = vmatprep.subr.mxu0 0.0
    %1861 = vmatpush1.msra.mxu0 %v1816
    %1862 = vmatprep.subr.mxu0 0.0
    %1863 = vmatpush1.msra.mxu0 %v1814
    %1864 = vmatprep.subr.mxu0 0.0
    %1865 = vmatpush2.msra.mxu0 0.0
    %1866 = vmatprep.subr.mxu0 0.0
    %1867 = vmatpush2.msra.mxu0 0.0
    %1868 = vmatprep.subr.mxu0 0.0
    %1869 = vmatpush2.msra.mxu0 0.0
    %1870 = vmatprep.subr.mxu0 0.0
    %1871 = vmatpush2.msra.mxu0 0.0
    %1872 = vmatprep.subr.mxu0 0.0
    %1873 = vmatpush2.msra.mxu0 0.0
    %1874 = vmatprep.subr.mxu0 0.0
    %1875 = vmatpush2.msra.mxu0 0.0
    %1876 = vmatprep.subr.mxu0 0.0
    %1877 = vmatpush2.msra.mxu0 0.0
    %1878 = vmatprep.subr.mxu0 0.0
    %1879 = vmatpush2.msra.mxu0 0.0
    %1880 = vmatprep.subr.mxu0 0.0
    %1881 = vmatpush2.msra.mxu0 0.0
    %1882 = vmatprep.subr.mxu0 0.0
    %1883 = vmatpush2.msra.mxu0 0.0
    %1884 = vmatprep.subr.mxu0 0.0
    %1885 = vmatpush2.msra.mxu0 0.0
    %1886 = vmatprep.subr.mxu0 0.0
    %1887 = vmatpush2.msra.mxu0 0.0
    %1888 = vmatprep.subr.mxu0 0.0
    %1889 = vmatpush2.msra.mxu0 0.0
    %1890 = vmatprep.subr.mxu0 0.0
    %1891 = vmatpush2.msra.mxu0 0.0
    %1892 = vmatprep.subr.mxu0 0.0
    %1893 = vmatpush2.msra.mxu0 0.0
    %1894 = vmatprep.subr.mxu0 0.0
    %1895 = vmatpush2.msra.mxu0 0.0
    %1896 = vmatprep.mubr.f32.mxu0 0.0
    %1897 = vmatmul.mubr.f32.gmra.mxu0 %v1822
    %v1898 = vpop.f32.mrf.mxu0
    %v1899 = vadd.f32 0.0, %v1898
    %v1900 = vpop.f32.mrf.mxu0
    %1901 = vmatprep.mubr.f32.mxu0 0.0
    %1902 = vmatmul.mubr.f32.gmra.mxu0 %v1825
    %v1903 = vpop.f32.mrf.mxu0
    %v1904 = vadd.f32 0.0, %v1903
    %v1905 = vpop.f32.mrf.mxu0
    %1906 = vmatprep.mubr.f32.mxu0 0.0
    %1907 = vmatmul.mubr.f32.gmra.mxu0 %v1828
    %v1908 = vpop.f32.mrf.mxu0
    %v1909 = vadd.f32 0.0, %v1908
    %v1910 = vpop.f32.mrf.mxu0
    %1911 = vdwg.mxu0
    %1912 = vrot.lane.b32.xlu0 %v419, 64
    %v1913 = vpop.permute.xlu0 %1912
    %1914 = vrot.lane.b32.xlu0 %v421, 64
    %v1915 = vpop.permute.xlu0 %1914
    %1916 = vrot.lane.b32.xlu0 %v420, 64
    %v1917 = vpop.permute.xlu0 %1916
    %v1921 = vsel %vm1249, %v1503, 0
    %v1924 = vsel %vm1249, %v1504, 0
    %v1927 = vsel %vm1249, %v1505, 0
    %v1929 = vsel %vm1532, %v1917, 0
    %1931 = vmatprep.subr.mxu0 0.0
    %1932 = vmatpush1.msra.mxu0 0.0
    %1933 = vmatprep.subr.mxu0 0.0
    %1934 = vmatpush1.msra.mxu0 0.0
    %1935 = vmatprep.subr.mxu0 0.0
    %1936 = vmatpush1.msra.mxu0 0.0
    %1937 = vmatprep.subr.mxu0 0.0
    %1938 = vmatpush1.msra.mxu0 0.0
    %1939 = vmatprep.subr.mxu0 0.0
    %1940 = vmatpush1.msra.mxu0 0.0
    %1941 = vmatprep.subr.mxu0 0.0
    %1942 = vmatpush1.msra.mxu0 0.0
    %1943 = vmatprep.subr.mxu0 0.0
    %1944 = vmatpush1.msra.mxu0 0.0
    %1945 = vmatprep.subr.mxu0 0.0
    %1946 = vmatpush1.msra.mxu0 0.0
    %1947 = vmatprep.subr.mxu0 0.0
    %1948 = vmatpush1.msra.mxu0 0.0
    %1949 = vmatprep.subr.mxu0 0.0
    %1950 = vmatpush1.msra.mxu0 0.0
    %1951 = vmatprep.subr.mxu0 0.0
    %1952 = vmatpush1.msra.mxu0 0.0
    %1953 = vmatprep.subr.mxu0 0.0
    %1954 = vmatpush1.msra.mxu0 0.0
    %1955 = vmatprep.subr.mxu0 0.0
    %1956 = vmatpush1.msra.mxu0 0.0
    %1957 = vmatprep.subr.mxu0 0.0
    %1958 = vmatpush1.msra.mxu0 %v1929
    %1959 = vmatprep.subr.mxu0 0.0
    %1960 = vmatpush1.msra.mxu0 %v1915
    %1961 = vmatprep.subr.mxu0 0.0
    %1962 = vmatpush1.msra.mxu0 %v1913
    %1963 = vmatprep.subr.mxu0 0.0
    %1964 = vmatpush2.msra.mxu0 0.0
    %1965 = vmatprep.subr.mxu0 0.0
    %1966 = vmatpush2.msra.mxu0 0.0
    %1967 = vmatprep.subr.mxu0 0.0
    %1968 = vmatpush2.msra.mxu0 0.0
    %1969 = vmatprep.subr.mxu0 0.0
    %1970 = vmatpush2.msra.mxu0 0.0
    %1971 = vmatprep.subr.mxu0 0.0
    %1972 = vmatpush2.msra.mxu0 0.0
    %1973 = vmatprep.subr.mxu0 0.0
    %1974 = vmatpush2.msra.mxu0 0.0
    %1975 = vmatprep.subr.mxu0 0.0
    %1976 = vmatpush2.msra.mxu0 0.0
    %1977 = vmatprep.subr.mxu0 0.0
    %1978 = vmatpush2.msra.mxu0 0.0
    %1979 = vmatprep.subr.mxu0 0.0
    %1980 = vmatpush2.msra.mxu0 0.0
    %1981 = vmatprep.subr.mxu0 0.0
    %1982 = vmatpush2.msra.mxu0 0.0
    %1983 = vmatprep.subr.mxu0 0.0
    %1984 = vmatpush2.msra.mxu0 0.0
    %1985 = vmatprep.subr.mxu0 0.0
    %1986 = vmatpush2.msra.mxu0 0.0
    %1987 = vmatprep.subr.mxu0 0.0
    %1988 = vmatpush2.msra.mxu0 0.0
    %1989 = vmatprep.subr.mxu0 0.0
    %1990 = vmatpush2.msra.mxu0 0.0
    %1991 = vmatprep.subr.mxu0 0.0
    %1992 = vmatpush2.msra.mxu0 0.0
    %1993 = vmatprep.subr.mxu0 0.0
    %1994 = vmatpush2.msra.mxu0 0.0
    %1995 = vmatprep.mubr.f32.mxu0 0.0
    %1996 = vmatmul.mubr.f32.gmra.mxu0 %v1921
    %v1997 = vpop.f32.mrf.mxu0
    %v1998 = vadd.f32 0.0, %v1997
    %v1999 = vpop.f32.mrf.mxu0
    %2000 = vmatprep.mubr.f32.mxu0 0.0
    %2001 = vmatmul.mubr.f32.gmra.mxu0 %v1924
    %v2002 = vpop.f32.mrf.mxu0
    %v2003 = vadd.f32 0.0, %v2002
    %v2004 = vpop.f32.mrf.mxu0
    %2005 = vmatprep.mubr.f32.mxu0 0.0
    %2006 = vmatmul.mubr.f32.gmra.mxu0 %v1927
    %v2007 = vpop.f32.mrf.mxu0
    %v2008 = vadd.f32 0.0, %v2007
    %v2009 = vpop.f32.mrf.mxu0
    %2010 = vdwg.mxu0
    %2011 = vrot.lane.b32.xlu0 %v423, 64
    %v2012 = vpop.permute.xlu0 %2011
    %2013 = vrot.lane.b32.xlu0 %v425, 64
    %v2014 = vpop.permute.xlu0 %2013
    %2015 = vrot.lane.b32.xlu0 %v427, 64
    %v2016 = vpop.permute.xlu0 %2015
    %v2020 = vsel %vm1249, %v1506, 0
    %v2023 = vsel %vm1249, %v1507, 0
    %v2026 = vsel %vm1249, %v1508, 0
    %v2028 = vsel %vm1532, %v2016, 0
    %2030 = vmatprep.subr.mxu0 0.0
    %2031 = vmatpush1.msra.mxu0 0.0
    %2032 = vmatprep.subr.mxu0 0.0
    %2033 = vmatpush1.msra.mxu0 0.0
    %2034 = vmatprep.subr.mxu0 0.0
    %2035 = vmatpush1.msra.mxu0 0.0
    %2036 = vmatprep.subr.mxu0 0.0
    %2037 = vmatpush1.msra.mxu0 0.0
    %2038 = vmatprep.subr.mxu0 0.0
    %2039 = vmatpush1.msra.mxu0 0.0
    %2040 = vmatprep.subr.mxu0 0.0
    %2041 = vmatpush1.msra.mxu0 0.0
    %2042 = vmatprep.subr.mxu0 0.0
    %2043 = vmatpush1.msra.mxu0 0.0
    %2044 = vmatprep.subr.mxu0 0.0
    %2045 = vmatpush1.msra.mxu0 0.0
    %2046 = vmatprep.subr.mxu0 0.0
    %2047 = vmatpush1.msra.mxu0 0.0
    %2048 = vmatprep.subr.mxu0 0.0
    %2049 = vmatpush1.msra.mxu0 0.0
    %2050 = vmatprep.subr.mxu0 0.0
    %2051 = vmatpush1.msra.mxu0 0.0
    %2052 = vmatprep.subr.mxu0 0.0
    %2053 = vmatpush1.msra.mxu0 0.0
    %2054 = vmatprep.subr.mxu0 0.0
    %2055 = vmatpush1.msra.mxu0 0.0
    %2056 = vmatprep.subr.mxu0 0.0
    %2057 = vmatpush1.msra.mxu0 %v2028
    %2058 = vmatprep.subr.mxu0 0.0
    %2059 = vmatpush1.msra.mxu0 %v2014
    %2060 = vmatprep.subr.mxu0 0.0
    %2061 = vmatpush1.msra.mxu0 %v2012
    %2062 = vmatprep.subr.mxu0 0.0
    %2063 = vmatpush2.msra.mxu0 0.0
    %2064 = vmatprep.subr.mxu0 0.0
    %2065 = vmatpush2.msra.mxu0 0.0
    %2066 = vmatprep.subr.mxu0 0.0
    %2067 = vmatpush2.msra.mxu0 0.0
    %2068 = vmatprep.subr.mxu0 0.0
    %2069 = vmatpush2.msra.mxu0 0.0
    %2070 = vmatprep.subr.mxu0 0.0
    %2071 = vmatpush2.msra.mxu0 0.0
    %2072 = vmatprep.subr.mxu0 0.0
    %2073 = vmatpush2.msra.mxu0 0.0
    %2074 = vmatprep.subr.mxu0 0.0
    %2075 = vmatpush2.msra.mxu0 0.0
    %2076 = vmatprep.subr.mxu0 0.0
    %2077 = vmatpush2.msra.mxu0 0.0
    %2078 = vmatprep.subr.mxu0 0.0
    %2079 = vmatpush2.msra.mxu0 0.0
    %2080 = vmatprep.subr.mxu0 0.0
    %2081 = vmatpush2.msra.mxu0 0.0
    %2082 = vmatprep.subr.mxu0 0.0
    %2083 = vmatpush2.msra.mxu0 0.0
    %2084 = vmatprep.subr.mxu0 0.0
    %2085 = vmatpush2.msra.mxu0 0.0
    %2086 = vmatprep.subr.mxu0 0.0
    %2087 = vmatpush2.msra.mxu0 0.0
    %2088 = vmatprep.subr.mxu0 0.0
    %2089 = vmatpush2.msra.mxu0 0.0
    %2090 = vmatprep.subr.mxu0 0.0
    %2091 = vmatpush2.msra.mxu0 0.0
    %2092 = vmatprep.subr.mxu0 0.0
    %2093 = vmatpush2.msra.mxu0 0.0
    %2094 = vmatprep.mubr.f32.mxu0 0.0
    %2095 = vmatmul.mubr.f32.gmra.mxu0 %v2020
    %v2096 = vpop.f32.mrf.mxu0
    %v2097 = vadd.f32 0.0, %v2096
    %v2098 = vpop.f32.mrf.mxu0
    %2099 = vmatprep.mubr.f32.mxu0 0.0
    %2100 = vmatmul.mubr.f32.gmra.mxu0 %v2023
    %v2101 = vpop.f32.mrf.mxu0
    %v2102 = vadd.f32 0.0, %v2101
    %v2103 = vpop.f32.mrf.mxu0
    %2104 = vmatprep.mubr.f32.mxu0 0.0
    %2105 = vmatmul.mubr.f32.gmra.mxu0 %v2026
    %v2106 = vpop.f32.mrf.mxu0
    %v2107 = vadd.f32 0.0, %v2106
    %v2108 = vpop.f32.mrf.mxu0
    %2109 = vdwg.mxu0
    %2110 = vrot.lane.b32.xlu0 %v429, 64
    %v2111 = vpop.permute.xlu0 %2110
    %2112 = vrot.lane.b32.xlu0 %v431, 64
    %v2113 = vpop.permute.xlu0 %2112
    %2114 = vrot.lane.b32.xlu0 %v433, 64
    %v2115 = vpop.permute.xlu0 %2114
    %v2119 = vsel %vm1249, %v1509, 0
    %v2122 = vsel %vm1249, %v1510, 0
    %v2125 = vsel %vm1249, %v1511, 0
    %v2127 = vsel %vm1532, %v2115, 0
    %2129 = vmatprep.subr.mxu0 0.0
    %2130 = vmatpush1.msra.mxu0 0.0
    %2131 = vmatprep.subr.mxu0 0.0
    %2132 = vmatpush1.msra.mxu0 0.0
    %2133 = vmatprep.subr.mxu0 0.0
    %2134 = vmatpush1.msra.mxu0 0.0
    %2135 = vmatprep.subr.mxu0 0.0
    %2136 = vmatpush1.msra.mxu0 0.0
    %2137 = vmatprep.subr.mxu0 0.0
    %2138 = vmatpush1.msra.mxu0 0.0
    %2139 = vmatprep.subr.mxu0 0.0
    %2140 = vmatpush1.msra.mxu0 0.0
    %2141 = vmatprep.subr.mxu0 0.0
    %2142 = vmatpush1.msra.mxu0 0.0
    %2143 = vmatprep.subr.mxu0 0.0
    %2144 = vmatpush1.msra.mxu0 0.0
    %2145 = vmatprep.subr.mxu0 0.0
    %2146 = vmatpush1.msra.mxu0 0.0
    %2147 = vmatprep.subr.mxu0 0.0
    %2148 = vmatpush1.msra.mxu0 0.0
    %2149 = vmatprep.subr.mxu0 0.0
    %2150 = vmatpush1.msra.mxu0 0.0
    %2151 = vmatprep.subr.mxu0 0.0
    %2152 = vmatpush1.msra.mxu0 0.0
    %2153 = vmatprep.subr.mxu0 0.0
    %2154 = vmatpush1.msra.mxu0 0.0
    %2155 = vmatprep.subr.mxu0 0.0
    %2156 = vmatpush1.msra.mxu0 %v2127
    %2157 = vmatprep.subr.mxu0 0.0
    %2158 = vmatpush1.msra.mxu0 %v2113
    %2159 = vmatprep.subr.mxu0 0.0
    %2160 = vmatpush1.msra.mxu0 %v2111
    %2161 = vmatprep.subr.mxu0 0.0
    %2162 = vmatpush2.msra.mxu0 0.0
    %2163 = vmatprep.subr.mxu0 0.0
    %2164 = vmatpush2.msra.mxu0 0.0
    %2165 = vmatprep.subr.mxu0 0.0
    %2166 = vmatpush2.msra.mxu0 0.0
    %2167 = vmatprep.subr.mxu0 0.0
    %2168 = vmatpush2.msra.mxu0 0.0
    %2169 = vmatprep.subr.mxu0 0.0
    %2170 = vmatpush2.msra.mxu0 0.0
    %2171 = vmatprep.subr.mxu0 0.0
    %2172 = vmatpush2.msra.mxu0 0.0
    %2173 = vmatprep.subr.mxu0 0.0
    %2174 = vmatpush2.msra.mxu0 0.0
    %2175 = vmatprep.subr.mxu0 0.0
    %2176 = vmatpush2.msra.mxu0 0.0
    %2177 = vmatprep.subr.mxu0 0.0
    %2178 = vmatpush2.msra.mxu0 0.0
    %2179 = vmatprep.subr.mxu0 0.0
    %2180 = vmatpush2.msra.mxu0 0.0
    %2181 = vmatprep.subr.mxu0 0.0
    %2182 = vmatpush2.msra.mxu0 0.0
    %2183 = vmatprep.subr.mxu0 0.0
    %2184 = vmatpush2.msra.mxu0 0.0
    %2185 = vmatprep.subr.mxu0 0.0
    %2186 = vmatpush2.msra.mxu0 0.0
    %2187 = vmatprep.subr.mxu0 0.0
    %2188 = vmatpush2.msra.mxu0 0.0
    %2189 = vmatprep.subr.mxu0 0.0
    %2190 = vmatpush2.msra.mxu0 0.0
    %2191 = vmatprep.subr.mxu0 0.0
    %2192 = vmatpush2.msra.mxu0 0.0
    %2193 = vmatprep.mubr.f32.mxu0 0.0
    %2194 = vmatmul.mubr.f32.gmra.mxu0 %v2119
    %v2195 = vpop.f32.mrf.mxu0
    %v2196 = vadd.f32 0.0, %v2195
    %v2197 = vpop.f32.mrf.mxu0
    %2198 = vmatprep.mubr.f32.mxu0 0.0
    %2199 = vmatmul.mubr.f32.gmra.mxu0 %v2122
    %v2200 = vpop.f32.mrf.mxu0
    %v2201 = vadd.f32 0.0, %v2200
    %v2202 = vpop.f32.mrf.mxu0
    %2203 = vmatprep.mubr.f32.mxu0 0.0
    %2204 = vmatmul.mubr.f32.gmra.mxu0 %v2125
    %v2205 = vpop.f32.mrf.mxu0
    %v2206 = vadd.f32 0.0, %v2205
    %v2207 = vpop.f32.mrf.mxu0
    %2208 = vdwg.mxu0
    %2209 = vrot.lane.b32.xlu0 %v435, 64
    %v2210 = vpop.permute.xlu0 %2209
    %2211 = vrot.lane.b32.xlu0 %v437, 64
    %v2212 = vpop.permute.xlu0 %2211
    %2213 = vrot.lane.b32.xlu0 %v439, 64
    %v2214 = vpop.permute.xlu0 %2213
    %v2218 = vsel %vm1249, %v1512, 0
    %v2221 = vsel %vm1249, %v1513, 0
    %v2224 = vsel %vm1249, %v1514, 0
    %v2226 = vsel %vm1532, %v2214, 0
    %2228 = vmatprep.subr.mxu0 0.0
    %2229 = vmatpush1.msra.mxu0 0.0
    %2230 = vmatprep.subr.mxu0 0.0
    %2231 = vmatpush1.msra.mxu0 0.0
    %2232 = vmatprep.subr.mxu0 0.0
    %2233 = vmatpush1.msra.mxu0 0.0
    %2234 = vmatprep.subr.mxu0 0.0
    %2235 = vmatpush1.msra.mxu0 0.0
    %2236 = vmatprep.subr.mxu0 0.0
    %2237 = vmatpush1.msra.mxu0 0.0
    %2238 = vmatprep.subr.mxu0 0.0
    %2239 = vmatpush1.msra.mxu0 0.0
    %2240 = vmatprep.subr.mxu0 0.0
    %2241 = vmatpush1.msra.mxu0 0.0
    %2242 = vmatprep.subr.mxu0 0.0
    %2243 = vmatpush1.msra.mxu0 0.0
    %2244 = vmatprep.subr.mxu0 0.0
    %2245 = vmatpush1.msra.mxu0 0.0
    %2246 = vmatprep.subr.mxu0 0.0
    %2247 = vmatpush1.msra.mxu0 0.0
    %2248 = vmatprep.subr.mxu0 0.0
    %2249 = vmatpush1.msra.mxu0 0.0
    %2250 = vmatprep.subr.mxu0 0.0
    %2251 = vmatpush1.msra.mxu0 0.0
    %2252 = vmatprep.subr.mxu0 0.0
    %2253 = vmatpush1.msra.mxu0 0.0
    %2254 = vmatprep.subr.mxu0 0.0
    %2255 = vmatpush1.msra.mxu0 %v2226
    %2256 = vmatprep.subr.mxu0 0.0
    %2257 = vmatpush1.msra.mxu0 %v2212
    %2258 = vmatprep.subr.mxu0 0.0
    %2259 = vmatpush1.msra.mxu0 %v2210
    %2260 = vmatprep.subr.mxu0 0.0
    %2261 = vmatpush2.msra.mxu0 0.0
    %2262 = vmatprep.subr.mxu0 0.0
    %2263 = vmatpush2.msra.mxu0 0.0
    %2264 = vmatprep.subr.mxu0 0.0
    %2265 = vmatpush2.msra.mxu0 0.0
    %2266 = vmatprep.subr.mxu0 0.0
    %2267 = vmatpush2.msra.mxu0 0.0
    %2268 = vmatprep.subr.mxu0 0.0
    %2269 = vmatpush2.msra.mxu0 0.0
    %2270 = vmatprep.subr.mxu0 0.0
    %2271 = vmatpush2.msra.mxu0 0.0
    %2272 = vmatprep.subr.mxu0 0.0
    %2273 = vmatpush2.msra.mxu0 0.0
    %2274 = vmatprep.subr.mxu0 0.0
    %2275 = vmatpush2.msra.mxu0 0.0
    %2276 = vmatprep.subr.mxu0 0.0
    %2277 = vmatpush2.msra.mxu0 0.0
    %2278 = vmatprep.subr.mxu0 0.0
    %2279 = vmatpush2.msra.mxu0 0.0
    %2280 = vmatprep.subr.mxu0 0.0
    %2281 = vmatpush2.msra.mxu0 0.0
    %2282 = vmatprep.subr.mxu0 0.0
    %2283 = vmatpush2.msra.mxu0 0.0
    %2284 = vmatprep.subr.mxu0 0.0
    %2285 = vmatpush2.msra.mxu0 0.0
    %2286 = vmatprep.subr.mxu0 0.0
    %2287 = vmatpush2.msra.mxu0 0.0
    %2288 = vmatprep.subr.mxu0 0.0
    %2289 = vmatpush2.msra.mxu0 0.0
    %2290 = vmatprep.subr.mxu0 0.0
    %2291 = vmatpush2.msra.mxu0 0.0
    %2292 = vmatprep.mubr.f32.mxu0 0.0
    %2293 = vmatmul.mubr.f32.gmra.mxu0 %v2218
    %v2294 = vpop.f32.mrf.mxu0
    %v2295 = vadd.f32 0.0, %v2294
    %v2296 = vpop.f32.mrf.mxu0
    %2297 = vmatprep.mubr.f32.mxu0 0.0
    %2298 = vmatmul.mubr.f32.gmra.mxu0 %v2221
    %v2299 = vpop.f32.mrf.mxu0
    %v2300 = vadd.f32 0.0, %v2299
    %v2301 = vpop.f32.mrf.mxu0
    %2302 = vmatprep.mubr.f32.mxu0 0.0
    %2303 = vmatmul.mubr.f32.gmra.mxu0 %v2224
    %v2304 = vpop.f32.mrf.mxu0
    %v2305 = vadd.f32 0.0, %v2304
    %v2306 = vpop.f32.mrf.mxu0
    %2307 = vdwg.mxu0
    %2308 = vst.msk [vmem:[#allocation2] sm:$0xff] %vm446, %v1602
    %2309 = vst.msk [vmem:[#allocation2 + $0x8] sm:$0xff] %vm446, %v1607
    %vm2310 = vcmask 57344
    %2311 = vst.msk [vmem:[#allocation2 + $0x10] sm:$0x1] %vm2310, %v1612
    %2315 = vrot.lane.b32.xlu0 %v1701, 8
    %v2316 = vpop.permute.xlu0 %2315
    %2317 = vrot.lane.b32.xlu0 %v1706, 8
    %v2318 = vpop.permute.xlu0 %2317
    %2319 = vrot.lane.b32.xlu0 %v1711, 8
    %v2320 = vpop.permute.xlu0 %2319
    %vm2324 = vcmask 130112
    %2325 = vst.msk [vmem:[#allocation2] sm:$0xff] %vm2324, %v2316
    %2326 = vst.msk [vmem:[#allocation2 + $0x8] sm:$0xff] %vm2324, %v2318
    %vm2327 = vcmask 122944
    %2328 = vst.msk [vmem:[#allocation2 + $0x10] sm:$0x1] %vm2327, %v2320
    %2332 = vrot.lane.b32.xlu0 %v1800, 16
    %v2333 = vpop.permute.xlu0 %2332
    %2334 = vrot.lane.b32.xlu0 %v1805, 16
    %v2335 = vpop.permute.xlu0 %2334
    %2336 = vrot.lane.b32.xlu0 %v1810, 16
    %v2337 = vpop.permute.xlu0 %2336
    %vm2341 = vcmask 195712
    %2342 = vst.msk [vmem:[#allocation2] sm:$0xff] %vm2341, %v2333
    %2343 = vst.msk [vmem:[#allocation2 + $0x8] sm:$0xff] %vm2341, %v2335
    %vm2344 = vcmask 188544
    %2345 = vst.msk [vmem:[#allocation2 + $0x10] sm:$0x1] %vm2344, %v2337
    %2349 = vrot.lane.b32.xlu0 %v1899, 24
    %v2350 = vpop.permute.xlu0 %2349
    %2351 = vrot.lane.b32.xlu0 %v1904, 24
    %v2352 = vpop.permute.xlu0 %2351
    %2353 = vrot.lane.b32.xlu0 %v1909, 24
    %v2354 = vpop.permute.xlu0 %2353
    %vm2358 = vcmask 261312
    %2359 = vst.msk [vmem:[#allocation2] sm:$0xff] %vm2358, %v2350
    %2360 = vst.msk [vmem:[#allocation2 + $0x8] sm:$0xff] %vm2358, %v2352
    %vm2361 = vcmask 254144
    %2362 = vst.msk [vmem:[#allocation2 + $0x10] sm:$0x1] %vm2361, %v2354
    %2363 = vst.msk [vmem:[#allocation2 + $0x11] sm:$0xff] %vm446, %v1998
    %2364 = vst.msk [vmem:[#allocation2 + $0x19] sm:$0xff] %vm446, %v2003
    %2365 = vst.msk [vmem:[#allocation2 + $0x21] sm:$0x1] %vm2310, %v2008
    %2369 = vrot.lane.b32.xlu0 %v2097, 8
    %v2370 = vpop.permute.xlu0 %2369
    %2371 = vrot.lane.b32.xlu0 %v2102, 8
    %v2372 = vpop.permute.xlu0 %2371
    %2373 = vrot.lane.b32.xlu0 %v2107, 8
    %v2374 = vpop.permute.xlu0 %2373
    %2378 = vst.msk [vmem:[#allocation2 + $0x11] sm:$0xff] %vm2324, %v2370
    %2379 = vst.msk [vmem:[#allocation2 + $0x19] sm:$0xff] %vm2324, %v2372
    %2380 = vst.msk [vmem:[#allocation2 + $0x21] sm:$0x1] %vm2327, %v2374
    %2384 = vrot.lane.b32.xlu0 %v2196, 16
    %v2385 = vpop.permute.xlu0 %2384
    %2386 = vrot.lane.b32.xlu0 %v2201, 16
    %v2387 = vpop.permute.xlu0 %2386
    %2388 = vrot.lane.b32.xlu0 %v2206, 16
    %v2389 = vpop.permute.xlu0 %2388
    %2393 = vst.msk [vmem:[#allocation2 + $0x11] sm:$0xff] %vm2341, %v2385
    %2394 = vst.msk [vmem:[#allocation2 + $0x19] sm:$0xff] %vm2341, %v2387
    %2395 = vst.msk [vmem:[#allocation2 + $0x21] sm:$0x1] %vm2344, %v2389
    %2399 = vrot.lane.b32.xlu0 %v2295, 24
    %v2400 = vpop.permute.xlu0 %2399
    %2401 = vrot.lane.b32.xlu0 %v2300, 24
    %v2402 = vpop.permute.xlu0 %2401
    %2403 = vrot.lane.b32.xlu0 %v2305, 24
    %v2404 = vpop.permute.xlu0 %2403
    %2408 = vst.msk [vmem:[#allocation2 + $0x11] sm:$0xff] %vm2358, %v2400
    %2409 = vst.msk [vmem:[#allocation2 + $0x19] sm:$0xff] %vm2358, %v2402
    %2410 = vst.msk [vmem:[#allocation2 + $0x21] sm:$0x1] %vm2361, %v2404
    %v2411 = vld [vmem:[#allocation2] sm:$0xff]
    %v2412 = vld [vmem:[#allocation2 + $0x8] sm:$0xff]
    %v2413 = vld [vmem:[#allocation2 + $0x10] sm:$0xff]
    %v2414 = vld [vmem:[#allocation2 + $0x18] sm:$0xff]
    %v2415 = vld [vmem:[#allocation2 + $0x20] sm:$0x3]
    %v2416 = vld [vmem:[%s7] sm:$0xff]
    %v2417 = vld [vmem:[%s7 + $0x8] sm:$0xff]
    %v2418 = vld [vmem:[%s7 + $0x10] sm:$0xff]
    %v2419 = vld [vmem:[%s7 + $0x18] sm:$0xff]
    %v2421 = vsel %vm187, %v2411, 0
    %v2424 = vsel %vm187, %v2412, 0
    %v2427 = vsel %vm187, %v2413, 0
    %v2430 = vsel %vm187, %v2414, 0
    %v2433 = vsel %vm187, %v2415, 0
    %2435 = vmatprep.subr.mxu0 0.0
    %2436 = vmatpush1.msra.mxu0 0.0
    %2437 = vmatprep.subr.mxu0 0.0
    %2438 = vmatpush1.msra.mxu0 0.0
    %2439 = vmatprep.subr.mxu0 0.0
    %2440 = vmatpush1.msra.mxu0 0.0
    %2441 = vmatprep.subr.mxu0 0.0
    %2442 = vmatpush1.msra.mxu0 0.0
    %2443 = vmatprep.subr.mxu0 0.0
    %2444 = vmatpush1.msra.mxu0 0.0
    %2445 = vmatprep.subr.mxu0 0.0
    %2446 = vmatpush1.msra.mxu0 0.0
    %2447 = vmatprep.subr.mxu0 0.0
    %2448 = vmatpush1.msra.mxu0 0.0
    %2449 = vmatprep.subr.mxu0 0.0
    %2450 = vmatpush1.msra.mxu0 0.0
    %2451 = vmatprep.subr.mxu0 0.0
    %2452 = vmatpush1.msra.mxu0 0.0
    %2453 = vmatprep.subr.mxu0 0.0
    %2454 = vmatpush1.msra.mxu0 0.0
    %2455 = vmatprep.subr.mxu0 0.0
    %2456 = vmatpush1.msra.mxu0 0.0
    %2457 = vmatprep.subr.mxu0 0.0
    %2458 = vmatpush1.msra.mxu0 0.0
    %2459 = vmatprep.subr.mxu0 0.0
    %2460 = vmatpush1.msra.mxu0 %v2419
    %2461 = vmatprep.subr.mxu0 0.0
    %2462 = vmatpush1.msra.mxu0 %v2418
    %2463 = vmatprep.subr.mxu0 0.0
    %2464 = vmatpush1.msra.mxu0 %v2417
    %2465 = vmatprep.subr.mxu0 0.0
    %2466 = vmatpush1.msra.mxu0 %v2416
    %2467 = vmatprep.subr.mxu0 0.0
    %2468 = vmatpush2.msra.mxu0 0.0
    %2469 = vmatprep.subr.mxu0 0.0
    %2470 = vmatpush2.msra.mxu0 0.0
    %2471 = vmatprep.subr.mxu0 0.0
    %2472 = vmatpush2.msra.mxu0 0.0
    %2473 = vmatprep.subr.mxu0 0.0
    %2474 = vmatpush2.msra.mxu0 0.0
    %2475 = vmatprep.subr.mxu0 0.0
    %2476 = vmatpush2.msra.mxu0 0.0
    %2477 = vmatprep.subr.mxu0 0.0
    %2478 = vmatpush2.msra.mxu0 0.0
    %2479 = vmatprep.subr.mxu0 0.0
    %2480 = vmatpush2.msra.mxu0 0.0
    %2481 = vmatprep.subr.mxu0 0.0
    %2482 = vmatpush2.msra.mxu0 0.0
    %2483 = vmatprep.subr.mxu0 0.0
    %2484 = vmatpush2.msra.mxu0 0.0
    %2485 = vmatprep.subr.mxu0 0.0
    %2486 = vmatpush2.msra.mxu0 0.0
    %2487 = vmatprep.subr.mxu0 0.0
    %2488 = vmatpush2.msra.mxu0 0.0
    %2489 = vmatprep.subr.mxu0 0.0
    %2490 = vmatpush2.msra.mxu0 0.0
    %2491 = vmatprep.subr.mxu0 0.0
    %2492 = vmatpush2.msra.mxu0 0.0
    %2493 = vmatprep.subr.mxu0 0.0
    %2494 = vmatpush2.msra.mxu0 0.0
    %2495 = vmatprep.subr.mxu0 0.0
    %2496 = vmatpush2.msra.mxu0 0.0
    %2497 = vmatprep.subr.mxu0 0.0
    %2498 = vmatpush2.msra.mxu0 0.0
    %2499 = vmatprep.mubr.f32.mxu0 0.0
    %2500 = vmatmul.mubr.f32.gmra.mxu0 %v2421
    %v2501 = vpop.f32.mrf.mxu0
    %v2502 = vadd.f32 0.0, %v2501
    %v2503 = vpop.f32.mrf.mxu0
    %2504 = vmatprep.mubr.f32.mxu0 0.0
    %2505 = vmatmul.mubr.f32.gmra.mxu0 %v2424
    %v2506 = vpop.f32.mrf.mxu0
    %v2507 = vadd.f32 0.0, %v2506
    %v2508 = vpop.f32.mrf.mxu0
    %2509 = vmatprep.mubr.f32.mxu0 0.0
    %2510 = vmatmul.mubr.f32.gmra.mxu0 %v2427
    %v2511 = vpop.f32.mrf.mxu0
    %v2512 = vadd.f32 0.0, %v2511
    %v2513 = vpop.f32.mrf.mxu0
    %2514 = vmatprep.mubr.f32.mxu0 0.0
    %2515 = vmatmul.mubr.f32.gmra.mxu0 %v2430
    %v2516 = vpop.f32.mrf.mxu0
    %v2517 = vadd.f32 0.0, %v2516
    %v2518 = vpop.f32.mrf.mxu0
    %2519 = vmatprep.mubr.f32.mxu0 0.0
    %2520 = vmatmul.mubr.f32.gmra.mxu0 %v2433
    %v2521 = vpop.f32.mrf.mxu0
    %v2522 = vadd.f32 0.0, %v2521
    %v2523 = vpop.f32.mrf.mxu0
    %2524 = vdwg.mxu0
    %v2525 = vadd.f32 %v162, %v2502
    %v2526 = vadd.f32 %v167, %v2507
    %v2527 = vadd.f32 %v172, %v2512
    %v2528 = vadd.f32 %v177, %v2517
    %v2529 = vadd.f32 %v182, %v2522
    %v2530 = vld [vmem:[%s8] sm:$0x1]
    %v2532 = vlaneseq
    %v2533 = vshrl.u32 %v2532, 7
    %v2534 = vsub.s32 0, %v2533
    %v2535 = vrot.slane %v2530, %v2534
    %v2537 = vadd.f32 %v2525, %v2535
    %v2538 = vadd.f32 %v2526, %v2535
    %v2539 = vadd.f32 %v2527, %v2535
    %v2540 = vadd.f32 %v2528, %v2535
    %v2541 = vadd.f32 %v2529, %v2535
    %v2542 = vld [vmem:[%s9] sm:$0x1]
    %v2543 = vld [vmem:[%s10] sm:$0x1]
    %v2544 = vsel %vm187, %v2537, 0.0
    %2545 = vadd.xlane.f32.xlu0 %v2544
    %v2546 = vpop.xlane.xlu0 %2545
    %v2547 = vsel %vm187, %v2538, 0.0
    %2548 = vadd.xlane.f32.xlu0 %v2547
    %v2549 = vpop.xlane.xlu0 %2548
    %v2550 = vsel %vm187, %v2539, 0.0
    %2551 = vadd.xlane.f32.xlu0 %v2550
    %v2552 = vpop.xlane.xlu0 %2551
    %v2553 = vsel %vm187, %v2540, 0.0
    %2554 = vadd.xlane.f32.xlu0 %v2553
    %v2555 = vpop.xlane.xlu0 %2554
    %v2556 = vsel %vm200, %v2541, 0.0
    %2557 = vadd.xlane.f32.xlu0 %v2556
    %v2558 = vpop.xlane.xlu0 %2557
    %v2559 = vmul.f32 %v2546, %v204
    %v2560 = vmul.f32 %v2549, %v204
    %v2561 = vmul.f32 %v2552, %v204
    %v2562 = vmul.f32 %v2555, %v204
    %v2563 = vmul.f32 %v2558, %v204
    %v2564 = vsub.f32 %v2537, %v2559
    %v2565 = vsub.f32 %v2538, %v2560
    %v2566 = vsub.f32 %v2539, %v2561
    %v2567 = vsub.f32 %v2540, %v2562
    %v2568 = vsub.f32 %v2541, %v2563
    %v2569 = vmul.f32 %v2564, %v2564
    %v2570 = vmul.f32 %v2565, %v2565
    %v2571 = vmul.f32 %v2566, %v2566
    %v2572 = vmul.f32 %v2567, %v2567
    %v2573 = vmul.f32 %v2568, %v2568
    %v2574 = vsel %vm187, %v2569, 0.0
    %2575 = vadd.xlane.f32.xlu0 %v2574
    %v2576 = vpop.xlane.xlu0 %2575
    %v2577 = vsel %vm187, %v2570, 0.0
    %2578 = vadd.xlane.f32.xlu0 %v2577
    %v2579 = vpop.xlane.xlu0 %2578
    %v2580 = vsel %vm187, %v2571, 0.0
    %2581 = vadd.xlane.f32.xlu0 %v2580
    %v2582 = vpop.xlane.xlu0 %2581
    %v2583 = vsel %vm187, %v2572, 0.0
    %2584 = vadd.xlane.f32.xlu0 %v2583
    %v2585 = vpop.xlane.xlu0 %2584
    %v2586 = vsel %vm200, %v2573, 0.0
    %2587 = vadd.xlane.f32.xlu0 %v2586
    %v2588 = vpop.xlane.xlu0 %2587
    %v2589 = vmul.f32 %v2576, %v204
    %v2590 = vmul.f32 %v2579, %v204
    %v2591 = vmul.f32 %v2582, %v204
    %v2592 = vmul.f32 %v2585, %v204
    %v2593 = vmul.f32 %v2588, %v204
    %v2594 = vadd.f32 %v2589, 1e-05
    %v2595 = vadd.f32 %v2590, 1e-05
    %v2596 = vadd.f32 %v2591, 1e-05
    %v2597 = vadd.f32 %v2592, 1e-05
    %v2598 = vadd.f32 %v2593, 1e-05
    %v2599 = vrsqrt.pop %v2594
    %v2600 = vrsqrt.pop %v2595
    %v2601 = vrsqrt.pop %v2596
    %v2602 = vrsqrt.pop %v2597
    %v2603 = vrsqrt.pop %v2598
    %v2604 = vmul.f32 %v2564, %v2599
    %v2605 = vmul.f32 %v2565, %v2600
    %v2606 = vmul.f32 %v2566, %v2601
    %v2607 = vmul.f32 %v2567, %v2602
    %v2608 = vmul.f32 %v2568, %v2603
    %v2610 = vlaneseq
    %v2611 = vshrl.u32 %v2610, 7
    %v2612 = vsub.s32 0, %v2611
    %v2613 = vrot.slane %v2542, %v2612
    %v2615 = vmul.f32 %v2604, %v2613
    %v2616 = vmul.f32 %v2605, %v2613
    %v2617 = vmul.f32 %v2606, %v2613
    %v2618 = vmul.f32 %v2607, %v2613
    %v2619 = vmul.f32 %v2608, %v2613
    %v2621 = vlaneseq
    %v2622 = vshrl.u32 %v2621, 7
    %v2623 = vsub.s32 0, %v2622
    %v2624 = vrot.slane %v2543, %v2623
    %v2626 = vadd.f32 %v2615, %v2624
    %v2627 = vadd.f32 %v2616, %v2624
    %v2628 = vadd.f32 %v2617, %v2624
    %v2629 = vadd.f32 %v2618, %v2624
    %v2630 = vadd.f32 %v2619, %v2624
    %v2631 = vld [vmem:[%s11] sm:$0xff]
    %v2632 = vld [vmem:[%s11 + $0x8] sm:$0xff]
    %v2633 = vld [vmem:[%s11 + $0x10] sm:$0xff]
    %v2634 = vld [vmem:[%s11 + $0x18] sm:$0xff]
    %v2635 = vld [vmem:[%s12] sm:$0x1]
    %v2637 = vlaneseq
    %v2638 = vshrl.u32 %v2637, 7
    %v2639 = vsub.s32 0, %v2638
    %v2640 = vrot.slane %v2635, %v2639
    %v2643 = vsel %vm187, %v2626, 0
    %v2646 = vsel %vm187, %v2627, 0
    %v2649 = vsel %vm187, %v2628, 0
    %v2652 = vsel %vm187, %v2629, 0
    %v2655 = vsel %vm187, %v2630, 0
    %2657 = vmatprep.subr.mxu0 0.0
    %2658 = vmatpush1.msra.mxu0 0.0
    %2659 = vmatprep.subr.mxu0 0.0
    %2660 = vmatpush1.msra.mxu0 0.0
    %2661 = vmatprep.subr.mxu0 0.0
    %2662 = vmatpush1.msra.mxu0 0.0
    %2663 = vmatprep.subr.mxu0 0.0
    %2664 = vmatpush1.msra.mxu0 0.0
    %2665 = vmatprep.subr.mxu0 0.0
    %2666 = vmatpush1.msra.mxu0 0.0
    %2667 = vmatprep.subr.mxu0 0.0
    %2668 = vmatpush1.msra.mxu0 0.0
    %2669 = vmatprep.subr.mxu0 0.0
    %2670 = vmatpush1.msra.mxu0 0.0
    %2671 = vmatprep.subr.mxu0 0.0
    %2672 = vmatpush1.msra.mxu0 0.0
    %2673 = vmatprep.subr.mxu0 0.0
    %2674 = vmatpush1.msra.mxu0 0.0
    %2675 = vmatprep.subr.mxu0 0.0
    %2676 = vmatpush1.msra.mxu0 0.0
    %2677 = vmatprep.subr.mxu0 0.0
    %2678 = vmatpush1.msra.mxu0 0.0
    %2679 = vmatprep.subr.mxu0 0.0
    %2680 = vmatpush1.msra.mxu0 0.0
    %2681 = vmatprep.subr.mxu0 0.0
    %2682 = vmatpush1.msra.mxu0 %v2634
    %2683 = vmatprep.subr.mxu0 0.0
    %2684 = vmatpush1.msra.mxu0 %v2633
    %2685 = vmatprep.subr.mxu0 0.0
    %2686 = vmatpush1.msra.mxu0 %v2632
    %2687 = vmatprep.subr.mxu0 0.0
    %2688 = vmatpush1.msra.mxu0 %v2631
    %2689 = vmatprep.subr.mxu0 0.0
    %2690 = vmatpush2.msra.mxu0 0.0
    %2691 = vmatprep.subr.mxu0 0.0
    %2692 = vmatpush2.msra.mxu0 0.0
    %2693 = vmatprep.subr.mxu0 0.0
    %2694 = vmatpush2.msra.mxu0 0.0
    %2695 = vmatprep.subr.mxu0 0.0
    %2696 = vmatpush2.msra.mxu0 0.0
    %2697 = vmatprep.subr.mxu0 0.0
    %2698 = vmatpush2.msra.mxu0 0.0
    %2699 = vmatprep.subr.mxu0 0.0
    %2700 = vmatpush2.msra.mxu0 0.0
    %2701 = vmatprep.subr.mxu0 0.0
    %2702 = vmatpush2.msra.mxu0 0.0
    %2703 = vmatprep.subr.mxu0 0.0
    %2704 = vmatpush2.msra.mxu0 0.0
    %2705 = vmatprep.subr.mxu0 0.0
    %2706 = vmatpush2.msra.mxu0 0.0
    %2707 = vmatprep.subr.mxu0 0.0
    %2708 = vmatpush2.msra.mxu0 0.0
    %2709 = vmatprep.subr.mxu0 0.0
    %2710 = vmatpush2.msra.mxu0 0.0
    %2711 = vmatprep.subr.mxu0 0.0
    %2712 = vmatpush2.msra.mxu0 0.0
    %2713 = vmatprep.subr.mxu0 0.0
    %2714 = vmatpush2.msra.mxu0 0.0
    %2715 = vmatprep.subr.mxu0 0.0
    %2716 = vmatpush2.msra.mxu0 0.0
    %2717 = vmatprep.subr.mxu0 0.0
    %2718 = vmatpush2.msra.mxu0 0.0
    %2719 = vmatprep.subr.mxu0 0.0
    %2720 = vmatpush2.msra.mxu0 0.0
    %2721 = vmatprep.mubr.f32.mxu0 0.0
    %2722 = vmatmul.mubr.f32.gmra.mxu0 %v2643
    %v2723 = vpop.f32.mrf.mxu0
    %v2724 = vadd.f32 %v2640, %v2723
    %v2725 = vpop.f32.mrf.mxu0
    %2726 = vmatprep.mubr.f32.mxu0 0.0
    %2727 = vmatmul.mubr.f32.gmra.mxu0 %v2646
    %v2728 = vpop.f32.mrf.mxu0
    %v2729 = vadd.f32 %v2640, %v2728
    %v2730 = vpop.f32.mrf.mxu0
    %2731 = vmatprep.mubr.f32.mxu0 0.0
    %2732 = vmatmul.mubr.f32.gmra.mxu0 %v2649
    %v2733 = vpop.f32.mrf.mxu0
    %v2734 = vadd.f32 %v2640, %v2733
    %v2735 = vpop.f32.mrf.mxu0
    %2736 = vmatprep.mubr.f32.mxu0 0.0
    %2737 = vmatmul.mubr.f32.gmra.mxu0 %v2652
    %v2738 = vpop.f32.mrf.mxu0
    %v2739 = vadd.f32 %v2640, %v2738
    %v2740 = vpop.f32.mrf.mxu0
    %2741 = vmatprep.mubr.f32.mxu0 0.0
    %2742 = vmatmul.mubr.f32.gmra.mxu0 %v2655
    %v2743 = vpop.f32.mrf.mxu0
    %v2744 = vadd.f32 %v2640, %v2743
    %v2745 = vpop.f32.mrf.mxu0
    %2746 = vdwg.mxu0
    %v2747 = vmul.f32 %v2724, 0.5
    %v2748 = vmul.f32 %v2729, 0.5
    %v2749 = vmul.f32 %v2734, 0.5
    %v2750 = vmul.f32 %v2739, 0.5
    %v2751 = vmul.f32 %v2744, 0.5
    %v2752 = vmul.f32 %v2724, 0.70710677
    %v2753 = vmul.f32 %v2729, 0.70710677
    %v2754 = vmul.f32 %v2734, 0.70710677
    %v2755 = vmul.f32 %v2739, 0.70710677
    %v2756 = vmul.f32 %v2744, 0.70710677
    %v2757 = vand.u32 2147483647, %v2752
    %v2758 = vand.u32 2147483647, %v2753
    %v2759 = vand.u32 2147483647, %v2754
    %v2760 = vand.u32 2147483647, %v2755
    %v2761 = vand.u32 2147483647, %v2756
    %v2762 = vmul.f32 %v2757, 0.3275911
    %v2763 = vmul.f32 %v2758, 0.3275911
    %v2764 = vmul.f32 %v2759, 0.3275911
    %v2765 = vmul.f32 %v2760, 0.3275911
    %v2766 = vmul.f32 %v2761, 0.3275911
    %v2767 = vadd.f32 %v2762, 1.0
    %v2768 = vadd.f32 %v2763, 1.0
    %v2769 = vadd.f32 %v2764, 1.0
    %v2770 = vadd.f32 %v2765, 1.0
    %v2771 = vadd.f32 %v2766, 1.0
    %v2772 = vrcp.pop %v2767
    %v2773 = vrcp.pop %v2768
    %v2774 = vrcp.pop %v2769
    %v2775 = vrcp.pop %v2770
    %v2776 = vrcp.pop %v2771
    %v2777 = vmul.f32 %v2772, 1.0614054
    %v2778 = vmul.f32 %v2773, 1.0614054
    %v2779 = vmul.f32 %v2774, 1.0614054
    %v2780 = vmul.f32 %v2775, 1.0614054
    %v2781 = vmul.f32 %v2776, 1.0614054
    %v2782 = vadd.f32 %v2777, -1.4531521
    %v2783 = vadd.f32 %v2778, -1.4531521
    %v2784 = vadd.f32 %v2779, -1.4531521
    %v2785 = vadd.f32 %v2780, -1.4531521
    %v2786 = vadd.f32 %v2781, -1.4531521
    %v2787 = vmul.f32 %v2782, %v2772
    %v2788 = vmul.f32 %v2783, %v2773
    %v2789 = vmul.f32 %v2784, %v2774
    %v2790 = vmul.f32 %v2785, %v2775
    %v2791 = vmul.f32 %v2786, %v2776
    %v2792 = vadd.f32 %v2787, 1.4214138
    %v2793 = vadd.f32 %v2788, 1.4214138
    %v2794 = vadd.f32 %v2789, 1.4214138
    %v2795 = vadd.f32 %v2790, 1.4214138
    %v2796 = vadd.f32 %v2791, 1.4214138
    %v2797 = vmul.f32 %v2792, %v2772
    %v2798 = vmul.f32 %v2793, %v2773
    %v2799 = vmul.f32 %v2794, %v2774
    %v2800 = vmul.f32 %v2795, %v2775
    %v2801 = vmul.f32 %v2796, %v2776
    %v2802 = vadd.f32 %v2797, -0.28449672
    %v2803 = vadd.f32 %v2798, -0.28449672
    %v2804 = vadd.f32 %v2799, -0.28449672
    %v2805 = vadd.f32 %v2800, -0.28449672
    %v2806 = vadd.f32 %v2801, -0.28449672
    %v2807 = vmul.f32 %v2802, %v2772
    %v2808 = vmul.f32 %v2803, %v2773
    %v2809 = vmul.f32 %v2804, %v2774
    %v2810 = vmul.f32 %v2805, %v2775
    %v2811 = vmul.f32 %v2806, %v2776
    %v2812 = vadd.f32 %v2807, 0.2548296
    %v2813 = vadd.f32 %v2808, 0.2548296
    %v2814 = vadd.f32 %v2809, 0.2548296
    %v2815 = vadd.f32 %v2810, 0.2548296
    %v2816 = vadd.f32 %v2811, 0.2548296
    %v2817 = vmul.f32 %v2812, %v2772
    %v2818 = vmul.f32 %v2813, %v2773
    %v2819 = vmul.f32 %v2814, %v2774
    %v2820 = vmul.f32 %v2815, %v2775
    %v2821 = vmul.f32 %v2816, %v2776
    %v2822 = vsub.f32 0.0, %v2757
    %v2823 = vsub.f32 0.0, %v2758
    %v2824 = vsub.f32 0.0, %v2759
    %v2825 = vsub.f32 0.0, %v2760
    %v2826 = vsub.f32 0.0, %v2761
    %v2827 = vmul.f32 %v2822, %v2757
    %v2828 = vmul.f32 %v2823, %v2758
    %v2829 = vmul.f32 %v2824, %v2759
    %v2830 = vmul.f32 %v2825, %v2760
    %v2831 = vmul.f32 %v2826, %v2761
    %v2832 = vmul.f32 %v2827, 1.442695
    %v2833 = vpow.pop %v2832
    %v2834 = vmul.f32 %v2828, 1.442695
    %v2835 = vpow.pop %v2834
    %v2836 = vmul.f32 %v2829, 1.442695
    %v2837 = vpow.pop %v2836
    %v2838 = vmul.f32 %v2830, 1.442695
    %v2839 = vpow.pop %v2838
    %v2840 = vmul.f32 %v2831, 1.442695
    %v2841 = vpow.pop %v2840
    %v2842 = vmul.f32 %v2817, %v2833
    %v2843 = vmul.f32 %v2818, %v2835
    %v2844 = vmul.f32 %v2819, %v2837
    %v2845 = vmul.f32 %v2820, %v2839
    %v2846 = vmul.f32 %v2821, %v2841
    %v2847 = vsub.f32 1.0, %v2842
    %v2848 = vsub.f32 1.0, %v2843
    %v2849 = vsub.f32 1.0, %v2844
    %v2850 = vsub.f32 1.0, %v2845
    %v2851 = vsub.f32 1.0, %v2846
    %vm2852 = vcmp.ge.f32.partialorder %v2752, 0.0
    %vm2853 = vcmp.ge.f32.partialorder %v2753, 0.0
    %vm2854 = vcmp.ge.f32.partialorder %v2754, 0.0
    %vm2855 = vcmp.ge.f32.partialorder %v2755, 0.0
    %vm2856 = vcmp.ge.f32.partialorder %v2756, 0.0
    %v2857 = vsub.f32 0.0, %v2847
    %v2858 = vsub.f32 0.0, %v2848
    %v2859 = vsub.f32 0.0, %v2849
    %v2860 = vsub.f32 0.0, %v2850
    %v2861 = vsub.f32 0.0, %v2851
    %v2862 = vsel %vm2852, %v2847, %v2857
    %v2863 = vsel %vm2853, %v2848, %v2858
    %v2864 = vsel %vm2854, %v2849, %v2859
    %v2865 = vsel %vm2855, %v2850, %v2860
    %v2866 = vsel %vm2856, %v2851, %v2861
    %v2867 = vadd.f32 %v2862, 1.0
    %v2868 = vadd.f32 %v2863, 1.0
    %v2869 = vadd.f32 %v2864, 1.0
    %v2870 = vadd.f32 %v2865, 1.0
    %v2871 = vadd.f32 %v2866, 1.0
    %v2872 = vmul.f32 %v2747, %v2867
    %v2873 = vmul.f32 %v2748, %v2868
    %v2874 = vmul.f32 %v2749, %v2869
    %v2875 = vmul.f32 %v2750, %v2870
    %v2876 = vmul.f32 %v2751, %v2871
    %v2877 = vld [vmem:[%s13] sm:$0xff]
    %v2878 = vld [vmem:[%s13 + $0x8] sm:$0xff]
    %v2879 = vld [vmem:[%s13 + $0x10] sm:$0xff]
    %v2880 = vld [vmem:[%s13 + $0x18] sm:$0xff]
    %v2881 = vld [vmem:[%s13 + $0x20] sm:$0xff]
    %v2882 = vld [vmem:[%s13 + $0x28] sm:$0xff]
    %v2883 = vld [vmem:[%s13 + $0x30] sm:$0xff]
    %v2884 = vld [vmem:[%s13 + $0x38] sm:$0xff]
    %vm2885 = vcmask 523264
    %v2887 = vsel %vm2885, %v2872, 0
    %v2890 = vsel %vm2885, %v2873, 0
    %v2893 = vsel %vm2885, %v2874, 0
    %v2896 = vsel %vm2885, %v2875, 0
    %v2899 = vsel %vm2885, %v2876, 0
    %2901 = vmatprep.subr.mxu0 0.0
    %2902 = vmatpush1.msra.mxu0 0.0
    %2903 = vmatprep.subr.mxu0 0.0
    %2904 = vmatpush1.msra.mxu0 0.0
    %2905 = vmatprep.subr.mxu0 0.0
    %2906 = vmatpush1.msra.mxu0 0.0
    %2907 = vmatprep.subr.mxu0 0.0
    %2908 = vmatpush1.msra.mxu0 0.0
    %2909 = vmatprep.subr.mxu0 0.0
    %2910 = vmatpush1.msra.mxu0 0.0
    %2911 = vmatprep.subr.mxu0 0.0
    %2912 = vmatpush1.msra.mxu0 0.0
    %2913 = vmatprep.subr.mxu0 0.0
    %2914 = vmatpush1.msra.mxu0 0.0
    %2915 = vmatprep.subr.mxu0 0.0
    %2916 = vmatpush1.msra.mxu0 0.0
    %2917 = vmatprep.subr.mxu0 0.0
    %2918 = vmatpush1.msra.mxu0 %v2884
    %2919 = vmatprep.subr.mxu0 0.0
    %2920 = vmatpush1.msra.mxu0 %v2883
    %2921 = vmatprep.subr.mxu0 0.0
    %2922 = vmatpush1.msra.mxu0 %v2882
    %2923 = vmatprep.subr.mxu0 0.0
    %2924 = vmatpush1.msra.mxu0 %v2881
    %2925 = vmatprep.subr.mxu0 0.0
    %2926 = vmatpush1.msra.mxu0 %v2880
    %2927 = vmatprep.subr.mxu0 0.0
    %2928 = vmatpush1.msra.mxu0 %v2879
    %2929 = vmatprep.subr.mxu0 0.0
    %2930 = vmatpush1.msra.mxu0 %v2878
    %2931 = vmatprep.subr.mxu0 0.0
    %2932 = vmatpush1.msra.mxu0 %v2877
    %2933 = vmatprep.subr.mxu0 0.0
    %2934 = vmatpush2.msra.mxu0 0.0
    %2935 = vmatprep.subr.mxu0 0.0
    %2936 = vmatpush2.msra.mxu0 0.0
    %2937 = vmatprep.subr.mxu0 0.0
    %2938 = vmatpush2.msra.mxu0 0.0
    %2939 = vmatprep.subr.mxu0 0.0
    %2940 = vmatpush2.msra.mxu0 0.0
    %2941 = vmatprep.subr.mxu0 0.0
    %2942 = vmatpush2.msra.mxu0 0.0
    %2943 = vmatprep.subr.mxu0 0.0
    %2944 = vmatpush2.msra.mxu0 0.0
    %2945 = vmatprep.subr.mxu0 0.0
    %2946 = vmatpush2.msra.mxu0 0.0
    %2947 = vmatprep.subr.mxu0 0.0
    %2948 = vmatpush2.msra.mxu0 0.0
    %2949 = vmatprep.subr.mxu0 0.0
    %2950 = vmatpush2.msra.mxu0 0.0
    %2951 = vmatprep.subr.mxu0 0.0
    %2952 = vmatpush2.msra.mxu0 0.0
    %2953 = vmatprep.subr.mxu0 0.0
    %2954 = vmatpush2.msra.mxu0 0.0
    %2955 = vmatprep.subr.mxu0 0.0
    %2956 = vmatpush2.msra.mxu0 0.0
    %2957 = vmatprep.subr.mxu0 0.0
    %2958 = vmatpush2.msra.mxu0 0.0
    %2959 = vmatprep.subr.mxu0 0.0
    %2960 = vmatpush2.msra.mxu0 0.0
    %2961 = vmatprep.subr.mxu0 0.0
    %2962 = vmatpush2.msra.mxu0 0.0
    %2963 = vmatprep.subr.mxu0 0.0
    %2964 = vmatpush2.msra.mxu0 0.0
    %2965 = vmatprep.mubr.f32.mxu0 0.0
    %2966 = vmatmul.mubr.f32.gmra.mxu0 %v2887
    %v2967 = vpop.f32.mrf.mxu0
    %v2968 = vadd.f32 0.0, %v2967
    %v2969 = vpop.f32.mrf.mxu0
    %2970 = vmatprep.mubr.f32.mxu0 0.0
    %2971 = vmatmul.mubr.f32.gmra.mxu0 %v2890
    %v2972 = vpop.f32.mrf.mxu0
    %v2973 = vadd.f32 0.0, %v2972
    %v2974 = vpop.f32.mrf.mxu0
    %2975 = vmatprep.mubr.f32.mxu0 0.0
    %2976 = vmatmul.mubr.f32.gmra.mxu0 %v2893
    %v2977 = vpop.f32.mrf.mxu0
    %v2978 = vadd.f32 0.0, %v2977
    %v2979 = vpop.f32.mrf.mxu0
    %2980 = vmatprep.mubr.f32.mxu0 0.0
    %2981 = vmatmul.mubr.f32.gmra.mxu0 %v2896
    %v2982 = vpop.f32.mrf.mxu0
    %v2983 = vadd.f32 0.0, %v2982
    %v2984 = vpop.f32.mrf.mxu0
    %2985 = vmatprep.mubr.f32.mxu0 0.0
    %2986 = vmatmul.mubr.f32.gmra.mxu0 %v2899
    %v2987 = vpop.f32.mrf.mxu0
    %v2988 = vadd.f32 0.0, %v2987
    %v2989 = vpop.f32.mrf.mxu0
    %2990 = vdwg.mxu0
    %v2991 = vadd.f32 %v2537, %v2968
    %v2992 = vadd.f32 %v2538, %v2973
    %v2993 = vadd.f32 %v2539, %v2978
    %v2994 = vadd.f32 %v2540, %v2983
    %v2995 = vadd.f32 %v2541, %v2988
    %v2996 = vld [vmem:[%s14] sm:$0x1]
    %v2998 = vlaneseq
    %v2999 = vshrl.u32 %v2998, 7
    %v3000 = vsub.s32 0, %v2999
    %v3001 = vrot.slane %v2996, %v3000
    %v3003 = vadd.f32 %v2991, %v3001
    %v3004 = vadd.f32 %v2992, %v3001
    %v3005 = vadd.f32 %v2993, %v3001
    %v3006 = vadd.f32 %v2994, %v3001
    %v3007 = vadd.f32 %v2995, %v3001
    %s3008 = scalar_lea.vmem %s3, 1
    %v3009 = vld [vmem:[%s3008] sm:$0x1]
    %s3010 = scalar_lea.vmem %s4, 1
    %v3011 = vld [vmem:[%s3010] sm:$0x1]
    %v3012 = vsel %vm187, %v3003, 0.0
    %3013 = vadd.xlane.f32.xlu0 %v3012
    %v3014 = vpop.xlane.xlu0 %3013
    %v3015 = vsel %vm187, %v3004, 0.0
    %3016 = vadd.xlane.f32.xlu0 %v3015
    %v3017 = vpop.xlane.xlu0 %3016
    %v3018 = vsel %vm187, %v3005, 0.0
    %3019 = vadd.xlane.f32.xlu0 %v3018
    %v3020 = vpop.xlane.xlu0 %3019
    %v3021 = vsel %vm187, %v3006, 0.0
    %3022 = vadd.xlane.f32.xlu0 %v3021
    %v3023 = vpop.xlane.xlu0 %3022
    %v3024 = vsel %vm200, %v3007, 0.0
    %3025 = vadd.xlane.f32.xlu0 %v3024
    %v3026 = vpop.xlane.xlu0 %3025
    %v3027 = vmul.f32 %v3014, %v204
    %v3028 = vmul.f32 %v3017, %v204
    %v3029 = vmul.f32 %v3020, %v204
    %v3030 = vmul.f32 %v3023, %v204
    %v3031 = vmul.f32 %v3026, %v204
    %v3032 = vsub.f32 %v3003, %v3027
    %v3033 = vsub.f32 %v3004, %v3028
    %v3034 = vsub.f32 %v3005, %v3029
    %v3035 = vsub.f32 %v3006, %v3030
    %v3036 = vsub.f32 %v3007, %v3031
    %v3037 = vmul.f32 %v3032, %v3032
    %v3038 = vmul.f32 %v3033, %v3033
    %v3039 = vmul.f32 %v3034, %v3034
    %v3040 = vmul.f32 %v3035, %v3035
    %v3041 = vmul.f32 %v3036, %v3036
    %v3042 = vsel %vm187, %v3037, 0.0
    %3043 = vadd.xlane.f32.xlu0 %v3042
    %v3044 = vpop.xlane.xlu0 %3043
    %v3045 = vsel %vm187, %v3038, 0.0
    %3046 = vadd.xlane.f32.xlu0 %v3045
    %v3047 = vpop.xlane.xlu0 %3046
    %v3048 = vsel %vm187, %v3039, 0.0
    %3049 = vadd.xlane.f32.xlu0 %v3048
    %v3050 = vpop.xlane.xlu0 %3049
    %v3051 = vsel %vm187, %v3040, 0.0
    %3052 = vadd.xlane.f32.xlu0 %v3051
    %v3053 = vpop.xlane.xlu0 %3052
    %v3054 = vsel %vm200, %v3041, 0.0
    %3055 = vadd.xlane.f32.xlu0 %v3054
    %v3056 = vpop.xlane.xlu0 %3055
    %v3057 = vmul.f32 %v3044, %v204
    %v3058 = vmul.f32 %v3047, %v204
    %v3059 = vmul.f32 %v3050, %v204
    %v3060 = vmul.f32 %v3053, %v204
    %v3061 = vmul.f32 %v3056, %v204
    %v3062 = vadd.f32 %v3057, 1e-05
    %v3063 = vadd.f32 %v3058, 1e-05
    %v3064 = vadd.f32 %v3059, 1e-05
    %v3065 = vadd.f32 %v3060, 1e-05
    %v3066 = vadd.f32 %v3061, 1e-05
    %v3067 = vrsqrt.pop %v3062
    %v3068 = vrsqrt.pop %v3063
    %v3069 = vrsqrt.pop %v3064
    %v3070 = vrsqrt.pop %v3065
    %v3071 = vrsqrt.pop %v3066
    %v3072 = vmul.f32 %v3032, %v3067
    %v3073 = vmul.f32 %v3033, %v3068
    %v3074 = vmul.f32 %v3034, %v3069
    %v3075 = vmul.f32 %v3035, %v3070
    %v3076 = vmul.f32 %v3036, %v3071
    %v3078 = vlaneseq
    %v3079 = vshrl.u32 %v3078, 7
    %v3080 = vsub.s32 0, %v3079
    %v3081 = vrot.slane %v3009, %v3080
    %v3083 = vmul.f32 %v3072, %v3081
    %v3084 = vmul.f32 %v3073, %v3081
    %v3085 = vmul.f32 %v3074, %v3081
    %v3086 = vmul.f32 %v3075, %v3081
    %v3087 = vmul.f32 %v3076, %v3081
    %v3089 = vlaneseq
    %v3090 = vshrl.u32 %v3089, 7
    %v3091 = vsub.s32 0, %v3090
    %v3092 = vrot.slane %v3011, %v3091
    %v3094 = vadd.f32 %v3083, %v3092
    %v3095 = vadd.f32 %v3084, %v3092
    %v3096 = vadd.f32 %v3085, %v3092
    %v3097 = vadd.f32 %v3086, %v3092
    %v3098 = vadd.f32 %v3087, %v3092
    %s3099 = scalar_lea.vmem %s5, 32
    %v3100 = vld [vmem:[%s3099] sm:$0xff]
    %v3101 = vld [vmem:[%s3099 + $0x8] sm:$0xff]
    %v3102 = vld [vmem:[%s3099 + $0x10] sm:$0xff]
    %v3103 = vld [vmem:[%s3099 + $0x18] sm:$0xff]
    %s3104 = scalar_lea.vmem %s6, 1
    %v3105 = vld [vmem:[%s3104] sm:$0x1]
    %v3107 = vlaneseq
    %v3108 = vshrl.u32 %v3107, 7
    %v3109 = vsub.s32 0, %v3108
    %v3110 = vrot.slane %v3105, %v3109
    %v3113 = vsel %vm187, %v3094, 0
    %v3116 = vsel %vm187, %v3095, 0
    %v3119 = vsel %vm187, %v3096, 0
    %v3122 = vsel %vm187, %v3097, 0
    %v3125 = vsel %vm187, %v3098, 0
    %3127 = vmatprep.subr.mxu0 0.0
    %3128 = vmatpush1.msra.mxu0 0.0
    %3129 = vmatprep.subr.mxu0 0.0
    %3130 = vmatpush1.msra.mxu0 0.0
    %3131 = vmatprep.subr.mxu0 0.0
    %3132 = vmatpush1.msra.mxu0 0.0
    %3133 = vmatprep.subr.mxu0 0.0
    %3134 = vmatpush1.msra.mxu0 0.0
    %3135 = vmatprep.subr.mxu0 0.0
    %3136 = vmatpush1.msra.mxu0 0.0
    %3137 = vmatprep.subr.mxu0 0.0
    %3138 = vmatpush1.msra.mxu0 0.0
    %3139 = vmatprep.subr.mxu0 0.0
    %3140 = vmatpush1.msra.mxu0 0.0
    %3141 = vmatprep.subr.mxu0 0.0
    %3142 = vmatpush1.msra.mxu0 0.0
    %3143 = vmatprep.subr.mxu0 0.0
    %3144 = vmatpush1.msra.mxu0 0.0
    %3145 = vmatprep.subr.mxu0 0.0
    %3146 = vmatpush1.msra.mxu0 0.0
    %3147 = vmatprep.subr.mxu0 0.0
    %3148 = vmatpush1.msra.mxu0 0.0
    %3149 = vmatprep.subr.mxu0 0.0
    %3150 = vmatpush1.msra.mxu0 0.0
    %3151 = vmatprep.subr.mxu0 0.0
    %3152 = vmatpush1.msra.mxu0 %v3103
    %3153 = vmatprep.subr.mxu0 0.0
    %3154 = vmatpush1.msra.mxu0 %v3102
    %3155 = vmatprep.subr.mxu0 0.0
    %3156 = vmatpush1.msra.mxu0 %v3101
    %3157 = vmatprep.subr.mxu0 0.0
    %3158 = vmatpush1.msra.mxu0 %v3100
    %3159 = vmatprep.subr.mxu0 0.0
    %3160 = vmatpush2.msra.mxu0 0.0
    %3161 = vmatprep.subr.mxu0 0.0
    %3162 = vmatpush2.msra.mxu0 0.0
    %3163 = vmatprep.subr.mxu0 0.0
    %3164 = vmatpush2.msra.mxu0 0.0
    %3165 = vmatprep.subr.mxu0 0.0
    %3166 = vmatpush2.msra.mxu0 0.0
    %3167 = vmatprep.subr.mxu0 0.0
    %3168 = vmatpush2.msra.mxu0 0.0
    %3169 = vmatprep.subr.mxu0 0.0
    %3170 = vmatpush2.msra.mxu0 0.0
    %3171 = vmatprep.subr.mxu0 0.0
    %3172 = vmatpush2.msra.mxu0 0.0
    %3173 = vmatprep.subr.mxu0 0.0
    %3174 = vmatpush2.msra.mxu0 0.0
    %3175 = vmatprep.subr.mxu0 0.0
    %3176 = vmatpush2.msra.mxu0 0.0
    %3177 = vmatprep.subr.mxu0 0.0
    %3178 = vmatpush2.msra.mxu0 0.0
    %3179 = vmatprep.subr.mxu0 0.0
    %3180 = vmatpush2.msra.mxu0 0.0
    %3181 = vmatprep.subr.mxu0 0.0
    %3182 = vmatpush2.msra.mxu0 0.0
    %3183 = vmatprep.subr.mxu0 0.0
    %3184 = vmatpush2.msra.mxu0 0.0
    %3185 = vmatprep.subr.mxu0 0.0
    %3186 = vmatpush2.msra.mxu0 0.0
    %3187 = vmatprep.subr.mxu0 0.0
    %3188 = vmatpush2.msra.mxu0 0.0
    %3189 = vmatprep.subr.mxu0 0.0
    %3190 = vmatpush2.msra.mxu0 0.0
    %3191 = vmatprep.mubr.f32.mxu0 0.0
    %3192 = vmatmul.mubr.f32.gmra.mxu0 %v3113
    %v3193 = vpop.f32.mrf.mxu0
    %v3194 = vadd.f32 %v3110, %v3193
    %v3195 = vpop.f32.mrf.mxu0
    %3196 = vmatprep.mubr.f32.mxu0 0.0
    %3197 = vmatmul.mubr.f32.gmra.mxu0 %v3116
    %v3198 = vpop.f32.mrf.mxu0
    %v3199 = vadd.f32 %v3110, %v3198
    %v3200 = vpop.f32.mrf.mxu0
    %3201 = vmatprep.mubr.f32.mxu0 0.0
    %3202 = vmatmul.mubr.f32.gmra.mxu0 %v3119
    %v3203 = vpop.f32.mrf.mxu0
    %v3204 = vadd.f32 %v3110, %v3203
    %v3205 = vpop.f32.mrf.mxu0
    %3206 = vmatprep.mubr.f32.mxu0 0.0
    %3207 = vmatmul.mubr.f32.gmra.mxu0 %v3122
    %v3208 = vpop.f32.mrf.mxu0
    %v3209 = vadd.f32 %v3110, %v3208
    %v3210 = vpop.f32.mrf.mxu0
    %3211 = vmatprep.mubr.f32.mxu0 0.0
    %3212 = vmatmul.mubr.f32.gmra.mxu0 %v3125
    %v3213 = vpop.f32.mrf.mxu0
    %v3214 = vadd.f32 %v3110, %v3213
    %v3215 = vpop.f32.mrf.mxu0
    %3216 = vdwg.mxu0
    %3220 = vrot.lane.b32.xlu0 %v3194, 120
    %v3221 = vpop.permute.xlu0 %3220
    %3222 = vrot.lane.b32.xlu0 %v3199, 120
    %v3223 = vpop.permute.xlu0 %3222
    %3224 = vrot.lane.b32.xlu0 %v3204, 120
    %v3225 = vpop.permute.xlu0 %3224
    %3226 = vrot.lane.b32.xlu0 %v3194, 112
    %v3227 = vpop.permute.xlu0 %3226
    %3228 = vrot.lane.b32.xlu0 %v3199, 112
    %v3229 = vpop.permute.xlu0 %3228
    %3230 = vrot.lane.b32.xlu0 %v3204, 112
    %v3231 = vpop.permute.xlu0 %3230
    %3232 = vrot.lane.b32.xlu0 %v3194, 104
    %v3233 = vpop.permute.xlu0 %3232
    %3234 = vrot.lane.b32.xlu0 %v3199, 104
    %v3235 = vpop.permute.xlu0 %3234
    %3236 = vrot.lane.b32.xlu0 %v3204, 104
    %v3237 = vpop.permute.xlu0 %3236
    %v3240 = vrot.slane %v3204, 1
    %v3241 = vrot.slane %v3209, 1
    %v3242 = vsel %vm416, %v3240, %v3241
    %v3243 = vrot.slane %v3214, 1
    %v3244 = vsel %vm416, %v3241, %v3243
    %3245 = vrot.lane.b32.xlu0 %v3242, 120
    %v3246 = vpop.permute.xlu0 %3245
    %3247 = vrot.lane.b32.xlu0 %v3244, 120
    %v3248 = vpop.permute.xlu0 %3247
    %3249 = vrot.lane.b32.xlu0 %v3243, 120
    %v3250 = vpop.permute.xlu0 %3249
    %3251 = vrot.lane.b32.xlu0 %v3242, 112
    %v3252 = vpop.permute.xlu0 %3251
    %3253 = vrot.lane.b32.xlu0 %v3244, 112
    %v3254 = vpop.permute.xlu0 %3253
    %3255 = vrot.lane.b32.xlu0 %v3243, 112
    %v3256 = vpop.permute.xlu0 %3255
    %3257 = vrot.lane.b32.xlu0 %v3242, 104
    %v3258 = vpop.permute.xlu0 %3257
    %3259 = vrot.lane.b32.xlu0 %v3244, 104
    %v3260 = vpop.permute.xlu0 %3259
    %3261 = vrot.lane.b32.xlu0 %v3243, 104
    %v3262 = vpop.permute.xlu0 %3261
    %3263 = vrot.lane.b32.xlu0 %v3194, 96
    %v3264 = vpop.permute.xlu0 %3263
    %3265 = vrot.lane.b32.xlu0 %v3199, 96
    %v3266 = vpop.permute.xlu0 %3265
    %3267 = vrot.lane.b32.xlu0 %v3204, 96
    %v3268 = vpop.permute.xlu0 %3267
    %v3269 = vsel %vm446, %v3194, 0
    %v3271 = vsel %vm446, %v3199, 0
    %v3273 = vsel %vm446, %v3204, 0
    %v3275 = vsel %vm446, %v3264, 0
    %v3277 = vsel %vm446, %v3266, 0
    %v3279 = vsel %vm446, %v3268, 0
    %3281 = vmatprep.subr.mxu0 0.0
    %3282 = vmatpush1.xpose.msra.mxu0 0.0
    %3283 = vmatprep.subr.mxu0 0.0
    %3284 = vmatpush1.xpose.msra.mxu0 0.0
    %3285 = vmatprep.subr.mxu0 0.0
    %3286 = vmatpush1.xpose.msra.mxu0 0.0
    %3287 = vmatprep.subr.mxu0 0.0
    %3288 = vmatpush1.xpose.msra.mxu0 0.0
    %3289 = vmatprep.subr.mxu0 0.0
    %3290 = vmatpush1.xpose.msra.mxu0 0.0
    %3291 = vmatprep.subr.mxu0 0.0
    %3292 = vmatpush1.xpose.msra.mxu0 0.0
    %3293 = vmatprep.subr.mxu0 0.0
    %3294 = vmatpush1.xpose.msra.mxu0 0.0
    %3295 = vmatprep.subr.mxu0 0.0
    %3296 = vmatpush1.xpose.msra.mxu0 0.0
    %3297 = vmatprep.subr.mxu0 0.0
    %3298 = vmatpush1.xpose.msra.mxu0 0.0
    %3299 = vmatprep.subr.mxu0 0.0
    %3300 = vmatpush1.xpose.msra.mxu0 0.0
    %3301 = vmatprep.subr.mxu0 0.0
    %3302 = vmatpush1.xpose.msra.mxu0 0.0
    %3303 = vmatprep.subr.mxu0 0.0
    %3304 = vmatpush1.xpose.msra.mxu0 0.0
    %3305 = vmatprep.subr.mxu0 0.0
    %3306 = vmatpush1.xpose.msra.mxu0 0.0
    %3307 = vmatprep.subr.mxu0 0.0
    %3308 = vmatpush1.xpose.msra.mxu0 %v3279
    %3309 = vmatprep.subr.mxu0 0.0
    %3310 = vmatpush1.xpose.msra.mxu0 %v3277
    %3311 = vmatprep.subr.mxu0 0.0
    %3312 = vmatpush1.xpose.msra.mxu0 %v3275
    %3313 = vmatprep.subr.mxu0 0.0
    %3314 = vmatpush2.xpose.msra.mxu0 0.0
    %3315 = vmatprep.subr.mxu0 0.0
    %3316 = vmatpush2.xpose.msra.mxu0 0.0
    %3317 = vmatprep.subr.mxu0 0.0
    %3318 = vmatpush2.xpose.msra.mxu0 0.0
    %3319 = vmatprep.subr.mxu0 0.0
    %3320 = vmatpush2.xpose.msra.mxu0 0.0
    %3321 = vmatprep.subr.mxu0 0.0
    %3322 = vmatpush2.xpose.msra.mxu0 0.0
    %3323 = vmatprep.subr.mxu0 0.0
    %3324 = vmatpush2.xpose.msra.mxu0 0.0
    %3325 = vmatprep.subr.mxu0 0.0
    %3326 = vmatpush2.xpose.msra.mxu0 0.0
    %3327 = vmatprep.subr.mxu0 0.0
    %3328 = vmatpush2.xpose.msra.mxu0 0.0
    %3329 = vmatprep.subr.mxu0 0.0
    %3330 = vmatpush2.xpose.msra.mxu0 0.0
    %3331 = vmatprep.subr.mxu0 0.0
    %3332 = vmatpush2.xpose.msra.mxu0 0.0
    %3333 = vmatprep.subr.mxu0 0.0
    %3334 = vmatpush2.xpose.msra.mxu0 0.0
    %3335 = vmatprep.subr.mxu0 0.0
    %3336 = vmatpush2.xpose.msra.mxu0 0.0
    %3337 = vmatprep.subr.mxu0 0.0
    %3338 = vmatpush2.xpose.msra.mxu0 0.0
    %3339 = vmatprep.subr.mxu0 0.0
    %3340 = vmatpush2.xpose.msra.mxu0 0.0
    %3341 = vmatprep.subr.mxu0 0.0
    %3342 = vmatpush2.xpose.msra.mxu0 0.0
    %3343 = vmatprep.subr.mxu0 0.0
    %3344 = vmatpush2.xpose.msra.mxu0 0.0
    %3345 = vmatprep.mubr.f32.mxu0 0.0
    %3346 = vmatmul.mubr.f32.gmra.mxu0 %v3269
    %v3347 = vpop.f32.mrf.mxu0
    %v3348 = vadd.f32 0.0, %v3347
    %v3349 = vpop.f32.mrf.mxu0
    %3350 = vmatprep.mubr.f32.mxu0 0.0
    %3351 = vmatmul.mubr.f32.gmra.mxu0 %v3271
    %v3352 = vpop.f32.mrf.mxu0
    %v3353 = vadd.f32 0.0, %v3352
    %v3354 = vpop.f32.mrf.mxu0
    %3355 = vmatprep.mubr.f32.mxu0 0.0
    %3356 = vmatmul.mubr.f32.gmra.mxu0 %v3273
    %v3357 = vpop.f32.mrf.mxu0
    %v3358 = vadd.f32 0.0, %v3357
    %v3359 = vpop.f32.mrf.mxu0
    %3360 = vdwg.mxu0
    %3361 = vrot.lane.b32.xlu0 %v3221, 96
    %v3362 = vpop.permute.xlu0 %3361
    %3363 = vrot.lane.b32.xlu0 %v3223, 96
    %v3364 = vpop.permute.xlu0 %3363
    %3365 = vrot.lane.b32.xlu0 %v3225, 96
    %v3366 = vpop.permute.xlu0 %3365
    %v3367 = vsel %vm446, %v3221, 0
    %v3369 = vsel %vm446, %v3223, 0
    %v3371 = vsel %vm446, %v3225, 0
    %v3373 = vsel %vm446, %v3362, 0
    %v3375 = vsel %vm446, %v3364, 0
    %v3377 = vsel %vm446, %v3366, 0
    %3379 = vmatprep.subr.mxu0 0.0
    %3380 = vmatpush1.xpose.msra.mxu0 0.0
    %3381 = vmatprep.subr.mxu0 0.0
    %3382 = vmatpush1.xpose.msra.mxu0 0.0
    %3383 = vmatprep.subr.mxu0 0.0
    %3384 = vmatpush1.xpose.msra.mxu0 0.0
    %3385 = vmatprep.subr.mxu0 0.0
    %3386 = vmatpush1.xpose.msra.mxu0 0.0
    %3387 = vmatprep.subr.mxu0 0.0
    %3388 = vmatpush1.xpose.msra.mxu0 0.0
    %3389 = vmatprep.subr.mxu0 0.0
    %3390 = vmatpush1.xpose.msra.mxu0 0.0
    %3391 = vmatprep.subr.mxu0 0.0
    %3392 = vmatpush1.xpose.msra.mxu0 0.0
    %3393 = vmatprep.subr.mxu0 0.0
    %3394 = vmatpush1.xpose.msra.mxu0 0.0
    %3395 = vmatprep.subr.mxu0 0.0
    %3396 = vmatpush1.xpose.msra.mxu0 0.0
    %3397 = vmatprep.subr.mxu0 0.0
    %3398 = vmatpush1.xpose.msra.mxu0 0.0
    %3399 = vmatprep.subr.mxu0 0.0
    %3400 = vmatpush1.xpose.msra.mxu0 0.0
    %3401 = vmatprep.subr.mxu0 0.0
    %3402 = vmatpush1.xpose.msra.mxu0 0.0
    %3403 = vmatprep.subr.mxu0 0.0
    %3404 = vmatpush1.xpose.msra.mxu0 0.0
    %3405 = vmatprep.subr.mxu0 0.0
    %3406 = vmatpush1.xpose.msra.mxu0 %v3377
    %3407 = vmatprep.subr.mxu0 0.0
    %3408 = vmatpush1.xpose.msra.mxu0 %v3375
    %3409 = vmatprep.subr.mxu0 0.0
    %3410 = vmatpush1.xpose.msra.mxu0 %v3373
    %3411 = vmatprep.subr.mxu0 0.0
    %3412 = vmatpush2.xpose.msra.mxu0 0.0
    %3413 = vmatprep.subr.mxu0 0.0
    %3414 = vmatpush2.xpose.msra.mxu0 0.0
    %3415 = vmatprep.subr.mxu0 0.0
    %3416 = vmatpush2.xpose.msra.mxu0 0.0
    %3417 = vmatprep.subr.mxu0 0.0
    %3418 = vmatpush2.xpose.msra.mxu0 0.0
    %3419 = vmatprep.subr.mxu0 0.0
    %3420 = vmatpush2.xpose.msra.mxu0 0.0
    %3421 = vmatprep.subr.mxu0 0.0
    %3422 = vmatpush2.xpose.msra.mxu0 0.0
    %3423 = vmatprep.subr.mxu0 0.0
    %3424 = vmatpush2.xpose.msra.mxu0 0.0
    %3425 = vmatprep.subr.mxu0 0.0
    %3426 = vmatpush2.xpose.msra.mxu0 0.0
    %3427 = vmatprep.subr.mxu0 0.0
    %3428 = vmatpush2.xpose.msra.mxu0 0.0
    %3429 = vmatprep.subr.mxu0 0.0
    %3430 = vmatpush2.xpose.msra.mxu0 0.0
    %3431 = vmatprep.subr.mxu0 0.0
    %3432 = vmatpush2.xpose.msra.mxu0 0.0
    %3433 = vmatprep.subr.mxu0 0.0
    %3434 = vmatpush2.xpose.msra.mxu0 0.0
    %3435 = vmatprep.subr.mxu0 0.0
    %3436 = vmatpush2.xpose.msra.mxu0 0.0
    %3437 = vmatprep.subr.mxu0 0.0
    %3438 = vmatpush2.xpose.msra.mxu0 0.0
    %3439 = vmatprep.subr.mxu0 0.0
    %3440 = vmatpush2.xpose.msra.mxu0 0.0
    %3441 = vmatprep.subr.mxu0 0.0
    %3442 = vmatpush2.xpose.msra.mxu0 0.0
    %3443 = vmatprep.mubr.f32.mxu0 0.0
    %3444 = vmatmul.mubr.f32.gmra.mxu0 %v3367
    %v3445 = vpop.f32.mrf.mxu0
    %v3446 = vadd.f32 0.0, %v3445
    %v3447 = vpop.f32.mrf.mxu0
    %3448 = vmatprep.mubr.f32.mxu0 0.0
    %3449 = vmatmul.mubr.f32.gmra.mxu0 %v3369
    %v3450 = vpop.f32.mrf.mxu0
    %v3451 = vadd.f32 0.0, %v3450
    %v3452 = vpop.f32.mrf.mxu0
    %3453 = vmatprep.mubr.f32.mxu0 0.0
    %3454 = vmatmul.mubr.f32.gmra.mxu0 %v3371
    %v3455 = vpop.f32.mrf.mxu0
    %v3456 = vadd.f32 0.0, %v3455
    %v3457 = vpop.f32.mrf.mxu0
    %3458 = vdwg.mxu0
    %3459 = vrot.lane.b32.xlu0 %v3227, 96
    %v3460 = vpop.permute.xlu0 %3459
    %3461 = vrot.lane.b32.xlu0 %v3229, 96
    %v3462 = vpop.permute.xlu0 %3461
    %3463 = vrot.lane.b32.xlu0 %v3231, 96
    %v3464 = vpop.permute.xlu0 %3463
    %v3465 = vsel %vm446, %v3227, 0
    %v3467 = vsel %vm446, %v3229, 0
    %v3469 = vsel %vm446, %v3231, 0
    %v3471 = vsel %vm446, %v3460, 0
    %v3473 = vsel %vm446, %v3462, 0
    %v3475 = vsel %vm446, %v3464, 0
    %3477 = vmatprep.subr.mxu0 0.0
    %3478 = vmatpush1.xpose.msra.mxu0 0.0
    %3479 = vmatprep.subr.mxu0 0.0
    %3480 = vmatpush1.xpose.msra.mxu0 0.0
    %3481 = vmatprep.subr.mxu0 0.0
    %3482 = vmatpush1.xpose.msra.mxu0 0.0
    %3483 = vmatprep.subr.mxu0 0.0
    %3484 = vmatpush1.xpose.msra.mxu0 0.0
    %3485 = vmatprep.subr.mxu0 0.0
    %3486 = vmatpush1.xpose.msra.mxu0 0.0
    %3487 = vmatprep.subr.mxu0 0.0
    %3488 = vmatpush1.xpose.msra.mxu0 0.0
    %3489 = vmatprep.subr.mxu0 0.0
    %3490 = vmatpush1.xpose.msra.mxu0 0.0
    %3491 = vmatprep.subr.mxu0 0.0
    %3492 = vmatpush1.xpose.msra.mxu0 0.0
    %3493 = vmatprep.subr.mxu0 0.0
    %3494 = vmatpush1.xpose.msra.mxu0 0.0
    %3495 = vmatprep.subr.mxu0 0.0
    %3496 = vmatpush1.xpose.msra.mxu0 0.0
    %3497 = vmatprep.subr.mxu0 0.0
    %3498 = vmatpush1.xpose.msra.mxu0 0.0
    %3499 = vmatprep.subr.mxu0 0.0
    %3500 = vmatpush1.xpose.msra.mxu0 0.0
    %3501 = vmatprep.subr.mxu0 0.0
    %3502 = vmatpush1.xpose.msra.mxu0 0.0
    %3503 = vmatprep.subr.mxu0 0.0
    %3504 = vmatpush1.xpose.msra.mxu0 %v3475
    %3505 = vmatprep.subr.mxu0 0.0
    %3506 = vmatpush1.xpose.msra.mxu0 %v3473
    %3507 = vmatprep.subr.mxu0 0.0
    %3508 = vmatpush1.xpose.msra.mxu0 %v3471
    %3509 = vmatprep.subr.mxu0 0.0
    %3510 = vmatpush2.xpose.msra.mxu0 0.0
    %3511 = vmatprep.subr.mxu0 0.0
    %3512 = vmatpush2.xpose.msra.mxu0 0.0
    %3513 = vmatprep.subr.mxu0 0.0
    %3514 = vmatpush2.xpose.msra.mxu0 0.0
    %3515 = vmatprep.subr.mxu0 0.0
    %3516 = vmatpush2.xpose.msra.mxu0 0.0
    %3517 = vmatprep.subr.mxu0 0.0
    %3518 = vmatpush2.xpose.msra.mxu0 0.0
    %3519 = vmatprep.subr.mxu0 0.0
    %3520 = vmatpush2.xpose.msra.mxu0 0.0
    %3521 = vmatprep.subr.mxu0 0.0
    %3522 = vmatpush2.xpose.msra.mxu0 0.0
    %3523 = vmatprep.subr.mxu0 0.0
    %3524 = vmatpush2.xpose.msra.mxu0 0.0
    %3525 = vmatprep.subr.mxu0 0.0
    %3526 = vmatpush2.xpose.msra.mxu0 0.0
    %3527 = vmatprep.subr.mxu0 0.0
    %3528 = vmatpush2.xpose.msra.mxu0 0.0
    %3529 = vmatprep.subr.mxu0 0.0
    %3530 = vmatpush2.xpose.msra.mxu0 0.0
    %3531 = vmatprep.subr.mxu0 0.0
    %3532 = vmatpush2.xpose.msra.mxu0 0.0
    %3533 = vmatprep.subr.mxu0 0.0
    %3534 = vmatpush2.xpose.msra.mxu0 0.0
    %3535 = vmatprep.subr.mxu0 0.0
    %3536 = vmatpush2.xpose.msra.mxu0 0.0
    %3537 = vmatprep.subr.mxu0 0.0
    %3538 = vmatpush2.xpose.msra.mxu0 0.0
    %3539 = vmatprep.subr.mxu0 0.0
    %3540 = vmatpush2.xpose.msra.mxu0 0.0
    %3541 = vmatprep.mubr.f32.mxu0 0.0
    %3542 = vmatmul.mubr.f32.gmra.mxu0 %v3465
    %v3543 = vpop.f32.mrf.mxu0
    %v3544 = vadd.f32 0.0, %v3543
    %v3545 = vpop.f32.mrf.mxu0
    %3546 = vmatprep.mubr.f32.mxu0 0.0
    %3547 = vmatmul.mubr.f32.gmra.mxu0 %v3467
    %v3548 = vpop.f32.mrf.mxu0
    %v3549 = vadd.f32 0.0, %v3548
    %v3550 = vpop.f32.mrf.mxu0
    %3551 = vmatprep.mubr.f32.mxu0 0.0
    %3552 = vmatmul.mubr.f32.gmra.mxu0 %v3469
    %v3553 = vpop.f32.mrf.mxu0
    %v3554 = vadd.f32 0.0, %v3553
    %v3555 = vpop.f32.mrf.mxu0
    %3556 = vdwg.mxu0
    %3557 = vrot.lane.b32.xlu0 %v3233, 96
    %v3558 = vpop.permute.xlu0 %3557
    %3559 = vrot.lane.b32.xlu0 %v3235, 96
    %v3560 = vpop.permute.xlu0 %3559
    %3561 = vrot.lane.b32.xlu0 %v3237, 96
    %v3562 = vpop.permute.xlu0 %3561
    %v3563 = vsel %vm446, %v3233, 0
    %v3565 = vsel %vm446, %v3235, 0
    %v3567 = vsel %vm446, %v3237, 0
    %v3569 = vsel %vm446, %v3558, 0
    %v3571 = vsel %vm446, %v3560, 0
    %v3573 = vsel %vm446, %v3562, 0
    %3575 = vmatprep.subr.mxu0 0.0
    %3576 = vmatpush1.xpose.msra.mxu0 0.0
    %3577 = vmatprep.subr.mxu0 0.0
    %3578 = vmatpush1.xpose.msra.mxu0 0.0
    %3579 = vmatprep.subr.mxu0 0.0
    %3580 = vmatpush1.xpose.msra.mxu0 0.0
    %3581 = vmatprep.subr.mxu0 0.0
    %3582 = vmatpush1.xpose.msra.mxu0 0.0
    %3583 = vmatprep.subr.mxu0 0.0
    %3584 = vmatpush1.xpose.msra.mxu0 0.0
    %3585 = vmatprep.subr.mxu0 0.0
    %3586 = vmatpush1.xpose.msra.mxu0 0.0
    %3587 = vmatprep.subr.mxu0 0.0
    %3588 = vmatpush1.xpose.msra.mxu0 0.0
    %3589 = vmatprep.subr.mxu0 0.0
    %3590 = vmatpush1.xpose.msra.mxu0 0.0
    %3591 = vmatprep.subr.mxu0 0.0
    %3592 = vmatpush1.xpose.msra.mxu0 0.0
    %3593 = vmatprep.subr.mxu0 0.0
    %3594 = vmatpush1.xpose.msra.mxu0 0.0
    %3595 = vmatprep.subr.mxu0 0.0
    %3596 = vmatpush1.xpose.msra.mxu0 0.0
    %3597 = vmatprep.subr.mxu0 0.0
    %3598 = vmatpush1.xpose.msra.mxu0 0.0
    %3599 = vmatprep.subr.mxu0 0.0
    %3600 = vmatpush1.xpose.msra.mxu0 0.0
    %3601 = vmatprep.subr.mxu0 0.0
    %3602 = vmatpush1.xpose.msra.mxu0 %v3573
    %3603 = vmatprep.subr.mxu0 0.0
    %3604 = vmatpush1.xpose.msra.mxu0 %v3571
    %3605 = vmatprep.subr.mxu0 0.0
    %3606 = vmatpush1.xpose.msra.mxu0 %v3569
    %3607 = vmatprep.subr.mxu0 0.0
    %3608 = vmatpush2.xpose.msra.mxu0 0.0
    %3609 = vmatprep.subr.mxu0 0.0
    %3610 = vmatpush2.xpose.msra.mxu0 0.0
    %3611 = vmatprep.subr.mxu0 0.0
    %3612 = vmatpush2.xpose.msra.mxu0 0.0
    %3613 = vmatprep.subr.mxu0 0.0
    %3614 = vmatpush2.xpose.msra.mxu0 0.0
    %3615 = vmatprep.subr.mxu0 0.0
    %3616 = vmatpush2.xpose.msra.mxu0 0.0
    %3617 = vmatprep.subr.mxu0 0.0
    %3618 = vmatpush2.xpose.msra.mxu0 0.0
    %3619 = vmatprep.subr.mxu0 0.0
    %3620 = vmatpush2.xpose.msra.mxu0 0.0
    %3621 = vmatprep.subr.mxu0 0.0
    %3622 = vmatpush2.xpose.msra.mxu0 0.0
    %3623 = vmatprep.subr.mxu0 0.0
    %3624 = vmatpush2.xpose.msra.mxu0 0.0
    %3625 = vmatprep.subr.mxu0 0.0
    %3626 = vmatpush2.xpose.msra.mxu0 0.0
    %3627 = vmatprep.subr.mxu0 0.0
    %3628 = vmatpush2.xpose.msra.mxu0 0.0
    %3629 = vmatprep.subr.mxu0 0.0
    %3630 = vmatpush2.xpose.msra.mxu0 0.0
    %3631 = vmatprep.subr.mxu0 0.0
    %3632 = vmatpush2.xpose.msra.mxu0 0.0
    %3633 = vmatprep.subr.mxu0 0.0
    %3634 = vmatpush2.xpose.msra.mxu0 0.0
    %3635 = vmatprep.subr.mxu0 0.0
    %3636 = vmatpush2.xpose.msra.mxu0 0.0
    %3637 = vmatprep.subr.mxu0 0.0
    %3638 = vmatpush2.xpose.msra.mxu0 0.0
    %3639 = vmatprep.mubr.f32.mxu0 0.0
    %3640 = vmatmul.mubr.f32.gmra.mxu0 %v3563
    %v3641 = vpop.f32.mrf.mxu0
    %v3642 = vadd.f32 0.0, %v3641
    %v3643 = vpop.f32.mrf.mxu0
    %3644 = vmatprep.mubr.f32.mxu0 0.0
    %3645 = vmatmul.mubr.f32.gmra.mxu0 %v3565
    %v3646 = vpop.f32.mrf.mxu0
    %v3647 = vadd.f32 0.0, %v3646
    %v3648 = vpop.f32.mrf.mxu0
    %3649 = vmatprep.mubr.f32.mxu0 0.0
    %3650 = vmatmul.mubr.f32.gmra.mxu0 %v3567
    %v3651 = vpop.f32.mrf.mxu0
    %v3652 = vadd.f32 0.0, %v3651
    %v3653 = vpop.f32.mrf.mxu0
    %3654 = vdwg.mxu0
    %3655 = vrot.lane.b32.xlu0 %v3242, 96
    %v3656 = vpop.permute.xlu0 %3655
    %3657 = vrot.lane.b32.xlu0 %v3244, 96
    %v3658 = vpop.permute.xlu0 %3657
    %3659 = vrot.lane.b32.xlu0 %v3243, 96
    %v3660 = vpop.permute.xlu0 %3659
    %v3661 = vsel %vm446, %v3242, 0
    %v3663 = vsel %vm446, %v3244, 0
    %v3665 = vsel %vm446, %v3243, 0
    %v3667 = vsel %vm446, %v3656, 0
    %v3669 = vsel %vm446, %v3658, 0
    %v3671 = vsel %vm446, %v3660, 0
    %3673 = vmatprep.subr.mxu0 0.0
    %3674 = vmatpush1.xpose.msra.mxu0 0.0
    %3675 = vmatprep.subr.mxu0 0.0
    %3676 = vmatpush1.xpose.msra.mxu0 0.0
    %3677 = vmatprep.subr.mxu0 0.0
    %3678 = vmatpush1.xpose.msra.mxu0 0.0
    %3679 = vmatprep.subr.mxu0 0.0
    %3680 = vmatpush1.xpose.msra.mxu0 0.0
    %3681 = vmatprep.subr.mxu0 0.0
    %3682 = vmatpush1.xpose.msra.mxu0 0.0
    %3683 = vmatprep.subr.mxu0 0.0
    %3684 = vmatpush1.xpose.msra.mxu0 0.0
    %3685 = vmatprep.subr.mxu0 0.0
    %3686 = vmatpush1.xpose.msra.mxu0 0.0
    %3687 = vmatprep.subr.mxu0 0.0
    %3688 = vmatpush1.xpose.msra.mxu0 0.0
    %3689 = vmatprep.subr.mxu0 0.0
    %3690 = vmatpush1.xpose.msra.mxu0 0.0
    %3691 = vmatprep.subr.mxu0 0.0
    %3692 = vmatpush1.xpose.msra.mxu0 0.0
    %3693 = vmatprep.subr.mxu0 0.0
    %3694 = vmatpush1.xpose.msra.mxu0 0.0
    %3695 = vmatprep.subr.mxu0 0.0
    %3696 = vmatpush1.xpose.msra.mxu0 0.0
    %3697 = vmatprep.subr.mxu0 0.0
    %3698 = vmatpush1.xpose.msra.mxu0 0.0
    %3699 = vmatprep.subr.mxu0 0.0
    %3700 = vmatpush1.xpose.msra.mxu0 %v3671
    %3701 = vmatprep.subr.mxu0 0.0
    %3702 = vmatpush1.xpose.msra.mxu0 %v3669
    %3703 = vmatprep.subr.mxu0 0.0
    %3704 = vmatpush1.xpose.msra.mxu0 %v3667
    %3705 = vmatprep.subr.mxu0 0.0
    %3706 = vmatpush2.xpose.msra.mxu0 0.0
    %3707 = vmatprep.subr.mxu0 0.0
    %3708 = vmatpush2.xpose.msra.mxu0 0.0
    %3709 = vmatprep.subr.mxu0 0.0
    %3710 = vmatpush2.xpose.msra.mxu0 0.0
    %3711 = vmatprep.subr.mxu0 0.0
    %3712 = vmatpush2.xpose.msra.mxu0 0.0
    %3713 = vmatprep.subr.mxu0 0.0
    %3714 = vmatpush2.xpose.msra.mxu0 0.0
    %3715 = vmatprep.subr.mxu0 0.0
    %3716 = vmatpush2.xpose.msra.mxu0 0.0
    %3717 = vmatprep.subr.mxu0 0.0
    %3718 = vmatpush2.xpose.msra.mxu0 0.0
    %3719 = vmatprep.subr.mxu0 0.0
    %3720 = vmatpush2.xpose.msra.mxu0 0.0
    %3721 = vmatprep.subr.mxu0 0.0
    %3722 = vmatpush2.xpose.msra.mxu0 0.0
    %3723 = vmatprep.subr.mxu0 0.0
    %3724 = vmatpush2.xpose.msra.mxu0 0.0
    %3725 = vmatprep.subr.mxu0 0.0
    %3726 = vmatpush2.xpose.msra.mxu0 0.0
    %3727 = vmatprep.subr.mxu0 0.0
    %3728 = vmatpush2.xpose.msra.mxu0 0.0
    %3729 = vmatprep.subr.mxu0 0.0
    %3730 = vmatpush2.xpose.msra.mxu0 0.0
    %3731 = vmatprep.subr.mxu0 0.0
    %3732 = vmatpush2.xpose.msra.mxu0 0.0
    %3733 = vmatprep.subr.mxu0 0.0
    %3734 = vmatpush2.xpose.msra.mxu0 0.0
    %3735 = vmatprep.subr.mxu0 0.0
    %3736 = vmatpush2.xpose.msra.mxu0 0.0
    %3737 = vmatprep.mubr.f32.mxu0 0.0
    %3738 = vmatmul.mubr.f32.gmra.mxu0 %v3661
    %v3739 = vpop.f32.mrf.mxu0
    %v3740 = vadd.f32 0.0, %v3739
    %v3741 = vpop.f32.mrf.mxu0
    %3742 = vmatprep.mubr.f32.mxu0 0.0
    %3743 = vmatmul.mubr.f32.gmra.mxu0 %v3663
    %v3744 = vpop.f32.mrf.mxu0
    %v3745 = vadd.f32 0.0, %v3744
    %v3746 = vpop.f32.mrf.mxu0
    %3747 = vmatprep.mubr.f32.mxu0 0.0
    %3748 = vmatmul.mubr.f32.gmra.mxu0 %v3665
    %v3749 = vpop.f32.mrf.mxu0
    %v3750 = vadd.f32 0.0, %v3749
    %v3751 = vpop.f32.mrf.mxu0
    %3752 = vdwg.mxu0
    %3753 = vrot.lane.b32.xlu0 %v3246, 96
    %v3754 = vpop.permute.xlu0 %3753
    %3755 = vrot.lane.b32.xlu0 %v3248, 96
    %v3756 = vpop.permute.xlu0 %3755
    %3757 = vrot.lane.b32.xlu0 %v3250, 96
    %v3758 = vpop.permute.xlu0 %3757
    %v3759 = vsel %vm446, %v3246, 0
    %v3761 = vsel %vm446, %v3248, 0
    %v3763 = vsel %vm446, %v3250, 0
    %v3765 = vsel %vm446, %v3754, 0
    %v3767 = vsel %vm446, %v3756, 0
    %v3769 = vsel %vm446, %v3758, 0
    %3771 = vmatprep.subr.mxu0 0.0
    %3772 = vmatpush1.xpose.msra.mxu0 0.0
    %3773 = vmatprep.subr.mxu0 0.0
    %3774 = vmatpush1.xpose.msra.mxu0 0.0
    %3775 = vmatprep.subr.mxu0 0.0
    %3776 = vmatpush1.xpose.msra.mxu0 0.0
    %3777 = vmatprep.subr.mxu0 0.0
    %3778 = vmatpush1.xpose.msra.mxu0 0.0
    %3779 = vmatprep.subr.mxu0 0.0
    %3780 = vmatpush1.xpose.msra.mxu0 0.0
    %3781 = vmatprep.subr.mxu0 0.0
    %3782 = vmatpush1.xpose.msra.mxu0 0.0
    %3783 = vmatprep.subr.mxu0 0.0
    %3784 = vmatpush1.xpose.msra.mxu0 0.0
    %3785 = vmatprep.subr.mxu0 0.0
    %3786 = vmatpush1.xpose.msra.mxu0 0.0
    %3787 = vmatprep.subr.mxu0 0.0
    %3788 = vmatpush1.xpose.msra.mxu0 0.0
    %3789 = vmatprep.subr.mxu0 0.0
    %3790 = vmatpush1.xpose.msra.mxu0 0.0
    %3791 = vmatprep.subr.mxu0 0.0
    %3792 = vmatpush1.xpose.msra.mxu0 0.0
    %3793 = vmatprep.subr.mxu0 0.0
    %3794 = vmatpush1.xpose.msra.mxu0 0.0
    %3795 = vmatprep.subr.mxu0 0.0
    %3796 = vmatpush1.xpose.msra.mxu0 0.0
    %3797 = vmatprep.subr.mxu0 0.0
    %3798 = vmatpush1.xpose.msra.mxu0 %v3769
    %3799 = vmatprep.subr.mxu0 0.0
    %3800 = vmatpush1.xpose.msra.mxu0 %v3767
    %3801 = vmatprep.subr.mxu0 0.0
    %3802 = vmatpush1.xpose.msra.mxu0 %v3765
    %3803 = vmatprep.subr.mxu0 0.0
    %3804 = vmatpush2.xpose.msra.mxu0 0.0
    %3805 = vmatprep.subr.mxu0 0.0
    %3806 = vmatpush2.xpose.msra.mxu0 0.0
    %3807 = vmatprep.subr.mxu0 0.0
    %3808 = vmatpush2.xpose.msra.mxu0 0.0
    %3809 = vmatprep.subr.mxu0 0.0
    %3810 = vmatpush2.xpose.msra.mxu0 0.0
    %3811 = vmatprep.subr.mxu0 0.0
    %3812 = vmatpush2.xpose.msra.mxu0 0.0
    %3813 = vmatprep.subr.mxu0 0.0
    %3814 = vmatpush2.xpose.msra.mxu0 0.0
    %3815 = vmatprep.subr.mxu0 0.0
    %3816 = vmatpush2.xpose.msra.mxu0 0.0
    %3817 = vmatprep.subr.mxu0 0.0
    %3818 = vmatpush2.xpose.msra.mxu0 0.0
    %3819 = vmatprep.subr.mxu0 0.0
    %3820 = vmatpush2.xpose.msra.mxu0 0.0
    %3821 = vmatprep.subr.mxu0 0.0
    %3822 = vmatpush2.xpose.msra.mxu0 0.0
    %3823 = vmatprep.subr.mxu0 0.0
    %3824 = vmatpush2.xpose.msra.mxu0 0.0
    %3825 = vmatprep.subr.mxu0 0.0
    %3826 = vmatpush2.xpose.msra.mxu0 0.0
    %3827 = vmatprep.subr.mxu0 0.0
    %3828 = vmatpush2.xpose.msra.mxu0 0.0
    %3829 = vmatprep.subr.mxu0 0.0
    %3830 = vmatpush2.xpose.msra.mxu0 0.0
    %3831 = vmatprep.subr.mxu0 0.0
    %3832 = vmatpush2.xpose.msra.mxu0 0.0
    %3833 = vmatprep.subr.mxu0 0.0
    %3834 = vmatpush2.xpose.msra.mxu0 0.0
    %3835 = vmatprep.mubr.f32.mxu0 0.0
    %3836 = vmatmul.mubr.f32.gmra.mxu0 %v3759
    %v3837 = vpop.f32.mrf.mxu0
    %v3838 = vadd.f32 0.0, %v3837
    %v3839 = vpop.f32.mrf.mxu0
    %3840 = vmatprep.mubr.f32.mxu0 0.0
    %3841 = vmatmul.mubr.f32.gmra.mxu0 %v3761
    %v3842 = vpop.f32.mrf.mxu0
    %v3843 = vadd.f32 0.0, %v3842
    %v3844 = vpop.f32.mrf.mxu0
    %3845 = vmatprep.mubr.f32.mxu0 0.0
    %3846 = vmatmul.mubr.f32.gmra.mxu0 %v3763
    %v3847 = vpop.f32.mrf.mxu0
    %v3848 = vadd.f32 0.0, %v3847
    %v3849 = vpop.f32.mrf.mxu0
    %3850 = vdwg.mxu0
    %3851 = vrot.lane.b32.xlu0 %v3252, 96
    %v3852 = vpop.permute.xlu0 %3851
    %3853 = vrot.lane.b32.xlu0 %v3254, 96
    %v3854 = vpop.permute.xlu0 %3853
    %3855 = vrot.lane.b32.xlu0 %v3256, 96
    %v3856 = vpop.permute.xlu0 %3855
    %v3857 = vsel %vm446, %v3252, 0
    %v3859 = vsel %vm446, %v3254, 0
    %v3861 = vsel %vm446, %v3256, 0
    %v3863 = vsel %vm446, %v3852, 0
    %v3865 = vsel %vm446, %v3854, 0
    %v3867 = vsel %vm446, %v3856, 0
    %3869 = vmatprep.subr.mxu0 0.0
    %3870 = vmatpush1.xpose.msra.mxu0 0.0
    %3871 = vmatprep.subr.mxu0 0.0
    %3872 = vmatpush1.xpose.msra.mxu0 0.0
    %3873 = vmatprep.subr.mxu0 0.0
    %3874 = vmatpush1.xpose.msra.mxu0 0.0
    %3875 = vmatprep.subr.mxu0 0.0
    %3876 = vmatpush1.xpose.msra.mxu0 0.0
    %3877 = vmatprep.subr.mxu0 0.0
    %3878 = vmatpush1.xpose.msra.mxu0 0.0
    %3879 = vmatprep.subr.mxu0 0.0
    %3880 = vmatpush1.xpose.msra.mxu0 0.0
    %3881 = vmatprep.subr.mxu0 0.0
    %3882 = vmatpush1.xpose.msra.mxu0 0.0
    %3883 = vmatprep.subr.mxu0 0.0
    %3884 = vmatpush1.xpose.msra.mxu0 0.0
    %3885 = vmatprep.subr.mxu0 0.0
    %3886 = vmatpush1.xpose.msra.mxu0 0.0
    %3887 = vmatprep.subr.mxu0 0.0
    %3888 = vmatpush1.xpose.msra.mxu0 0.0
    %3889 = vmatprep.subr.mxu0 0.0
    %3890 = vmatpush1.xpose.msra.mxu0 0.0
    %3891 = vmatprep.subr.mxu0 0.0
    %3892 = vmatpush1.xpose.msra.mxu0 0.0
    %3893 = vmatprep.subr.mxu0 0.0
    %3894 = vmatpush1.xpose.msra.mxu0 0.0
    %3895 = vmatprep.subr.mxu0 0.0
    %3896 = vmatpush1.xpose.msra.mxu0 %v3867
    %3897 = vmatprep.subr.mxu0 0.0
    %3898 = vmatpush1.xpose.msra.mxu0 %v3865
    %3899 = vmatprep.subr.mxu0 0.0
    %3900 = vmatpush1.xpose.msra.mxu0 %v3863
    %3901 = vmatprep.subr.mxu0 0.0
    %3902 = vmatpush2.xpose.msra.mxu0 0.0
    %3903 = vmatprep.subr.mxu0 0.0
    %3904 = vmatpush2.xpose.msra.mxu0 0.0
    %3905 = vmatprep.subr.mxu0 0.0
    %3906 = vmatpush2.xpose.msra.mxu0 0.0
    %3907 = vmatprep.subr.mxu0 0.0
    %3908 = vmatpush2.xpose.msra.mxu0 0.0
    %3909 = vmatprep.subr.mxu0 0.0
    %3910 = vmatpush2.xpose.msra.mxu0 0.0
    %3911 = vmatprep.subr.mxu0 0.0
    %3912 = vmatpush2.xpose.msra.mxu0 0.0
    %3913 = vmatprep.subr.mxu0 0.0
    %3914 = vmatpush2.xpose.msra.mxu0 0.0
    %3915 = vmatprep.subr.mxu0 0.0
    %3916 = vmatpush2.xpose.msra.mxu0 0.0
    %3917 = vmatprep.subr.mxu0 0.0
    %3918 = vmatpush2.xpose.msra.mxu0 0.0
    %3919 = vmatprep.subr.mxu0 0.0
    %3920 = vmatpush2.xpose.msra.mxu0 0.0
    %3921 = vmatprep.subr.mxu0 0.0
    %3922 = vmatpush2.xpose.msra.mxu0 0.0
    %3923 = vmatprep.subr.mxu0 0.0
    %3924 = vmatpush2.xpose.msra.mxu0 0.0
    %3925 = vmatprep.subr.mxu0 0.0
    %3926 = vmatpush2.xpose.msra.mxu0 0.0
    %3927 = vmatprep.subr.mxu0 0.0
    %3928 = vmatpush2.xpose.msra.mxu0 0.0
    %3929 = vmatprep.subr.mxu0 0.0
    %3930 = vmatpush2.xpose.msra.mxu0 0.0
    %3931 = vmatprep.subr.mxu0 0.0
    %3932 = vmatpush2.xpose.msra.mxu0 0.0
    %3933 = vmatprep.mubr.f32.mxu0 0.0
    %3934 = vmatmul.mubr.f32.gmra.mxu0 %v3857
    %v3935 = vpop.f32.mrf.mxu0
    %v3936 = vadd.f32 0.0, %v3935
    %v3937 = vpop.f32.mrf.mxu0
    %3938 = vmatprep.mubr.f32.mxu0 0.0
    %3939 = vmatmul.mubr.f32.gmra.mxu0 %v3859
    %v3940 = vpop.f32.mrf.mxu0
    %v3941 = vadd.f32 0.0, %v3940
    %v3942 = vpop.f32.mrf.mxu0
    %3943 = vmatprep.mubr.f32.mxu0 0.0
    %3944 = vmatmul.mubr.f32.gmra.mxu0 %v3861
    %v3945 = vpop.f32.mrf.mxu0
    %v3946 = vadd.f32 0.0, %v3945
    %v3947 = vpop.f32.mrf.mxu0
    %3948 = vdwg.mxu0
    %3949 = vrot.lane.b32.xlu0 %v3258, 96
    %v3950 = vpop.permute.xlu0 %3949
    %3951 = vrot.lane.b32.xlu0 %v3260, 96
    %v3952 = vpop.permute.xlu0 %3951
    %3953 = vrot.lane.b32.xlu0 %v3262, 96
    %v3954 = vpop.permute.xlu0 %3953
    %v3955 = vsel %vm446, %v3258, 0
    %v3957 = vsel %vm446, %v3260, 0
    %v3959 = vsel %vm446, %v3262, 0
    %v3961 = vsel %vm446, %v3950, 0
    %v3963 = vsel %vm446, %v3952, 0
    %v3965 = vsel %vm446, %v3954, 0
    %3967 = vmatprep.subr.mxu0 0.0
    %3968 = vmatpush1.xpose.msra.mxu0 0.0
    %3969 = vmatprep.subr.mxu0 0.0
    %3970 = vmatpush1.xpose.msra.mxu0 0.0
    %3971 = vmatprep.subr.mxu0 0.0
    %3972 = vmatpush1.xpose.msra.mxu0 0.0
    %3973 = vmatprep.subr.mxu0 0.0
    %3974 = vmatpush1.xpose.msra.mxu0 0.0
    %3975 = vmatprep.subr.mxu0 0.0
    %3976 = vmatpush1.xpose.msra.mxu0 0.0
    %3977 = vmatprep.subr.mxu0 0.0
    %3978 = vmatpush1.xpose.msra.mxu0 0.0
    %3979 = vmatprep.subr.mxu0 0.0
    %3980 = vmatpush1.xpose.msra.mxu0 0.0
    %3981 = vmatprep.subr.mxu0 0.0
    %3982 = vmatpush1.xpose.msra.mxu0 0.0
    %3983 = vmatprep.subr.mxu0 0.0
    %3984 = vmatpush1.xpose.msra.mxu0 0.0
    %3985 = vmatprep.subr.mxu0 0.0
    %3986 = vmatpush1.xpose.msra.mxu0 0.0
    %3987 = vmatprep.subr.mxu0 0.0
    %3988 = vmatpush1.xpose.msra.mxu0 0.0
    %3989 = vmatprep.subr.mxu0 0.0
    %3990 = vmatpush1.xpose.msra.mxu0 0.0
    %3991 = vmatprep.subr.mxu0 0.0
    %3992 = vmatpush1.xpose.msra.mxu0 0.0
    %3993 = vmatprep.subr.mxu0 0.0
    %3994 = vmatpush1.xpose.msra.mxu0 %v3965
    %3995 = vmatprep.subr.mxu0 0.0
    %3996 = vmatpush1.xpose.msra.mxu0 %v3963
    %3997 = vmatprep.subr.mxu0 0.0
    %3998 = vmatpush1.xpose.msra.mxu0 %v3961
    %3999 = vmatprep.subr.mxu0 0.0
    %4000 = vmatpush2.xpose.msra.mxu0 0.0
    %4001 = vmatprep.subr.mxu0 0.0
    %4002 = vmatpush2.xpose.msra.mxu0 0.0
    %4003 = vmatprep.subr.mxu0 0.0
    %4004 = vmatpush2.xpose.msra.mxu0 0.0
    %4005 = vmatprep.subr.mxu0 0.0
    %4006 = vmatpush2.xpose.msra.mxu0 0.0
    %4007 = vmatprep.subr.mxu0 0.0
    %4008 = vmatpush2.xpose.msra.mxu0 0.0
    %4009 = vmatprep.subr.mxu0 0.0
    %4010 = vmatpush2.xpose.msra.mxu0 0.0
    %4011 = vmatprep.subr.mxu0 0.0
    %4012 = vmatpush2.xpose.msra.mxu0 0.0
    %4013 = vmatprep.subr.mxu0 0.0
    %4014 = vmatpush2.xpose.msra.mxu0 0.0
    %4015 = vmatprep.subr.mxu0 0.0
    %4016 = vmatpush2.xpose.msra.mxu0 0.0
    %4017 = vmatprep.subr.mxu0 0.0
    %4018 = vmatpush2.xpose.msra.mxu0 0.0
    %4019 = vmatprep.subr.mxu0 0.0
    %4020 = vmatpush2.xpose.msra.mxu0 0.0
    %4021 = vmatprep.subr.mxu0 0.0
    %4022 = vmatpush2.xpose.msra.mxu0 0.0
    %4023 = vmatprep.subr.mxu0 0.0
    %4024 = vmatpush2.xpose.msra.mxu0 0.0
    %4025 = vmatprep.subr.mxu0 0.0
    %4026 = vmatpush2.xpose.msra.mxu0 0.0
    %4027 = vmatprep.subr.mxu0 0.0
    %4028 = vmatpush2.xpose.msra.mxu0 0.0
    %4029 = vmatprep.subr.mxu0 0.0
    %4030 = vmatpush2.xpose.msra.mxu0 0.0
    %4031 = vmatprep.mubr.f32.mxu0 0.0
    %4032 = vmatmul.mubr.f32.gmra.mxu0 %v3955
    %v4033 = vpop.f32.mrf.mxu0
    %v4034 = vadd.f32 0.0, %v4033
    %v4035 = vpop.f32.mrf.mxu0
    %4036 = vmatprep.mubr.f32.mxu0 0.0
    %4037 = vmatmul.mubr.f32.gmra.mxu0 %v3957
    %v4038 = vpop.f32.mrf.mxu0
    %v4039 = vadd.f32 0.0, %v4038
    %v4040 = vpop.f32.mrf.mxu0
    %4041 = vmatprep.mubr.f32.mxu0 0.0
    %4042 = vmatmul.mubr.f32.gmra.mxu0 %v3959
    %v4043 = vpop.f32.mrf.mxu0
    %v4044 = vadd.f32 0.0, %v4043
    %v4045 = vpop.f32.mrf.mxu0
    %4046 = vdwg.mxu0
    %v4047 = vmul.f32 %v3348, 0.35355338
    %v4048 = vmul.f32 %v3353, 0.35355338
    %v4049 = vmul.f32 %v3358, 0.35355338
    %v4050 = vmul.f32 %v3446, 0.35355338
    %v4051 = vmul.f32 %v3451, 0.35355338
    %v4052 = vmul.f32 %v3456, 0.35355338
    %v4053 = vmul.f32 %v3544, 0.35355338
    %v4054 = vmul.f32 %v3549, 0.35355338
    %v4055 = vmul.f32 %v3554, 0.35355338
    %v4056 = vmul.f32 %v3642, 0.35355338
    %v4057 = vmul.f32 %v3647, 0.35355338
    %v4058 = vmul.f32 %v3652, 0.35355338
    %v4059 = vmul.f32 %v3740, 0.35355338
    %v4060 = vmul.f32 %v3745, 0.35355338
    %v4061 = vmul.f32 %v3750, 0.35355338
    %v4062 = vmul.f32 %v3838, 0.35355338
    %v4063 = vmul.f32 %v3843, 0.35355338
    %v4064 = vmul.f32 %v3848, 0.35355338
    %v4065 = vmul.f32 %v3936, 0.35355338
    %v4066 = vmul.f32 %v3941, 0.35355338
    %v4067 = vmul.f32 %v3946, 0.35355338
    %v4068 = vmul.f32 %v4034, 0.35355338
    %v4069 = vmul.f32 %v4039, 0.35355338
    %v4070 = vmul.f32 %v4044, 0.35355338
    %v4071 = vsel %vm1249, %v4047, -inf
    %4072 = vmax.xlane.f32.xlu0 %v4071
    %v4073 = vpop.xlane.xlu0 %4072
    %v4074 = vsel %vm1249, %v4048, -inf
    %4075 = vmax.xlane.f32.xlu0 %v4074
    %v4076 = vpop.xlane.xlu0 %4075
    %v4077 = vsel %vm1256, %v4049, -inf
    %4078 = vmax.xlane.f32.xlu0 %v4077
    %v4079 = vpop.xlane.xlu0 %4078
    %v4080 = vsel %vm1249, %v4050, -inf
    %4081 = vmax.xlane.f32.xlu0 %v4080
    %v4082 = vpop.xlane.xlu0 %4081
    %v4083 = vsel %vm1249, %v4051, -inf
    %4084 = vmax.xlane.f32.xlu0 %v4083
    %v4085 = vpop.xlane.xlu0 %4084
    %v4086 = vsel %vm1256, %v4052, -inf
    %4087 = vmax.xlane.f32.xlu0 %v4086
    %v4088 = vpop.xlane.xlu0 %4087
    %v4089 = vsel %vm1249, %v4053, -inf
    %4090 = vmax.xlane.f32.xlu0 %v4089
    %v4091 = vpop.xlane.xlu0 %4090
    %v4092 = vsel %vm1249, %v4054, -inf
    %4093 = vmax.xlane.f32.xlu0 %v4092
    %v4094 = vpop.xlane.xlu0 %4093
    %v4095 = vsel %vm1256, %v4055, -inf
    %4096 = vmax.xlane.f32.xlu0 %v4095
    %v4097 = vpop.xlane.xlu0 %4096
    %v4098 = vsel %vm1249, %v4056, -inf
    %4099 = vmax.xlane.f32.xlu0 %v4098
    %v4100 = vpop.xlane.xlu0 %4099
    %v4101 = vsel %vm1249, %v4057, -inf
    %4102 = vmax.xlane.f32.xlu0 %v4101
    %v4103 = vpop.xlane.xlu0 %4102
    %v4104 = vsel %vm1256, %v4058, -inf
    %4105 = vmax.xlane.f32.xlu0 %v4104
    %v4106 = vpop.xlane.xlu0 %4105
    %v4107 = vsel %vm1249, %v4059, -inf
    %4108 = vmax.xlane.f32.xlu0 %v4107
    %v4109 = vpop.xlane.xlu0 %4108
    %v4110 = vsel %vm1249, %v4060, -inf
    %4111 = vmax.xlane.f32.xlu0 %v4110
    %v4112 = vpop.xlane.xlu0 %4111
    %v4113 = vsel %vm1256, %v4061, -inf
    %4114 = vmax.xlane.f32.xlu0 %v4113
    %v4115 = vpop.xlane.xlu0 %4114
    %v4116 = vsel %vm1249, %v4062, -inf
    %4117 = vmax.xlane.f32.xlu0 %v4116
    %v4118 = vpop.xlane.xlu0 %4117
    %v4119 = vsel %vm1249, %v4063, -inf
    %4120 = vmax.xlane.f32.xlu0 %v4119
    %v4121 = vpop.xlane.xlu0 %4120
    %v4122 = vsel %vm1256, %v4064, -inf
    %4123 = vmax.xlane.f32.xlu0 %v4122
    %v4124 = vpop.xlane.xlu0 %4123
    %v4125 = vsel %vm1249, %v4065, -inf
    %4126 = vmax.xlane.f32.xlu0 %v4125
    %v4127 = vpop.xlane.xlu0 %4126
    %v4128 = vsel %vm1249, %v4066, -inf
    %4129 = vmax.xlane.f32.xlu0 %v4128
    %v4130 = vpop.xlane.xlu0 %4129
    %v4131 = vsel %vm1256, %v4067, -inf
    %4132 = vmax.xlane.f32.xlu0 %v4131
    %v4133 = vpop.xlane.xlu0 %4132
    %v4134 = vsel %vm1249, %v4068, -inf
    %4135 = vmax.xlane.f32.xlu0 %v4134
    %v4136 = vpop.xlane.xlu0 %4135
    %v4137 = vsel %vm1249, %v4069, -inf
    %4138 = vmax.xlane.f32.xlu0 %v4137
    %v4139 = vpop.xlane.xlu0 %4138
    %v4140 = vsel %vm1256, %v4070, -inf
    %4141 = vmax.xlane.f32.xlu0 %v4140
    %v4142 = vpop.xlane.xlu0 %4141
    %v4143 = vsub.f32 %v4047, %v4073
    %v4144 = vsub.f32 %v4048, %v4076
    %v4145 = vsub.f32 %v4049, %v4079
    %v4146 = vsub.f32 %v4050, %v4082
    %v4147 = vsub.f32 %v4051, %v4085
    %v4148 = vsub.f32 %v4052, %v4088
    %v4149 = vsub.f32 %v4053, %v4091
    %v4150 = vsub.f32 %v4054, %v4094
    %v4151 = vsub.f32 %v4055, %v4097
    %v4152 = vsub.f32 %v4056, %v4100
    %v4153 = vsub.f32 %v4057, %v4103
    %v4154 = vsub.f32 %v4058, %v4106
    %v4155 = vsub.f32 %v4059, %v4109
    %v4156 = vsub.f32 %v4060, %v4112
    %v4157 = vsub.f32 %v4061, %v4115
    %v4158 = vsub.f32 %v4062, %v4118
    %v4159 = vsub.f32 %v4063, %v4121
    %v4160 = vsub.f32 %v4064, %v4124
    %v4161 = vsub.f32 %v4065, %v4127
    %v4162 = vsub.f32 %v4066, %v4130
    %v4163 = vsub.f32 %v4067, %v4133
    %v4164 = vsub.f32 %v4068, %v4136
    %v4165 = vsub.f32 %v4069, %v4139
    %v4166 = vsub.f32 %v4070, %v4142
    %v4167 = vmul.f32 %v4143, 1.442695
    %v4168 = vpow.pop %v4167
    %v4169 = vmul.f32 %v4144, 1.442695
    %v4170 = vpow.pop %v4169
    %v4171 = vmul.f32 %v4145, 1.442695
    %v4172 = vpow.pop %v4171
    %v4173 = vmul.f32 %v4146, 1.442695
    %v4174 = vpow.pop %v4173
    %v4175 = vmul.f32 %v4147, 1.442695
    %v4176 = vpow.pop %v4175
    %v4177 = vmul.f32 %v4148, 1.442695
    %v4178 = vpow.pop %v4177
    %v4179 = vmul.f32 %v4149, 1.442695
    %v4180 = vpow.pop %v4179
    %v4181 = vmul.f32 %v4150, 1.442695
    %v4182 = vpow.pop %v4181
    %v4183 = vmul.f32 %v4151, 1.442695
    %v4184 = vpow.pop %v4183
    %v4185 = vmul.f32 %v4152, 1.442695
    %v4186 = vpow.pop %v4185
    %v4187 = vmul.f32 %v4153, 1.442695
    %v4188 = vpow.pop %v4187
    %v4189 = vmul.f32 %v4154, 1.442695
    %v4190 = vpow.pop %v4189
    %v4191 = vmul.f32 %v4155, 1.442695
    %v4192 = vpow.pop %v4191
    %v4193 = vmul.f32 %v4156, 1.442695
    %v4194 = vpow.pop %v4193
    %v4195 = vmul.f32 %v4157, 1.442695
    %v4196 = vpow.pop %v4195
    %v4197 = vmul.f32 %v4158, 1.442695
    %v4198 = vpow.pop %v4197
    %v4199 = vmul.f32 %v4159, 1.442695
    %v4200 = vpow.pop %v4199
    %v4201 = vmul.f32 %v4160, 1.442695
    %v4202 = vpow.pop %v4201
    %v4203 = vmul.f32 %v4161, 1.442695
    %v4204 = vpow.pop %v4203
    %v4205 = vmul.f32 %v4162, 1.442695
    %v4206 = vpow.pop %v4205
    %v4207 = vmul.f32 %v4163, 1.442695
    %v4208 = vpow.pop %v4207
    %v4209 = vmul.f32 %v4164, 1.442695
    %v4210 = vpow.pop %v4209
    %v4211 = vmul.f32 %v4165, 1.442695
    %v4212 = vpow.pop %v4211
    %v4213 = vmul.f32 %v4166, 1.442695
    %v4214 = vpow.pop %v4213
    %v4215 = vsel %vm1249, %v4168, 0.0
    %4216 = vadd.xlane.f32.xlu0 %v4215
    %v4217 = vpop.xlane.xlu0 %4216
    %v4218 = vsel %vm1249, %v4170, 0.0
    %4219 = vadd.xlane.f32.xlu0 %v4218
    %v4220 = vpop.xlane.xlu0 %4219
    %v4221 = vsel %vm1256, %v4172, 0.0
    %4222 = vadd.xlane.f32.xlu0 %v4221
    %v4223 = vpop.xlane.xlu0 %4222
    %v4224 = vsel %vm1249, %v4174, 0.0
    %4225 = vadd.xlane.f32.xlu0 %v4224
    %v4226 = vpop.xlane.xlu0 %4225
    %v4227 = vsel %vm1249, %v4176, 0.0
    %4228 = vadd.xlane.f32.xlu0 %v4227
    %v4229 = vpop.xlane.xlu0 %4228
    %v4230 = vsel %vm1256, %v4178, 0.0
    %4231 = vadd.xlane.f32.xlu0 %v4230
    %v4232 = vpop.xlane.xlu0 %4231
    %v4233 = vsel %vm1249, %v4180, 0.0
    %4234 = vadd.xlane.f32.xlu0 %v4233
    %v4235 = vpop.xlane.xlu0 %4234
    %v4236 = vsel %vm1249, %v4182, 0.0
    %4237 = vadd.xlane.f32.xlu0 %v4236
    %v4238 = vpop.xlane.xlu0 %4237
    %v4239 = vsel %vm1256, %v4184, 0.0
    %4240 = vadd.xlane.f32.xlu0 %v4239
    %v4241 = vpop.xlane.xlu0 %4240
    %v4242 = vsel %vm1249, %v4186, 0.0
    %4243 = vadd.xlane.f32.xlu0 %v4242
    %v4244 = vpop.xlane.xlu0 %4243
    %v4245 = vsel %vm1249, %v4188, 0.0
    %4246 = vadd.xlane.f32.xlu0 %v4245
    %v4247 = vpop.xlane.xlu0 %4246
    %v4248 = vsel %vm1256, %v4190, 0.0
    %4249 = vadd.xlane.f32.xlu0 %v4248
    %v4250 = vpop.xlane.xlu0 %4249
    %v4251 = vsel %vm1249, %v4192, 0.0
    %4252 = vadd.xlane.f32.xlu0 %v4251
    %v4253 = vpop.xlane.xlu0 %4252
    %v4254 = vsel %vm1249, %v4194, 0.0
    %4255 = vadd.xlane.f32.xlu0 %v4254
    %v4256 = vpop.xlane.xlu0 %4255
    %v4257 = vsel %vm1256, %v4196, 0.0
    %4258 = vadd.xlane.f32.xlu0 %v4257
    %v4259 = vpop.xlane.xlu0 %4258
    %v4260 = vsel %vm1249, %v4198, 0.0
    %4261 = vadd.xlane.f32.xlu0 %v4260
    %v4262 = vpop.xlane.xlu0 %4261
    %v4263 = vsel %vm1249, %v4200, 0.0
    %4264 = vadd.xlane.f32.xlu0 %v4263
    %v4265 = vpop.xlane.xlu0 %4264
    %v4266 = vsel %vm1256, %v4202, 0.0
    %4267 = vadd.xlane.f32.xlu0 %v4266
    %v4268 = vpop.xlane.xlu0 %4267
    %v4269 = vsel %vm1249, %v4204, 0.0
    %4270 = vadd.xlane.f32.xlu0 %v4269
    %v4271 = vpop.xlane.xlu0 %4270
    %v4272 = vsel %vm1249, %v4206, 0.0
    %4273 = vadd.xlane.f32.xlu0 %v4272
    %v4274 = vpop.xlane.xlu0 %4273
    %v4275 = vsel %vm1256, %v4208, 0.0
    %4276 = vadd.xlane.f32.xlu0 %v4275
    %v4277 = vpop.xlane.xlu0 %4276
    %v4278 = vsel %vm1249, %v4210, 0.0
    %4279 = vadd.xlane.f32.xlu0 %v4278
    %v4280 = vpop.xlane.xlu0 %4279
    %v4281 = vsel %vm1249, %v4212, 0.0
    %4282 = vadd.xlane.f32.xlu0 %v4281
    %v4283 = vpop.xlane.xlu0 %4282
    %v4284 = vsel %vm1256, %v4214, 0.0
    %4285 = vadd.xlane.f32.xlu0 %v4284
    %v4286 = vpop.xlane.xlu0 %4285
    %v4287 = vrcp.pop %v4217
    %v4288 = vrcp.pop %v4220
    %v4289 = vrcp.pop %v4223
    %v4290 = vrcp.pop %v4226
    %v4291 = vrcp.pop %v4229
    %v4292 = vrcp.pop %v4232
    %v4293 = vrcp.pop %v4235
    %v4294 = vrcp.pop %v4238
    %v4295 = vrcp.pop %v4241
    %v4296 = vrcp.pop %v4244
    %v4297 = vrcp.pop %v4247
    %v4298 = vrcp.pop %v4250
    %v4299 = vrcp.pop %v4253
    %v4300 = vrcp.pop %v4256
    %v4301 = vrcp.pop %v4259
    %v4302 = vrcp.pop %v4262
    %v4303 = vrcp.pop %v4265
    %v4304 = vrcp.pop %v4268
    %v4305 = vrcp.pop %v4271
    %v4306 = vrcp.pop %v4274
    %v4307 = vrcp.pop %v4277
    %v4308 = vrcp.pop %v4280
    %v4309 = vrcp.pop %v4283
    %v4310 = vrcp.pop %v4286
    %v4311 = vmul.f32 %v4168, %v4287
    %v4312 = vmul.f32 %v4170, %v4288
    %v4313 = vmul.f32 %v4172, %v4289
    %v4314 = vmul.f32 %v4174, %v4290
    %v4315 = vmul.f32 %v4176, %v4291
    %v4316 = vmul.f32 %v4178, %v4292
    %v4317 = vmul.f32 %v4180, %v4293
    %v4318 = vmul.f32 %v4182, %v4294
    %v4319 = vmul.f32 %v4184, %v4295
    %v4320 = vmul.f32 %v4186, %v4296
    %v4321 = vmul.f32 %v4188, %v4297
    %v4322 = vmul.f32 %v4190, %v4298
    %v4323 = vmul.f32 %v4192, %v4299
    %v4324 = vmul.f32 %v4194, %v4300
    %v4325 = vmul.f32 %v4196, %v4301
    %v4326 = vmul.f32 %v4198, %v4302
    %v4327 = vmul.f32 %v4200, %v4303
    %v4328 = vmul.f32 %v4202, %v4304
    %v4329 = vmul.f32 %v4204, %v4305
    %v4330 = vmul.f32 %v4206, %v4306
    %v4331 = vmul.f32 %v4208, %v4307
    %v4332 = vmul.f32 %v4210, %v4308
    %v4333 = vmul.f32 %v4212, %v4309
    %v4334 = vmul.f32 %v4214, %v4310
    %4335 = vrot.lane.b32.xlu0 %v3194, 64
    %v4336 = vpop.permute.xlu0 %4335
    %4337 = vrot.lane.b32.xlu0 %v3199, 64
    %v4338 = vpop.permute.xlu0 %4337
    %4339 = vrot.lane.b32.xlu0 %v3204, 64
    %v4340 = vpop.permute.xlu0 %4339
    %v4344 = vsel %vm1249, %v4311, 0
    %v4347 = vsel %vm1249, %v4312, 0
    %v4350 = vsel %vm1249, %v4313, 0
    %v4352 = vsel %vm1532, %v4340, 0
    %4354 = vmatprep.subr.mxu0 0.0
    %4355 = vmatpush1.msra.mxu0 0.0
    %4356 = vmatprep.subr.mxu0 0.0
    %4357 = vmatpush1.msra.mxu0 0.0
    %4358 = vmatprep.subr.mxu0 0.0
    %4359 = vmatpush1.msra.mxu0 0.0
    %4360 = vmatprep.subr.mxu0 0.0
    %4361 = vmatpush1.msra.mxu0 0.0
    %4362 = vmatprep.subr.mxu0 0.0
    %4363 = vmatpush1.msra.mxu0 0.0
    %4364 = vmatprep.subr.mxu0 0.0
    %4365 = vmatpush1.msra.mxu0 0.0
    %4366 = vmatprep.subr.mxu0 0.0
    %4367 = vmatpush1.msra.mxu0 0.0
    %4368 = vmatprep.subr.mxu0 0.0
    %4369 = vmatpush1.msra.mxu0 0.0
    %4370 = vmatprep.subr.mxu0 0.0
    %4371 = vmatpush1.msra.mxu0 0.0
    %4372 = vmatprep.subr.mxu0 0.0
    %4373 = vmatpush1.msra.mxu0 0.0
    %4374 = vmatprep.subr.mxu0 0.0
    %4375 = vmatpush1.msra.mxu0 0.0
    %4376 = vmatprep.subr.mxu0 0.0
    %4377 = vmatpush1.msra.mxu0 0.0
    %4378 = vmatprep.subr.mxu0 0.0
    %4379 = vmatpush1.msra.mxu0 0.0
    %4380 = vmatprep.subr.mxu0 0.0
    %4381 = vmatpush1.msra.mxu0 %v4352
    %4382 = vmatprep.subr.mxu0 0.0
    %4383 = vmatpush1.msra.mxu0 %v4338
    %4384 = vmatprep.subr.mxu0 0.0
    %4385 = vmatpush1.msra.mxu0 %v4336
    %4386 = vmatprep.subr.mxu0 0.0
    %4387 = vmatpush2.msra.mxu0 0.0
    %4388 = vmatprep.subr.mxu0 0.0
    %4389 = vmatpush2.msra.mxu0 0.0
    %4390 = vmatprep.subr.mxu0 0.0
    %4391 = vmatpush2.msra.mxu0 0.0
    %4392 = vmatprep.subr.mxu0 0.0
    %4393 = vmatpush2.msra.mxu0 0.0
    %4394 = vmatprep.subr.mxu0 0.0
    %4395 = vmatpush2.msra.mxu0 0.0
    %4396 = vmatprep.subr.mxu0 0.0
    %4397 = vmatpush2.msra.mxu0 0.0
    %4398 = vmatprep.subr.mxu0 0.0
    %4399 = vmatpush2.msra.mxu0 0.0
    %4400 = vmatprep.subr.mxu0 0.0
    %4401 = vmatpush2.msra.mxu0 0.0
    %4402 = vmatprep.subr.mxu0 0.0
    %4403 = vmatpush2.msra.mxu0 0.0
    %4404 = vmatprep.subr.mxu0 0.0
    %4405 = vmatpush2.msra.mxu0 0.0
    %4406 = vmatprep.subr.mxu0 0.0
    %4407 = vmatpush2.msra.mxu0 0.0
    %4408 = vmatprep.subr.mxu0 0.0
    %4409 = vmatpush2.msra.mxu0 0.0
    %4410 = vmatprep.subr.mxu0 0.0
    %4411 = vmatpush2.msra.mxu0 0.0
    %4412 = vmatprep.subr.mxu0 0.0
    %4413 = vmatpush2.msra.mxu0 0.0
    %4414 = vmatprep.subr.mxu0 0.0
    %4415 = vmatpush2.msra.mxu0 0.0
    %4416 = vmatprep.subr.mxu0 0.0
    %4417 = vmatpush2.msra.mxu0 0.0
    %4418 = vmatprep.mubr.f32.mxu0 0.0
    %4419 = vmatmul.mubr.f32.gmra.mxu0 %v4344
    %v4420 = vpop.f32.mrf.mxu0
    %v4421 = vadd.f32 0.0, %v4420
    %v4422 = vpop.f32.mrf.mxu0
    %4423 = vmatprep.mubr.f32.mxu0 0.0
    %4424 = vmatmul.mubr.f32.gmra.mxu0 %v4347
    %v4425 = vpop.f32.mrf.mxu0
    %v4426 = vadd.f32 0.0, %v4425
    %v4427 = vpop.f32.mrf.mxu0
    %4428 = vmatprep.mubr.f32.mxu0 0.0
    %4429 = vmatmul.mubr.f32.gmra.mxu0 %v4350
    %v4430 = vpop.f32.mrf.mxu0
    %v4431 = vadd.f32 0.0, %v4430
    %v4432 = vpop.f32.mrf.mxu0
    %4433 = vdwg.mxu0
    %4434 = vrot.lane.b32.xlu0 %v3221, 64
    %v4435 = vpop.permute.xlu0 %4434
    %4436 = vrot.lane.b32.xlu0 %v3223, 64
    %v4437 = vpop.permute.xlu0 %4436
    %4438 = vrot.lane.b32.xlu0 %v3225, 64
    %v4439 = vpop.permute.xlu0 %4438
    %v4443 = vsel %vm1249, %v4314, 0
    %v4446 = vsel %vm1249, %v4315, 0
    %v4449 = vsel %vm1249, %v4316, 0
    %v4451 = vsel %vm1532, %v4439, 0
    %4453 = vmatprep.subr.mxu0 0.0
    %4454 = vmatpush1.msra.mxu0 0.0
    %4455 = vmatprep.subr.mxu0 0.0
    %4456 = vmatpush1.msra.mxu0 0.0
    %4457 = vmatprep.subr.mxu0 0.0
    %4458 = vmatpush1.msra.mxu0 0.0
    %4459 = vmatprep.subr.mxu0 0.0
    %4460 = vmatpush1.msra.mxu0 0.0
    %4461 = vmatprep.subr.mxu0 0.0
    %4462 = vmatpush1.msra.mxu0 0.0
    %4463 = vmatprep.subr.mxu0 0.0
    %4464 = vmatpush1.msra.mxu0 0.0
    %4465 = vmatprep.subr.mxu0 0.0
    %4466 = vmatpush1.msra.mxu0 0.0
    %4467 = vmatprep.subr.mxu0 0.0
    %4468 = vmatpush1.msra.mxu0 0.0
    %4469 = vmatprep.subr.mxu0 0.0
    %4470 = vmatpush1.msra.mxu0 0.0
    %4471 = vmatprep.subr.mxu0 0.0
    %4472 = vmatpush1.msra.mxu0 0.0
    %4473 = vmatprep.subr.mxu0 0.0
    %4474 = vmatpush1.msra.mxu0 0.0
    %4475 = vmatprep.subr.mxu0 0.0
    %4476 = vmatpush1.msra.mxu0 0.0
    %4477 = vmatprep.subr.mxu0 0.0
    %4478 = vmatpush1.msra.mxu0 0.0
    %4479 = vmatprep.subr.mxu0 0.0
    %4480 = vmatpush1.msra.mxu0 %v4451
    %4481 = vmatprep.subr.mxu0 0.0
    %4482 = vmatpush1.msra.mxu0 %v4437
    %4483 = vmatprep.subr.mxu0 0.0
    %4484 = vmatpush1.msra.mxu0 %v4435
    %4485 = vmatprep.subr.mxu0 0.0
    %4486 = vmatpush2.msra.mxu0 0.0
    %4487 = vmatprep.subr.mxu0 0.0
    %4488 = vmatpush2.msra.mxu0 0.0
    %4489 = vmatprep.subr.mxu0 0.0
    %4490 = vmatpush2.msra.mxu0 0.0
    %4491 = vmatprep.subr.mxu0 0.0
    %4492 = vmatpush2.msra.mxu0 0.0
    %4493 = vmatprep.subr.mxu0 0.0
    %4494 = vmatpush2.msra.mxu0 0.0
    %4495 = vmatprep.subr.mxu0 0.0
    %4496 = vmatpush2.msra.mxu0 0.0
    %4497 = vmatprep.subr.mxu0 0.0
    %4498 = vmatpush2.msra.mxu0 0.0
    %4499 = vmatprep.subr.mxu0 0.0
    %4500 = vmatpush2.msra.mxu0 0.0
    %4501 = vmatprep.subr.mxu0 0.0
    %4502 = vmatpush2.msra.mxu0 0.0
    %4503 = vmatprep.subr.mxu0 0.0
    %4504 = vmatpush2.msra.mxu0 0.0
    %4505 = vmatprep.subr.mxu0 0.0
    %4506 = vmatpush2.msra.mxu0 0.0
    %4507 = vmatprep.subr.mxu0 0.0
    %4508 = vmatpush2.msra.mxu0 0.0
    %4509 = vmatprep.subr.mxu0 0.0
    %4510 = vmatpush2.msra.mxu0 0.0
    %4511 = vmatprep.subr.mxu0 0.0
    %4512 = vmatpush2.msra.mxu0 0.0
    %4513 = vmatprep.subr.mxu0 0.0
    %4514 = vmatpush2.msra.mxu0 0.0
    %4515 = vmatprep.subr.mxu0 0.0
    %4516 = vmatpush2.msra.mxu0 0.0
    %4517 = vmatprep.mubr.f32.mxu0 0.0
    %4518 = vmatmul.mubr.f32.gmra.mxu0 %v4443
    %v4519 = vpop.f32.mrf.mxu0
    %v4520 = vadd.f32 0.0, %v4519
    %v4521 = vpop.f32.mrf.mxu0
    %4522 = vmatprep.mubr.f32.mxu0 0.0
    %4523 = vmatmul.mubr.f32.gmra.mxu0 %v4446
    %v4524 = vpop.f32.mrf.mxu0
    %v4525 = vadd.f32 0.0, %v4524
    %v4526 = vpop.f32.mrf.mxu0
    %4527 = vmatprep.mubr.f32.mxu0 0.0
    %4528 = vmatmul.mubr.f32.gmra.mxu0 %v4449
    %v4529 = vpop.f32.mrf.mxu0
    %v4530 = vadd.f32 0.0, %v4529
    %v4531 = vpop.f32.mrf.mxu0
    %4532 = vdwg.mxu0
    %4533 = vrot.lane.b32.xlu0 %v3227, 64
    %v4534 = vpop.permute.xlu0 %4533
    %4535 = vrot.lane.b32.xlu0 %v3229, 64
    %v4536 = vpop.permute.xlu0 %4535
    %4537 = vrot.lane.b32.xlu0 %v3231, 64
    %v4538 = vpop.permute.xlu0 %4537
    %v4542 = vsel %vm1249, %v4317, 0
    %v4545 = vsel %vm1249, %v4318, 0
    %v4548 = vsel %vm1249, %v4319, 0
    %v4550 = vsel %vm1532, %v4538, 0
    %4552 = vmatprep.subr.mxu0 0.0
    %4553 = vmatpush1.msra.mxu0 0.0
    %4554 = vmatprep.subr.mxu0 0.0
    %4555 = vmatpush1.msra.mxu0 0.0
    %4556 = vmatprep.subr.mxu0 0.0
    %4557 = vmatpush1.msra.mxu0 0.0
    %4558 = vmatprep.subr.mxu0 0.0
    %4559 = vmatpush1.msra.mxu0 0.0
    %4560 = vmatprep.subr.mxu0 0.0
    %4561 = vmatpush1.msra.mxu0 0.0
    %4562 = vmatprep.subr.mxu0 0.0
    %4563 = vmatpush1.msra.mxu0 0.0
    %4564 = vmatprep.subr.mxu0 0.0
    %4565 = vmatpush1.msra.mxu0 0.0
    %4566 = vmatprep.subr.mxu0 0.0
    %4567 = vmatpush1.msra.mxu0 0.0
    %4568 = vmatprep.subr.mxu0 0.0
    %4569 = vmatpush1.msra.mxu0 0.0
    %4570 = vmatprep.subr.mxu0 0.0
    %4571 = vmatpush1.msra.mxu0 0.0
    %4572 = vmatprep.subr.mxu0 0.0
    %4573 = vmatpush1.msra.mxu0 0.0
    %4574 = vmatprep.subr.mxu0 0.0
    %4575 = vmatpush1.msra.mxu0 0.0
    %4576 = vmatprep.subr.mxu0 0.0
    %4577 = vmatpush1.msra.mxu0 0.0
    %4578 = vmatprep.subr.mxu0 0.0
    %4579 = vmatpush1.msra.mxu0 %v4550
    %4580 = vmatprep.subr.mxu0 0.0
    %4581 = vmatpush1.msra.mxu0 %v4536
    %4582 = vmatprep.subr.mxu0 0.0
    %4583 = vmatpush1.msra.mxu0 %v4534
    %4584 = vmatprep.subr.mxu0 0.0
    %4585 = vmatpush2.msra.mxu0 0.0
    %4586 = vmatprep.subr.mxu0 0.0
    %4587 = vmatpush2.msra.mxu0 0.0
    %4588 = vmatprep.subr.mxu0 0.0
    %4589 = vmatpush2.msra.mxu0 0.0
    %4590 = vmatprep.subr.mxu0 0.0
    %4591 = vmatpush2.msra.mxu0 0.0
    %4592 = vmatprep.subr.mxu0 0.0
    %4593 = vmatpush2.msra.mxu0 0.0
    %4594 = vmatprep.subr.mxu0 0.0
    %4595 = vmatpush2.msra.mxu0 0.0
    %4596 = vmatprep.subr.mxu0 0.0
    %4597 = vmatpush2.msra.mxu0 0.0
    %4598 = vmatprep.subr.mxu0 0.0
    %4599 = vmatpush2.msra.mxu0 0.0
    %4600 = vmatprep.subr.mxu0 0.0
    %4601 = vmatpush2.msra.mxu0 0.0
    %4602 = vmatprep.subr.mxu0 0.0
    %4603 = vmatpush2.msra.mxu0 0.0
    %4604 = vmatprep.subr.mxu0 0.0
    %4605 = vmatpush2.msra.mxu0 0.0
    %4606 = vmatprep.subr.mxu0 0.0
    %4607 = vmatpush2.msra.mxu0 0.0
    %4608 = vmatprep.subr.mxu0 0.0
    %4609 = vmatpush2.msra.mxu0 0.0
    %4610 = vmatprep.subr.mxu0 0.0
    %4611 = vmatpush2.msra.mxu0 0.0
    %4612 = vmatprep.subr.mxu0 0.0
    %4613 = vmatpush2.msra.mxu0 0.0
    %4614 = vmatprep.subr.mxu0 0.0
    %4615 = vmatpush2.msra.mxu0 0.0
    %4616 = vmatprep.mubr.f32.mxu0 0.0
    %4617 = vmatmul.mubr.f32.gmra.mxu0 %v4542
    %v4618 = vpop.f32.mrf.mxu0
    %v4619 = vadd.f32 0.0, %v4618
    %v4620 = vpop.f32.mrf.mxu0
    %4621 = vmatprep.mubr.f32.mxu0 0.0
    %4622 = vmatmul.mubr.f32.gmra.mxu0 %v4545
    %v4623 = vpop.f32.mrf.mxu0
    %v4624 = vadd.f32 0.0, %v4623
    %v4625 = vpop.f32.mrf.mxu0
    %4626 = vmatprep.mubr.f32.mxu0 0.0
    %4627 = vmatmul.mubr.f32.gmra.mxu0 %v4548
    %v4628 = vpop.f32.mrf.mxu0
    %v4629 = vadd.f32 0.0, %v4628
    %v4630 = vpop.f32.mrf.mxu0
    %4631 = vdwg.mxu0
    %4632 = vrot.lane.b32.xlu0 %v3233, 64
    %v4633 = vpop.permute.xlu0 %4632
    %4634 = vrot.lane.b32.xlu0 %v3235, 64
    %v4635 = vpop.permute.xlu0 %4634
    %4636 = vrot.lane.b32.xlu0 %v3237, 64
    %v4637 = vpop.permute.xlu0 %4636
    %v4641 = vsel %vm1249, %v4320, 0
    %v4644 = vsel %vm1249, %v4321, 0
    %v4647 = vsel %vm1249, %v4322, 0
    %v4649 = vsel %vm1532, %v4637, 0
    %4651 = vmatprep.subr.mxu0 0.0
    %4652 = vmatpush1.msra.mxu0 0.0
    %4653 = vmatprep.subr.mxu0 0.0
    %4654 = vmatpush1.msra.mxu0 0.0
    %4655 = vmatprep.subr.mxu0 0.0
    %4656 = vmatpush1.msra.mxu0 0.0
    %4657 = vmatprep.subr.mxu0 0.0
    %4658 = vmatpush1.msra.mxu0 0.0
    %4659 = vmatprep.subr.mxu0 0.0
    %4660 = vmatpush1.msra.mxu0 0.0
    %4661 = vmatprep.subr.mxu0 0.0
    %4662 = vmatpush1.msra.mxu0 0.0
    %4663 = vmatprep.subr.mxu0 0.0
    %4664 = vmatpush1.msra.mxu0 0.0
    %4665 = vmatprep.subr.mxu0 0.0
    %4666 = vmatpush1.msra.mxu0 0.0
    %4667 = vmatprep.subr.mxu0 0.0
    %4668 = vmatpush1.msra.mxu0 0.0
    %4669 = vmatprep.subr.mxu0 0.0
    %4670 = vmatpush1.msra.mxu0 0.0
    %4671 = vmatprep.subr.mxu0 0.0
    %4672 = vmatpush1.msra.mxu0 0.0
    %4673 = vmatprep.subr.mxu0 0.0
    %4674 = vmatpush1.msra.mxu0 0.0
    %4675 = vmatprep.subr.mxu0 0.0
    %4676 = vmatpush1.msra.mxu0 0.0
    %4677 = vmatprep.subr.mxu0 0.0
    %4678 = vmatpush1.msra.mxu0 %v4649
    %4679 = vmatprep.subr.mxu0 0.0
    %4680 = vmatpush1.msra.mxu0 %v4635
    %4681 = vmatprep.subr.mxu0 0.0
    %4682 = vmatpush1.msra.mxu0 %v4633
    %4683 = vmatprep.subr.mxu0 0.0
    %4684 = vmatpush2.msra.mxu0 0.0
    %4685 = vmatprep.subr.mxu0 0.0
    %4686 = vmatpush2.msra.mxu0 0.0
    %4687 = vmatprep.subr.mxu0 0.0
    %4688 = vmatpush2.msra.mxu0 0.0
    %4689 = vmatprep.subr.mxu0 0.0
    %4690 = vmatpush2.msra.mxu0 0.0
    %4691 = vmatprep.subr.mxu0 0.0
    %4692 = vmatpush2.msra.mxu0 0.0
    %4693 = vmatprep.subr.mxu0 0.0
    %4694 = vmatpush2.msra.mxu0 0.0
    %4695 = vmatprep.subr.mxu0 0.0
    %4696 = vmatpush2.msra.mxu0 0.0
    %4697 = vmatprep.subr.mxu0 0.0
    %4698 = vmatpush2.msra.mxu0 0.0
    %4699 = vmatprep.subr.mxu0 0.0
    %4700 = vmatpush2.msra.mxu0 0.0
    %4701 = vmatprep.subr.mxu0 0.0
    %4702 = vmatpush2.msra.mxu0 0.0
    %4703 = vmatprep.subr.mxu0 0.0
    %4704 = vmatpush2.msra.mxu0 0.0
    %4705 = vmatprep.subr.mxu0 0.0
    %4706 = vmatpush2.msra.mxu0 0.0
    %4707 = vmatprep.subr.mxu0 0.0
    %4708 = vmatpush2.msra.mxu0 0.0
    %4709 = vmatprep.subr.mxu0 0.0
    %4710 = vmatpush2.msra.mxu0 0.0
    %4711 = vmatprep.subr.mxu0 0.0
    %4712 = vmatpush2.msra.mxu0 0.0
    %4713 = vmatprep.subr.mxu0 0.0
    %4714 = vmatpush2.msra.mxu0 0.0
    %4715 = vmatprep.mubr.f32.mxu0 0.0
    %4716 = vmatmul.mubr.f32.gmra.mxu0 %v4641
    %v4717 = vpop.f32.mrf.mxu0
    %v4718 = vadd.f32 0.0, %v4717
    %v4719 = vpop.f32.mrf.mxu0
    %4720 = vmatprep.mubr.f32.mxu0 0.0
    %4721 = vmatmul.mubr.f32.gmra.mxu0 %v4644
    %v4722 = vpop.f32.mrf.mxu0
    %v4723 = vadd.f32 0.0, %v4722
    %v4724 = vpop.f32.mrf.mxu0
    %4725 = vmatprep.mubr.f32.mxu0 0.0
    %4726 = vmatmul.mubr.f32.gmra.mxu0 %v4647
    %v4727 = vpop.f32.mrf.mxu0
    %v4728 = vadd.f32 0.0, %v4727
    %v4729 = vpop.f32.mrf.mxu0
    %4730 = vdwg.mxu0
    %4731 = vrot.lane.b32.xlu0 %v3242, 64
    %v4732 = vpop.permute.xlu0 %4731
    %4733 = vrot.lane.b32.xlu0 %v3244, 64
    %v4734 = vpop.permute.xlu0 %4733
    %4735 = vrot.lane.b32.xlu0 %v3243, 64
    %v4736 = vpop.permute.xlu0 %4735
    %v4740 = vsel %vm1249, %v4323, 0
    %v4743 = vsel %vm1249, %v4324, 0
    %v4746 = vsel %vm1249, %v4325, 0
    %v4748 = vsel %vm1532, %v4736, 0
    %4750 = vmatprep.subr.mxu0 0.0
    %4751 = vmatpush1.msra.mxu0 0.0
    %4752 = vmatprep.subr.mxu0 0.0
    %4753 = vmatpush1.msra.mxu0 0.0
    %4754 = vmatprep.subr.mxu0 0.0
    %4755 = vmatpush1.msra.mxu0 0.0
    %4756 = vmatprep.subr.mxu0 0.0
    %4757 = vmatpush1.msra.mxu0 0.0
    %4758 = vmatprep.subr.mxu0 0.0
    %4759 = vmatpush1.msra.mxu0 0.0
    %4760 = vmatprep.subr.mxu0 0.0
    %4761 = vmatpush1.msra.mxu0 0.0
    %4762 = vmatprep.subr.mxu0 0.0
    %4763 = vmatpush1.msra.mxu0 0.0
    %4764 = vmatprep.subr.mxu0 0.0
    %4765 = vmatpush1.msra.mxu0 0.0
    %4766 = vmatprep.subr.mxu0 0.0
    %4767 = vmatpush1.msra.mxu0 0.0
    %4768 = vmatprep.subr.mxu0 0.0
    %4769 = vmatpush1.msra.mxu0 0.0
    %4770 = vmatprep.subr.mxu0 0.0
    %4771 = vmatpush1.msra.mxu0 0.0
    %4772 = vmatprep.subr.mxu0 0.0
    %4773 = vmatpush1.msra.mxu0 0.0
    %4774 = vmatprep.subr.mxu0 0.0
    %4775 = vmatpush1.msra.mxu0 0.0
    %4776 = vmatprep.subr.mxu0 0.0
    %4777 = vmatpush1.msra.mxu0 %v4748
    %4778 = vmatprep.subr.mxu0 0.0
    %4779 = vmatpush1.msra.mxu0 %v4734
    %4780 = vmatprep.subr.mxu0 0.0
    %4781 = vmatpush1.msra.mxu0 %v4732
    %4782 = vmatprep.subr.mxu0 0.0
    %4783 = vmatpush2.msra.mxu0 0.0
    %4784 = vmatprep.subr.mxu0 0.0
    %4785 = vmatpush2.msra.mxu0 0.0
    %4786 = vmatprep.subr.mxu0 0.0
    %4787 = vmatpush2.msra.mxu0 0.0
    %4788 = vmatprep.subr.mxu0 0.0
    %4789 = vmatpush2.msra.mxu0 0.0
    %4790 = vmatprep.subr.mxu0 0.0
    %4791 = vmatpush2.msra.mxu0 0.0
    %4792 = vmatprep.subr.mxu0 0.0
    %4793 = vmatpush2.msra.mxu0 0.0
    %4794 = vmatprep.subr.mxu0 0.0
    %4795 = vmatpush2.msra.mxu0 0.0
    %4796 = vmatprep.subr.mxu0 0.0
    %4797 = vmatpush2.msra.mxu0 0.0
    %4798 = vmatprep.subr.mxu0 0.0
    %4799 = vmatpush2.msra.mxu0 0.0
    %4800 = vmatprep.subr.mxu0 0.0
    %4801 = vmatpush2.msra.mxu0 0.0
    %4802 = vmatprep.subr.mxu0 0.0
    %4803 = vmatpush2.msra.mxu0 0.0
    %4804 = vmatprep.subr.mxu0 0.0
    %4805 = vmatpush2.msra.mxu0 0.0
    %4806 = vmatprep.subr.mxu0 0.0
    %4807 = vmatpush2.msra.mxu0 0.0
    %4808 = vmatprep.subr.mxu0 0.0
    %4809 = vmatpush2.msra.mxu0 0.0
    %4810 = vmatprep.subr.mxu0 0.0
    %4811 = vmatpush2.msra.mxu0 0.0
    %4812 = vmatprep.subr.mxu0 0.0
    %4813 = vmatpush2.msra.mxu0 0.0
    %4814 = vmatprep.mubr.f32.mxu0 0.0
    %4815 = vmatmul.mubr.f32.gmra.mxu0 %v4740
    %v4816 = vpop.f32.mrf.mxu0
    %v4817 = vadd.f32 0.0, %v4816
    %v4818 = vpop.f32.mrf.mxu0
    %4819 = vmatprep.mubr.f32.mxu0 0.0
    %4820 = vmatmul.mubr.f32.gmra.mxu0 %v4743
    %v4821 = vpop.f32.mrf.mxu0
    %v4822 = vadd.f32 0.0, %v4821
    %v4823 = vpop.f32.mrf.mxu0
    %4824 = vmatprep.mubr.f32.mxu0 0.0
    %4825 = vmatmul.mubr.f32.gmra.mxu0 %v4746
    %v4826 = vpop.f32.mrf.mxu0
    %v4827 = vadd.f32 0.0, %v4826
    %v4828 = vpop.f32.mrf.mxu0
    %4829 = vdwg.mxu0
    %4830 = vrot.lane.b32.xlu0 %v3246, 64
    %v4831 = vpop.permute.xlu0 %4830
    %4832 = vrot.lane.b32.xlu0 %v3248, 64
    %v4833 = vpop.permute.xlu0 %4832
    %4834 = vrot.lane.b32.xlu0 %v3250, 64
    %v4835 = vpop.permute.xlu0 %4834
    %v4839 = vsel %vm1249, %v4326, 0
    %v4842 = vsel %vm1249, %v4327, 0
    %v4845 = vsel %vm1249, %v4328, 0
    %v4847 = vsel %vm1532, %v4835, 0
    %4849 = vmatprep.subr.mxu0 0.0
    %4850 = vmatpush1.msra.mxu0 0.0
    %4851 = vmatprep.subr.mxu0 0.0
    %4852 = vmatpush1.msra.mxu0 0.0
    %4853 = vmatprep.subr.mxu0 0.0
    %4854 = vmatpush1.msra.mxu0 0.0
    %4855 = vmatprep.subr.mxu0 0.0
    %4856 = vmatpush1.msra.mxu0 0.0
    %4857 = vmatprep.subr.mxu0 0.0
    %4858 = vmatpush1.msra.mxu0 0.0
    %4859 = vmatprep.subr.mxu0 0.0
    %4860 = vmatpush1.msra.mxu0 0.0
    %4861 = vmatprep.subr.mxu0 0.0
    %4862 = vmatpush1.msra.mxu0 0.0
    %4863 = vmatprep.subr.mxu0 0.0
    %4864 = vmatpush1.msra.mxu0 0.0
    %4865 = vmatprep.subr.mxu0 0.0
    %4866 = vmatpush1.msra.mxu0 0.0
    %4867 = vmatprep.subr.mxu0 0.0
    %4868 = vmatpush1.msra.mxu0 0.0
    %4869 = vmatprep.subr.mxu0 0.0
    %4870 = vmatpush1.msra.mxu0 0.0
    %4871 = vmatprep.subr.mxu0 0.0
    %4872 = vmatpush1.msra.mxu0 0.0
    %4873 = vmatprep.subr.mxu0 0.0
    %4874 = vmatpush1.msra.mxu0 0.0
    %4875 = vmatprep.subr.mxu0 0.0
    %4876 = vmatpush1.msra.mxu0 %v4847
    %4877 = vmatprep.subr.mxu0 0.0
    %4878 = vmatpush1.msra.mxu0 %v4833
    %4879 = vmatprep.subr.mxu0 0.0
    %4880 = vmatpush1.msra.mxu0 %v4831
    %4881 = vmatprep.subr.mxu0 0.0
    %4882 = vmatpush2.msra.mxu0 0.0
    %4883 = vmatprep.subr.mxu0 0.0
    %4884 = vmatpush2.msra.mxu0 0.0
    %4885 = vmatprep.subr.mxu0 0.0
    %4886 = vmatpush2.msra.mxu0 0.0
    %4887 = vmatprep.subr.mxu0 0.0
    %4888 = vmatpush2.msra.mxu0 0.0
    %4889 = vmatprep.subr.mxu0 0.0
    %4890 = vmatpush2.msra.mxu0 0.0
    %4891 = vmatprep.subr.mxu0 0.0
    %4892 = vmatpush2.msra.mxu0 0.0
    %4893 = vmatprep.subr.mxu0 0.0
    %4894 = vmatpush2.msra.mxu0 0.0
    %4895 = vmatprep.subr.mxu0 0.0
    %4896 = vmatpush2.msra.mxu0 0.0
    %4897 = vmatprep.subr.mxu0 0.0
    %4898 = vmatpush2.msra.mxu0 0.0
    %4899 = vmatprep.subr.mxu0 0.0
    %4900 = vmatpush2.msra.mxu0 0.0
    %4901 = vmatprep.subr.mxu0 0.0
    %4902 = vmatpush2.msra.mxu0 0.0
    %4903 = vmatprep.subr.mxu0 0.0
    %4904 = vmatpush2.msra.mxu0 0.0
    %4905 = vmatprep.subr.mxu0 0.0
    %4906 = vmatpush2.msra.mxu0 0.0
    %4907 = vmatprep.subr.mxu0 0.0
    %4908 = vmatpush2.msra.mxu0 0.0
    %4909 = vmatprep.subr.mxu0 0.0
    %4910 = vmatpush2.msra.mxu0 0.0
    %4911 = vmatprep.subr.mxu0 0.0
    %4912 = vmatpush2.msra.mxu0 0.0
    %4913 = vmatprep.mubr.f32.mxu0 0.0
    %4914 = vmatmul.mubr.f32.gmra.mxu0 %v4839
    %v4915 = vpop.f32.mrf.mxu0
    %v4916 = vadd.f32 0.0, %v4915
    %v4917 = vpop.f32.mrf.mxu0
    %4918 = vmatprep.mubr.f32.mxu0 0.0
    %4919 = vmatmul.mubr.f32.gmra.mxu0 %v4842
    %v4920 = vpop.f32.mrf.mxu0
    %v4921 = vadd.f32 0.0, %v4920
    %v4922 = vpop.f32.mrf.mxu0
    %4923 = vmatprep.mubr.f32.mxu0 0.0
    %4924 = vmatmul.mubr.f32.gmra.mxu0 %v4845
    %v4925 = vpop.f32.mrf.mxu0
    %v4926 = vadd.f32 0.0, %v4925
    %v4927 = vpop.f32.mrf.mxu0
    %4928 = vdwg.mxu0
    %4929 = vrot.lane.b32.xlu0 %v3252, 64
    %v4930 = vpop.permute.xlu0 %4929
    %4931 = vrot.lane.b32.xlu0 %v3254, 64
    %v4932 = vpop.permute.xlu0 %4931
    %4933 = vrot.lane.b32.xlu0 %v3256, 64
    %v4934 = vpop.permute.xlu0 %4933
    %v4938 = vsel %vm1249, %v4329, 0
    %v4941 = vsel %vm1249, %v4330, 0
    %v4944 = vsel %vm1249, %v4331, 0
    %v4946 = vsel %vm1532, %v4934, 0
    %4948 = vmatprep.subr.mxu0 0.0
    %4949 = vmatpush1.msra.mxu0 0.0
    %4950 = vmatprep.subr.mxu0 0.0
    %4951 = vmatpush1.msra.mxu0 0.0
    %4952 = vmatprep.subr.mxu0 0.0
    %4953 = vmatpush1.msra.mxu0 0.0
    %4954 = vmatprep.subr.mxu0 0.0
    %4955 = vmatpush1.msra.mxu0 0.0
    %4956 = vmatprep.subr.mxu0 0.0
    %4957 = vmatpush1.msra.mxu0 0.0
    %4958 = vmatprep.subr.mxu0 0.0
    %4959 = vmatpush1.msra.mxu0 0.0
    %4960 = vmatprep.subr.mxu0 0.0
    %4961 = vmatpush1.msra.mxu0 0.0
    %4962 = vmatprep.subr.mxu0 0.0
    %4963 = vmatpush1.msra.mxu0 0.0
    %4964 = vmatprep.subr.mxu0 0.0
    %4965 = vmatpush1.msra.mxu0 0.0
    %4966 = vmatprep.subr.mxu0 0.0
    %4967 = vmatpush1.msra.mxu0 0.0
    %4968 = vmatprep.subr.mxu0 0.0
    %4969 = vmatpush1.msra.mxu0 0.0
    %4970 = vmatprep.subr.mxu0 0.0
    %4971 = vmatpush1.msra.mxu0 0.0
    %4972 = vmatprep.subr.mxu0 0.0
    %4973 = vmatpush1.msra.mxu0 0.0
    %4974 = vmatprep.subr.mxu0 0.0
    %4975 = vmatpush1.msra.mxu0 %v4946
    %4976 = vmatprep.subr.mxu0 0.0
    %4977 = vmatpush1.msra.mxu0 %v4932
    %4978 = vmatprep.subr.mxu0 0.0
    %4979 = vmatpush1.msra.mxu0 %v4930
    %4980 = vmatprep.subr.mxu0 0.0
    %4981 = vmatpush2.msra.mxu0 0.0
    %4982 = vmatprep.subr.mxu0 0.0
    %4983 = vmatpush2.msra.mxu0 0.0
    %4984 = vmatprep.subr.mxu0 0.0
    %4985 = vmatpush2.msra.mxu0 0.0
    %4986 = vmatprep.subr.mxu0 0.0
    %4987 = vmatpush2.msra.mxu0 0.0
    %4988 = vmatprep.subr.mxu0 0.0
    %4989 = vmatpush2.msra.mxu0 0.0
    %4990 = vmatprep.subr.mxu0 0.0
    %4991 = vmatpush2.msra.mxu0 0.0
    %4992 = vmatprep.subr.mxu0 0.0
    %4993 = vmatpush2.msra.mxu0 0.0
    %4994 = vmatprep.subr.mxu0 0.0
    %4995 = vmatpush2.msra.mxu0 0.0
    %4996 = vmatprep.subr.mxu0 0.0
    %4997 = vmatpush2.msra.mxu0 0.0
    %4998 = vmatprep.subr.mxu0 0.0
    %4999 = vmatpush2.msra.mxu0 0.0
    %5000 = vmatprep.subr.mxu0 0.0
    %5001 = vmatpush2.msra.mxu0 0.0
    %5002 = vmatprep.subr.mxu0 0.0
    %5003 = vmatpush2.msra.mxu0 0.0
    %5004 = vmatprep.subr.mxu0 0.0
    %5005 = vmatpush2.msra.mxu0 0.0
    %5006 = vmatprep.subr.mxu0 0.0
    %5007 = vmatpush2.msra.mxu0 0.0
    %5008 = vmatprep.subr.mxu0 0.0
    %5009 = vmatpush2.msra.mxu0 0.0
    %5010 = vmatprep.subr.mxu0 0.0
    %5011 = vmatpush2.msra.mxu0 0.0
    %5012 = vmatprep.mubr.f32.mxu0 0.0
    %5013 = vmatmul.mubr.f32.gmra.mxu0 %v4938
    %v5014 = vpop.f32.mrf.mxu0
    %v5015 = vadd.f32 0.0, %v5014
    %v5016 = vpop.f32.mrf.mxu0
    %5017 = vmatprep.mubr.f32.mxu0 0.0
    %5018 = vmatmul.mubr.f32.gmra.mxu0 %v4941
    %v5019 = vpop.f32.mrf.mxu0
    %v5020 = vadd.f32 0.0, %v5019
    %v5021 = vpop.f32.mrf.mxu0
    %5022 = vmatprep.mubr.f32.mxu0 0.0
    %5023 = vmatmul.mubr.f32.gmra.mxu0 %v4944
    %v5024 = vpop.f32.mrf.mxu0
    %v5025 = vadd.f32 0.0, %v5024
    %v5026 = vpop.f32.mrf.mxu0
    %5027 = vdwg.mxu0
    %5028 = vrot.lane.b32.xlu0 %v3258, 64
    %v5029 = vpop.permute.xlu0 %5028
    %5030 = vrot.lane.b32.xlu0 %v3260, 64
    %v5031 = vpop.permute.xlu0 %5030
    %5032 = vrot.lane.b32.xlu0 %v3262, 64
    %v5033 = vpop.permute.xlu0 %5032
    %v5037 = vsel %vm1249, %v4332, 0
    %v5040 = vsel %vm1249, %v4333, 0
    %v5043 = vsel %vm1249, %v4334, 0
    %v5045 = vsel %vm1532, %v5033, 0
    %5047 = vmatprep.subr.mxu0 0.0
    %5048 = vmatpush1.msra.mxu0 0.0
    %5049 = vmatprep.subr.mxu0 0.0
    %5050 = vmatpush1.msra.mxu0 0.0
    %5051 = vmatprep.subr.mxu0 0.0
    %5052 = vmatpush1.msra.mxu0 0.0
    %5053 = vmatprep.subr.mxu0 0.0
    %5054 = vmatpush1.msra.mxu0 0.0
    %5055 = vmatprep.subr.mxu0 0.0
    %5056 = vmatpush1.msra.mxu0 0.0
    %5057 = vmatprep.subr.mxu0 0.0
    %5058 = vmatpush1.msra.mxu0 0.0
    %5059 = vmatprep.subr.mxu0 0.0
    %5060 = vmatpush1.msra.mxu0 0.0
    %5061 = vmatprep.subr.mxu0 0.0
    %5062 = vmatpush1.msra.mxu0 0.0
    %5063 = vmatprep.subr.mxu0 0.0
    %5064 = vmatpush1.msra.mxu0 0.0
    %5065 = vmatprep.subr.mxu0 0.0
    %5066 = vmatpush1.msra.mxu0 0.0
    %5067 = vmatprep.subr.mxu0 0.0
    %5068 = vmatpush1.msra.mxu0 0.0
    %5069 = vmatprep.subr.mxu0 0.0
    %5070 = vmatpush1.msra.mxu0 0.0
    %5071 = vmatprep.subr.mxu0 0.0
    %5072 = vmatpush1.msra.mxu0 0.0
    %5073 = vmatprep.subr.mxu0 0.0
    %5074 = vmatpush1.msra.mxu0 %v5045
    %5075 = vmatprep.subr.mxu0 0.0
    %5076 = vmatpush1.msra.mxu0 %v5031
    %5077 = vmatprep.subr.mxu0 0.0
    %5078 = vmatpush1.msra.mxu0 %v5029
    %5079 = vmatprep.subr.mxu0 0.0
    %5080 = vmatpush2.msra.mxu0 0.0
    %5081 = vmatprep.subr.mxu0 0.0
    %5082 = vmatpush2.msra.mxu0 0.0
    %5083 = vmatprep.subr.mxu0 0.0
    %5084 = vmatpush2.msra.mxu0 0.0
    %5085 = vmatprep.subr.mxu0 0.0
    %5086 = vmatpush2.msra.mxu0 0.0
    %5087 = vmatprep.subr.mxu0 0.0
    %5088 = vmatpush2.msra.mxu0 0.0
    %5089 = vmatprep.subr.mxu0 0.0
    %5090 = vmatpush2.msra.mxu0 0.0
    %5091 = vmatprep.subr.mxu0 0.0
    %5092 = vmatpush2.msra.mxu0 0.0
    %5093 = vmatprep.subr.mxu0 0.0
    %5094 = vmatpush2.msra.mxu0 0.0
    %5095 = vmatprep.subr.mxu0 0.0
    %5096 = vmatpush2.msra.mxu0 0.0
    %5097 = vmatprep.subr.mxu0 0.0
    %5098 = vmatpush2.msra.mxu0 0.0
    %5099 = vmatprep.subr.mxu0 0.0
    %5100 = vmatpush2.msra.mxu0 0.0
    %5101 = vmatprep.subr.mxu0 0.0
    %5102 = vmatpush2.msra.mxu0 0.0
    %5103 = vmatprep.subr.mxu0 0.0
    %5104 = vmatpush2.msra.mxu0 0.0
    %5105 = vmatprep.subr.mxu0 0.0
    %5106 = vmatpush2.msra.mxu0 0.0
    %5107 = vmatprep.subr.mxu0 0.0
    %5108 = vmatpush2.msra.mxu0 0.0
    %5109 = vmatprep.subr.mxu0 0.0
    %5110 = vmatpush2.msra.mxu0 0.0
    %5111 = vmatprep.mubr.f32.mxu0 0.0
    %5112 = vmatmul.mubr.f32.gmra.mxu0 %v5037
    %v5113 = vpop.f32.mrf.mxu0
    %v5114 = vadd.f32 0.0, %v5113
    %v5115 = vpop.f32.mrf.mxu0
    %5116 = vmatprep.mubr.f32.mxu0 0.0
    %5117 = vmatmul.mubr.f32.gmra.mxu0 %v5040
    %v5118 = vpop.f32.mrf.mxu0
    %v5119 = vadd.f32 0.0, %v5118
    %v5120 = vpop.f32.mrf.mxu0
    %5121 = vmatprep.mubr.f32.mxu0 0.0
    %5122 = vmatmul.mubr.f32.gmra.mxu0 %v5043
    %v5123 = vpop.f32.mrf.mxu0
    %v5124 = vadd.f32 0.0, %v5123
    %v5125 = vpop.f32.mrf.mxu0
    %5126 = vdwg.mxu0
    %5127 = vst.msk [vmem:[#allocation2] sm:$0xff] %vm446, %v4421
    %5128 = vst.msk [vmem:[#allocation2 + $0x8] sm:$0xff] %vm446, %v4426
    %5129 = vst.msk [vmem:[#allocation2 + $0x10] sm:$0x1] %vm2310, %v4431
    %5133 = vrot.lane.b32.xlu0 %v4520, 8
    %v5134 = vpop.permute.xlu0 %5133
    %5135 = vrot.lane.b32.xlu0 %v4525, 8
    %v5136 = vpop.permute.xlu0 %5135
    %5137 = vrot.lane.b32.xlu0 %v4530, 8
    %v5138 = vpop.permute.xlu0 %5137
    %5142 = vst.msk [vmem:[#allocation2] sm:$0xff] %vm2324, %v5134
    %5143 = vst.msk [vmem:[#allocation2 + $0x8] sm:$0xff] %vm2324, %v5136
    %5144 = vst.msk [vmem:[#allocation2 + $0x10] sm:$0x1] %vm2327, %v5138
    %5148 = vrot.lane.b32.xlu0 %v4619, 16
    %v5149 = vpop.permute.xlu0 %5148
    %5150 = vrot.lane.b32.xlu0 %v4624, 16
    %v5151 = vpop.permute.xlu0 %5150
    %5152 = vrot.lane.b32.xlu0 %v4629, 16
    %v5153 = vpop.permute.xlu0 %5152
    %5157 = vst.msk [vmem:[#allocation2] sm:$0xff] %vm2341, %v5149
    %5158 = vst.msk [vmem:[#allocation2 + $0x8] sm:$0xff] %vm2341, %v5151
    %5159 = vst.msk [vmem:[#allocation2 + $0x10] sm:$0x1] %vm2344, %v5153
    %5163 = vrot.lane.b32.xlu0 %v4718, 24
    %v5164 = vpop.permute.xlu0 %5163
    %5165 = vrot.lane.b32.xlu0 %v4723, 24
    %v5166 = vpop.permute.xlu0 %5165
    %5167 = vrot.lane.b32.xlu0 %v4728, 24
    %v5168 = vpop.permute.xlu0 %5167
    %5172 = vst.msk [vmem:[#allocation2] sm:$0xff] %vm2358, %v5164
    %5173 = vst.msk [vmem:[#allocation2 + $0x8] sm:$0xff] %vm2358, %v5166
    %5174 = vst.msk [vmem:[#allocation2 + $0x10] sm:$0x1] %vm2361, %v5168
    %5175 = vst.msk [vmem:[#allocation2 + $0x11] sm:$0xff] %vm446, %v4817
    %5176 = vst.msk [vmem:[#allocation2 + $0x19] sm:$0xff] %vm446, %v4822
    %5177 = vst.msk [vmem:[#allocation2 + $0x21] sm:$0x1] %vm2310, %v4827
    %5181 = vrot.lane.b32.xlu0 %v4916, 8
    %v5182 = vpop.permute.xlu0 %5181
    %5183 = vrot.lane.b32.xlu0 %v4921, 8
    %v5184 = vpop.permute.xlu0 %5183
    %5185 = vrot.lane.b32.xlu0 %v4926, 8
    %v5186 = vpop.permute.xlu0 %5185
    %5190 = vst.msk [vmem:[#allocation2 + $0x11] sm:$0xff] %vm2324, %v5182
    %5191 = vst.msk [vmem:[#allocation2 + $0x19] sm:$0xff] %vm2324, %v5184
    %5192 = vst.msk [vmem:[#allocation2 + $0x21] sm:$0x1] %vm2327, %v5186
    %5196 = vrot.lane.b32.xlu0 %v5015, 16
    %v5197 = vpop.permute.xlu0 %5196
    %5198 = vrot.lane.b32.xlu0 %v5020, 16
    %v5199 = vpop.permute.xlu0 %5198
    %5200 = vrot.lane.b32.xlu0 %v5025, 16
    %v5201 = vpop.permute.xlu0 %5200
    %5205 = vst.msk [vmem:[#allocation2 + $0x11] sm:$0xff] %vm2341, %v5197
    %5206 = vst.msk [vmem:[#allocation2 + $0x19] sm:$0xff] %vm2341, %v5199
    %5207 = vst.msk [vmem:[#allocation2 + $0x21] sm:$0x1] %vm2344, %v5201
    %5211 = vrot.lane.b32.xlu0 %v5114, 24
    %v5212 = vpop.permute.xlu0 %5211
    %5213 = vrot.lane.b32.xlu0 %v5119, 24
    %v5214 = vpop.permute.xlu0 %5213
    %5215 = vrot.lane.b32.xlu0 %v5124, 24
    %v5216 = vpop.permute.xlu0 %5215
    %5220 = vst.msk [vmem:[#allocation2 + $0x11] sm:$0xff] %vm2358, %v5212
    %5221 = vst.msk [vmem:[#allocation2 + $0x19] sm:$0xff] %vm2358, %v5214
    %5222 = vst.msk [vmem:[#allocation2 + $0x21] sm:$0x1] %vm2361, %v5216
    %v5223 = vld [vmem:[#allocation2] sm:$0xff]
    %v5224 = vld [vmem:[#allocation2 + $0x8] sm:$0xff]
    %v5225 = vld [vmem:[#allocation2 + $0x10] sm:$0xff]
    %v5226 = vld [vmem:[#allocation2 + $0x18] sm:$0xff]
    %v5227 = vld [vmem:[#allocation2 + $0x20] sm:$0x3]
    %s5228 = scalar_lea.vmem %s7, 32
    %v5229 = vld [vmem:[%s5228] sm:$0xff]
    %v5230 = vld [vmem:[%s5228 + $0x8] sm:$0xff]
    %v5231 = vld [vmem:[%s5228 + $0x10] sm:$0xff]
    %v5232 = vld [vmem:[%s5228 + $0x18] sm:$0xff]
    %v5234 = vsel %vm187, %v5223, 0
    %v5237 = vsel %vm187, %v5224, 0
    %v5240 = vsel %vm187, %v5225, 0
    %v5243 = vsel %vm187, %v5226, 0
    %v5246 = vsel %vm187, %v5227, 0
    %5248 = vmatprep.subr.mxu0 0.0
    %5249 = vmatpush1.msra.mxu0 0.0
    %5250 = vmatprep.subr.mxu0 0.0
    %5251 = vmatpush1.msra.mxu0 0.0
    %5252 = vmatprep.subr.mxu0 0.0
    %5253 = vmatpush1.msra.mxu0 0.0
    %5254 = vmatprep.subr.mxu0 0.0
    %5255 = vmatpush1.msra.mxu0 0.0
    %5256 = vmatprep.subr.mxu0 0.0
    %5257 = vmatpush1.msra.mxu0 0.0
    %5258 = vmatprep.subr.mxu0 0.0
    %5259 = vmatpush1.msra.mxu0 0.0
    %5260 = vmatprep.subr.mxu0 0.0
    %5261 = vmatpush1.msra.mxu0 0.0
    %5262 = vmatprep.subr.mxu0 0.0
    %5263 = vmatpush1.msra.mxu0 0.0
    %5264 = vmatprep.subr.mxu0 0.0
    %5265 = vmatpush1.msra.mxu0 0.0
    %5266 = vmatprep.subr.mxu0 0.0
    %5267 = vmatpush1.msra.mxu0 0.0
    %5268 = vmatprep.subr.mxu0 0.0
    %5269 = vmatpush1.msra.mxu0 0.0
    %5270 = vmatprep.subr.mxu0 0.0
    %5271 = vmatpush1.msra.mxu0 0.0
    %5272 = vmatprep.subr.mxu0 0.0
    %5273 = vmatpush1.msra.mxu0 %v5232
    %5274 = vmatprep.subr.mxu0 0.0
    %5275 = vmatpush1.msra.mxu0 %v5231
    %5276 = vmatprep.subr.mxu0 0.0
    %5277 = vmatpush1.msra.mxu0 %v5230
    %5278 = vmatprep.subr.mxu0 0.0
    %5279 = vmatpush1.msra.mxu0 %v5229
    %5280 = vmatprep.subr.mxu0 0.0
    %5281 = vmatpush2.msra.mxu0 0.0
    %5282 = vmatprep.subr.mxu0 0.0
    %5283 = vmatpush2.msra.mxu0 0.0
    %5284 = vmatprep.subr.mxu0 0.0
    %5285 = vmatpush2.msra.mxu0 0.0
    %5286 = vmatprep.subr.mxu0 0.0
    %5287 = vmatpush2.msra.mxu0 0.0
    %5288 = vmatprep.subr.mxu0 0.0
    %5289 = vmatpush2.msra.mxu0 0.0
    %5290 = vmatprep.subr.mxu0 0.0
    %5291 = vmatpush2.msra.mxu0 0.0
    %5292 = vmatprep.subr.mxu0 0.0
    %5293 = vmatpush2.msra.mxu0 0.0
    %5294 = vmatprep.subr.mxu0 0.0
    %5295 = vmatpush2.msra.mxu0 0.0
    %5296 = vmatprep.subr.mxu0 0.0
    %5297 = vmatpush2.msra.mxu0 0.0
    %5298 = vmatprep.subr.mxu0 0.0
    %5299 = vmatpush2.msra.mxu0 0.0
    %5300 = vmatprep.subr.mxu0 0.0
    %5301 = vmatpush2.msra.mxu0 0.0
    %5302 = vmatprep.subr.mxu0 0.0
    %5303 = vmatpush2.msra.mxu0 0.0
    %5304 = vmatprep.subr.mxu0 0.0
    %5305 = vmatpush2.msra.mxu0 0.0
    %5306 = vmatprep.subr.mxu0 0.0
    %5307 = vmatpush2.msra.mxu0 0.0
    %5308 = vmatprep.subr.mxu0 0.0
    %5309 = vmatpush2.msra.mxu0 0.0
    %5310 = vmatprep.subr.mxu0 0.0
    %5311 = vmatpush2.msra.mxu0 0.0
    %5312 = vmatprep.mubr.f32.mxu0 0.0
    %5313 = vmatmul.mubr.f32.gmra.mxu0 %v5234
    %v5314 = vpop.f32.mrf.mxu0
    %v5315 = vadd.f32 0.0, %v5314
    %v5316 = vpop.f32.mrf.mxu0
    %5317 = vmatprep.mubr.f32.mxu0 0.0
    %5318 = vmatmul.mubr.f32.gmra.mxu0 %v5237
    %v5319 = vpop.f32.mrf.mxu0
    %v5320 = vadd.f32 0.0, %v5319
    %v5321 = vpop.f32.mrf.mxu0
    %5322 = vmatprep.mubr.f32.mxu0 0.0
    %5323 = vmatmul.mubr.f32.gmra.mxu0 %v5240
    %v5324 = vpop.f32.mrf.mxu0
    %v5325 = vadd.f32 0.0, %v5324
    %v5326 = vpop.f32.mrf.mxu0
    %5327 = vmatprep.mubr.f32.mxu0 0.0
    %5328 = vmatmul.mubr.f32.gmra.mxu0 %v5243
    %v5329 = vpop.f32.mrf.mxu0
    %v5330 = vadd.f32 0.0, %v5329
    %v5331 = vpop.f32.mrf.mxu0
    %5332 = vmatprep.mubr.f32.mxu0 0.0
    %5333 = vmatmul.mubr.f32.gmra.mxu0 %v5246
    %v5334 = vpop.f32.mrf.mxu0
    %v5335 = vadd.f32 0.0, %v5334
    %v5336 = vpop.f32.mrf.mxu0
    %5337 = vdwg.mxu0
    %v5338 = vadd.f32 %v3003, %v5315
    %v5339 = vadd.f32 %v3004, %v5320
    %v5340 = vadd.f32 %v3005, %v5325
    %v5341 = vadd.f32 %v3006, %v5330
    %v5342 = vadd.f32 %v3007, %v5335
    %s5343 = scalar_lea.vmem %s8, 1
    %v5344 = vld [vmem:[%s5343] sm:$0x1]
    %v5346 = vlaneseq
    %v5347 = vshrl.u32 %v5346, 7
    %v5348 = vsub.s32 0, %v5347
    %v5349 = vrot.slane %v5344, %v5348
    %v5351 = vadd.f32 %v5338, %v5349
    %v5352 = vadd.f32 %v5339, %v5349
    %v5353 = vadd.f32 %v5340, %v5349
    %v5354 = vadd.f32 %v5341, %v5349
    %v5355 = vadd.f32 %v5342, %v5349
    %s5356 = scalar_lea.vmem %s9, 1
    %v5357 = vld [vmem:[%s5356] sm:$0x1]
    %s5358 = scalar_lea.vmem %s10, 1
    %v5359 = vld [vmem:[%s5358] sm:$0x1]
    %v5360 = vsel %vm187, %v5351, 0.0
    %5361 = vadd.xlane.f32.xlu0 %v5360
    %v5362 = vpop.xlane.xlu0 %5361
    %v5363 = vsel %vm187, %v5352, 0.0
    %5364 = vadd.xlane.f32.xlu0 %v5363
    %v5365 = vpop.xlane.xlu0 %5364
    %v5366 = vsel %vm187, %v5353, 0.0
    %5367 = vadd.xlane.f32.xlu0 %v5366
    %v5368 = vpop.xlane.xlu0 %5367
    %v5369 = vsel %vm187, %v5354, 0.0
    %5370 = vadd.xlane.f32.xlu0 %v5369
    %v5371 = vpop.xlane.xlu0 %5370
    %v5372 = vsel %vm200, %v5355, 0.0
    %5373 = vadd.xlane.f32.xlu0 %v5372
    %v5374 = vpop.xlane.xlu0 %5373
    %v5375 = vmul.f32 %v5362, %v204
    %v5376 = vmul.f32 %v5365, %v204
    %v5377 = vmul.f32 %v5368, %v204
    %v5378 = vmul.f32 %v5371, %v204
    %v5379 = vmul.f32 %v5374, %v204
    %v5380 = vsub.f32 %v5351, %v5375
    %v5381 = vsub.f32 %v5352, %v5376
    %v5382 = vsub.f32 %v5353, %v5377
    %v5383 = vsub.f32 %v5354, %v5378
    %v5384 = vsub.f32 %v5355, %v5379
    %v5385 = vmul.f32 %v5380, %v5380
    %v5386 = vmul.f32 %v5381, %v5381
    %v5387 = vmul.f32 %v5382, %v5382
    %v5388 = vmul.f32 %v5383, %v5383
    %v5389 = vmul.f32 %v5384, %v5384
    %v5390 = vsel %vm187, %v5385, 0.0
    %5391 = vadd.xlane.f32.xlu0 %v5390
    %v5392 = vpop.xlane.xlu0 %5391
    %v5393 = vsel %vm187, %v5386, 0.0
    %5394 = vadd.xlane.f32.xlu0 %v5393
    %v5395 = vpop.xlane.xlu0 %5394
    %v5396 = vsel %vm187, %v5387, 0.0
    %5397 = vadd.xlane.f32.xlu0 %v5396
    %v5398 = vpop.xlane.xlu0 %5397
    %v5399 = vsel %vm187, %v5388, 0.0
    %5400 = vadd.xlane.f32.xlu0 %v5399
    %v5401 = vpop.xlane.xlu0 %5400
    %v5402 = vsel %vm200, %v5389, 0.0
    %5403 = vadd.xlane.f32.xlu0 %v5402
    %v5404 = vpop.xlane.xlu0 %5403
    %v5405 = vmul.f32 %v5392, %v204
    %v5406 = vmul.f32 %v5395, %v204
    %v5407 = vmul.f32 %v5398, %v204
    %v5408 = vmul.f32 %v5401, %v204
    %v5409 = vmul.f32 %v5404, %v204
    %v5410 = vadd.f32 %v5405, 1e-05
    %v5411 = vadd.f32 %v5406, 1e-05
    %v5412 = vadd.f32 %v5407, 1e-05
    %v5413 = vadd.f32 %v5408, 1e-05
    %v5414 = vadd.f32 %v5409, 1e-05
    %v5415 = vrsqrt.pop %v5410
    %v5416 = vrsqrt.pop %v5411
    %v5417 = vrsqrt.pop %v5412
    %v5418 = vrsqrt.pop %v5413
    %v5419 = vrsqrt.pop %v5414
    %v5420 = vmul.f32 %v5380, %v5415
    %v5421 = vmul.f32 %v5381, %v5416
    %v5422 = vmul.f32 %v5382, %v5417
    %v5423 = vmul.f32 %v5383, %v5418
    %v5424 = vmul.f32 %v5384, %v5419
    %v5426 = vlaneseq
    %v5427 = vshrl.u32 %v5426, 7
    %v5428 = vsub.s32 0, %v5427
    %v5429 = vrot.slane %v5357, %v5428
    %v5431 = vmul.f32 %v5420, %v5429
    %v5432 = vmul.f32 %v5421, %v5429
    %v5433 = vmul.f32 %v5422, %v5429
    %v5434 = vmul.f32 %v5423, %v5429
    %v5435 = vmul.f32 %v5424, %v5429
    %v5437 = vlaneseq
    %v5438 = vshrl.u32 %v5437, 7
    %v5439 = vsub.s32 0, %v5438
    %v5440 = vrot.slane %v5359, %v5439
    %v5442 = vadd.f32 %v5431, %v5440
    %v5443 = vadd.f32 %v5432, %v5440
    %v5444 = vadd.f32 %v5433, %v5440
    %v5445 = vadd.f32 %v5434, %v5440
    %v5446 = vadd.f32 %v5435, %v5440
    %s5447 = scalar_lea.vmem %s11, 32
    %v5448 = vld [vmem:[%s5447] sm:$0xff]
    %v5449 = vld [vmem:[%s5447 + $0x8] sm:$0xff]
    %v5450 = vld [vmem:[%s5447 + $0x10] sm:$0xff]
    %v5451 = vld [vmem:[%s5447 + $0x18] sm:$0xff]
    %s5452 = scalar_lea.vmem %s12, 1
    %v5453 = vld [vmem:[%s5452] sm:$0x1]
    %v5455 = vlaneseq
    %v5456 = vshrl.u32 %v5455, 7
    %v5457 = vsub.s32 0, %v5456
    %v5458 = vrot.slane %v5453, %v5457
    %v5461 = vsel %vm187, %v5442, 0
    %v5464 = vsel %vm187, %v5443, 0
    %v5467 = vsel %vm187, %v5444, 0
    %v5470 = vsel %vm187, %v5445, 0
    %v5473 = vsel %vm187, %v5446, 0
    %5475 = vmatprep.subr.mxu0 0.0
    %5476 = vmatpush1.msra.mxu0 0.0
    %5477 = vmatprep.subr.mxu0 0.0
    %5478 = vmatpush1.msra.mxu0 0.0
    %5479 = vmatprep.subr.mxu0 0.0
    %5480 = vmatpush1.msra.mxu0 0.0
    %5481 = vmatprep.subr.mxu0 0.0
    %5482 = vmatpush1.msra.mxu0 0.0
    %5483 = vmatprep.subr.mxu0 0.0
    %5484 = vmatpush1.msra.mxu0 0.0
    %5485 = vmatprep.subr.mxu0 0.0
    %5486 = vmatpush1.msra.mxu0 0.0
    %5487 = vmatprep.subr.mxu0 0.0
    %5488 = vmatpush1.msra.mxu0 0.0
    %5489 = vmatprep.subr.mxu0 0.0
    %5490 = vmatpush1.msra.mxu0 0.0
    %5491 = vmatprep.subr.mxu0 0.0
    %5492 = vmatpush1.msra.mxu0 0.0
    %5493 = vmatprep.subr.mxu0 0.0
    %5494 = vmatpush1.msra.mxu0 0.0
    %5495 = vmatprep.subr.mxu0 0.0
    %5496 = vmatpush1.msra.mxu0 0.0
    %5497 = vmatprep.subr.mxu0 0.0
    %5498 = vmatpush1.msra.mxu0 0.0
    %5499 = vmatprep.subr.mxu0 0.0
    %5500 = vmatpush1.msra.mxu0 %v5451
    %5501 = vmatprep.subr.mxu0 0.0
    %5502 = vmatpush1.msra.mxu0 %v5450
    %5503 = vmatprep.subr.mxu0 0.0
    %5504 = vmatpush1.msra.mxu0 %v5449
    %5505 = vmatprep.subr.mxu0 0.0
    %5506 = vmatpush1.msra.mxu0 %v5448
    %5507 = vmatprep.subr.mxu0 0.0
    %5508 = vmatpush2.msra.mxu0 0.0
    %5509 = vmatprep.subr.mxu0 0.0
    %5510 = vmatpush2.msra.mxu0 0.0
    %5511 = vmatprep.subr.mxu0 0.0
    %5512 = vmatpush2.msra.mxu0 0.0
    %5513 = vmatprep.subr.mxu0 0.0
    %5514 = vmatpush2.msra.mxu0 0.0
    %5515 = vmatprep.subr.mxu0 0.0
    %5516 = vmatpush2.msra.mxu0 0.0
    %5517 = vmatprep.subr.mxu0 0.0
    %5518 = vmatpush2.msra.mxu0 0.0
    %5519 = vmatprep.subr.mxu0 0.0
    %5520 = vmatpush2.msra.mxu0 0.0
    %5521 = vmatprep.subr.mxu0 0.0
    %5522 = vmatpush2.msra.mxu0 0.0
    %5523 = vmatprep.subr.mxu0 0.0
    %5524 = vmatpush2.msra.mxu0 0.0
    %5525 = vmatprep.subr.mxu0 0.0
    %5526 = vmatpush2.msra.mxu0 0.0
    %5527 = vmatprep.subr.mxu0 0.0
    %5528 = vmatpush2.msra.mxu0 0.0
    %5529 = vmatprep.subr.mxu0 0.0
    %5530 = vmatpush2.msra.mxu0 0.0
    %5531 = vmatprep.subr.mxu0 0.0
    %5532 = vmatpush2.msra.mxu0 0.0
    %5533 = vmatprep.subr.mxu0 0.0
    %5534 = vmatpush2.msra.mxu0 0.0
    %5535 = vmatprep.subr.mxu0 0.0
    %5536 = vmatpush2.msra.mxu0 0.0
    %5537 = vmatprep.subr.mxu0 0.0
    %5538 = vmatpush2.msra.mxu0 0.0
    %5539 = vmatprep.mubr.f32.mxu0 0.0
    %5540 = vmatmul.mubr.f32.gmra.mxu0 %v5461
    %v5541 = vpop.f32.mrf.mxu0
    %v5542 = vadd.f32 %v5458, %v5541
    %v5543 = vpop.f32.mrf.mxu0
    %5544 = vmatprep.mubr.f32.mxu0 0.0
    %5545 = vmatmul.mubr.f32.gmra.mxu0 %v5464
    %v5546 = vpop.f32.mrf.mxu0
    %v5547 = vadd.f32 %v5458, %v5546
    %v5548 = vpop.f32.mrf.mxu0
    %5549 = vmatprep.mubr.f32.mxu0 0.0
    %5550 = vmatmul.mubr.f32.gmra.mxu0 %v5467
    %v5551 = vpop.f32.mrf.mxu0
    %v5552 = vadd.f32 %v5458, %v5551
    %v5553 = vpop.f32.mrf.mxu0
    %5554 = vmatprep.mubr.f32.mxu0 0.0
    %5555 = vmatmul.mubr.f32.gmra.mxu0 %v5470
    %v5556 = vpop.f32.mrf.mxu0
    %v5557 = vadd.f32 %v5458, %v5556
    %v5558 = vpop.f32.mrf.mxu0
    %5559 = vmatprep.mubr.f32.mxu0 0.0
    %5560 = vmatmul.mubr.f32.gmra.mxu0 %v5473
    %v5561 = vpop.f32.mrf.mxu0
    %v5562 = vadd.f32 %v5458, %v5561
    %v5563 = vpop.f32.mrf.mxu0
    %5564 = vdwg.mxu0
    %v5565 = vmul.f32 %v5542, 0.5
    %v5566 = vmul.f32 %v5547, 0.5
    %v5567 = vmul.f32 %v5552, 0.5
    %v5568 = vmul.f32 %v5557, 0.5
    %v5569 = vmul.f32 %v5562, 0.5
    %v5570 = vmul.f32 %v5542, 0.70710677
    %v5571 = vmul.f32 %v5547, 0.70710677
    %v5572 = vmul.f32 %v5552, 0.70710677
    %v5573 = vmul.f32 %v5557, 0.70710677
    %v5574 = vmul.f32 %v5562, 0.70710677
    %v5575 = vand.u32 2147483647, %v5570
    %v5576 = vand.u32 2147483647, %v5571
    %v5577 = vand.u32 2147483647, %v5572
    %v5578 = vand.u32 2147483647, %v5573
    %v5579 = vand.u32 2147483647, %v5574
    %v5580 = vmul.f32 %v5575, 0.3275911
    %v5581 = vmul.f32 %v5576, 0.3275911
    %v5582 = vmul.f32 %v5577, 0.3275911
    %v5583 = vmul.f32 %v5578, 0.3275911
    %v5584 = vmul.f32 %v5579, 0.3275911
    %v5585 = vadd.f32 %v5580, 1.0
    %v5586 = vadd.f32 %v5581, 1.0
    %v5587 = vadd.f32 %v5582, 1.0
    %v5588 = vadd.f32 %v5583, 1.0
    %v5589 = vadd.f32 %v5584, 1.0
    %v5590 = vrcp.pop %v5585
    %v5591 = vrcp.pop %v5586
    %v5592 = vrcp.pop %v5587
    %v5593 = vrcp.pop %v5588
    %v5594 = vrcp.pop %v5589
    %v5595 = vmul.f32 %v5590, 1.0614054
    %v5596 = vmul.f32 %v5591, 1.0614054
    %v5597 = vmul.f32 %v5592, 1.0614054
    %v5598 = vmul.f32 %v5593, 1.0614054
    %v5599 = vmul.f32 %v5594, 1.0614054
    %v5600 = vadd.f32 %v5595, -1.4531521
    %v5601 = vadd.f32 %v5596, -1.4531521
    %v5602 = vadd.f32 %v5597, -1.4531521
    %v5603 = vadd.f32 %v5598, -1.4531521
    %v5604 = vadd.f32 %v5599, -1.4531521
    %v5605 = vmul.f32 %v5600, %v5590
    %v5606 = vmul.f32 %v5601, %v5591
    %v5607 = vmul.f32 %v5602, %v5592
    %v5608 = vmul.f32 %v5603, %v5593
    %v5609 = vmul.f32 %v5604, %v5594
    %v5610 = vadd.f32 %v5605, 1.4214138
    %v5611 = vadd.f32 %v5606, 1.4214138
    %v5612 = vadd.f32 %v5607, 1.4214138
    %v5613 = vadd.f32 %v5608, 1.4214138
    %v5614 = vadd.f32 %v5609, 1.4214138
    %v5615 = vmul.f32 %v5610, %v5590
    %v5616 = vmul.f32 %v5611, %v5591
    %v5617 = vmul.f32 %v5612, %v5592
    %v5618 = vmul.f32 %v5613, %v5593
    %v5619 = vmul.f32 %v5614, %v5594
    %v5620 = vadd.f32 %v5615, -0.28449672
    %v5621 = vadd.f32 %v5616, -0.28449672
    %v5622 = vadd.f32 %v5617, -0.28449672
    %v5623 = vadd.f32 %v5618, -0.28449672
    %v5624 = vadd.f32 %v5619, -0.28449672
    %v5625 = vmul.f32 %v5620, %v5590
    %v5626 = vmul.f32 %v5621, %v5591
    %v5627 = vmul.f32 %v5622, %v5592
    %v5628 = vmul.f32 %v5623, %v5593
    %v5629 = vmul.f32 %v5624, %v5594
    %v5630 = vadd.f32 %v5625, 0.2548296
    %v5631 = vadd.f32 %v5626, 0.2548296
    %v5632 = vadd.f32 %v5627, 0.2548296
    %v5633 = vadd.f32 %v5628, 0.2548296
    %v5634 = vadd.f32 %v5629, 0.2548296
    %v5635 = vmul.f32 %v5630, %v5590
    %v5636 = vmul.f32 %v5631, %v5591
    %v5637 = vmul.f32 %v5632, %v5592
    %v5638 = vmul.f32 %v5633, %v5593
    %v5639 = vmul.f32 %v5634, %v5594
    %v5640 = vsub.f32 0.0, %v5575
    %v5641 = vsub.f32 0.0, %v5576
    %v5642 = vsub.f32 0.0, %v5577
    %v5643 = vsub.f32 0.0, %v5578
    %v5644 = vsub.f32 0.0, %v5579
    %v5645 = vmul.f32 %v5640, %v5575
    %v5646 = vmul.f32 %v5641, %v5576
    %v5647 = vmul.f32 %v5642, %v5577
    %v5648 = vmul.f32 %v5643, %v5578
    %v5649 = vmul.f32 %v5644, %v5579
    %v5650 = vmul.f32 %v5645, 1.442695
    %v5651 = vpow.pop %v5650
    %v5652 = vmul.f32 %v5646, 1.442695
    %v5653 = vpow.pop %v5652
    %v5654 = vmul.f32 %v5647, 1.442695
    %v5655 = vpow.pop %v5654
    %v5656 = vmul.f32 %v5648, 1.442695
    %v5657 = vpow.pop %v5656
    %v5658 = vmul.f32 %v5649, 1.442695
    %v5659 = vpow.pop %v5658
    %v5660 = vmul.f32 %v5635, %v5651
    %v5661 = vmul.f32 %v5636, %v5653
    %v5662 = vmul.f32 %v5637, %v5655
    %v5663 = vmul.f32 %v5638, %v5657
    %v5664 = vmul.f32 %v5639, %v5659
    %v5665 = vsub.f32 1.0, %v5660
    %v5666 = vsub.f32 1.0, %v5661
    %v5667 = vsub.f32 1.0, %v5662
    %v5668 = vsub.f32 1.0, %v5663
    %v5669 = vsub.f32 1.0, %v5664
    %vm5670 = vcmp.ge.f32.partialorder %v5570, 0.0
    %vm5671 = vcmp.ge.f32.partialorder %v5571, 0.0
    %vm5672 = vcmp.ge.f32.partialorder %v5572, 0.0
    %vm5673 = vcmp.ge.f32.partialorder %v5573, 0.0
    %vm5674 = vcmp.ge.f32.partialorder %v5574, 0.0
    %v5675 = vsub.f32 0.0, %v5665
    %v5676 = vsub.f32 0.0, %v5666
    %v5677 = vsub.f32 0.0, %v5667
    %v5678 = vsub.f32 0.0, %v5668
    %v5679 = vsub.f32 0.0, %v5669
    %v5680 = vsel %vm5670, %v5665, %v5675
    %v5681 = vsel %vm5671, %v5666, %v5676
    %v5682 = vsel %vm5672, %v5667, %v5677
    %v5683 = vsel %vm5673, %v5668, %v5678
    %v5684 = vsel %vm5674, %v5669, %v5679
    %v5685 = vadd.f32 %v5680, 1.0
    %v5686 = vadd.f32 %v5681, 1.0
    %v5687 = vadd.f32 %v5682, 1.0
    %v5688 = vadd.f32 %v5683, 1.0
    %v5689 = vadd.f32 %v5684, 1.0
    %v5690 = vmul.f32 %v5565, %v5685
    %v5691 = vmul.f32 %v5566, %v5686
    %v5692 = vmul.f32 %v5567, %v5687
    %v5693 = vmul.f32 %v5568, %v5688
    %v5694 = vmul.f32 %v5569, %v5689
    %s5695 = scalar_lea.vmem %s13, 64
    %v5696 = vld [vmem:[%s5695] sm:$0xff]
    %v5697 = vld [vmem:[%s5695 + $0x8] sm:$0xff]
    %v5698 = vld [vmem:[%s5695 + $0x10] sm:$0xff]
    %v5699 = vld [vmem:[%s5695 + $0x18] sm:$0xff]
    %v5700 = vld [vmem:[%s5695 + $0x20] sm:$0xff]
    %v5701 = vld [vmem:[%s5695 + $0x28] sm:$0xff]
    %v5702 = vld [vmem:[%s5695 + $0x30] sm:$0xff]
    %v5703 = vld [vmem:[%s5695 + $0x38] sm:$0xff]
    %v5705 = vsel %vm2885, %v5690, 0
    %v5708 = vsel %vm2885, %v5691, 0
    %v5711 = vsel %vm2885, %v5692, 0
    %v5714 = vsel %vm2885, %v5693, 0
    %v5717 = vsel %vm2885, %v5694, 0
    %5719 = vmatprep.subr.mxu0 0.0
    %5720 = vmatpush1.msra.mxu0 0.0
    %5721 = vmatprep.subr.mxu0 0.0
    %5722 = vmatpush1.msra.mxu0 0.0
    %5723 = vmatprep.subr.mxu0 0.0
    %5724 = vmatpush1.msra.mxu0 0.0
    %5725 = vmatprep.subr.mxu0 0.0
    %5726 = vmatpush1.msra.mxu0 0.0
    %5727 = vmatprep.subr.mxu0 0.0
    %5728 = vmatpush1.msra.mxu0 0.0
    %5729 = vmatprep.subr.mxu0 0.0
    %5730 = vmatpush1.msra.mxu0 0.0
    %5731 = vmatprep.subr.mxu0 0.0
    %5732 = vmatpush1.msra.mxu0 0.0
    %5733 = vmatprep.subr.mxu0 0.0
    %5734 = vmatpush1.msra.mxu0 0.0
    %5735 = vmatprep.subr.mxu0 0.0
    %5736 = vmatpush1.msra.mxu0 %v5703
    %5737 = vmatprep.subr.mxu0 0.0
    %5738 = vmatpush1.msra.mxu0 %v5702
    %5739 = vmatprep.subr.mxu0 0.0
    %5740 = vmatpush1.msra.mxu0 %v5701
    %5741 = vmatprep.subr.mxu0 0.0
    %5742 = vmatpush1.msra.mxu0 %v5700
    %5743 = vmatprep.subr.mxu0 0.0
    %5744 = vmatpush1.msra.mxu0 %v5699
    %5745 = vmatprep.subr.mxu0 0.0
    %5746 = vmatpush1.msra.mxu0 %v5698
    %5747 = vmatprep.subr.mxu0 0.0
    %5748 = vmatpush1.msra.mxu0 %v5697
    %5749 = vmatprep.subr.mxu0 0.0
    %5750 = vmatpush1.msra.mxu0 %v5696
    %5751 = vmatprep.subr.mxu0 0.0
    %5752 = vmatpush2.msra.mxu0 0.0
    %5753 = vmatprep.subr.mxu0 0.0
    %5754 = vmatpush2.msra.mxu0 0.0
    %5755 = vmatprep.subr.mxu0 0.0
    %5756 = vmatpush2.msra.mxu0 0.0
    %5757 = vmatprep.subr.mxu0 0.0
    %5758 = vmatpush2.msra.mxu0 0.0
    %5759 = vmatprep.subr.mxu0 0.0
    %5760 = vmatpush2.msra.mxu0 0.0
    %5761 = vmatprep.subr.mxu0 0.0
    %5762 = vmatpush2.msra.mxu0 0.0
    %5763 = vmatprep.subr.mxu0 0.0
    %5764 = vmatpush2.msra.mxu0 0.0
    %5765 = vmatprep.subr.mxu0 0.0
    %5766 = vmatpush2.msra.mxu0 0.0
    %5767 = vmatprep.subr.mxu0 0.0
    %5768 = vmatpush2.msra.mxu0 0.0
    %5769 = vmatprep.subr.mxu0 0.0
    %5770 = vmatpush2.msra.mxu0 0.0
    %5771 = vmatprep.subr.mxu0 0.0
    %5772 = vmatpush2.msra.mxu0 0.0
    %5773 = vmatprep.subr.mxu0 0.0
    %5774 = vmatpush2.msra.mxu0 0.0
    %5775 = vmatprep.subr.mxu0 0.0
    %5776 = vmatpush2.msra.mxu0 0.0
    %5777 = vmatprep.subr.mxu0 0.0
    %5778 = vmatpush2.msra.mxu0 0.0
    %5779 = vmatprep.subr.mxu0 0.0
    %5780 = vmatpush2.msra.mxu0 0.0
    %5781 = vmatprep.subr.mxu0 0.0
    %5782 = vmatpush2.msra.mxu0 0.0
    %5783 = vmatprep.mubr.f32.mxu0 0.0
    %5784 = vmatmul.mubr.f32.gmra.mxu0 %v5705
    %v5785 = vpop.f32.mrf.mxu0
    %v5786 = vadd.f32 0.0, %v5785
    %v5787 = vpop.f32.mrf.mxu0
    %5788 = vmatprep.mubr.f32.mxu0 0.0
    %5789 = vmatmul.mubr.f32.gmra.mxu0 %v5708
    %v5790 = vpop.f32.mrf.mxu0
    %v5791 = vpop.f32.mrf.mxu0
    %5792 = vmatprep.mubr.f32.mxu0 0.0
    %5793 = vmatmul.mubr.f32.gmra.mxu0 %v5711
    %v5794 = vpop.f32.mrf.mxu0
    %v5795 = vadd.f32 0.0, %v5794
    %v5796 = vpop.f32.mrf.mxu0
    %5797 = vmatprep.mubr.f32.mxu0 0.0
    %5798 = vmatmul.mubr.f32.gmra.mxu0 %v5714
    %v5799 = vpop.f32.mrf.mxu0
    %v5800 = vpop.f32.mrf.mxu0
    %5801 = vmatprep.mubr.f32.mxu0 0.0
    %5802 = vmatmul.mubr.f32.gmra.mxu0 %v5717
    %v5803 = vpop.f32.mrf.mxu0
    %v5804 = vpop.f32.mrf.mxu0
    %5805 = vdwg.mxu0
    %v5806 = vadd.f32 %v5351, %v5786
    %v5807 = vadd.f32 %v5353, %v5795
    %s5808 = scalar_lea.vmem %s14, 1
    %v5809 = vld [vmem:[%s5808] sm:$0x1]
    %v5811 = vlaneseq
    %v5812 = vshrl.u32 %v5811, 7
    %v5813 = vsub.s32 0, %v5812
    %v5814 = vrot.slane %v5809, %v5813
    %v5816 = vadd.f32 %v5806, %v5814
    %v5817 = vadd.f32 %v5807, %v5814
    %v5818 = vsel %vm1532, %v5816, %v5817
    %v5819 = vld [vmem:[%s15] sm:$0x1]
    %v5820 = vld [vmem:[%s16] sm:$0x1]
    %v5821 = vsel %vm200, %v5818, 0.0
    %5822 = vadd.xlane.f32.xlu0 %v5821
    %v5823 = vpop.xlane.xlu0 %5822
    %v5824 = vmul.f32 %v5823, %v204
    %v5825 = vsub.f32 %v5818, %v5824
    %v5826 = vmul.f32 %v5825, %v5825
    %v5827 = vsel %vm200, %v5826, 0.0
    %5828 = vadd.xlane.f32.xlu0 %v5827
    %v5829 = vpop.xlane.xlu0 %5828
    %v5830 = vmul.f32 %v5829, %v204
    %v5831 = vadd.f32 %v5830, 1e-05
    %v5832 = vrsqrt.pop %v5831
    %v5833 = vmul.f32 %v5825, %v5832
    %v5835 = vlaneseq
    %v5836 = vshrl.u32 %v5835, 7
    %v5837 = vsub.s32 0, %v5836
    %v5838 = vrot.slane %v5819, %v5837
    %v5840 = vmul.f32 %v5833, %v5838
    %v5842 = vlaneseq
    %v5843 = vshrl.u32 %v5842, 7
    %v5844 = vsub.s32 0, %v5843
    %v5845 = vrot.slane %v5820, %v5844
    %v5847 = vadd.f32 %v5840, %v5845
    %v5848 = vld [vmem:[%s17] sm:$0xff]
    %v5849 = vld [vmem:[%s17 + $0x8] sm:$0xff]
    %v5850 = vld [vmem:[%s17 + $0x10] sm:$0xff]
    %v5851 = vld [vmem:[%s17 + $0x18] sm:$0xff]
    %v5852 = vld [vmem:[%s18] sm:$0x1]
    %v5854 = vlaneseq
    %v5855 = vshrl.u32 %v5854, 7
    %v5856 = vsub.s32 0, %v5855
    %v5857 = vrot.slane %v5852, %v5856
    %v5860 = vsel %vm187, %v5847, 0
    %5862 = vmatprep.subr.mxu0 0.0
    %5863 = vmatpush1.msra.mxu0 0.0
    %5864 = vmatprep.subr.mxu0 0.0
    %5865 = vmatpush1.msra.mxu0 0.0
    %5866 = vmatprep.subr.mxu0 0.0
    %5867 = vmatpush1.msra.mxu0 0.0
    %5868 = vmatprep.subr.mxu0 0.0
    %5869 = vmatpush1.msra.mxu0 0.0
    %5870 = vmatprep.subr.mxu0 0.0
    %5871 = vmatpush1.msra.mxu0 0.0
    %5872 = vmatprep.subr.mxu0 0.0
    %5873 = vmatpush1.msra.mxu0 0.0
    %5874 = vmatprep.subr.mxu0 0.0
    %5875 = vmatpush1.msra.mxu0 0.0
    %5876 = vmatprep.subr.mxu0 0.0
    %5877 = vmatpush1.msra.mxu0 0.0
    %5878 = vmatprep.subr.mxu0 0.0
    %5879 = vmatpush1.msra.mxu0 0.0
    %5880 = vmatprep.subr.mxu0 0.0
    %5881 = vmatpush1.msra.mxu0 0.0
    %5882 = vmatprep.subr.mxu0 0.0
    %5883 = vmatpush1.msra.mxu0 0.0
    %5884 = vmatprep.subr.mxu0 0.0
    %5885 = vmatpush1.msra.mxu0 0.0
    %5886 = vmatprep.subr.mxu0 0.0
    %5887 = vmatpush1.msra.mxu0 %v5851
    %5888 = vmatprep.subr.mxu0 0.0
    %5889 = vmatpush1.msra.mxu0 %v5850
    %5890 = vmatprep.subr.mxu0 0.0
    %5891 = vmatpush1.msra.mxu0 %v5849
    %5892 = vmatprep.subr.mxu0 0.0
    %5893 = vmatpush1.msra.mxu0 %v5848
    %5894 = vmatprep.subr.mxu0 0.0
    %5895 = vmatpush2.msra.mxu0 0.0
    %5896 = vmatprep.subr.mxu0 0.0
    %5897 = vmatpush2.msra.mxu0 0.0
    %5898 = vmatprep.subr.mxu0 0.0
    %5899 = vmatpush2.msra.mxu0 0.0
    %5900 = vmatprep.subr.mxu0 0.0
    %5901 = vmatpush2.msra.mxu0 0.0
    %5902 = vmatprep.subr.mxu0 0.0
    %5903 = vmatpush2.msra.mxu0 0.0
    %5904 = vmatprep.subr.mxu0 0.0
    %5905 = vmatpush2.msra.mxu0 0.0
    %5906 = vmatprep.subr.mxu0 0.0
    %5907 = vmatpush2.msra.mxu0 0.0
    %5908 = vmatprep.subr.mxu0 0.0
    %5909 = vmatpush2.msra.mxu0 0.0
    %5910 = vmatprep.subr.mxu0 0.0
    %5911 = vmatpush2.msra.mxu0 0.0
    %5912 = vmatprep.subr.mxu0 0.0
    %5913 = vmatpush2.msra.mxu0 0.0
    %5914 = vmatprep.subr.mxu0 0.0
    %5915 = vmatpush2.msra.mxu0 0.0
    %5916 = vmatprep.subr.mxu0 0.0
    %5917 = vmatpush2.msra.mxu0 0.0
    %5918 = vmatprep.subr.mxu0 0.0
    %5919 = vmatpush2.msra.mxu0 0.0
    %5920 = vmatprep.subr.mxu0 0.0
    %5921 = vmatpush2.msra.mxu0 0.0
    %5922 = vmatprep.subr.mxu0 0.0
    %5923 = vmatpush2.msra.mxu0 0.0
    %5924 = vmatprep.subr.mxu0 0.0
    %5925 = vmatpush2.msra.mxu0 0.0
    %5926 = vmatprep.mubr.f32.mxu0 0.0
    %5927 = vmatmul.mubr.f32.gmra.mxu0 %v5860
    %v5928 = vpop.f32.mrf.mxu0
    %v5929 = vadd.f32 %v5857, %v5928
    %v5930 = vpop.f32.mrf.mxu0
    %5931 = vdwg.mxu0
    %vm5932 = vcmask 58368
    %5933 = vst.msk [vmem:[#allocation3] sm:$0x3] %vm5932, %v5929
    // Predicated region
    $region78: #{backbone_forward.1} parent=1 // pred_check
      _
    $region79: #{backbone_forward.1} parent=1 // pred_check_branch
      %5935 = sbr.rel (0) target = $region81
    $region80: #{backbone_forward.1} parent=1 // pred_region
      %s5937 = ssub.s32 32, 32
      %5938 = vsyncadd [#allocation4], %s5937
      %s5940 = sshll.u32 [#allocation3], 4
      %s5941 = int_to_ptr.vmem [resolvable:$true] %s5940
      %5943 = dma.vmem_to_hbm [thread:$0]  %s5941, 32, %s19, [#allocation4]
    $region81: #{backbone_forward.1} parent=1 // pred_fallthru
      _
    // Predicated region
    $region82: #{backbone_forward.1} parent=1 // pred_check
      _
    $region83: #{backbone_forward.1} parent=1 // pred_check_branch
      %5945 = sbr.rel (0) target = $region85
    $region84: #{backbone_forward.1} parent=1 // pred_region
      %5946 = dma.done [#allocation4], 32
    $region85: #{backbone_forward.1} parent=1 // pred_fallthru
      _
    %5947 = vsyncpa [#allocation4], 1

</llo_original>
